<compile_context>
chip_gen: v7x
topology: tpu7x:2x2x1
jax: 0.10.0
libtpu: 0.0.40
codegen_flags: <defaults>
</compile_context>

<pallas_src>
import functools

import jax
import jax.numpy as jnp
from jax.experimental import pallas as pl
from jax.experimental.pallas import tpu as pltpu


def _round_up(x, m):
    return ((x + m - 1) // m) * m


# ----------------------------------------------------------------------------
# Pallas kernel: one grid step = one component.  Full multi-layer LSTM over all
# T time steps (statically unrolled) + fused Linear + activation.
# ----------------------------------------------------------------------------
def _multi_lstm_fc_kernel(act_ref, x_ref, w_ih0_ref, w_hh0_ref, w_cat_ref,
                          b_ref, w_fc_ref, b_fc_ref, out_ref,
                          *, num_layers, h_pad, batch, seq_len):
    L, HP, B, T = num_layers, h_pad, batch, seq_len
    GP = 4 * HP
    f32 = jnp.float32
    bf16 = jnp.bfloat16

    comp = pl.program_id(0)
    b_all = b_ref[0]                                    # (L, GP) f32

    # Hoisted layer-0 input projection for all time steps, layer-0 bias folded in:
    # one (T*B, Din) x (Din, 4H) matmul instead of T serial ones.
    xw = jnp.dot(x_ref[0], w_ih0_ref[0], preferred_element_type=f32)
    xw = xw + b_all[0][None, :]                         # (T*B, GP)

    # Recurrent weights (bf16, MXU native), loaded once.
    w_hh0 = w_hh0_ref[0]                                # (HP, GP)
    w_cat = [w_cat_ref[0, l] for l in range(L - 1)]     # each (2HP, GP)
    # Hoisted bias broadcasts for layers >= 1 (broadcast_in_dim is not CSE'd).
    b_rest = [jnp.broadcast_to(b_all[l], (B, GP)) for l in range(1, L)]

    def cell(gates, c_old):
        i = jax.nn.sigmoid(gates[:, 0 * HP:1 * HP])
        f = jax.nn.sigmoid(gates[:, 1 * HP:2 * HP])
        g = jnp.tanh(gates[:, 2 * HP:3 * HP])
        o = jax.nn.sigmoid(gates[:, 3 * HP:4 * HP])
        c_new = f * c_old + i * g
        return o * jnp.tanh(c_new), c_new

    hs = [jnp.zeros((B, HP), f32) for _ in range(L)]
    cs = [jnp.zeros((B, HP), f32) for _ in range(L)]
    y_steps = []
    for t in range(T):                                  # static unroll (T small, fixed)
        # layer 0: only the recurrent matmul remains on the serial path.
        g0 = xw[t * B:(t + 1) * B, :] + jnp.dot(
            hs[0].astype(bf16), w_hh0, preferred_element_type=f32)
        hs[0], cs[0] = cell(g0, cs[0])
        # layers 1..L-1: one fused [h_{l-1}^t ; h_l^{t-1}] @ [W_ih ; W_hh] matmul.
        for l in range(1, L):
            xin = jnp.concatenate([hs[l - 1], hs[l]], axis=1).astype(bf16)
            g = jnp.dot(xin, w_cat[l - 1],
                        preferred_element_type=f32) + b_rest[l - 1]
            hs[l], cs[l] = cell(g, cs[l])
        y_steps.append(hs[L - 1])

    # FC head off the recurrent path: one matmul over all T*B rows, then one
    # lane-dense (DOUT_PAD multiple of 128) store of the whole output block.
    h_seq = jnp.concatenate(y_steps, axis=0)            # (T*B, HP) f32
    y = jnp.dot(h_seq, w_fc_ref[0], preferred_element_type=f32) + b_fc_ref[0]
    act = act_ref[comp]                                 # 0 = relu, 1 = sigmoid
    y = jnp.where(act == 1, jax.nn.sigmoid(y), jnp.maximum(y, 0.0))
    out_ref[0] = y


# ----------------------------------------------------------------------------
# Parameter packing: pad H -> HP (4HP multiple of 128), pad Din / Dout,
# fuse [W_ih ; W_hh] for layers >= 1, cast recurrent weights to bf16.
# ----------------------------------------------------------------------------
def pack_params(raw, din_pad, h_pad, dout_pad):
    w_ih0, w_ihr, w_hh, b, w_fc, b_fc = raw
    L, H4 = b.shape
    H = H4 // 4
    HP = h_pad

    def pad_gate_cols(w):  # (..., 4H) -> (..., 4HP), each gate block at k*HP
        parts = []
        for k in range(4):
            blk = w[..., k * H:(k + 1) * H]
            blk = jnp.pad(blk, [(0, 0)] * (w.ndim - 1) + [(0, HP - H)])
            parts.append(blk)
        return jnp.concatenate(parts, axis=-1)

    # layer-0 input weight (kept f32: used once, off the serial path)
    w0 = pad_gate_cols(w_ih0)
    w0 = jnp.pad(w0, [(0, din_pad - w_ih0.shape[0]), (0, 0)]).astype(jnp.float32)
    # layer-0 recurrent weight (bf16, on the serial path)
    wh0 = pad_gate_cols(w_hh[0])
    wh0 = jnp.pad(wh0, [(0, HP - H), (0, 0)]).astype(jnp.bfloat16)
    # layers 1..L-1: fused [W_ih ; W_hh]  ->  (2HP, 4HP), bf16
    cats = []
    for l in range(1, L):
        wi = jnp.pad(pad_gate_cols(w_ihr[l - 1]), [(0, HP - H), (0, 0)])
        wh = jnp.pad(pad_gate_cols(w_hh[l]), [(0, HP - H), (0, 0)])
        cats.append(jnp.concatenate([wi, wh], axis=0))
    if L == 1:
        cats.append(jnp.zeros((2 * HP, 4 * HP), jnp.float32))  # unused dummy
    w_cat = jnp.stack(cats, 0).astype(jnp.bfloat16)
    b_p = pad_gate_cols(b).astype(jnp.float32)                  # (L, 4HP)
    w_fc_p = jnp.pad(w_fc, [(0, HP - H), (0, dout_pad - w_fc.shape[1])]
                     ).astype(jnp.float32)
    b_fc_p = jnp.pad(b_fc, [(0, 0), (0, dout_pad - b_fc.shape[1])]
                     ).astype(jnp.float32)
    return (w0, wh0, w_cat, b_p, w_fc_p, b_fc_p)


# ----------------------------------------------------------------------------
# Wrapper: run several independent components in ONE pallas_call.
# ----------------------------------------------------------------------------
def multi_lstm_fc_forward(xs, packed_list, activations, out_dims):
    """xs: list of (B, T, Din_i) f32 (all same B, T). Returns list of (B, T, Dout_i)."""
    C = len(xs)
    B, T, _ = xs[0].shape
    for x in xs:
        assert x.shape[0] == B and x.shape[1] == T

    w0_s = jnp.stack([p[0] for p in packed_list], 0)
    wh0_s = jnp.stack([p[1] for p in packed_list], 0)
    wcat_s = jnp.stack([p[2] for p in packed_list], 0)
    b_s = jnp.stack([p[3] for p in packed_list], 0)
    wfc_s = jnp.stack([p[4] for p in packed_list], 0)
    bfc_s = jnp.stack([p[5] for p in packed_list], 0)

    DIN_PAD = w0_s.shape[1]
    HP = wh0_s.shape[1]
    GP = 4 * HP
    LC = wcat_s.shape[1]
    L = b_s.shape[1]
    DOUT_PAD = wfc_s.shape[2]

    # time-major, zero-padded, flattened inputs: (C, T*B, DIN_PAD)
    x_stk = []
    for x in xs:
        xt = jnp.transpose(x.astype(jnp.float32), (1, 0, 2))       # (T, B, Din)
        xt = jnp.pad(xt, [(0, 0), (0, 0), (0, DIN_PAD - x.shape[2])])
        x_stk.append(xt.reshape(T * B, DIN_PAD))
    x_stk = jnp.stack(x_stk, 0)

    act_arr = jnp.asarray([1 if a == "sigmoid" else 0 for a in activations],
                          jnp.int32)

    kernel = functools.partial(_multi_lstm_fc_kernel, num_layers=L,
                               h_pad=HP, batch=B, seq_len=T)

    out = pl.pallas_call(
        kernel,
        out_shape=jax.ShapeDtypeStruct((C, T * B, DOUT_PAD), jnp.float32),
        grid_spec=pltpu.PrefetchScalarGridSpec(
            num_scalar_prefetch=1,          # activation selector -> SMEM
            grid=(C,),
            in_specs=[
                pl.BlockSpec((1, T * B, DIN_PAD), lambda c, a: (c, 0, 0)),
                pl.BlockSpec((1, DIN_PAD, GP),    lambda c, a: (c, 0, 0)),
                pl.BlockSpec((1, HP, GP),         lambda c, a: (c, 0, 0)),
                pl.BlockSpec((1, LC, 2 * HP, GP), lambda c, a: (c, 0, 0, 0)),
                pl.BlockSpec((1, L, GP),          lambda c, a: (c, 0, 0)),
                pl.BlockSpec((1, HP, DOUT_PAD),   lambda c, a: (c, 0, 0)),
                pl.BlockSpec((1, 1, DOUT_PAD),    lambda c, a: (c, 0, 0)),
            ],
            out_specs=pl.BlockSpec((1, T * B, DOUT_PAD), lambda c, a: (c, 0, 0)),
        ),
        compiler_params=pltpu.CompilerParams(
            # components are fully independent -> both v7x TensorCores usable;
            # the time recurrence lives entirely inside one grid step.
            dimension_semantics=("parallel",)),
    )(act_arr, x_stk, w0_s, wh0_s, wcat_s, b_s, wfc_s, bfc_s)

    results = []
    for ci, dout in enumerate(out_dims):
        y = out[ci].reshape(T, B, DOUT_PAD)
        y = jnp.transpose(y, (1, 0, 2))[:, :, :dout]                # (B, T, dout)
        results.append(y)
    return results


# ----------------------------------------------------------------------------
# Deterministic parameter init (same shapes/init range as nn.LSTM / nn.Linear)
# ----------------------------------------------------------------------------
def init_lstm_fc_params(key, input_dim, hidden_dim, num_layers, out_dim):
    H = hidden_dim
    k = 1.0 / jnp.sqrt(jnp.float32(H))
    keys = jax.random.split(key, 7)

    def u(kk, shape, bound):
        return jax.random.uniform(kk, shape, jnp.float32, -bound, bound)

    w_ih0 = u(keys[0], (input_dim, 4 * H), k)                        # layer 0 W_ih^T
    n_rest = max(num_layers - 1, 1)
    w_ihr = u(keys[1], (n_rest, H, 4 * H), k)                        # layers 1.. W_ih^T
    if num_layers == 1:
        w_ihr = jnp.zeros((1, H, 4 * H), jnp.float32)                # unused dummy
    w_hh = u(keys[2], (num_layers, H, 4 * H), k)                     # W_hh^T
    b = u(keys[3], (num_layers, 4 * H), k) + u(keys[4], (num_layers, 4 * H), k)
    w_fc = u(keys[5], (H, out_dim), k)                               # Linear W^T
    b_fc = u(keys[6], (1, out_dim), k)
    return (w_ih0, w_ihr, w_hh, b, w_fc, b_fc)


# ----------------------------------------------------------------------------
# Pure-JAX reference (mirrors torch.nn.LSTM batch_first + Linear + activation)
# ----------------------------------------------------------------------------
def ref_lstm_fc(x, params, activation):
    w_ih0, w_ihr, w_hh, b, w_fc, b_fc = params
    L, H4 = b.shape
    H = H4 // 4
    B, T, _ = x.shape
    h = [jnp.zeros((B, H), jnp.float32) for _ in range(L)]
    c = [jnp.zeros((B, H), jnp.float32) for _ in range(L)]
    outs = []
    for t in range(T):
        inp = x[:, t, :]
        for l in range(L):
            w_ih = w_ih0 if l == 0 else w_ihr[l - 1]
            gates = inp @ w_ih + h[l] @ w_hh[l] + b[l]
            i = jax.nn.sigmoid(gates[:, :H])
            f = jax.nn.sigmoid(gates[:, H:2 * H])
            g = jnp.tanh(gates[:, 2 * H:3 * H])
            o = jax.nn.sigmoid(gates[:, 3 * H:])
            c[l] = f * c[l] + i * g
            h[l] = o * jnp.tanh(c[l])
            inp = h[l]
        outs.append(inp)
    out = jnp.stack(outs, axis=1)
    y = out @ w_fc + b_fc
    return jnp.maximum(y, 0.0) if activation == "relu" else jax.nn.sigmoid(y)


# ----------------------------------------------------------------------------
# TimeGAN component wrappers
# ----------------------------------------------------------------------------
class TimeGANPallas:
    ACTS = {"embedder": "relu", "recovery": "sigmoid", "generator": "relu",
            "supervisor": "relu", "discriminator": "sigmoid"}

    def __init__(self, key, feature_dim, hidden_dim=24, num_layers=3, noise_dim=32):
        ks = jax.random.split(key, 5)
        self.raw = {
            "embedder":      init_lstm_fc_params(ks[0], feature_dim, hidden_dim, num_layers, hidden_dim),
            "recovery":      init_lstm_fc_params(ks[1], hidden_dim, hidden_dim, num_layers, feature_dim),
            "generator":     init_lstm_fc_params(ks[2], noise_dim, hidden_dim, num_layers, hidden_dim),
            "supervisor":    init_lstm_fc_params(ks[3], hidden_dim, hidden_dim, num_layers, hidden_dim),
            "discriminator": init_lstm_fc_params(ks[4], hidden_dim, hidden_dim, num_layers, 1),
        }
        self.out_dim = {"embedder": hidden_dim, "recovery": feature_dim,
                        "generator": hidden_dim, "supervisor": hidden_dim,
                        "discriminator": 1}
        din_pad = _round_up(max(feature_dim, hidden_dim, noise_dim), 8)
        h_pad = _round_up(hidden_dim, 32)        # 24 -> 32 so 4H = 128
        dout_pad = _round_up(max(feature_dim, hidden_dim, 1), 128)
        self.packed = {k: pack_params(v, din_pad, h_pad, dout_pad)
                       for k, v in self.raw.items()}

    def run(self, names, inputs):
        """One fused pallas_call over several independent components."""
        return multi_lstm_fc_forward(inputs,
                                     [self.packed[n] for n in names],
                                     [self.ACTS[n] for n in names],
                                     [self.out_dim[n] for n in names])

    def embedder(self, x):      return self.run(["embedder"], [x])[0]
    def recovery(self, h):      return self.run(["recovery"], [h])[0]
    def generator(self, z):     return self.run(["generator"], [z])[0]
    def supervisor(self, h):    return self.run(["supervisor"], [h])[0]
    def discriminator(self, h): return self.run(["discriminator"], [h])[0]

    # TODO(synk): TimeGAN.forward() in the reference raises NotImplementedError
    # (step-wise training); no single global forward exists to translate.


if __name__ == "__main__":
    B, T = 2, 8
    feature_dim, hidden_dim, num_layers, noise_dim = 6, 24, 3, 32

    key = jax.random.PRNGKey(0)
    k_model, k_x, k_z = jax.random.split(key, 3)

    model = TimeGANPallas(k_model, feature_dim, hidden_dim, num_layers, noise_dim)

    x = jax.random.normal(k_x, (B, T, feature_dim), jnp.float32)
    z = jax.random.normal(k_z, (B, T, noise_dim), jnp.float32)

    @jax.jit
    def pipeline(x, z):
        # launch 1: the two input-independent components together
        h, e_hat = model.run(["embedder", "generator"], [x, z])
        # launch 2: every consumer of h / e_hat fused into one pallas_call
        x_tilde, h_sup, y_real, h_hat = model.run(
            ["recovery", "supervisor", "discriminator", "supervisor"],
            [h, h, h, e_hat])
        return h, e_hat, x_tilde, h_sup, y_real, h_hat

    h, e_hat, x_tilde, h_sup, y_real, h_hat = jax.block_until_ready(pipeline(x, z))

    # correctness check vs pure-f32 reference (kernel uses bf16 recurrent
    # matmul operands, hence the slightly loosened tolerance)
    checks = [
        (h,       ref_lstm_fc(x,     model.raw["embedder"],      "relu")),
        (e_hat,   ref_lstm_fc(z,     model.raw["generator"],     "relu")),
        (x_tilde, ref_lstm_fc(h,     model.raw["recovery"],      "sigmoid")),
        (h_sup,   ref_lstm_fc(h,     model.raw["supervisor"],    "relu")),
        (y_real,  ref_lstm_fc(h,     model.raw["discriminator"], "sigmoid")),
        (h_hat,   ref_lstm_fc(e_hat, model.raw["supervisor"],    "relu")),
    ]
    for got, want in checks:
        assert got.shape == want.shape, (got.shape, want.shape)
        err = float(jnp.max(jnp.abs(got - want)))
        assert err < 3e-2, err

    print("KERNEL_OK")
</pallas_src>

<mosaic_0001>
module attributes {stable_mosaic.version = 11 : i64} {
  func.func @_multi_lstm_fc_kernel(%arg0: i32, %arg1: memref<2xi32, #tpu.memory_space<smem>>, %arg2: memref<1x16x32xf32, #tpu.memory_space<vmem>>, %arg3: memref<1x32x128xf32, #tpu.memory_space<vmem>>, %arg4: memref<1x32x128xbf16, #tpu.memory_space<vmem>>, %arg5: memref<1x2x64x128xbf16, #tpu.memory_space<vmem>>, %arg6: memref<1x3x128xf32, #tpu.memory_space<vmem>>, %arg7: memref<1x32x128xf32, #tpu.memory_space<vmem>>, %arg8: memref<1x1x128xf32, #tpu.memory_space<vmem>>, %arg9: memref<1x16x128xf32, #tpu.memory_space<vmem>>) attributes {dimension_semantics = [#tpu.dimension_semantics<parallel>], iteration_bounds = array<i64: 2>, scalar_prefetch = 1 : i64, scratch_operands = 0 : i64, tpu.core_type = #tpu.core_type<tc>, window_params = [{transform_indices = @transform_0, window_bounds = array<i64: 1, 16, 32>}, {transform_indices = @transform_1, window_bounds = array<i64: 1, 32, 128>}, {transform_indices = @transform_2, window_bounds = array<i64: 1, 32, 128>}, {transform_indices = @transform_3, window_bounds = array<i64: 1, 2, 64, 128>}, {transform_indices = @transform_4, window_bounds = array<i64: 1, 3, 128>}, {transform_indices = @transform_5, window_bounds = array<i64: 1, 32, 128>}, {transform_indices = @transform_6, window_bounds = array<i64: 1, 1, 128>}, {transform_indices = @transform_7, window_bounds = array<i64: 1, 16, 128>}]} {
    %c0 = arith.constant 0 : index
    %c0_0 = arith.constant 0 : index
    %c0_1 = arith.constant 0 : index
    %0 = vector.load %arg6[%c0, %c0_0, %c0_1] : memref<1x3x128xf32, #tpu.memory_space<vmem>>, vector<1x3x128xf32>
    %1 = vector.shape_cast %0 : vector<1x3x128xf32> to vector<3x128xf32>
    %c0_2 = arith.constant 0 : index
    %c0_3 = arith.constant 0 : index
    %c0_4 = arith.constant 0 : index
    %2 = vector.load %arg2[%c0_2, %c0_3, %c0_4] : memref<1x16x32xf32, #tpu.memory_space<vmem>>, vector<1x16x32xf32>
    %3 = vector.shape_cast %2 : vector<1x16x32xf32> to vector<16x32xf32>
    %c0_5 = arith.constant 0 : index
    %c0_6 = arith.constant 0 : index
    %c0_7 = arith.constant 0 : index
    %4 = vector.load %arg3[%c0_5, %c0_6, %c0_7] : memref<1x32x128xf32, #tpu.memory_space<vmem>>, vector<1x32x128xf32>
    %5 = vector.shape_cast %4 : vector<1x32x128xf32> to vector<32x128xf32>
    %cst = arith.constant dense<0.000000e+00> : vector<16x128xf32>
    %6 = tpu.matmul %3, %5, %cst {dimension_numbers = #tpu.dot_dimension_numbers<[1], [0], [0], [1], [0, 0, 1, 1], [], []>} : vector<16x32xf32>, vector<32x128xf32>, vector<16x128xf32> -> vector<16x128xf32>
    %7 = vector.extract_strided_slice %1 {offsets = [0, 0], sizes = [1, 128], strides = [1, 1]} : vector<3x128xf32> to vector<1x128xf32>
    %8 = vector.shape_cast %7 : vector<1x128xf32> to vector<128xf32>
    %9 = vector.shape_cast %8 : vector<128xf32> to vector<1x128xf32>
    %10 = vector.broadcast %9 : vector<1x128xf32> to vector<16x128xf32>
    %11 = arith.addf %6, %10 : vector<16x128xf32>
    %c0_8 = arith.constant 0 : index
    %c0_9 = arith.constant 0 : index
    %c0_10 = arith.constant 0 : index
    %12 = vector.load %arg4[%c0_8, %c0_9, %c0_10] : memref<1x32x128xbf16, #tpu.memory_space<vmem>>, vector<1x32x128xbf16>
    %13 = vector.shape_cast %12 : vector<1x32x128xbf16> to vector<32x128xbf16>
    %c0_11 = arith.constant 0 : index
    %c0_12 = arith.constant 0 : index
    %c0_13 = arith.constant 0 : index
    %c0_14 = arith.constant 0 : index
    %14 = vector.load %arg5[%c0_11, %c0_12, %c0_13, %c0_14] : memref<1x2x64x128xbf16, #tpu.memory_space<vmem>>, vector<1x1x64x128xbf16>
    %15 = vector.shape_cast %14 : vector<1x1x64x128xbf16> to vector<64x128xbf16>
    %c0_15 = arith.constant 0 : index
    %c1 = arith.constant 1 : index
    %c0_16 = arith.constant 0 : index
    %c0_17 = arith.constant 0 : index
    %16 = vector.load %arg5[%c0_15, %c1, %c0_16, %c0_17] : memref<1x2x64x128xbf16, #tpu.memory_space<vmem>>, vector<1x1x64x128xbf16>
    %17 = vector.shape_cast %16 : vector<1x1x64x128xbf16> to vector<64x128xbf16>
    %18 = vector.extract_strided_slice %1 {offsets = [1, 0], sizes = [1, 128], strides = [1, 1]} : vector<3x128xf32> to vector<1x128xf32>
    %19 = vector.shape_cast %18 : vector<1x128xf32> to vector<128xf32>
    %20 = vector.shape_cast %19 : vector<128xf32> to vector<1x128xf32>
    %21 = vector.broadcast %20 : vector<1x128xf32> to vector<2x128xf32>
    %22 = vector.extract_strided_slice %1 {offsets = [2, 0], sizes = [1, 128], strides = [1, 1]} : vector<3x128xf32> to vector<1x128xf32>
    %23 = vector.shape_cast %22 : vector<1x128xf32> to vector<128xf32>
    %24 = vector.shape_cast %23 : vector<128xf32> to vector<1x128xf32>
    %25 = vector.broadcast %24 : vector<1x128xf32> to vector<2x128xf32>
    %cst_18 = arith.constant 0.000000e+00 : f32
    %26 = vector.broadcast %cst_18 : f32 to vector<2x32xf32>
    %cst_19 = arith.constant 0.000000e+00 : f32
    %27 = vector.broadcast %cst_19 : f32 to vector<2x32xf32>
    %cst_20 = arith.constant 0.000000e+00 : f32
    %28 = vector.broadcast %cst_20 : f32 to vector<2x32xf32>
    %cst_21 = arith.constant 0.000000e+00 : f32
    %29 = vector.broadcast %cst_21 : f32 to vector<2x32xf32>
    %cst_22 = arith.constant 0.000000e+00 : f32
    %30 = vector.broadcast %cst_22 : f32 to vector<2x32xf32>
    %cst_23 = arith.constant 0.000000e+00 : f32
    %31 = vector.broadcast %cst_23 : f32 to vector<2x32xf32>
    %32 = vector.extract_strided_slice %11 {offsets = [0, 0], sizes = [2, 128], strides = [1, 1]} : vector<16x128xf32> to vector<2x128xf32>
    %33 = arith.truncf %26 : vector<2x32xf32> to vector<2x32xbf16>
    %cst_24 = arith.constant dense<0.000000e+00> : vector<2x128xf32>
    %34 = tpu.matmul %33, %13, %cst_24 {dimension_numbers = #tpu.dot_dimension_numbers<[1], [0], [0], [1], [0, 0, 1, 1], [], []>} : vector<2x32xbf16>, vector<32x128xbf16>, vector<2x128xf32> -> vector<2x128xf32>
    %35 = arith.addf %32, %34 : vector<2x128xf32>
    %36 = vector.extract_strided_slice %35 {offsets = [0, 0], sizes = [2, 32], strides = [1, 1]} : vector<2x128xf32> to vector<2x32xf32>
    %37 = arith.negf %36 : vector<2x32xf32>
    %38 = math.exp %37 : vector<2x32xf32>
    %cst_25 = arith.constant 1.000000e+00 : f32
    %39 = vector.broadcast %cst_25 : f32 to vector<2x32xf32>
    %40 = arith.addf %39, %38 : vector<2x32xf32>
    %41 = arith.divf %39, %40 : vector<2x32xf32>
    %42 = vector.extract_strided_slice %35 {offsets = [0, 32], sizes = [2, 32], strides = [1, 1]} : vector<2x128xf32> to vector<2x32xf32>
    %43 = arith.negf %42 : vector<2x32xf32>
    %44 = math.exp %43 : vector<2x32xf32>
    %cst_26 = arith.constant 1.000000e+00 : f32
    %45 = vector.broadcast %cst_26 : f32 to vector<2x32xf32>
    %46 = arith.addf %45, %44 : vector<2x32xf32>
    %47 = arith.divf %45, %46 : vector<2x32xf32>
    %48 = vector.extract_strided_slice %35 {offsets = [0, 64], sizes = [2, 32], strides = [1, 1]} : vector<2x128xf32> to vector<2x32xf32>
    %49 = math.tanh %48 : vector<2x32xf32>
    %50 = vector.extract_strided_slice %35 {offsets = [0, 96], sizes = [2, 32], strides = [1, 1]} : vector<2x128xf32> to vector<2x32xf32>
    %51 = arith.negf %50 : vector<2x32xf32>
    %52 = math.exp %51 : vector<2x32xf32>
    %cst_27 = arith.constant 1.000000e+00 : f32
    %53 = vector.broadcast %cst_27 : f32 to vector<2x32xf32>
    %54 = arith.addf %53, %52 : vector<2x32xf32>
    %55 = arith.divf %53, %54 : vector<2x32xf32>
    %56 = arith.mulf %47, %29 : vector<2x32xf32>
    %57 = arith.mulf %41, %49 : vector<2x32xf32>
    %58 = arith.addf %56, %57 : vector<2x32xf32>
    %59 = math.tanh %58 : vector<2x32xf32>
    %60 = arith.mulf %55, %59 : vector<2x32xf32>
    %61 = tpu.concatenate %60, %27 in 1 : vector<2x32xf32>, vector<2x32xf32> -> vector<2x64xf32>
    %62 = arith.truncf %61 : vector<2x64xf32> to vector<2x64xbf16>
    %cst_28 = arith.constant dense<0.000000e+00> : vector<2x128xf32>
    %63 = tpu.matmul %62, %15, %cst_28 {dimension_numbers = #tpu.dot_dimension_numbers<[1], [0], [0], [1], [0, 0, 1, 1], [], []>} : vector<2x64xbf16>, vector<64x128xbf16>, vector<2x128xf32> -> vector<2x128xf32>
    %64 = arith.addf %63, %21 : vector<2x128xf32>
    %65 = vector.extract_strided_slice %64 {offsets = [0, 0], sizes = [2, 32], strides = [1, 1]} : vector<2x128xf32> to vector<2x32xf32>
    %66 = arith.negf %65 : vector<2x32xf32>
    %67 = math.exp %66 : vector<2x32xf32>
    %cst_29 = arith.constant 1.000000e+00 : f32
    %68 = vector.broadcast %cst_29 : f32 to vector<2x32xf32>
    %69 = arith.addf %68, %67 : vector<2x32xf32>
    %70 = arith.divf %68, %69 : vector<2x32xf32>
    %71 = vector.extract_strided_slice %64 {offsets = [0, 32], sizes = [2, 32], strides = [1, 1]} : vector<2x128xf32> to vector<2x32xf32>
    %72 = arith.negf %71 : vector<2x32xf32>
    %73 = math.exp %72 : vector<2x32xf32>
    %cst_30 = arith.constant 1.000000e+00 : f32
    %74 = vector.broadcast %cst_30 : f32 to vector<2x32xf32>
    %75 = arith.addf %74, %73 : vector<2x32xf32>
    %76 = arith.divf %74, %75 : vector<2x32xf32>
    %77 = vector.extract_strided_slice %64 {offsets = [0, 64], sizes = [2, 32], strides = [1, 1]} : vector<2x128xf32> to vector<2x32xf32>
    %78 = math.tanh %77 : vector<2x32xf32>
    %79 = vector.extract_strided_slice %64 {offsets = [0, 96], sizes = [2, 32], strides = [1, 1]} : vector<2x128xf32> to vector<2x32xf32>
    %80 = arith.negf %79 : vector<2x32xf32>
    %81 = math.exp %80 : vector<2x32xf32>
    %cst_31 = arith.constant 1.000000e+00 : f32
    %82 = vector.broadcast %cst_31 : f32 to vector<2x32xf32>
    %83 = arith.addf %82, %81 : vector<2x32xf32>
    %84 = arith.divf %82, %83 : vector<2x32xf32>
    %85 = arith.mulf %76, %30 : vector<2x32xf32>
    %86 = arith.mulf %70, %78 : vector<2x32xf32>
    %87 = arith.addf %85, %86 : vector<2x32xf32>
    %88 = math.tanh %87 : vector<2x32xf32>
    %89 = arith.mulf %84, %88 : vector<2x32xf32>
    %90 = tpu.concatenate %89, %28 in 1 : vector<2x32xf32>, vector<2x32xf32> -> vector<2x64xf32>
    %91 = arith.truncf %90 : vector<2x64xf32> to vector<2x64xbf16>
    %cst_32 = arith.constant dense<0.000000e+00> : vector<2x128xf32>
    %92 = tpu.matmul %91, %17, %cst_32 {dimension_numbers = #tpu.dot_dimension_numbers<[1], [0], [0], [1], [0, 0, 1, 1], [], []>} : vector<2x64xbf16>, vector<64x128xbf16>, vector<2x128xf32> -> vector<2x128xf32>
    %93 = arith.addf %92, %25 : vector<2x128xf32>
    %94 = vector.extract_strided_slice %93 {offsets = [0, 0], sizes = [2, 32], strides = [1, 1]} : vector<2x128xf32> to vector<2x32xf32>
    %95 = arith.negf %94 : vector<2x32xf32>
    %96 = math.exp %95 : vector<2x32xf32>
    %cst_33 = arith.constant 1.000000e+00 : f32
    %97 = vector.broadcast %cst_33 : f32 to vector<2x32xf32>
    %98 = arith.addf %97, %96 : vector<2x32xf32>
    %99 = arith.divf %97, %98 : vector<2x32xf32>
    %100 = vector.extract_strided_slice %93 {offsets = [0, 32], sizes = [2, 32], strides = [1, 1]} : vector<2x128xf32> to vector<2x32xf32>
    %101 = arith.negf %100 : vector<2x32xf32>
    %102 = math.exp %101 : vector<2x32xf32>
    %cst_34 = arith.constant 1.000000e+00 : f32
    %103 = vector.broadcast %cst_34 : f32 to vector<2x32xf32>
    %104 = arith.addf %103, %102 : vector<2x32xf32>
    %105 = arith.divf %103, %104 : vector<2x32xf32>
    %106 = vector.extract_strided_slice %93 {offsets = [0, 64], sizes = [2, 32], strides = [1, 1]} : vector<2x128xf32> to vector<2x32xf32>
    %107 = math.tanh %106 : vector<2x32xf32>
    %108 = vector.extract_strided_slice %93 {offsets = [0, 96], sizes = [2, 32], strides = [1, 1]} : vector<2x128xf32> to vector<2x32xf32>
    %109 = arith.negf %108 : vector<2x32xf32>
    %110 = math.exp %109 : vector<2x32xf32>
    %cst_35 = arith.constant 1.000000e+00 : f32
    %111 = vector.broadcast %cst_35 : f32 to vector<2x32xf32>
    %112 = arith.addf %111, %110 : vector<2x32xf32>
    %113 = arith.divf %111, %112 : vector<2x32xf32>
    %114 = arith.mulf %105, %31 : vector<2x32xf32>
    %115 = arith.mulf %99, %107 : vector<2x32xf32>
    %116 = arith.addf %114, %115 : vector<2x32xf32>
    %117 = math.tanh %116 : vector<2x32xf32>
    %118 = arith.mulf %113, %117 : vector<2x32xf32>
    %119 = vector.extract_strided_slice %11 {offsets = [2, 0], sizes = [2, 128], strides = [1, 1]} : vector<16x128xf32> to vector<2x128xf32>
    %120 = arith.truncf %60 : vector<2x32xf32> to vector<2x32xbf16>
    %cst_36 = arith.constant dense<0.000000e+00> : vector<2x128xf32>
    %121 = tpu.matmul %120, %13, %cst_36 {dimension_numbers = #tpu.dot_dimension_numbers<[1], [0], [0], [1], [0, 0, 1, 1], [], []>} : vector<2x32xbf16>, vector<32x128xbf16>, vector<2x128xf32> -> vector<2x128xf32>
    %122 = arith.addf %119, %121 : vector<2x128xf32>
    %123 = vector.extract_strided_slice %122 {offsets = [0, 0], sizes = [2, 32], strides = [1, 1]} : vector<2x128xf32> to vector<2x32xf32>
    %124 = arith.negf %123 : vector<2x32xf32>
    %125 = math.exp %124 : vector<2x32xf32>
    %cst_37 = arith.constant 1.000000e+00 : f32
    %126 = vector.broadcast %cst_37 : f32 to vector<2x32xf32>
    %127 = arith.addf %126, %125 : vector<2x32xf32>
    %128 = arith.divf %126, %127 : vector<2x32xf32>
    %129 = vector.extract_strided_slice %122 {offsets = [0, 32], sizes = [2, 32], strides = [1, 1]} : vector<2x128xf32> to vector<2x32xf32>
    %130 = arith.negf %129 : vector<2x32xf32>
    %131 = math.exp %130 : vector<2x32xf32>
    %cst_38 = arith.constant 1.000000e+00 : f32
    %132 = vector.broadcast %cst_38 : f32 to vector<2x32xf32>
    %133 = arith.addf %132, %131 : vector<2x32xf32>
    %134 = arith.divf %132, %133 : vector<2x32xf32>
    %135 = vector.extract_strided_slice %122 {offsets = [0, 64], sizes = [2, 32], strides = [1, 1]} : vector<2x128xf32> to vector<2x32xf32>
    %136 = math.tanh %135 : vector<2x32xf32>
    %137 = vector.extract_strided_slice %122 {offsets = [0, 96], sizes = [2, 32], strides = [1, 1]} : vector<2x128xf32> to vector<2x32xf32>
    %138 = arith.negf %137 : vector<2x32xf32>
    %139 = math.exp %138 : vector<2x32xf32>
    %cst_39 = arith.constant 1.000000e+00 : f32
    %140 = vector.broadcast %cst_39 : f32 to vector<2x32xf32>
    %141 = arith.addf %140, %139 : vector<2x32xf32>
    %142 = arith.divf %140, %141 : vector<2x32xf32>
    %143 = arith.mulf %134, %58 : vector<2x32xf32>
    %144 = arith.mulf %128, %136 : vector<2x32xf32>
    %145 = arith.addf %143, %144 : vector<2x32xf32>
    %146 = math.tanh %145 : vector<2x32xf32>
    %147 = arith.mulf %142, %146 : vector<2x32xf32>
    %148 = tpu.concatenate %147, %89 in 1 : vector<2x32xf32>, vector<2x32xf32> -> vector<2x64xf32>
    %149 = arith.truncf %148 : vector<2x64xf32> to vector<2x64xbf16>
    %cst_40 = arith.constant dense<0.000000e+00> : vector<2x128xf32>
    %150 = tpu.matmul %149, %15, %cst_40 {dimension_numbers = #tpu.dot_dimension_numbers<[1], [0], [0], [1], [0, 0, 1, 1], [], []>} : vector<2x64xbf16>, vector<64x128xbf16>, vector<2x128xf32> -> vector<2x128xf32>
    %151 = arith.addf %150, %21 : vector<2x128xf32>
    %152 = vector.extract_strided_slice %151 {offsets = [0, 0], sizes = [2, 32], strides = [1, 1]} : vector<2x128xf32> to vector<2x32xf32>
    %153 = arith.negf %152 : vector<2x32xf32>
    %154 = math.exp %153 : vector<2x32xf32>
    %cst_41 = arith.constant 1.000000e+00 : f32
    %155 = vector.broadcast %cst_41 : f32 to vector<2x32xf32>
    %156 = arith.addf %155, %154 : vector<2x32xf32>
    %157 = arith.divf %155, %156 : vector<2x32xf32>
    %158 = vector.extract_strided_slice %151 {offsets = [0, 32], sizes = [2, 32], strides = [1, 1]} : vector<2x128xf32> to vector<2x32xf32>
    %159 = arith.negf %158 : vector<2x32xf32>
    %160 = math.exp %159 : vector<2x32xf32>
    %cst_42 = arith.constant 1.000000e+00 : f32
    %161 = vector.broadcast %cst_42 : f32 to vector<2x32xf32>
    %162 = arith.addf %161, %160 : vector<2x32xf32>
    %163 = arith.divf %161, %162 : vector<2x32xf32>
    %164 = vector.extract_strided_slice %151 {offsets = [0, 64], sizes = [2, 32], strides = [1, 1]} : vector<2x128xf32> to vector<2x32xf32>
    %165 = math.tanh %164 : vector<2x32xf32>
    %166 = vector.extract_strided_slice %151 {offsets = [0, 96], sizes = [2, 32], strides = [1, 1]} : vector<2x128xf32> to vector<2x32xf32>
    %167 = arith.negf %166 : vector<2x32xf32>
    %168 = math.exp %167 : vector<2x32xf32>
    %cst_43 = arith.constant 1.000000e+00 : f32
    %169 = vector.broadcast %cst_43 : f32 to vector<2x32xf32>
    %170 = arith.addf %169, %168 : vector<2x32xf32>
    %171 = arith.divf %169, %170 : vector<2x32xf32>
    %172 = arith.mulf %163, %87 : vector<2x32xf32>
    %173 = arith.mulf %157, %165 : vector<2x32xf32>
    %174 = arith.addf %172, %173 : vector<2x32xf32>
    %175 = math.tanh %174 : vector<2x32xf32>
    %176 = arith.mulf %171, %175 : vector<2x32xf32>
    %177 = tpu.concatenate %176, %118 in 1 : vector<2x32xf32>, vector<2x32xf32> -> vector<2x64xf32>
    %178 = arith.truncf %177 : vector<2x64xf32> to vector<2x64xbf16>
    %cst_44 = arith.constant dense<0.000000e+00> : vector<2x128xf32>
    %179 = tpu.matmul %178, %17, %cst_44 {dimension_numbers = #tpu.dot_dimension_numbers<[1], [0], [0], [1], [0, 0, 1, 1], [], []>} : vector<2x64xbf16>, vector<64x128xbf16>, vector<2x128xf32> -> vector<2x128xf32>
    %180 = arith.addf %179, %25 : vector<2x128xf32>
    %181 = vector.extract_strided_slice %180 {offsets = [0, 0], sizes = [2, 32], strides = [1, 1]} : vector<2x128xf32> to vector<2x32xf32>
    %182 = arith.negf %181 : vector<2x32xf32>
    %183 = math.exp %182 : vector<2x32xf32>
    %cst_45 = arith.constant 1.000000e+00 : f32
    %184 = vector.broadcast %cst_45 : f32 to vector<2x32xf32>
    %185 = arith.addf %184, %183 : vector<2x32xf32>
    %186 = arith.divf %184, %185 : vector<2x32xf32>
    %187 = vector.extract_strided_slice %180 {offsets = [0, 32], sizes = [2, 32], strides = [1, 1]} : vector<2x128xf32> to vector<2x32xf32>
    %188 = arith.negf %187 : vector<2x32xf32>
    %189 = math.exp %188 : vector<2x32xf32>
    %cst_46 = arith.constant 1.000000e+00 : f32
    %190 = vector.broadcast %cst_46 : f32 to vector<2x32xf32>
    %191 = arith.addf %190, %189 : vector<2x32xf32>
    %192 = arith.divf %190, %191 : vector<2x32xf32>
    %193 = vector.extract_strided_slice %180 {offsets = [0, 64], sizes = [2, 32], strides = [1, 1]} : vector<2x128xf32> to vector<2x32xf32>
    %194 = math.tanh %193 : vector<2x32xf32>
    %195 = vector.extract_strided_slice %180 {offsets = [0, 96], sizes = [2, 32], strides = [1, 1]} : vector<2x128xf32> to vector<2x32xf32>
    %196 = arith.negf %195 : vector<2x32xf32>
    %197 = math.exp %196 : vector<2x32xf32>
    %cst_47 = arith.constant 1.000000e+00 : f32
    %198 = vector.broadcast %cst_47 : f32 to vector<2x32xf32>
    %199 = arith.addf %198, %197 : vector<2x32xf32>
    %200 = arith.divf %198, %199 : vector<2x32xf32>
    %201 = arith.mulf %192, %116 : vector<2x32xf32>
    %202 = arith.mulf %186, %194 : vector<2x32xf32>
    %203 = arith.addf %201, %202 : vector<2x32xf32>
    %204 = math.tanh %203 : vector<2x32xf32>
    %205 = arith.mulf %200, %204 : vector<2x32xf32>
    %206 = vector.extract_strided_slice %11 {offsets = [4, 0], sizes = [2, 128], strides = [1, 1]} : vector<16x128xf32> to vector<2x128xf32>
    %207 = arith.truncf %147 : vector<2x32xf32> to vector<2x32xbf16>
    %cst_48 = arith.constant dense<0.000000e+00> : vector<2x128xf32>
    %208 = tpu.matmul %207, %13, %cst_48 {dimension_numbers = #tpu.dot_dimension_numbers<[1], [0], [0], [1], [0, 0, 1, 1], [], []>} : vector<2x32xbf16>, vector<32x128xbf16>, vector<2x128xf32> -> vector<2x128xf32>
    %209 = arith.addf %206, %208 : vector<2x128xf32>
    %210 = vector.extract_strided_slice %209 {offsets = [0, 0], sizes = [2, 32], strides = [1, 1]} : vector<2x128xf32> to vector<2x32xf32>
    %211 = arith.negf %210 : vector<2x32xf32>
    %212 = math.exp %211 : vector<2x32xf32>
    %cst_49 = arith.constant 1.000000e+00 : f32
    %213 = vector.broadcast %cst_49 : f32 to vector<2x32xf32>
    %214 = arith.addf %213, %212 : vector<2x32xf32>
    %215 = arith.divf %213, %214 : vector<2x32xf32>
    %216 = vector.extract_strided_slice %209 {offsets = [0, 32], sizes = [2, 32], strides = [1, 1]} : vector<2x128xf32> to vector<2x32xf32>
    %217 = arith.negf %216 : vector<2x32xf32>
    %218 = math.exp %217 : vector<2x32xf32>
    %cst_50 = arith.constant 1.000000e+00 : f32
    %219 = vector.broadcast %cst_50 : f32 to vector<2x32xf32>
    %220 = arith.addf %219, %218 : vector<2x32xf32>
    %221 = arith.divf %219, %220 : vector<2x32xf32>
    %222 = vector.extract_strided_slice %209 {offsets = [0, 64], sizes = [2, 32], strides = [1, 1]} : vector<2x128xf32> to vector<2x32xf32>
    %223 = math.tanh %222 : vector<2x32xf32>
    %224 = vector.extract_strided_slice %209 {offsets = [0, 96], sizes = [2, 32], strides = [1, 1]} : vector<2x128xf32> to vector<2x32xf32>
    %225 = arith.negf %224 : vector<2x32xf32>
    %226 = math.exp %225 : vector<2x32xf32>
    %cst_51 = arith.constant 1.000000e+00 : f32
    %227 = vector.broadcast %cst_51 : f32 to vector<2x32xf32>
    %228 = arith.addf %227, %226 : vector<2x32xf32>
    %229 = arith.divf %227, %228 : vector<2x32xf32>
    %230 = arith.mulf %221, %145 : vector<2x32xf32>
    %231 = arith.mulf %215, %223 : vector<2x32xf32>
    %232 = arith.addf %230, %231 : vector<2x32xf32>
    %233 = math.tanh %232 : vector<2x32xf32>
    %234 = arith.mulf %229, %233 : vector<2x32xf32>
    %235 = tpu.concatenate %234, %176 in 1 : vector<2x32xf32>, vector<2x32xf32> -> vector<2x64xf32>
    %236 = arith.truncf %235 : vector<2x64xf32> to vector<2x64xbf16>
    %cst_52 = arith.constant dense<0.000000e+00> : vector<2x128xf32>
    %237 = tpu.matmul %236, %15, %cst_52 {dimension_numbers = #tpu.dot_dimension_numbers<[1], [0], [0], [1], [0, 0, 1, 1], [], []>} : vector<2x64xbf16>, vector<64x128xbf16>, vector<2x128xf32> -> vector<2x128xf32>
    %238 = arith.addf %237, %21 : vector<2x128xf32>
    %239 = vector.extract_strided_slice %238 {offsets = [0, 0], sizes = [2, 32], strides = [1, 1]} : vector<2x128xf32> to vector<2x32xf32>
    %240 = arith.negf %239 : vector<2x32xf32>
    %241 = math.exp %240 : vector<2x32xf32>
    %cst_53 = arith.constant 1.000000e+00 : f32
    %242 = vector.broadcast %cst_53 : f32 to vector<2x32xf32>
    %243 = arith.addf %242, %241 : vector<2x32xf32>
    %244 = arith.divf %242, %243 : vector<2x32xf32>
    %245 = vector.extract_strided_slice %238 {offsets = [0, 32], sizes = [2, 32], strides = [1, 1]} : vector<2x128xf32> to vector<2x32xf32>
    %246 = arith.negf %245 : vector<2x32xf32>
    %247 = math.exp %246 : vector<2x32xf32>
    %cst_54 = arith.constant 1.000000e+00 : f32
    %248 = vector.broadcast %cst_54 : f32 to vector<2x32xf32>
    %249 = arith.addf %248, %247 : vector<2x32xf32>
    %250 = arith.divf %248, %249 : vector<2x32xf32>
    %251 = vector.extract_strided_slice %238 {offsets = [0, 64], sizes = [2, 32], strides = [1, 1]} : vector<2x128xf32> to vector<2x32xf32>
    %252 = math.tanh %251 : vector<2x32xf32>
    %253 = vector.extract_strided_slice %238 {offsets = [0, 96], sizes = [2, 32], strides = [1, 1]} : vector<2x128xf32> to vector<2x32xf32>
    %254 = arith.negf %253 : vector<2x32xf32>
    %255 = math.exp %254 : vector<2x32xf32>
    %cst_55 = arith.constant 1.000000e+00 : f32
    %256 = vector.broadcast %cst_55 : f32 to vector<2x32xf32>
    %257 = arith.addf %256, %255 : vector<2x32xf32>
    %258 = arith.divf %256, %257 : vector<2x32xf32>
    %259 = arith.mulf %250, %174 : vector<2x32xf32>
    %260 = arith.mulf %244, %252 : vector<2x32xf32>
    %261 = arith.addf %259, %260 : vector<2x32xf32>
    %262 = math.tanh %261 : vector<2x32xf32>
    %263 = arith.mulf %258, %262 : vector<2x32xf32>
    %264 = tpu.concatenate %263, %205 in 1 : vector<2x32xf32>, vector<2x32xf32> -> vector<2x64xf32>
    %265 = arith.truncf %264 : vector<2x64xf32> to vector<2x64xbf16>
    %cst_56 = arith.constant dense<0.000000e+00> : vector<2x128xf32>
    %266 = tpu.matmul %265, %17, %cst_56 {dimension_numbers = #tpu.dot_dimension_numbers<[1], [0], [0], [1], [0, 0, 1, 1], [], []>} : vector<2x64xbf16>, vector<64x128xbf16>, vector<2x128xf32> -> vector<2x128xf32>
    %267 = arith.addf %266, %25 : vector<2x128xf32>
    %268 = vector.extract_strided_slice %267 {offsets = [0, 0], sizes = [2, 32], strides = [1, 1]} : vector<2x128xf32> to vector<2x32xf32>
    %269 = arith.negf %268 : vector<2x32xf32>
    %270 = math.exp %269 : vector<2x32xf32>
    %cst_57 = arith.constant 1.000000e+00 : f32
    %271 = vector.broadcast %cst_57 : f32 to vector<2x32xf32>
    %272 = arith.addf %271, %270 : vector<2x32xf32>
    %273 = arith.divf %271, %272 : vector<2x32xf32>
    %274 = vector.extract_strided_slice %267 {offsets = [0, 32], sizes = [2, 32], strides = [1, 1]} : vector<2x128xf32> to vector<2x32xf32>
    %275 = arith.negf %274 : vector<2x32xf32>
    %276 = math.exp %275 : vector<2x32xf32>
    %cst_58 = arith.constant 1.000000e+00 : f32
    %277 = vector.broadcast %cst_58 : f32 to vector<2x32xf32>
    %278 = arith.addf %277, %276 : vector<2x32xf32>
    %279 = arith.divf %277, %278 : vector<2x32xf32>
    %280 = vector.extract_strided_slice %267 {offsets = [0, 64], sizes = [2, 32], strides = [1, 1]} : vector<2x128xf32> to vector<2x32xf32>
    %281 = math.tanh %280 : vector<2x32xf32>
    %282 = vector.extract_strided_slice %267 {offsets = [0, 96], sizes = [2, 32], strides = [1, 1]} : vector<2x128xf32> to vector<2x32xf32>
    %283 = arith.negf %282 : vector<2x32xf32>
    %284 = math.exp %283 : vector<2x32xf32>
    %cst_59 = arith.constant 1.000000e+00 : f32
    %285 = vector.broadcast %cst_59 : f32 to vector<2x32xf32>
    %286 = arith.addf %285, %284 : vector<2x32xf32>
    %287 = arith.divf %285, %286 : vector<2x32xf32>
    %288 = arith.mulf %279, %203 : vector<2x32xf32>
    %289 = arith.mulf %273, %281 : vector<2x32xf32>
    %290 = arith.addf %288, %289 : vector<2x32xf32>
    %291 = math.tanh %290 : vector<2x32xf32>
    %292 = arith.mulf %287, %291 : vector<2x32xf32>
    %293 = vector.extract_strided_slice %11 {offsets = [6, 0], sizes = [2, 128], strides = [1, 1]} : vector<16x128xf32> to vector<2x128xf32>
    %294 = arith.truncf %234 : vector<2x32xf32> to vector<2x32xbf16>
    %cst_60 = arith.constant dense<0.000000e+00> : vector<2x128xf32>
    %295 = tpu.matmul %294, %13, %cst_60 {dimension_numbers = #tpu.dot_dimension_numbers<[1], [0], [0], [1], [0, 0, 1, 1], [], []>} : vector<2x32xbf16>, vector<32x128xbf16>, vector<2x128xf32> -> vector<2x128xf32>
    %296 = arith.addf %293, %295 : vector<2x128xf32>
    %297 = vector.extract_strided_slice %296 {offsets = [0, 0], sizes = [2, 32], strides = [1, 1]} : vector<2x128xf32> to vector<2x32xf32>
    %298 = arith.negf %297 : vector<2x32xf32>
    %299 = math.exp %298 : vector<2x32xf32>
    %cst_61 = arith.constant 1.000000e+00 : f32
    %300 = vector.broadcast %cst_61 : f32 to vector<2x32xf32>
    %301 = arith.addf %300, %299 : vector<2x32xf32>
    %302 = arith.divf %300, %301 : vector<2x32xf32>
    %303 = vector.extract_strided_slice %296 {offsets = [0, 32], sizes = [2, 32], strides = [1, 1]} : vector<2x128xf32> to vector<2x32xf32>
    %304 = arith.negf %303 : vector<2x32xf32>
    %305 = math.exp %304 : vector<2x32xf32>
    %cst_62 = arith.constant 1.000000e+00 : f32
    %306 = vector.broadcast %cst_62 : f32 to vector<2x32xf32>
    %307 = arith.addf %306, %305 : vector<2x32xf32>
    %308 = arith.divf %306, %307 : vector<2x32xf32>
    %309 = vector.extract_strided_slice %296 {offsets = [0, 64], sizes = [2, 32], strides = [1, 1]} : vector<2x128xf32> to vector<2x32xf32>
    %310 = math.tanh %309 : vector<2x32xf32>
    %311 = vector.extract_strided_slice %296 {offsets = [0, 96], sizes = [2, 32], strides = [1, 1]} : vector<2x128xf32> to vector<2x32xf32>
    %312 = arith.negf %311 : vector<2x32xf32>
    %313 = math.exp %312 : vector<2x32xf32>
    %cst_63 = arith.constant 1.000000e+00 : f32
    %314 = vector.broadcast %cst_63 : f32 to vector<2x32xf32>
    %315 = arith.addf %314, %313 : vector<2x32xf32>
    %316 = arith.divf %314, %315 : vector<2x32xf32>
    %317 = arith.mulf %308, %232 : vector<2x32xf32>
    %318 = arith.mulf %302, %310 : vector<2x32xf32>
    %319 = arith.addf %317, %318 : vector<2x32xf32>
    %320 = math.tanh %319 : vector<2x32xf32>
    %321 = arith.mulf %316, %320 : vector<2x32xf32>
    %322 = tpu.concatenate %321, %263 in 1 : vector<2x32xf32>, vector<2x32xf32> -> vector<2x64xf32>
    %323 = arith.truncf %322 : vector<2x64xf32> to vector<2x64xbf16>
    %cst_64 = arith.constant dense<0.000000e+00> : vector<2x128xf32>
    %324 = tpu.matmul %323, %15, %cst_64 {dimension_numbers = #tpu.dot_dimension_numbers<[1], [0], [0], [1], [0, 0, 1, 1], [], []>} : vector<2x64xbf16>, vector<64x128xbf16>, vector<2x128xf32> -> vector<2x128xf32>
    %325 = arith.addf %324, %21 : vector<2x128xf32>
    %326 = vector.extract_strided_slice %325 {offsets = [0, 0], sizes = [2, 32], strides = [1, 1]} : vector<2x128xf32> to vector<2x32xf32>
    %327 = arith.negf %326 : vector<2x32xf32>
    %328 = math.exp %327 : vector<2x32xf32>
    %cst_65 = arith.constant 1.000000e+00 : f32
    %329 = vector.broadcast %cst_65 : f32 to vector<2x32xf32>
    %330 = arith.addf %329, %328 : vector<2x32xf32>
    %331 = arith.divf %329, %330 : vector<2x32xf32>
    %332 = vector.extract_strided_slice %325 {offsets = [0, 32], sizes = [2, 32], strides = [1, 1]} : vector<2x128xf32> to vector<2x32xf32>
    %333 = arith.negf %332 : vector<2x32xf32>
    %334 = math.exp %333 : vector<2x32xf32>
    %cst_66 = arith.constant 1.000000e+00 : f32
    %335 = vector.broadcast %cst_66 : f32 to vector<2x32xf32>
    %336 = arith.addf %335, %334 : vector<2x32xf32>
    %337 = arith.divf %335, %336 : vector<2x32xf32>
    %338 = vector.extract_strided_slice %325 {offsets = [0, 64], sizes = [2, 32], strides = [1, 1]} : vector<2x128xf32> to vector<2x32xf32>
    %339 = math.tanh %338 : vector<2x32xf32>
    %340 = vector.extract_strided_slice %325 {offsets = [0, 96], sizes = [2, 32], strides = [1, 1]} : vector<2x128xf32> to vector<2x32xf32>
    %341 = arith.negf %340 : vector<2x32xf32>
    %342 = math.exp %341 : vector<2x32xf32>
    %cst_67 = arith.constant 1.000000e+00 : f32
    %343 = vector.broadcast %cst_67 : f32 to vector<2x32xf32>
    %344 = arith.addf %343, %342 : vector<2x32xf32>
    %345 = arith.divf %343, %344 : vector<2x32xf32>
    %346 = arith.mulf %337, %261 : vector<2x32xf32>
    %347 = arith.mulf %331, %339 : vector<2x32xf32>
    %348 = arith.addf %346, %347 : vector<2x32xf32>
    %349 = math.tanh %348 : vector<2x32xf32>
    %350 = arith.mulf %345, %349 : vector<2x32xf32>
    %351 = tpu.concatenate %350, %292 in 1 : vector<2x32xf32>, vector<2x32xf32> -> vector<2x64xf32>
    %352 = arith.truncf %351 : vector<2x64xf32> to vector<2x64xbf16>
    %cst_68 = arith.constant dense<0.000000e+00> : vector<2x128xf32>
    %353 = tpu.matmul %352, %17, %cst_68 {dimension_numbers = #tpu.dot_dimension_numbers<[1], [0], [0], [1], [0, 0, 1, 1], [], []>} : vector<2x64xbf16>, vector<64x128xbf16>, vector<2x128xf32> -> vector<2x128xf32>
    %354 = arith.addf %353, %25 : vector<2x128xf32>
    %355 = vector.extract_strided_slice %354 {offsets = [0, 0], sizes = [2, 32], strides = [1, 1]} : vector<2x128xf32> to vector<2x32xf32>
    %356 = arith.negf %355 : vector<2x32xf32>
    %357 = math.exp %356 : vector<2x32xf32>
    %cst_69 = arith.constant 1.000000e+00 : f32
    %358 = vector.broadcast %cst_69 : f32 to vector<2x32xf32>
    %359 = arith.addf %358, %357 : vector<2x32xf32>
    %360 = arith.divf %358, %359 : vector<2x32xf32>
    %361 = vector.extract_strided_slice %354 {offsets = [0, 32], sizes = [2, 32], strides = [1, 1]} : vector<2x128xf32> to vector<2x32xf32>
    %362 = arith.negf %361 : vector<2x32xf32>
    %363 = math.exp %362 : vector<2x32xf32>
    %cst_70 = arith.constant 1.000000e+00 : f32
    %364 = vector.broadcast %cst_70 : f32 to vector<2x32xf32>
    %365 = arith.addf %364, %363 : vector<2x32xf32>
    %366 = arith.divf %364, %365 : vector<2x32xf32>
    %367 = vector.extract_strided_slice %354 {offsets = [0, 64], sizes = [2, 32], strides = [1, 1]} : vector<2x128xf32> to vector<2x32xf32>
    %368 = math.tanh %367 : vector<2x32xf32>
    %369 = vector.extract_strided_slice %354 {offsets = [0, 96], sizes = [2, 32], strides = [1, 1]} : vector<2x128xf32> to vector<2x32xf32>
    %370 = arith.negf %369 : vector<2x32xf32>
    %371 = math.exp %370 : vector<2x32xf32>
    %cst_71 = arith.constant 1.000000e+00 : f32
    %372 = vector.broadcast %cst_71 : f32 to vector<2x32xf32>
    %373 = arith.addf %372, %371 : vector<2x32xf32>
    %374 = arith.divf %372, %373 : vector<2x32xf32>
    %375 = arith.mulf %366, %290 : vector<2x32xf32>
    %376 = arith.mulf %360, %368 : vector<2x32xf32>
    %377 = arith.addf %375, %376 : vector<2x32xf32>
    %378 = math.tanh %377 : vector<2x32xf32>
    %379 = arith.mulf %374, %378 : vector<2x32xf32>
    %380 = vector.extract_strided_slice %11 {offsets = [8, 0], sizes = [2, 128], strides = [1, 1]} : vector<16x128xf32> to vector<2x128xf32>
    %381 = arith.truncf %321 : vector<2x32xf32> to vector<2x32xbf16>
    %cst_72 = arith.constant dense<0.000000e+00> : vector<2x128xf32>
    %382 = tpu.matmul %381, %13, %cst_72 {dimension_numbers = #tpu.dot_dimension_numbers<[1], [0], [0], [1], [0, 0, 1, 1], [], []>} : vector<2x32xbf16>, vector<32x128xbf16>, vector<2x128xf32> -> vector<2x128xf32>
    %383 = arith.addf %380, %382 : vector<2x128xf32>
    %384 = vector.extract_strided_slice %383 {offsets = [0, 0], sizes = [2, 32], strides = [1, 1]} : vector<2x128xf32> to vector<2x32xf32>
    %385 = arith.negf %384 : vector<2x32xf32>
    %386 = math.exp %385 : vector<2x32xf32>
    %cst_73 = arith.constant 1.000000e+00 : f32
    %387 = vector.broadcast %cst_73 : f32 to vector<2x32xf32>
    %388 = arith.addf %387, %386 : vector<2x32xf32>
    %389 = arith.divf %387, %388 : vector<2x32xf32>
    %390 = vector.extract_strided_slice %383 {offsets = [0, 32], sizes = [2, 32], strides = [1, 1]} : vector<2x128xf32> to vector<2x32xf32>
    %391 = arith.negf %390 : vector<2x32xf32>
    %392 = math.exp %391 : vector<2x32xf32>
    %cst_74 = arith.constant 1.000000e+00 : f32
    %393 = vector.broadcast %cst_74 : f32 to vector<2x32xf32>
    %394 = arith.addf %393, %392 : vector<2x32xf32>
    %395 = arith.divf %393, %394 : vector<2x32xf32>
    %396 = vector.extract_strided_slice %383 {offsets = [0, 64], sizes = [2, 32], strides = [1, 1]} : vector<2x128xf32> to vector<2x32xf32>
    %397 = math.tanh %396 : vector<2x32xf32>
    %398 = vector.extract_strided_slice %383 {offsets = [0, 96], sizes = [2, 32], strides = [1, 1]} : vector<2x128xf32> to vector<2x32xf32>
    %399 = arith.negf %398 : vector<2x32xf32>
    %400 = math.exp %399 : vector<2x32xf32>
    %cst_75 = arith.constant 1.000000e+00 : f32
    %401 = vector.broadcast %cst_75 : f32 to vector<2x32xf32>
    %402 = arith.addf %401, %400 : vector<2x32xf32>
    %403 = arith.divf %401, %402 : vector<2x32xf32>
    %404 = arith.mulf %395, %319 : vector<2x32xf32>
    %405 = arith.mulf %389, %397 : vector<2x32xf32>
    %406 = arith.addf %404, %405 : vector<2x32xf32>
    %407 = math.tanh %406 : vector<2x32xf32>
    %408 = arith.mulf %403, %407 : vector<2x32xf32>
    %409 = tpu.concatenate %408, %350 in 1 : vector<2x32xf32>, vector<2x32xf32> -> vector<2x64xf32>
    %410 = arith.truncf %409 : vector<2x64xf32> to vector<2x64xbf16>
    %cst_76 = arith.constant dense<0.000000e+00> : vector<2x128xf32>
    %411 = tpu.matmul %410, %15, %cst_76 {dimension_numbers = #tpu.dot_dimension_numbers<[1], [0], [0], [1], [0, 0, 1, 1], [], []>} : vector<2x64xbf16>, vector<64x128xbf16>, vector<2x128xf32> -> vector<2x128xf32>
    %412 = arith.addf %411, %21 : vector<2x128xf32>
    %413 = vector.extract_strided_slice %412 {offsets = [0, 0], sizes = [2, 32], strides = [1, 1]} : vector<2x128xf32> to vector<2x32xf32>
    %414 = arith.negf %413 : vector<2x32xf32>
    %415 = math.exp %414 : vector<2x32xf32>
    %cst_77 = arith.constant 1.000000e+00 : f32
    %416 = vector.broadcast %cst_77 : f32 to vector<2x32xf32>
    %417 = arith.addf %416, %415 : vector<2x32xf32>
    %418 = arith.divf %416, %417 : vector<2x32xf32>
    %419 = vector.extract_strided_slice %412 {offsets = [0, 32], sizes = [2, 32], strides = [1, 1]} : vector<2x128xf32> to vector<2x32xf32>
    %420 = arith.negf %419 : vector<2x32xf32>
    %421 = math.exp %420 : vector<2x32xf32>
    %cst_78 = arith.constant 1.000000e+00 : f32
    %422 = vector.broadcast %cst_78 : f32 to vector<2x32xf32>
    %423 = arith.addf %422, %421 : vector<2x32xf32>
    %424 = arith.divf %422, %423 : vector<2x32xf32>
    %425 = vector.extract_strided_slice %412 {offsets = [0, 64], sizes = [2, 32], strides = [1, 1]} : vector<2x128xf32> to vector<2x32xf32>
    %426 = math.tanh %425 : vector<2x32xf32>
    %427 = vector.extract_strided_slice %412 {offsets = [0, 96], sizes = [2, 32], strides = [1, 1]} : vector<2x128xf32> to vector<2x32xf32>
    %428 = arith.negf %427 : vector<2x32xf32>
    %429 = math.exp %428 : vector<2x32xf32>
    %cst_79 = arith.constant 1.000000e+00 : f32
    %430 = vector.broadcast %cst_79 : f32 to vector<2x32xf32>
    %431 = arith.addf %430, %429 : vector<2x32xf32>
    %432 = arith.divf %430, %431 : vector<2x32xf32>
    %433 = arith.mulf %424, %348 : vector<2x32xf32>
    %434 = arith.mulf %418, %426 : vector<2x32xf32>
    %435 = arith.addf %433, %434 : vector<2x32xf32>
    %436 = math.tanh %435 : vector<2x32xf32>
    %437 = arith.mulf %432, %436 : vector<2x32xf32>
    %438 = tpu.concatenate %437, %379 in 1 : vector<2x32xf32>, vector<2x32xf32> -> vector<2x64xf32>
    %439 = arith.truncf %438 : vector<2x64xf32> to vector<2x64xbf16>
    %cst_80 = arith.constant dense<0.000000e+00> : vector<2x128xf32>
    %440 = tpu.matmul %439, %17, %cst_80 {dimension_numbers = #tpu.dot_dimension_numbers<[1], [0], [0], [1], [0, 0, 1, 1], [], []>} : vector<2x64xbf16>, vector<64x128xbf16>, vector<2x128xf32> -> vector<2x128xf32>
    %441 = arith.addf %440, %25 : vector<2x128xf32>
    %442 = vector.extract_strided_slice %441 {offsets = [0, 0], sizes = [2, 32], strides = [1, 1]} : vector<2x128xf32> to vector<2x32xf32>
    %443 = arith.negf %442 : vector<2x32xf32>
    %444 = math.exp %443 : vector<2x32xf32>
    %cst_81 = arith.constant 1.000000e+00 : f32
    %445 = vector.broadcast %cst_81 : f32 to vector<2x32xf32>
    %446 = arith.addf %445, %444 : vector<2x32xf32>
    %447 = arith.divf %445, %446 : vector<2x32xf32>
    %448 = vector.extract_strided_slice %441 {offsets = [0, 32], sizes = [2, 32], strides = [1, 1]} : vector<2x128xf32> to vector<2x32xf32>
    %449 = arith.negf %448 : vector<2x32xf32>
    %450 = math.exp %449 : vector<2x32xf32>
    %cst_82 = arith.constant 1.000000e+00 : f32
    %451 = vector.broadcast %cst_82 : f32 to vector<2x32xf32>
    %452 = arith.addf %451, %450 : vector<2x32xf32>
    %453 = arith.divf %451, %452 : vector<2x32xf32>
    %454 = vector.extract_strided_slice %441 {offsets = [0, 64], sizes = [2, 32], strides = [1, 1]} : vector<2x128xf32> to vector<2x32xf32>
    %455 = math.tanh %454 : vector<2x32xf32>
    %456 = vector.extract_strided_slice %441 {offsets = [0, 96], sizes = [2, 32], strides = [1, 1]} : vector<2x128xf32> to vector<2x32xf32>
    %457 = arith.negf %456 : vector<2x32xf32>
    %458 = math.exp %457 : vector<2x32xf32>
    %cst_83 = arith.constant 1.000000e+00 : f32
    %459 = vector.broadcast %cst_83 : f32 to vector<2x32xf32>
    %460 = arith.addf %459, %458 : vector<2x32xf32>
    %461 = arith.divf %459, %460 : vector<2x32xf32>
    %462 = arith.mulf %453, %377 : vector<2x32xf32>
    %463 = arith.mulf %447, %455 : vector<2x32xf32>
    %464 = arith.addf %462, %463 : vector<2x32xf32>
    %465 = math.tanh %464 : vector<2x32xf32>
    %466 = arith.mulf %461, %465 : vector<2x32xf32>
    %467 = vector.extract_strided_slice %11 {offsets = [10, 0], sizes = [2, 128], strides = [1, 1]} : vector<16x128xf32> to vector<2x128xf32>
    %468 = arith.truncf %408 : vector<2x32xf32> to vector<2x32xbf16>
    %cst_84 = arith.constant dense<0.000000e+00> : vector<2x128xf32>
    %469 = tpu.matmul %468, %13, %cst_84 {dimension_numbers = #tpu.dot_dimension_numbers<[1], [0], [0], [1], [0, 0, 1, 1], [], []>} : vector<2x32xbf16>, vector<32x128xbf16>, vector<2x128xf32> -> vector<2x128xf32>
    %470 = arith.addf %467, %469 : vector<2x128xf32>
    %471 = vector.extract_strided_slice %470 {offsets = [0, 0], sizes = [2, 32], strides = [1, 1]} : vector<2x128xf32> to vector<2x32xf32>
    %472 = arith.negf %471 : vector<2x32xf32>
    %473 = math.exp %472 : vector<2x32xf32>
    %cst_85 = arith.constant 1.000000e+00 : f32
    %474 = vector.broadcast %cst_85 : f32 to vector<2x32xf32>
    %475 = arith.addf %474, %473 : vector<2x32xf32>
    %476 = arith.divf %474, %475 : vector<2x32xf32>
    %477 = vector.extract_strided_slice %470 {offsets = [0, 32], sizes = [2, 32], strides = [1, 1]} : vector<2x128xf32> to vector<2x32xf32>
    %478 = arith.negf %477 : vector<2x32xf32>
    %479 = math.exp %478 : vector<2x32xf32>
    %cst_86 = arith.constant 1.000000e+00 : f32
    %480 = vector.broadcast %cst_86 : f32 to vector<2x32xf32>
    %481 = arith.addf %480, %479 : vector<2x32xf32>
    %482 = arith.divf %480, %481 : vector<2x32xf32>
    %483 = vector.extract_strided_slice %470 {offsets = [0, 64], sizes = [2, 32], strides = [1, 1]} : vector<2x128xf32> to vector<2x32xf32>
    %484 = math.tanh %483 : vector<2x32xf32>
    %485 = vector.extract_strided_slice %470 {offsets = [0, 96], sizes = [2, 32], strides = [1, 1]} : vector<2x128xf32> to vector<2x32xf32>
    %486 = arith.negf %485 : vector<2x32xf32>
    %487 = math.exp %486 : vector<2x32xf32>
    %cst_87 = arith.constant 1.000000e+00 : f32
    %488 = vector.broadcast %cst_87 : f32 to vector<2x32xf32>
    %489 = arith.addf %488, %487 : vector<2x32xf32>
    %490 = arith.divf %488, %489 : vector<2x32xf32>
    %491 = arith.mulf %482, %406 : vector<2x32xf32>
    %492 = arith.mulf %476, %484 : vector<2x32xf32>
    %493 = arith.addf %491, %492 : vector<2x32xf32>
    %494 = math.tanh %493 : vector<2x32xf32>
    %495 = arith.mulf %490, %494 : vector<2x32xf32>
    %496 = tpu.concatenate %495, %437 in 1 : vector<2x32xf32>, vector<2x32xf32> -> vector<2x64xf32>
    %497 = arith.truncf %496 : vector<2x64xf32> to vector<2x64xbf16>
    %cst_88 = arith.constant dense<0.000000e+00> : vector<2x128xf32>
    %498 = tpu.matmul %497, %15, %cst_88 {dimension_numbers = #tpu.dot_dimension_numbers<[1], [0], [0], [1], [0, 0, 1, 1], [], []>} : vector<2x64xbf16>, vector<64x128xbf16>, vector<2x128xf32> -> vector<2x128xf32>
    %499 = arith.addf %498, %21 : vector<2x128xf32>
    %500 = vector.extract_strided_slice %499 {offsets = [0, 0], sizes = [2, 32], strides = [1, 1]} : vector<2x128xf32> to vector<2x32xf32>
    %501 = arith.negf %500 : vector<2x32xf32>
    %502 = math.exp %501 : vector<2x32xf32>
    %cst_89 = arith.constant 1.000000e+00 : f32
    %503 = vector.broadcast %cst_89 : f32 to vector<2x32xf32>
    %504 = arith.addf %503, %502 : vector<2x32xf32>
    %505 = arith.divf %503, %504 : vector<2x32xf32>
    %506 = vector.extract_strided_slice %499 {offsets = [0, 32], sizes = [2, 32], strides = [1, 1]} : vector<2x128xf32> to vector<2x32xf32>
    %507 = arith.negf %506 : vector<2x32xf32>
    %508 = math.exp %507 : vector<2x32xf32>
    %cst_90 = arith.constant 1.000000e+00 : f32
    %509 = vector.broadcast %cst_90 : f32 to vector<2x32xf32>
    %510 = arith.addf %509, %508 : vector<2x32xf32>
    %511 = arith.divf %509, %510 : vector<2x32xf32>
    %512 = vector.extract_strided_slice %499 {offsets = [0, 64], sizes = [2, 32], strides = [1, 1]} : vector<2x128xf32> to vector<2x32xf32>
    %513 = math.tanh %512 : vector<2x32xf32>
    %514 = vector.extract_strided_slice %499 {offsets = [0, 96], sizes = [2, 32], strides = [1, 1]} : vector<2x128xf32> to vector<2x32xf32>
    %515 = arith.negf %514 : vector<2x32xf32>
    %516 = math.exp %515 : vector<2x32xf32>
    %cst_91 = arith.constant 1.000000e+00 : f32
    %517 = vector.broadcast %cst_91 : f32 to vector<2x32xf32>
    %518 = arith.addf %517, %516 : vector<2x32xf32>
    %519 = arith.divf %517, %518 : vector<2x32xf32>
    %520 = arith.mulf %511, %435 : vector<2x32xf32>
    %521 = arith.mulf %505, %513 : vector<2x32xf32>
    %522 = arith.addf %520, %521 : vector<2x32xf32>
    %523 = math.tanh %522 : vector<2x32xf32>
    %524 = arith.mulf %519, %523 : vector<2x32xf32>
    %525 = tpu.concatenate %524, %466 in 1 : vector<2x32xf32>, vector<2x32xf32> -> vector<2x64xf32>
    %526 = arith.truncf %525 : vector<2x64xf32> to vector<2x64xbf16>
    %cst_92 = arith.constant dense<0.000000e+00> : vector<2x128xf32>
    %527 = tpu.matmul %526, %17, %cst_92 {dimension_numbers = #tpu.dot_dimension_numbers<[1], [0], [0], [1], [0, 0, 1, 1], [], []>} : vector<2x64xbf16>, vector<64x128xbf16>, vector<2x128xf32> -> vector<2x128xf32>
    %528 = arith.addf %527, %25 : vector<2x128xf32>
    %529 = vector.extract_strided_slice %528 {offsets = [0, 0], sizes = [2, 32], strides = [1, 1]} : vector<2x128xf32> to vector<2x32xf32>
    %530 = arith.negf %529 : vector<2x32xf32>
    %531 = math.exp %530 : vector<2x32xf32>
    %cst_93 = arith.constant 1.000000e+00 : f32
    %532 = vector.broadcast %cst_93 : f32 to vector<2x32xf32>
    %533 = arith.addf %532, %531 : vector<2x32xf32>
    %534 = arith.divf %532, %533 : vector<2x32xf32>
    %535 = vector.extract_strided_slice %528 {offsets = [0, 32], sizes = [2, 32], strides = [1, 1]} : vector<2x128xf32> to vector<2x32xf32>
    %536 = arith.negf %535 : vector<2x32xf32>
    %537 = math.exp %536 : vector<2x32xf32>
    %cst_94 = arith.constant 1.000000e+00 : f32
    %538 = vector.broadcast %cst_94 : f32 to vector<2x32xf32>
    %539 = arith.addf %538, %537 : vector<2x32xf32>
    %540 = arith.divf %538, %539 : vector<2x32xf32>
    %541 = vector.extract_strided_slice %528 {offsets = [0, 64], sizes = [2, 32], strides = [1, 1]} : vector<2x128xf32> to vector<2x32xf32>
    %542 = math.tanh %541 : vector<2x32xf32>
    %543 = vector.extract_strided_slice %528 {offsets = [0, 96], sizes = [2, 32], strides = [1, 1]} : vector<2x128xf32> to vector<2x32xf32>
    %544 = arith.negf %543 : vector<2x32xf32>
    %545 = math.exp %544 : vector<2x32xf32>
    %cst_95 = arith.constant 1.000000e+00 : f32
    %546 = vector.broadcast %cst_95 : f32 to vector<2x32xf32>
    %547 = arith.addf %546, %545 : vector<2x32xf32>
    %548 = arith.divf %546, %547 : vector<2x32xf32>
    %549 = arith.mulf %540, %464 : vector<2x32xf32>
    %550 = arith.mulf %534, %542 : vector<2x32xf32>
    %551 = arith.addf %549, %550 : vector<2x32xf32>
    %552 = math.tanh %551 : vector<2x32xf32>
    %553 = arith.mulf %548, %552 : vector<2x32xf32>
    %554 = vector.extract_strided_slice %11 {offsets = [12, 0], sizes = [2, 128], strides = [1, 1]} : vector<16x128xf32> to vector<2x128xf32>
    %555 = arith.truncf %495 : vector<2x32xf32> to vector<2x32xbf16>
    %cst_96 = arith.constant dense<0.000000e+00> : vector<2x128xf32>
    %556 = tpu.matmul %555, %13, %cst_96 {dimension_numbers = #tpu.dot_dimension_numbers<[1], [0], [0], [1], [0, 0, 1, 1], [], []>} : vector<2x32xbf16>, vector<32x128xbf16>, vector<2x128xf32> -> vector<2x128xf32>
    %557 = arith.addf %554, %556 : vector<2x128xf32>
    %558 = vector.extract_strided_slice %557 {offsets = [0, 0], sizes = [2, 32], strides = [1, 1]} : vector<2x128xf32> to vector<2x32xf32>
    %559 = arith.negf %558 : vector<2x32xf32>
    %560 = math.exp %559 : vector<2x32xf32>
    %cst_97 = arith.constant 1.000000e+00 : f32
    %561 = vector.broadcast %cst_97 : f32 to vector<2x32xf32>
    %562 = arith.addf %561, %560 : vector<2x32xf32>
    %563 = arith.divf %561, %562 : vector<2x32xf32>
    %564 = vector.extract_strided_slice %557 {offsets = [0, 32], sizes = [2, 32], strides = [1, 1]} : vector<2x128xf32> to vector<2x32xf32>
    %565 = arith.negf %564 : vector<2x32xf32>
    %566 = math.exp %565 : vector<2x32xf32>
    %cst_98 = arith.constant 1.000000e+00 : f32
    %567 = vector.broadcast %cst_98 : f32 to vector<2x32xf32>
    %568 = arith.addf %567, %566 : vector<2x32xf32>
    %569 = arith.divf %567, %568 : vector<2x32xf32>
    %570 = vector.extract_strided_slice %557 {offsets = [0, 64], sizes = [2, 32], strides = [1, 1]} : vector<2x128xf32> to vector<2x32xf32>
    %571 = math.tanh %570 : vector<2x32xf32>
    %572 = vector.extract_strided_slice %557 {offsets = [0, 96], sizes = [2, 32], strides = [1, 1]} : vector<2x128xf32> to vector<2x32xf32>
    %573 = arith.negf %572 : vector<2x32xf32>
    %574 = math.exp %573 : vector<2x32xf32>
    %cst_99 = arith.constant 1.000000e+00 : f32
    %575 = vector.broadcast %cst_99 : f32 to vector<2x32xf32>
    %576 = arith.addf %575, %574 : vector<2x32xf32>
    %577 = arith.divf %575, %576 : vector<2x32xf32>
    %578 = arith.mulf %569, %493 : vector<2x32xf32>
    %579 = arith.mulf %563, %571 : vector<2x32xf32>
    %580 = arith.addf %578, %579 : vector<2x32xf32>
    %581 = math.tanh %580 : vector<2x32xf32>
    %582 = arith.mulf %577, %581 : vector<2x32xf32>
    %583 = tpu.concatenate %582, %524 in 1 : vector<2x32xf32>, vector<2x32xf32> -> vector<2x64xf32>
    %584 = arith.truncf %583 : vector<2x64xf32> to vector<2x64xbf16>
    %cst_100 = arith.constant dense<0.000000e+00> : vector<2x128xf32>
    %585 = tpu.matmul %584, %15, %cst_100 {dimension_numbers = #tpu.dot_dimension_numbers<[1], [0], [0], [1], [0, 0, 1, 1], [], []>} : vector<2x64xbf16>, vector<64x128xbf16>, vector<2x128xf32> -> vector<2x128xf32>
    %586 = arith.addf %585, %21 : vector<2x128xf32>
    %587 = vector.extract_strided_slice %586 {offsets = [0, 0], sizes = [2, 32], strides = [1, 1]} : vector<2x128xf32> to vector<2x32xf32>
    %588 = arith.negf %587 : vector<2x32xf32>
    %589 = math.exp %588 : vector<2x32xf32>
    %cst_101 = arith.constant 1.000000e+00 : f32
    %590 = vector.broadcast %cst_101 : f32 to vector<2x32xf32>
    %591 = arith.addf %590, %589 : vector<2x32xf32>
    %592 = arith.divf %590, %591 : vector<2x32xf32>
    %593 = vector.extract_strided_slice %586 {offsets = [0, 32], sizes = [2, 32], strides = [1, 1]} : vector<2x128xf32> to vector<2x32xf32>
    %594 = arith.negf %593 : vector<2x32xf32>
    %595 = math.exp %594 : vector<2x32xf32>
    %cst_102 = arith.constant 1.000000e+00 : f32
    %596 = vector.broadcast %cst_102 : f32 to vector<2x32xf32>
    %597 = arith.addf %596, %595 : vector<2x32xf32>
    %598 = arith.divf %596, %597 : vector<2x32xf32>
    %599 = vector.extract_strided_slice %586 {offsets = [0, 64], sizes = [2, 32], strides = [1, 1]} : vector<2x128xf32> to vector<2x32xf32>
    %600 = math.tanh %599 : vector<2x32xf32>
    %601 = vector.extract_strided_slice %586 {offsets = [0, 96], sizes = [2, 32], strides = [1, 1]} : vector<2x128xf32> to vector<2x32xf32>
    %602 = arith.negf %601 : vector<2x32xf32>
    %603 = math.exp %602 : vector<2x32xf32>
    %cst_103 = arith.constant 1.000000e+00 : f32
    %604 = vector.broadcast %cst_103 : f32 to vector<2x32xf32>
    %605 = arith.addf %604, %603 : vector<2x32xf32>
    %606 = arith.divf %604, %605 : vector<2x32xf32>
    %607 = arith.mulf %598, %522 : vector<2x32xf32>
    %608 = arith.mulf %592, %600 : vector<2x32xf32>
    %609 = arith.addf %607, %608 : vector<2x32xf32>
    %610 = math.tanh %609 : vector<2x32xf32>
    %611 = arith.mulf %606, %610 : vector<2x32xf32>
    %612 = tpu.concatenate %611, %553 in 1 : vector<2x32xf32>, vector<2x32xf32> -> vector<2x64xf32>
    %613 = arith.truncf %612 : vector<2x64xf32> to vector<2x64xbf16>
    %cst_104 = arith.constant dense<0.000000e+00> : vector<2x128xf32>
    %614 = tpu.matmul %613, %17, %cst_104 {dimension_numbers = #tpu.dot_dimension_numbers<[1], [0], [0], [1], [0, 0, 1, 1], [], []>} : vector<2x64xbf16>, vector<64x128xbf16>, vector<2x128xf32> -> vector<2x128xf32>
    %615 = arith.addf %614, %25 : vector<2x128xf32>
    %616 = vector.extract_strided_slice %615 {offsets = [0, 0], sizes = [2, 32], strides = [1, 1]} : vector<2x128xf32> to vector<2x32xf32>
    %617 = arith.negf %616 : vector<2x32xf32>
    %618 = math.exp %617 : vector<2x32xf32>
    %cst_105 = arith.constant 1.000000e+00 : f32
    %619 = vector.broadcast %cst_105 : f32 to vector<2x32xf32>
    %620 = arith.addf %619, %618 : vector<2x32xf32>
    %621 = arith.divf %619, %620 : vector<2x32xf32>
    %622 = vector.extract_strided_slice %615 {offsets = [0, 32], sizes = [2, 32], strides = [1, 1]} : vector<2x128xf32> to vector<2x32xf32>
    %623 = arith.negf %622 : vector<2x32xf32>
    %624 = math.exp %623 : vector<2x32xf32>
    %cst_106 = arith.constant 1.000000e+00 : f32
    %625 = vector.broadcast %cst_106 : f32 to vector<2x32xf32>
    %626 = arith.addf %625, %624 : vector<2x32xf32>
    %627 = arith.divf %625, %626 : vector<2x32xf32>
    %628 = vector.extract_strided_slice %615 {offsets = [0, 64], sizes = [2, 32], strides = [1, 1]} : vector<2x128xf32> to vector<2x32xf32>
    %629 = math.tanh %628 : vector<2x32xf32>
    %630 = vector.extract_strided_slice %615 {offsets = [0, 96], sizes = [2, 32], strides = [1, 1]} : vector<2x128xf32> to vector<2x32xf32>
    %631 = arith.negf %630 : vector<2x32xf32>
    %632 = math.exp %631 : vector<2x32xf32>
    %cst_107 = arith.constant 1.000000e+00 : f32
    %633 = vector.broadcast %cst_107 : f32 to vector<2x32xf32>
    %634 = arith.addf %633, %632 : vector<2x32xf32>
    %635 = arith.divf %633, %634 : vector<2x32xf32>
    %636 = arith.mulf %627, %551 : vector<2x32xf32>
    %637 = arith.mulf %621, %629 : vector<2x32xf32>
    %638 = arith.addf %636, %637 : vector<2x32xf32>
    %639 = math.tanh %638 : vector<2x32xf32>
    %640 = arith.mulf %635, %639 : vector<2x32xf32>
    %641 = vector.extract_strided_slice %11 {offsets = [14, 0], sizes = [2, 128], strides = [1, 1]} : vector<16x128xf32> to vector<2x128xf32>
    %642 = arith.truncf %582 : vector<2x32xf32> to vector<2x32xbf16>
    %cst_108 = arith.constant dense<0.000000e+00> : vector<2x128xf32>
    %643 = tpu.matmul %642, %13, %cst_108 {dimension_numbers = #tpu.dot_dimension_numbers<[1], [0], [0], [1], [0, 0, 1, 1], [], []>} : vector<2x32xbf16>, vector<32x128xbf16>, vector<2x128xf32> -> vector<2x128xf32>
    %644 = arith.addf %641, %643 : vector<2x128xf32>
    %645 = vector.extract_strided_slice %644 {offsets = [0, 0], sizes = [2, 32], strides = [1, 1]} : vector<2x128xf32> to vector<2x32xf32>
    %646 = arith.negf %645 : vector<2x32xf32>
    %647 = math.exp %646 : vector<2x32xf32>
    %cst_109 = arith.constant 1.000000e+00 : f32
    %648 = vector.broadcast %cst_109 : f32 to vector<2x32xf32>
    %649 = arith.addf %648, %647 : vector<2x32xf32>
    %650 = arith.divf %648, %649 : vector<2x32xf32>
    %651 = vector.extract_strided_slice %644 {offsets = [0, 32], sizes = [2, 32], strides = [1, 1]} : vector<2x128xf32> to vector<2x32xf32>
    %652 = arith.negf %651 : vector<2x32xf32>
    %653 = math.exp %652 : vector<2x32xf32>
    %cst_110 = arith.constant 1.000000e+00 : f32
    %654 = vector.broadcast %cst_110 : f32 to vector<2x32xf32>
    %655 = arith.addf %654, %653 : vector<2x32xf32>
    %656 = arith.divf %654, %655 : vector<2x32xf32>
    %657 = vector.extract_strided_slice %644 {offsets = [0, 64], sizes = [2, 32], strides = [1, 1]} : vector<2x128xf32> to vector<2x32xf32>
    %658 = math.tanh %657 : vector<2x32xf32>
    %659 = vector.extract_strided_slice %644 {offsets = [0, 96], sizes = [2, 32], strides = [1, 1]} : vector<2x128xf32> to vector<2x32xf32>
    %660 = arith.negf %659 : vector<2x32xf32>
    %661 = math.exp %660 : vector<2x32xf32>
    %cst_111 = arith.constant 1.000000e+00 : f32
    %662 = vector.broadcast %cst_111 : f32 to vector<2x32xf32>
    %663 = arith.addf %662, %661 : vector<2x32xf32>
    %664 = arith.divf %662, %663 : vector<2x32xf32>
    %665 = arith.mulf %656, %580 : vector<2x32xf32>
    %666 = arith.mulf %650, %658 : vector<2x32xf32>
    %667 = arith.addf %665, %666 : vector<2x32xf32>
    %668 = math.tanh %667 : vector<2x32xf32>
    %669 = arith.mulf %664, %668 : vector<2x32xf32>
    %670 = tpu.concatenate %669, %611 in 1 : vector<2x32xf32>, vector<2x32xf32> -> vector<2x64xf32>
    %671 = arith.truncf %670 : vector<2x64xf32> to vector<2x64xbf16>
    %cst_112 = arith.constant dense<0.000000e+00> : vector<2x128xf32>
    %672 = tpu.matmul %671, %15, %cst_112 {dimension_numbers = #tpu.dot_dimension_numbers<[1], [0], [0], [1], [0, 0, 1, 1], [], []>} : vector<2x64xbf16>, vector<64x128xbf16>, vector<2x128xf32> -> vector<2x128xf32>
    %673 = arith.addf %672, %21 : vector<2x128xf32>
    %674 = vector.extract_strided_slice %673 {offsets = [0, 0], sizes = [2, 32], strides = [1, 1]} : vector<2x128xf32> to vector<2x32xf32>
    %675 = arith.negf %674 : vector<2x32xf32>
    %676 = math.exp %675 : vector<2x32xf32>
    %cst_113 = arith.constant 1.000000e+00 : f32
    %677 = vector.broadcast %cst_113 : f32 to vector<2x32xf32>
    %678 = arith.addf %677, %676 : vector<2x32xf32>
    %679 = arith.divf %677, %678 : vector<2x32xf32>
    %680 = vector.extract_strided_slice %673 {offsets = [0, 32], sizes = [2, 32], strides = [1, 1]} : vector<2x128xf32> to vector<2x32xf32>
    %681 = arith.negf %680 : vector<2x32xf32>
    %682 = math.exp %681 : vector<2x32xf32>
    %cst_114 = arith.constant 1.000000e+00 : f32
    %683 = vector.broadcast %cst_114 : f32 to vector<2x32xf32>
    %684 = arith.addf %683, %682 : vector<2x32xf32>
    %685 = arith.divf %683, %684 : vector<2x32xf32>
    %686 = vector.extract_strided_slice %673 {offsets = [0, 64], sizes = [2, 32], strides = [1, 1]} : vector<2x128xf32> to vector<2x32xf32>
    %687 = math.tanh %686 : vector<2x32xf32>
    %688 = vector.extract_strided_slice %673 {offsets = [0, 96], sizes = [2, 32], strides = [1, 1]} : vector<2x128xf32> to vector<2x32xf32>
    %689 = arith.negf %688 : vector<2x32xf32>
    %690 = math.exp %689 : vector<2x32xf32>
    %cst_115 = arith.constant 1.000000e+00 : f32
    %691 = vector.broadcast %cst_115 : f32 to vector<2x32xf32>
    %692 = arith.addf %691, %690 : vector<2x32xf32>
    %693 = arith.divf %691, %692 : vector<2x32xf32>
    %694 = arith.mulf %685, %609 : vector<2x32xf32>
    %695 = arith.mulf %679, %687 : vector<2x32xf32>
    %696 = arith.addf %694, %695 : vector<2x32xf32>
    %697 = math.tanh %696 : vector<2x32xf32>
    %698 = arith.mulf %693, %697 : vector<2x32xf32>
    %699 = tpu.concatenate %698, %640 in 1 : vector<2x32xf32>, vector<2x32xf32> -> vector<2x64xf32>
    %700 = arith.truncf %699 : vector<2x64xf32> to vector<2x64xbf16>
    %cst_116 = arith.constant dense<0.000000e+00> : vector<2x128xf32>
    %701 = tpu.matmul %700, %17, %cst_116 {dimension_numbers = #tpu.dot_dimension_numbers<[1], [0], [0], [1], [0, 0, 1, 1], [], []>} : vector<2x64xbf16>, vector<64x128xbf16>, vector<2x128xf32> -> vector<2x128xf32>
    %702 = arith.addf %701, %25 : vector<2x128xf32>
    %703 = vector.extract_strided_slice %702 {offsets = [0, 0], sizes = [2, 32], strides = [1, 1]} : vector<2x128xf32> to vector<2x32xf32>
    %704 = arith.negf %703 : vector<2x32xf32>
    %705 = math.exp %704 : vector<2x32xf32>
    %cst_117 = arith.constant 1.000000e+00 : f32
    %706 = vector.broadcast %cst_117 : f32 to vector<2x32xf32>
    %707 = arith.addf %706, %705 : vector<2x32xf32>
    %708 = arith.divf %706, %707 : vector<2x32xf32>
    %709 = vector.extract_strided_slice %702 {offsets = [0, 32], sizes = [2, 32], strides = [1, 1]} : vector<2x128xf32> to vector<2x32xf32>
    %710 = arith.negf %709 : vector<2x32xf32>
    %711 = math.exp %710 : vector<2x32xf32>
    %cst_118 = arith.constant 1.000000e+00 : f32
    %712 = vector.broadcast %cst_118 : f32 to vector<2x32xf32>
    %713 = arith.addf %712, %711 : vector<2x32xf32>
    %714 = arith.divf %712, %713 : vector<2x32xf32>
    %715 = vector.extract_strided_slice %702 {offsets = [0, 64], sizes = [2, 32], strides = [1, 1]} : vector<2x128xf32> to vector<2x32xf32>
    %716 = math.tanh %715 : vector<2x32xf32>
    %717 = vector.extract_strided_slice %702 {offsets = [0, 96], sizes = [2, 32], strides = [1, 1]} : vector<2x128xf32> to vector<2x32xf32>
    %718 = arith.negf %717 : vector<2x32xf32>
    %719 = math.exp %718 : vector<2x32xf32>
    %cst_119 = arith.constant 1.000000e+00 : f32
    %720 = vector.broadcast %cst_119 : f32 to vector<2x32xf32>
    %721 = arith.addf %720, %719 : vector<2x32xf32>
    %722 = arith.divf %720, %721 : vector<2x32xf32>
    %723 = arith.mulf %714, %638 : vector<2x32xf32>
    %724 = arith.mulf %708, %716 : vector<2x32xf32>
    %725 = arith.addf %723, %724 : vector<2x32xf32>
    %726 = math.tanh %725 : vector<2x32xf32>
    %727 = arith.mulf %722, %726 : vector<2x32xf32>
    %728 = tpu.concatenate %118, %205, %292, %379, %466, %553, %640, %727 in 0 : vector<2x32xf32>, vector<2x32xf32>, vector<2x32xf32>, vector<2x32xf32>, vector<2x32xf32>, vector<2x32xf32>, vector<2x32xf32>, vector<2x32xf32> -> vector<16x32xf32>
    %c0_120 = arith.constant 0 : index
    %c0_121 = arith.constant 0 : index
    %c0_122 = arith.constant 0 : index
    %729 = vector.load %arg7[%c0_120, %c0_121, %c0_122] : memref<1x32x128xf32, #tpu.memory_space<vmem>>, vector<1x32x128xf32>
    %730 = vector.shape_cast %729 : vector<1x32x128xf32> to vector<32x128xf32>
    %cst_123 = arith.constant dense<0.000000e+00> : vector<16x128xf32>
    %731 = tpu.matmul %728, %730, %cst_123 {dimension_numbers = #tpu.dot_dimension_numbers<[1], [0], [0], [1], [0, 0, 1, 1], [], []>} : vector<16x32xf32>, vector<32x128xf32>, vector<16x128xf32> -> vector<16x128xf32>
    %c0_124 = arith.constant 0 : index
    %c0_125 = arith.constant 0 : index
    %c0_126 = arith.constant 0 : index
    %732 = vector.load %arg8[%c0_124, %c0_125, %c0_126] : memref<1x1x128xf32, #tpu.memory_space<vmem>>, vector<1x1x128xf32>
    %733 = vector.shape_cast %732 : vector<1x1x128xf32> to vector<1x128xf32>
    %734 = vector.broadcast %733 : vector<1x128xf32> to vector<16x128xf32>
    %735 = arith.addf %731, %734 : vector<16x128xf32>
    %736 = arith.index_cast %arg0 : i32 to index
    %737 = memref.load %arg1[%736] : memref<2xi32, #tpu.memory_space<smem>>
    %c1_i32 = arith.constant 1 : i32
    %738 = arith.cmpi eq, %737, %c1_i32 : i32
    %739 = arith.negf %735 : vector<16x128xf32>
    %740 = math.exp %739 : vector<16x128xf32>
    %cst_127 = arith.constant 1.000000e+00 : f32
    %741 = vector.broadcast %cst_127 : f32 to vector<16x128xf32>
    %742 = arith.addf %741, %740 : vector<16x128xf32>
    %743 = arith.divf %741, %742 : vector<16x128xf32>
    %cst_128 = arith.constant 0.000000e+00 : f32
    %744 = vector.broadcast %cst_128 : f32 to vector<16x128xf32>
    %745 = arith.maximumf %735, %744 : vector<16x128xf32>
    %746 = arith.select %738, %743, %745 : vector<16x128xf32>
    %c0_129 = arith.constant 0 : index
    %c0_130 = arith.constant 0 : index
    %c0_131 = arith.constant 0 : index
    %747 = vector.load %arg9[%c0_129, %c0_130, %c0_131] : memref<1x16x128xf32, #tpu.memory_space<vmem>>, vector<1x16x128xf32>
    %748 = vector.shape_cast %747 : vector<1x16x128xf32> to vector<16x128xf32>
    %749 = vector.shape_cast %746 : vector<16x128xf32> to vector<1x16x128xf32>
    tpu.vector_store %arg9[%c0_129, %c0_130, %c0_131], %749 {strides = array<i32>} : memref<1x16x128xf32, #tpu.memory_space<vmem>>, vector<1x16x128xf32>,
    return
  }
  func.func @transform_0(%arg0: i32, %arg1: memref<2xi32, #tpu.memory_space<smem>>) -> (i32, i32, i32) {
    %c0_i32 = arith.constant 0 : i32
    %c0_i32_0 = arith.constant 0 : i32
    %c0_i32_1 = arith.constant 0 : i32
    return %arg0, %c0_i32, %c0_i32_0 : i32, i32, i32
  }
  func.func @transform_1(%arg0: i32, %arg1: memref<2xi32, #tpu.memory_space<smem>>) -> (i32, i32, i32) {
    %c0_i32 = arith.constant 0 : i32
    %c0_i32_0 = arith.constant 0 : i32
    %c0_i32_1 = arith.constant 0 : i32
    return %arg0, %c0_i32, %c0_i32_0 : i32, i32, i32
  }
  func.func @transform_2(%arg0: i32, %arg1: memref<2xi32, #tpu.memory_space<smem>>) -> (i32, i32, i32) {
    %c0_i32 = arith.constant 0 : i32
    %c0_i32_0 = arith.constant 0 : i32
    %c0_i32_1 = arith.constant 0 : i32
    return %arg0, %c0_i32, %c0_i32_0 : i32, i32, i32
  }
  func.func @transform_3(%arg0: i32, %arg1: memref<2xi32, #tpu.memory_space<smem>>) -> (i32, i32, i32, i32) {
    %c0_i32 = arith.constant 0 : i32
    %c0_i32_0 = arith.constant 0 : i32
    %c0_i32_1 = arith.constant 0 : i32
    %c0_i32_2 = arith.constant 0 : i32
    return %arg0, %c0_i32, %c0_i32_0, %c0_i32_1 : i32, i32, i32, i32
  }
  func.func @transform_4(%arg0: i32, %arg1: memref<2xi32, #tpu.memory_space<smem>>) -> (i32, i32, i32) {
    %c0_i32 = arith.constant 0 : i32
    %c0_i32_0 = arith.constant 0 : i32
    %c0_i32_1 = arith.constant 0 : i32
    return %arg0, %c0_i32, %c0_i32_0 : i32, i32, i32
  }
  func.func @transform_5(%arg0: i32, %arg1: memref<2xi32, #tpu.memory_space<smem>>) -> (i32, i32, i32) {
    %c0_i32 = arith.constant 0 : i32
    %c0_i32_0 = arith.constant 0 : i32
    %c0_i32_1 = arith.constant 0 : i32
    return %arg0, %c0_i32, %c0_i32_0 : i32, i32, i32
  }
  func.func @transform_6(%arg0: i32, %arg1: memref<2xi32, #tpu.memory_space<smem>>) -> (i32, i32, i32) {
    %c0_i32 = arith.constant 0 : i32
    %c0_i32_0 = arith.constant 0 : i32
    %c0_i32_1 = arith.constant 0 : i32
    return %arg0, %c0_i32, %c0_i32_0 : i32, i32, i32
  }
  func.func @transform_7(%arg0: i32, %arg1: memref<2xi32, #tpu.memory_space<smem>>) -> (i32, i32, i32) {
    %c0_i32 = arith.constant 0 : i32
    %c0_i32_0 = arith.constant 0 : i32
    %c0_i32_1 = arith.constant 0 : i32
    return %arg0, %c0_i32, %c0_i32_0 : i32, i32, i32
  }
}

module attributes {stable_mosaic.version = 11 : i64} {
  func.func @_multi_lstm_fc_kernel(%arg0: i32, %arg1: memref<4xi32, #tpu.memory_space<smem>>, %arg2: memref<1x16x32xf32, #tpu.memory_space<vmem>>, %arg3: memref<1x32x128xf32, #tpu.memory_space<vmem>>, %arg4: memref<1x32x128xbf16, #tpu.memory_space<vmem>>, %arg5: memref<1x2x64x128xbf16, #tpu.memory_space<vmem>>, %arg6: memref<1x3x128xf32, #tpu.memory_space<vmem>>, %arg7: memref<1x32x128xf32, #tpu.memory_space<vmem>>, %arg8: memref<1x1x128xf32, #tpu.memory_space<vmem>>, %arg9: memref<1x16x128xf32, #tpu.memory_space<vmem>>) attributes {dimension_semantics = [#tpu.dimension_semantics<parallel>], iteration_bounds = array<i64: 4>, scalar_prefetch = 1 : i64, scratch_operands = 0 : i64, tpu.core_type = #tpu.core_type<tc>, window_params = [{transform_indices = @transform_0, window_bounds = array<i64: 1, 16, 32>}, {transform_indices = @transform_1, window_bounds = array<i64: 1, 32, 128>}, {transform_indices = @transform_2, window_bounds = array<i64: 1, 32, 128>}, {transform_indices = @transform_3, window_bounds = array<i64: 1, 2, 64, 128>}, {transform_indices = @transform_4, window_bounds = array<i64: 1, 3, 128>}, {transform_indices = @transform_5, window_bounds = array<i64: 1, 32, 128>}, {transform_indices = @transform_6, window_bounds = array<i64: 1, 1, 128>}, {transform_indices = @transform_7, window_bounds = array<i64: 1, 16, 128>}]} {
    %c0 = arith.constant 0 : index
    %c0_0 = arith.constant 0 : index
    %c0_1 = arith.constant 0 : index
    %0 = vector.load %arg6[%c0, %c0_0, %c0_1] : memref<1x3x128xf32, #tpu.memory_space<vmem>>, vector<1x3x128xf32>
    %1 = vector.shape_cast %0 : vector<1x3x128xf32> to vector<3x128xf32>
    %c0_2 = arith.constant 0 : index
    %c0_3 = arith.constant 0 : index
    %c0_4 = arith.constant 0 : index
    %2 = vector.load %arg2[%c0_2, %c0_3, %c0_4] : memref<1x16x32xf32, #tpu.memory_space<vmem>>, vector<1x16x32xf32>
    %3 = vector.shape_cast %2 : vector<1x16x32xf32> to vector<16x32xf32>
    %c0_5 = arith.constant 0 : index
    %c0_6 = arith.constant 0 : index
    %c0_7 = arith.constant 0 : index
    %4 = vector.load %arg3[%c0_5, %c0_6, %c0_7] : memref<1x32x128xf32, #tpu.memory_space<vmem>>, vector<1x32x128xf32>
    %5 = vector.shape_cast %4 : vector<1x32x128xf32> to vector<32x128xf32>
    %cst = arith.constant dense<0.000000e+00> : vector<16x128xf32>
    %6 = tpu.matmul %3, %5, %cst {dimension_numbers = #tpu.dot_dimension_numbers<[1], [0], [0], [1], [0, 0, 1, 1], [], []>} : vector<16x32xf32>, vector<32x128xf32>, vector<16x128xf32> -> vector<16x128xf32>
    %7 = vector.extract_strided_slice %1 {offsets = [0, 0], sizes = [1, 128], strides = [1, 1]} : vector<3x128xf32> to vector<1x128xf32>
    %8 = vector.shape_cast %7 : vector<1x128xf32> to vector<128xf32>
    %9 = vector.shape_cast %8 : vector<128xf32> to vector<1x128xf32>
    %10 = vector.broadcast %9 : vector<1x128xf32> to vector<16x128xf32>
    %11 = arith.addf %6, %10 : vector<16x128xf32>
    %c0_8 = arith.constant 0 : index
    %c0_9 = arith.constant 0 : index
    %c0_10 = arith.constant 0 : index
    %12 = vector.load %arg4[%c0_8, %c0_9, %c0_10] : memref<1x32x128xbf16, #tpu.memory_space<vmem>>, vector<1x32x128xbf16>
    %13 = vector.shape_cast %12 : vector<1x32x128xbf16> to vector<32x128xbf16>
    %c0_11 = arith.constant 0 : index
    %c0_12 = arith.constant 0 : index
    %c0_13 = arith.constant 0 : index
    %c0_14 = arith.constant 0 : index
    %14 = vector.load %arg5[%c0_11, %c0_12, %c0_13, %c0_14] : memref<1x2x64x128xbf16, #tpu.memory_space<vmem>>, vector<1x1x64x128xbf16>
    %15 = vector.shape_cast %14 : vector<1x1x64x128xbf16> to vector<64x128xbf16>
    %c0_15 = arith.constant 0 : index
    %c1 = arith.constant 1 : index
    %c0_16 = arith.constant 0 : index
    %c0_17 = arith.constant 0 : index
    %16 = vector.load %arg5[%c0_15, %c1, %c0_16, %c0_17] : memref<1x2x64x128xbf16, #tpu.memory_space<vmem>>, vector<1x1x64x128xbf16>
    %17 = vector.shape_cast %16 : vector<1x1x64x128xbf16> to vector<64x128xbf16>
    %18 = vector.extract_strided_slice %1 {offsets = [1, 0], sizes = [1, 128], strides = [1, 1]} : vector<3x128xf32> to vector<1x128xf32>
    %19 = vector.shape_cast %18 : vector<1x128xf32> to vector<128xf32>
    %20 = vector.shape_cast %19 : vector<128xf32> to vector<1x128xf32>
    %21 = vector.broadcast %20 : vector<1x128xf32> to vector<2x128xf32>
    %22 = vector.extract_strided_slice %1 {offsets = [2, 0], sizes = [1, 128], strides = [1, 1]} : vector<3x128xf32> to vector<1x128xf32>
    %23 = vector.shape_cast %22 : vector<1x128xf32> to vector<128xf32>
    %24 = vector.shape_cast %23 : vector<128xf32> to vector<1x128xf32>
    %25 = vector.broadcast %24 : vector<1x128xf32> to vector<2x128xf32>
    %cst_18 = arith.constant 0.000000e+00 : f32
    %26 = vector.broadcast %cst_18 : f32 to vector<2x32xf32>
    %cst_19 = arith.constant 0.000000e+00 : f32
    %27 = vector.broadcast %cst_19 : f32 to vector<2x32xf32>
    %cst_20 = arith.constant 0.000000e+00 : f32
    %28 = vector.broadcast %cst_20 : f32 to vector<2x32xf32>
    %cst_21 = arith.constant 0.000000e+00 : f32
    %29 = vector.broadcast %cst_21 : f32 to vector<2x32xf32>
    %cst_22 = arith.constant 0.000000e+00 : f32
    %30 = vector.broadcast %cst_22 : f32 to vector<2x32xf32>
    %cst_23 = arith.constant 0.000000e+00 : f32
    %31 = vector.broadcast %cst_23 : f32 to vector<2x32xf32>
    %32 = vector.extract_strided_slice %11 {offsets = [0, 0], sizes = [2, 128], strides = [1, 1]} : vector<16x128xf32> to vector<2x128xf32>
    %33 = arith.truncf %26 : vector<2x32xf32> to vector<2x32xbf16>
    %cst_24 = arith.constant dense<0.000000e+00> : vector<2x128xf32>
    %34 = tpu.matmul %33, %13, %cst_24 {dimension_numbers = #tpu.dot_dimension_numbers<[1], [0], [0], [1], [0, 0, 1, 1], [], []>} : vector<2x32xbf16>, vector<32x128xbf16>, vector<2x128xf32> -> vector<2x128xf32>
    %35 = arith.addf %32, %34 : vector<2x128xf32>
    %36 = vector.extract_strided_slice %35 {offsets = [0, 0], sizes = [2, 32], strides = [1, 1]} : vector<2x128xf32> to vector<2x32xf32>
    %37 = arith.negf %36 : vector<2x32xf32>
    %38 = math.exp %37 : vector<2x32xf32>
    %cst_25 = arith.constant 1.000000e+00 : f32
    %39 = vector.broadcast %cst_25 : f32 to vector<2x32xf32>
    %40 = arith.addf %39, %38 : vector<2x32xf32>
    %41 = arith.divf %39, %40 : vector<2x32xf32>
    %42 = vector.extract_strided_slice %35 {offsets = [0, 32], sizes = [2, 32], strides = [1, 1]} : vector<2x128xf32> to vector<2x32xf32>
    %43 = arith.negf %42 : vector<2x32xf32>
    %44 = math.exp %43 : vector<2x32xf32>
    %cst_26 = arith.constant 1.000000e+00 : f32
    %45 = vector.broadcast %cst_26 : f32 to vector<2x32xf32>
    %46 = arith.addf %45, %44 : vector<2x32xf32>
    %47 = arith.divf %45, %46 : vector<2x32xf32>
    %48 = vector.extract_strided_slice %35 {offsets = [0, 64], sizes = [2, 32], strides = [1, 1]} : vector<2x128xf32> to vector<2x32xf32>
    %49 = math.tanh %48 : vector<2x32xf32>
    %50 = vector.extract_strided_slice %35 {offsets = [0, 96], sizes = [2, 32], strides = [1, 1]} : vector<2x128xf32> to vector<2x32xf32>
    %51 = arith.negf %50 : vector<2x32xf32>
    %52 = math.exp %51 : vector<2x32xf32>
    %cst_27 = arith.constant 1.000000e+00 : f32
    %53 = vector.broadcast %cst_27 : f32 to vector<2x32xf32>
    %54 = arith.addf %53, %52 : vector<2x32xf32>
    %55 = arith.divf %53, %54 : vector<2x32xf32>
    %56 = arith.mulf %47, %29 : vector<2x32xf32>
    %57 = arith.mulf %41, %49 : vector<2x32xf32>
    %58 = arith.addf %56, %57 : vector<2x32xf32>
    %59 = math.tanh %58 : vector<2x32xf32>
    %60 = arith.mulf %55, %59 : vector<2x32xf32>
    %61 = tpu.concatenate %60, %27 in 1 : vector<2x32xf32>, vector<2x32xf32> -> vector<2x64xf32>
    %62 = arith.truncf %61 : vector<2x64xf32> to vector<2x64xbf16>
    %cst_28 = arith.constant dense<0.000000e+00> : vector<2x128xf32>
    %63 = tpu.matmul %62, %15, %cst_28 {dimension_numbers = #tpu.dot_dimension_numbers<[1], [0], [0], [1], [0, 0, 1, 1], [], []>} : vector<2x64xbf16>, vector<64x128xbf16>, vector<2x128xf32> -> vector<2x128xf32>
    %64 = arith.addf %63, %21 : vector<2x128xf32>
    %65 = vector.extract_strided_slice %64 {offsets = [0, 0], sizes = [2, 32], strides = [1, 1]} : vector<2x128xf32> to vector<2x32xf32>
    %66 = arith.negf %65 : vector<2x32xf32>
    %67 = math.exp %66 : vector<2x32xf32>
    %cst_29 = arith.constant 1.000000e+00 : f32
    %68 = vector.broadcast %cst_29 : f32 to vector<2x32xf32>
    %69 = arith.addf %68, %67 : vector<2x32xf32>
    %70 = arith.divf %68, %69 : vector<2x32xf32>
    %71 = vector.extract_strided_slice %64 {offsets = [0, 32], sizes = [2, 32], strides = [1, 1]} : vector<2x128xf32> to vector<2x32xf32>
    %72 = arith.negf %71 : vector<2x32xf32>
    %73 = math.exp %72 : vector<2x32xf32>
    %cst_30 = arith.constant 1.000000e+00 : f32
    %74 = vector.broadcast %cst_30 : f32 to vector<2x32xf32>
    %75 = arith.addf %74, %73 : vector<2x32xf32>
    %76 = arith.divf %74, %75 : vector<2x32xf32>
    %77 = vector.extract_strided_slice %64 {offsets = [0, 64], sizes = [2, 32], strides = [1, 1]} : vector<2x128xf32> to vector<2x32xf32>
    %78 = math.tanh %77 : vector<2x32xf32>
    %79 = vector.extract_strided_slice %64 {offsets = [0, 96], sizes = [2, 32], strides = [1, 1]} : vector<2x128xf32> to vector<2x32xf32>
    %80 = arith.negf %79 : vector<2x32xf32>
    %81 = math.exp %80 : vector<2x32xf32>
    %cst_31 = arith.constant 1.000000e+00 : f32
    %82 = vector.broadcast %cst_31 : f32 to vector<2x32xf32>
    %83 = arith.addf %82, %81 : vector<2x32xf32>
    %84 = arith.divf %82, %83 : vector<2x32xf32>
    %85 = arith.mulf %76, %30 : vector<2x32xf32>
    %86 = arith.mulf %70, %78 : vector<2x32xf32>
    %87 = arith.addf %85, %86 : vector<2x32xf32>
    %88 = math.tanh %87 : vector<2x32xf32>
    %89 = arith.mulf %84, %88 : vector<2x32xf32>
    %90 = tpu.concatenate %89, %28 in 1 : vector<2x32xf32>, vector<2x32xf32> -> vector<2x64xf32>
    %91 = arith.truncf %90 : vector<2x64xf32> to vector<2x64xbf16>
    %cst_32 = arith.constant dense<0.000000e+00> : vector<2x128xf32>
    %92 = tpu.matmul %91, %17, %cst_32 {dimension_numbers = #tpu.dot_dimension_numbers<[1], [0], [0], [1], [0, 0, 1, 1], [], []>} : vector<2x64xbf16>, vector<64x128xbf16>, vector<2x128xf32> -> vector<2x128xf32>
    %93 = arith.addf %92, %25 : vector<2x128xf32>
    %94 = vector.extract_strided_slice %93 {offsets = [0, 0], sizes = [2, 32], strides = [1, 1]} : vector<2x128xf32> to vector<2x32xf32>
    %95 = arith.negf %94 : vector<2x32xf32>
    %96 = math.exp %95 : vector<2x32xf32>
    %cst_33 = arith.constant 1.000000e+00 : f32
    %97 = vector.broadcast %cst_33 : f32 to vector<2x32xf32>
    %98 = arith.addf %97, %96 : vector<2x32xf32>
    %99 = arith.divf %97, %98 : vector<2x32xf32>
    %100 = vector.extract_strided_slice %93 {offsets = [0, 32], sizes = [2, 32], strides = [1, 1]} : vector<2x128xf32> to vector<2x32xf32>
    %101 = arith.negf %100 : vector<2x32xf32>
    %102 = math.exp %101 : vector<2x32xf32>
    %cst_34 = arith.constant 1.000000e+00 : f32
    %103 = vector.broadcast %cst_34 : f32 to vector<2x32xf32>
    %104 = arith.addf %103, %102 : vector<2x32xf32>
    %105 = arith.divf %103, %104 : vector<2x32xf32>
    %106 = vector.extract_strided_slice %93 {offsets = [0, 64], sizes = [2, 32], strides = [1, 1]} : vector<2x128xf32> to vector<2x32xf32>
    %107 = math.tanh %106 : vector<2x32xf32>
    %108 = vector.extract_strided_slice %93 {offsets = [0, 96], sizes = [2, 32], strides = [1, 1]} : vector<2x128xf32> to vector<2x32xf32>
    %109 = arith.negf %108 : vector<2x32xf32>
    %110 = math.exp %109 : vector<2x32xf32>
    %cst_35 = arith.constant 1.000000e+00 : f32
    %111 = vector.broadcast %cst_35 : f32 to vector<2x32xf32>
    %112 = arith.addf %111, %110 : vector<2x32xf32>
    %113 = arith.divf %111, %112 : vector<2x32xf32>
    %114 = arith.mulf %105, %31 : vector<2x32xf32>
    %115 = arith.mulf %99, %107 : vector<2x32xf32>
    %116 = arith.addf %114, %115 : vector<2x32xf32>
    %117 = math.tanh %116 : vector<2x32xf32>
    %118 = arith.mulf %113, %117 : vector<2x32xf32>
    %119 = vector.extract_strided_slice %11 {offsets = [2, 0], sizes = [2, 128], strides = [1, 1]} : vector<16x128xf32> to vector<2x128xf32>
    %120 = arith.truncf %60 : vector<2x32xf32> to vector<2x32xbf16>
    %cst_36 = arith.constant dense<0.000000e+00> : vector<2x128xf32>
    %121 = tpu.matmul %120, %13, %cst_36 {dimension_numbers = #tpu.dot_dimension_numbers<[1], [0], [0], [1], [0, 0, 1, 1], [], []>} : vector<2x32xbf16>, vector<32x128xbf16>, vector<2x128xf32> -> vector<2x128xf32>
    %122 = arith.addf %119, %121 : vector<2x128xf32>
    %123 = vector.extract_strided_slice %122 {offsets = [0, 0], sizes = [2, 32], strides = [1, 1]} : vector<2x128xf32> to vector<2x32xf32>
    %124 = arith.negf %123 : vector<2x32xf32>
    %125 = math.exp %124 : vector<2x32xf32>
    %cst_37 = arith.constant 1.000000e+00 : f32
    %126 = vector.broadcast %cst_37 : f32 to vector<2x32xf32>
    %127 = arith.addf %126, %125 : vector<2x32xf32>
    %128 = arith.divf %126, %127 : vector<2x32xf32>
    %129 = vector.extract_strided_slice %122 {offsets = [0, 32], sizes = [2, 32], strides = [1, 1]} : vector<2x128xf32> to vector<2x32xf32>
    %130 = arith.negf %129 : vector<2x32xf32>
    %131 = math.exp %130 : vector<2x32xf32>
    %cst_38 = arith.constant 1.000000e+00 : f32
    %132 = vector.broadcast %cst_38 : f32 to vector<2x32xf32>
    %133 = arith.addf %132, %131 : vector<2x32xf32>
    %134 = arith.divf %132, %133 : vector<2x32xf32>
    %135 = vector.extract_strided_slice %122 {offsets = [0, 64], sizes = [2, 32], strides = [1, 1]} : vector<2x128xf32> to vector<2x32xf32>
    %136 = math.tanh %135 : vector<2x32xf32>
    %137 = vector.extract_strided_slice %122 {offsets = [0, 96], sizes = [2, 32], strides = [1, 1]} : vector<2x128xf32> to vector<2x32xf32>
    %138 = arith.negf %137 : vector<2x32xf32>
    %139 = math.exp %138 : vector<2x32xf32>
    %cst_39 = arith.constant 1.000000e+00 : f32
    %140 = vector.broadcast %cst_39 : f32 to vector<2x32xf32>
    %141 = arith.addf %140, %139 : vector<2x32xf32>
    %142 = arith.divf %140, %141 : vector<2x32xf32>
    %143 = arith.mulf %134, %58 : vector<2x32xf32>
    %144 = arith.mulf %128, %136 : vector<2x32xf32>
    %145 = arith.addf %143, %144 : vector<2x32xf32>
    %146 = math.tanh %145 : vector<2x32xf32>
    %147 = arith.mulf %142, %146 : vector<2x32xf32>
    %148 = tpu.concatenate %147, %89 in 1 : vector<2x32xf32>, vector<2x32xf32> -> vector<2x64xf32>
    %149 = arith.truncf %148 : vector<2x64xf32> to vector<2x64xbf16>
    %cst_40 = arith.constant dense<0.000000e+00> : vector<2x128xf32>
    %150 = tpu.matmul %149, %15, %cst_40 {dimension_numbers = #tpu.dot_dimension_numbers<[1], [0], [0], [1], [0, 0, 1, 1], [], []>} : vector<2x64xbf16>, vector<64x128xbf16>, vector<2x128xf32> -> vector<2x128xf32>
    %151 = arith.addf %150, %21 : vector<2x128xf32>
    %152 = vector.extract_strided_slice %151 {offsets = [0, 0], sizes = [2, 32], strides = [1, 1]} : vector<2x128xf32> to vector<2x32xf32>
    %153 = arith.negf %152 : vector<2x32xf32>
    %154 = math.exp %153 : vector<2x32xf32>
    %cst_41 = arith.constant 1.000000e+00 : f32
    %155 = vector.broadcast %cst_41 : f32 to vector<2x32xf32>
    %156 = arith.addf %155, %154 : vector<2x32xf32>
    %157 = arith.divf %155, %156 : vector<2x32xf32>
    %158 = vector.extract_strided_slice %151 {offsets = [0, 32], sizes = [2, 32], strides = [1, 1]} : vector<2x128xf32> to vector<2x32xf32>
    %159 = arith.negf %158 : vector<2x32xf32>
    %160 = math.exp %159 : vector<2x32xf32>
    %cst_42 = arith.constant 1.000000e+00 : f32
    %161 = vector.broadcast %cst_42 : f32 to vector<2x32xf32>
    %162 = arith.addf %161, %160 : vector<2x32xf32>
    %163 = arith.divf %161, %162 : vector<2x32xf32>
    %164 = vector.extract_strided_slice %151 {offsets = [0, 64], sizes = [2, 32], strides = [1, 1]} : vector<2x128xf32> to vector<2x32xf32>
    %165 = math.tanh %164 : vector<2x32xf32>
    %166 = vector.extract_strided_slice %151 {offsets = [0, 96], sizes = [2, 32], strides = [1, 1]} : vector<2x128xf32> to vector<2x32xf32>
    %167 = arith.negf %166 : vector<2x32xf32>
    %168 = math.exp %167 : vector<2x32xf32>
    %cst_43 = arith.constant 1.000000e+00 : f32
    %169 = vector.broadcast %cst_43 : f32 to vector<2x32xf32>
    %170 = arith.addf %169, %168 : vector<2x32xf32>
    %171 = arith.divf %169, %170 : vector<2x32xf32>
    %172 = arith.mulf %163, %87 : vector<2x32xf32>
    %173 = arith.mulf %157, %165 : vector<2x32xf32>
    %174 = arith.addf %172, %173 : vector<2x32xf32>
    %175 = math.tanh %174 : vector<2x32xf32>
    %176 = arith.mulf %171, %175 : vector<2x32xf32>
    %177 = tpu.concatenate %176, %118 in 1 : vector<2x32xf32>, vector<2x32xf32> -> vector<2x64xf32>
    %178 = arith.truncf %177 : vector<2x64xf32> to vector<2x64xbf16>
    %cst_44 = arith.constant dense<0.000000e+00> : vector<2x128xf32>
    %179 = tpu.matmul %178, %17, %cst_44 {dimension_numbers = #tpu.dot_dimension_numbers<[1], [0], [0], [1], [0, 0, 1, 1], [], []>} : vector<2x64xbf16>, vector<64x128xbf16>, vector<2x128xf32> -> vector<2x128xf32>
    %180 = arith.addf %179, %25 : vector<2x128xf32>
    %181 = vector.extract_strided_slice %180 {offsets = [0, 0], sizes = [2, 32], strides = [1, 1]} : vector<2x128xf32> to vector<2x32xf32>
    %182 = arith.negf %181 : vector<2x32xf32>
    %183 = math.exp %182 : vector<2x32xf32>
    %cst_45 = arith.constant 1.000000e+00 : f32
    %184 = vector.broadcast %cst_45 : f32 to vector<2x32xf32>
    %185 = arith.addf %184, %183 : vector<2x32xf32>
    %186 = arith.divf %184, %185 : vector<2x32xf32>
    %187 = vector.extract_strided_slice %180 {offsets = [0, 32], sizes = [2, 32], strides = [1, 1]} : vector<2x128xf32> to vector<2x32xf32>
    %188 = arith.negf %187 : vector<2x32xf32>
    %189 = math.exp %188 : vector<2x32xf32>
    %cst_46 = arith.constant 1.000000e+00 : f32
    %190 = vector.broadcast %cst_46 : f32 to vector<2x32xf32>
    %191 = arith.addf %190, %189 : vector<2x32xf32>
    %192 = arith.divf %190, %191 : vector<2x32xf32>
    %193 = vector.extract_strided_slice %180 {offsets = [0, 64], sizes = [2, 32], strides = [1, 1]} : vector<2x128xf32> to vector<2x32xf32>
    %194 = math.tanh %193 : vector<2x32xf32>
    %195 = vector.extract_strided_slice %180 {offsets = [0, 96], sizes = [2, 32], strides = [1, 1]} : vector<2x128xf32> to vector<2x32xf32>
    %196 = arith.negf %195 : vector<2x32xf32>
    %197 = math.exp %196 : vector<2x32xf32>
    %cst_47 = arith.constant 1.000000e+00 : f32
    %198 = vector.broadcast %cst_47 : f32 to vector<2x32xf32>
    %199 = arith.addf %198, %197 : vector<2x32xf32>
    %200 = arith.divf %198, %199 : vector<2x32xf32>
    %201 = arith.mulf %192, %116 : vector<2x32xf32>
    %202 = arith.mulf %186, %194 : vector<2x32xf32>
    %203 = arith.addf %201, %202 : vector<2x32xf32>
    %204 = math.tanh %203 : vector<2x32xf32>
    %205 = arith.mulf %200, %204 : vector<2x32xf32>
    %206 = vector.extract_strided_slice %11 {offsets = [4, 0], sizes = [2, 128], strides = [1, 1]} : vector<16x128xf32> to vector<2x128xf32>
    %207 = arith.truncf %147 : vector<2x32xf32> to vector<2x32xbf16>
    %cst_48 = arith.constant dense<0.000000e+00> : vector<2x128xf32>
    %208 = tpu.matmul %207, %13, %cst_48 {dimension_numbers = #tpu.dot_dimension_numbers<[1], [0], [0], [1], [0, 0, 1, 1], [], []>} : vector<2x32xbf16>, vector<32x128xbf16>, vector<2x128xf32> -> vector<2x128xf32>
    %209 = arith.addf %206, %208 : vector<2x128xf32>
    %210 = vector.extract_strided_slice %209 {offsets = [0, 0], sizes = [2, 32], strides = [1, 1]} : vector<2x128xf32> to vector<2x32xf32>
    %211 = arith.negf %210 : vector<2x32xf32>
    %212 = math.exp %211 : vector<2x32xf32>
    %cst_49 = arith.constant 1.000000e+00 : f32
    %213 = vector.broadcast %cst_49 : f32 to vector<2x32xf32>
    %214 = arith.addf %213, %212 : vector<2x32xf32>
    %215 = arith.divf %213, %214 : vector<2x32xf32>
    %216 = vector.extract_strided_slice %209 {offsets = [0, 32], sizes = [2, 32], strides = [1, 1]} : vector<2x128xf32> to vector<2x32xf32>
    %217 = arith.negf %216 : vector<2x32xf32>
    %218 = math.exp %217 : vector<2x32xf32>
    %cst_50 = arith.constant 1.000000e+00 : f32
    %219 = vector.broadcast %cst_50 : f32 to vector<2x32xf32>
    %220 = arith.addf %219, %218 : vector<2x32xf32>
    %221 = arith.divf %219, %220 : vector<2x32xf32>
    %222 = vector.extract_strided_slice %209 {offsets = [0, 64], sizes = [2, 32], strides = [1, 1]} : vector<2x128xf32> to vector<2x32xf32>
    %223 = math.tanh %222 : vector<2x32xf32>
    %224 = vector.extract_strided_slice %209 {offsets = [0, 96], sizes = [2, 32], strides = [1, 1]} : vector<2x128xf32> to vector<2x32xf32>
    %225 = arith.negf %224 : vector<2x32xf32>
    %226 = math.exp %225 : vector<2x32xf32>
    %cst_51 = arith.constant 1.000000e+00 : f32
    %227 = vector.broadcast %cst_51 : f32 to vector<2x32xf32>
    %228 = arith.addf %227, %226 : vector<2x32xf32>
    %229 = arith.divf %227, %228 : vector<2x32xf32>
    %230 = arith.mulf %221, %145 : vector<2x32xf32>
    %231 = arith.mulf %215, %223 : vector<2x32xf32>
    %232 = arith.addf %230, %231 : vector<2x32xf32>
    %233 = math.tanh %232 : vector<2x32xf32>
    %234 = arith.mulf %229, %233 : vector<2x32xf32>
    %235 = tpu.concatenate %234, %176 in 1 : vector<2x32xf32>, vector<2x32xf32> -> vector<2x64xf32>
    %236 = arith.truncf %235 : vector<2x64xf32> to vector<2x64xbf16>
    %cst_52 = arith.constant dense<0.000000e+00> : vector<2x128xf32>
    %237 = tpu.matmul %236, %15, %cst_52 {dimension_numbers = #tpu.dot_dimension_numbers<[1], [0], [0], [1], [0, 0, 1, 1], [], []>} : vector<2x64xbf16>, vector<64x128xbf16>, vector<2x128xf32> -> vector<2x128xf32>
    %238 = arith.addf %237, %21 : vector<2x128xf32>
    %239 = vector.extract_strided_slice %238 {offsets = [0, 0], sizes = [2, 32], strides = [1, 1]} : vector<2x128xf32> to vector<2x32xf32>
    %240 = arith.negf %239 : vector<2x32xf32>
    %241 = math.exp %240 : vector<2x32xf32>
    %cst_53 = arith.constant 1.000000e+00 : f32
    %242 = vector.broadcast %cst_53 : f32 to vector<2x32xf32>
    %243 = arith.addf %242, %241 : vector<2x32xf32>
    %244 = arith.divf %242, %243 : vector<2x32xf32>
    %245 = vector.extract_strided_slice %238 {offsets = [0, 32], sizes = [2, 32], strides = [1, 1]} : vector<2x128xf32> to vector<2x32xf32>
    %246 = arith.negf %245 : vector<2x32xf32>
    %247 = math.exp %246 : vector<2x32xf32>
    %cst_54 = arith.constant 1.000000e+00 : f32
    %248 = vector.broadcast %cst_54 : f32 to vector<2x32xf32>
    %249 = arith.addf %248, %247 : vector<2x32xf32>
    %250 = arith.divf %248, %249 : vector<2x32xf32>
    %251 = vector.extract_strided_slice %238 {offsets = [0, 64], sizes = [2, 32], strides = [1, 1]} : vector<2x128xf32> to vector<2x32xf32>
    %252 = math.tanh %251 : vector<2x32xf32>
    %253 = vector.extract_strided_slice %238 {offsets = [0, 96], sizes = [2, 32], strides = [1, 1]} : vector<2x128xf32> to vector<2x32xf32>
    %254 = arith.negf %253 : vector<2x32xf32>
    %255 = math.exp %254 : vector<2x32xf32>
    %cst_55 = arith.constant 1.000000e+00 : f32
    %256 = vector.broadcast %cst_55 : f32 to vector<2x32xf32>
    %257 = arith.addf %256, %255 : vector<2x32xf32>
    %258 = arith.divf %256, %257 : vector<2x32xf32>
    %259 = arith.mulf %250, %174 : vector<2x32xf32>
    %260 = arith.mulf %244, %252 : vector<2x32xf32>
    %261 = arith.addf %259, %260 : vector<2x32xf32>
    %262 = math.tanh %261 : vector<2x32xf32>
    %263 = arith.mulf %258, %262 : vector<2x32xf32>
    %264 = tpu.concatenate %263, %205 in 1 : vector<2x32xf32>, vector<2x32xf32> -> vector<2x64xf32>
    %265 = arith.truncf %264 : vector<2x64xf32> to vector<2x64xbf16>
    %cst_56 = arith.constant dense<0.000000e+00> : vector<2x128xf32>
    %266 = tpu.matmul %265, %17, %cst_56 {dimension_numbers = #tpu.dot_dimension_numbers<[1], [0], [0], [1], [0, 0, 1, 1], [], []>} : vector<2x64xbf16>, vector<64x128xbf16>, vector<2x128xf32> -> vector<2x128xf32>
    %267 = arith.addf %266, %25 : vector<2x128xf32>
    %268 = vector.extract_strided_slice %267 {offsets = [0, 0], sizes = [2, 32], strides = [1, 1]} : vector<2x128xf32> to vector<2x32xf32>
    %269 = arith.negf %268 : vector<2x32xf32>
    %270 = math.exp %269 : vector<2x32xf32>
    %cst_57 = arith.constant 1.000000e+00 : f32
    %271 = vector.broadcast %cst_57 : f32 to vector<2x32xf32>
    %272 = arith.addf %271, %270 : vector<2x32xf32>
    %273 = arith.divf %271, %272 : vector<2x32xf32>
    %274 = vector.extract_strided_slice %267 {offsets = [0, 32], sizes = [2, 32], strides = [1, 1]} : vector<2x128xf32> to vector<2x32xf32>
    %275 = arith.negf %274 : vector<2x32xf32>
    %276 = math.exp %275 : vector<2x32xf32>
    %cst_58 = arith.constant 1.000000e+00 : f32
    %277 = vector.broadcast %cst_58 : f32 to vector<2x32xf32>
    %278 = arith.addf %277, %276 : vector<2x32xf32>
    %279 = arith.divf %277, %278 : vector<2x32xf32>
    %280 = vector.extract_strided_slice %267 {offsets = [0, 64], sizes = [2, 32], strides = [1, 1]} : vector<2x128xf32> to vector<2x32xf32>
    %281 = math.tanh %280 : vector<2x32xf32>
    %282 = vector.extract_strided_slice %267 {offsets = [0, 96], sizes = [2, 32], strides = [1, 1]} : vector<2x128xf32> to vector<2x32xf32>
    %283 = arith.negf %282 : vector<2x32xf32>
    %284 = math.exp %283 : vector<2x32xf32>
    %cst_59 = arith.constant 1.000000e+00 : f32
    %285 = vector.broadcast %cst_59 : f32 to vector<2x32xf32>
    %286 = arith.addf %285, %284 : vector<2x32xf32>
    %287 = arith.divf %285, %286 : vector<2x32xf32>
    %288 = arith.mulf %279, %203 : vector<2x32xf32>
    %289 = arith.mulf %273, %281 : vector<2x32xf32>
    %290 = arith.addf %288, %289 : vector<2x32xf32>
    %291 = math.tanh %290 : vector<2x32xf32>
    %292 = arith.mulf %287, %291 : vector<2x32xf32>
    %293 = vector.extract_strided_slice %11 {offsets = [6, 0], sizes = [2, 128], strides = [1, 1]} : vector<16x128xf32> to vector<2x128xf32>
    %294 = arith.truncf %234 : vector<2x32xf32> to vector<2x32xbf16>
    %cst_60 = arith.constant dense<0.000000e+00> : vector<2x128xf32>
    %295 = tpu.matmul %294, %13, %cst_60 {dimension_numbers = #tpu.dot_dimension_numbers<[1], [0], [0], [1], [0, 0, 1, 1], [], []>} : vector<2x32xbf16>, vector<32x128xbf16>, vector<2x128xf32> -> vector<2x128xf32>
    %296 = arith.addf %293, %295 : vector<2x128xf32>
    %297 = vector.extract_strided_slice %296 {offsets = [0, 0], sizes = [2, 32], strides = [1, 1]} : vector<2x128xf32> to vector<2x32xf32>
    %298 = arith.negf %297 : vector<2x32xf32>
    %299 = math.exp %298 : vector<2x32xf32>
    %cst_61 = arith.constant 1.000000e+00 : f32
    %300 = vector.broadcast %cst_61 : f32 to vector<2x32xf32>
    %301 = arith.addf %300, %299 : vector<2x32xf32>
    %302 = arith.divf %300, %301 : vector<2x32xf32>
    %303 = vector.extract_strided_slice %296 {offsets = [0, 32], sizes = [2, 32], strides = [1, 1]} : vector<2x128xf32> to vector<2x32xf32>
    %304 = arith.negf %303 : vector<2x32xf32>
    %305 = math.exp %304 : vector<2x32xf32>
    %cst_62 = arith.constant 1.000000e+00 : f32
    %306 = vector.broadcast %cst_62 : f32 to vector<2x32xf32>
    %307 = arith.addf %306, %305 : vector<2x32xf32>
    %308 = arith.divf %306, %307 : vector<2x32xf32>
    %309 = vector.extract_strided_slice %296 {offsets = [0, 64], sizes = [2, 32], strides = [1, 1]} : vector<2x128xf32> to vector<2x32xf32>
    %310 = math.tanh %309 : vector<2x32xf32>
    %311 = vector.extract_strided_slice %296 {offsets = [0, 96], sizes = [2, 32], strides = [1, 1]} : vector<2x128xf32> to vector<2x32xf32>
    %312 = arith.negf %311 : vector<2x32xf32>
    %313 = math.exp %312 : vector<2x32xf32>
    %cst_63 = arith.constant 1.000000e+00 : f32
    %314 = vector.broadcast %cst_63 : f32 to vector<2x32xf32>
    %315 = arith.addf %314, %313 : vector<2x32xf32>
    %316 = arith.divf %314, %315 : vector<2x32xf32>
    %317 = arith.mulf %308, %232 : vector<2x32xf32>
    %318 = arith.mulf %302, %310 : vector<2x32xf32>
    %319 = arith.addf %317, %318 : vector<2x32xf32>
    %320 = math.tanh %319 : vector<2x32xf32>
    %321 = arith.mulf %316, %320 : vector<2x32xf32>
    %322 = tpu.concatenate %321, %263 in 1 : vector<2x32xf32>, vector<2x32xf32> -> vector<2x64xf32>
    %323 = arith.truncf %322 : vector<2x64xf32> to vector<2x64xbf16>
    %cst_64 = arith.constant dense<0.000000e+00> : vector<2x128xf32>
    %324 = tpu.matmul %323, %15, %cst_64 {dimension_numbers = #tpu.dot_dimension_numbers<[1], [0], [0], [1], [0, 0, 1, 1], [], []>} : vector<2x64xbf16>, vector<64x128xbf16>, vector<2x128xf32> -> vector<2x128xf32>
    %325 = arith.addf %324, %21 : vector<2x128xf32>
    %326 = vector.extract_strided_slice %325 {offsets = [0, 0], sizes = [2, 32], strides = [1, 1]} : vector<2x128xf32> to vector<2x32xf32>
    %327 = arith.negf %326 : vector<2x32xf32>
    %328 = math.exp %327 : vector<2x32xf32>
    %cst_65 = arith.constant 1.000000e+00 : f32
    %329 = vector.broadcast %cst_65 : f32 to vector<2x32xf32>
    %330 = arith.addf %329, %328 : vector<2x32xf32>
    %331 = arith.divf %329, %330 : vector<2x32xf32>
    %332 = vector.extract_strided_slice %325 {offsets = [0, 32], sizes = [2, 32], strides = [1, 1]} : vector<2x128xf32> to vector<2x32xf32>
    %333 = arith.negf %332 : vector<2x32xf32>
    %334 = math.exp %333 : vector<2x32xf32>
    %cst_66 = arith.constant 1.000000e+00 : f32
    %335 = vector.broadcast %cst_66 : f32 to vector<2x32xf32>
    %336 = arith.addf %335, %334 : vector<2x32xf32>
    %337 = arith.divf %335, %336 : vector<2x32xf32>
    %338 = vector.extract_strided_slice %325 {offsets = [0, 64], sizes = [2, 32], strides = [1, 1]} : vector<2x128xf32> to vector<2x32xf32>
    %339 = math.tanh %338 : vector<2x32xf32>
    %340 = vector.extract_strided_slice %325 {offsets = [0, 96], sizes = [2, 32], strides = [1, 1]} : vector<2x128xf32> to vector<2x32xf32>
    %341 = arith.negf %340 : vector<2x32xf32>
    %342 = math.exp %341 : vector<2x32xf32>
    %cst_67 = arith.constant 1.000000e+00 : f32
    %343 = vector.broadcast %cst_67 : f32 to vector<2x32xf32>
    %344 = arith.addf %343, %342 : vector<2x32xf32>
    %345 = arith.divf %343, %344 : vector<2x32xf32>
    %346 = arith.mulf %337, %261 : vector<2x32xf32>
    %347 = arith.mulf %331, %339 : vector<2x32xf32>
    %348 = arith.addf %346, %347 : vector<2x32xf32>
    %349 = math.tanh %348 : vector<2x32xf32>
    %350 = arith.mulf %345, %349 : vector<2x32xf32>
    %351 = tpu.concatenate %350, %292 in 1 : vector<2x32xf32>, vector<2x32xf32> -> vector<2x64xf32>
    %352 = arith.truncf %351 : vector<2x64xf32> to vector<2x64xbf16>
    %cst_68 = arith.constant dense<0.000000e+00> : vector<2x128xf32>
    %353 = tpu.matmul %352, %17, %cst_68 {dimension_numbers = #tpu.dot_dimension_numbers<[1], [0], [0], [1], [0, 0, 1, 1], [], []>} : vector<2x64xbf16>, vector<64x128xbf16>, vector<2x128xf32> -> vector<2x128xf32>
    %354 = arith.addf %353, %25 : vector<2x128xf32>
    %355 = vector.extract_strided_slice %354 {offsets = [0, 0], sizes = [2, 32], strides = [1, 1]} : vector<2x128xf32> to vector<2x32xf32>
    %356 = arith.negf %355 : vector<2x32xf32>
    %357 = math.exp %356 : vector<2x32xf32>
    %cst_69 = arith.constant 1.000000e+00 : f32
    %358 = vector.broadcast %cst_69 : f32 to vector<2x32xf32>
    %359 = arith.addf %358, %357 : vector<2x32xf32>
    %360 = arith.divf %358, %359 : vector<2x32xf32>
    %361 = vector.extract_strided_slice %354 {offsets = [0, 32], sizes = [2, 32], strides = [1, 1]} : vector<2x128xf32> to vector<2x32xf32>
    %362 = arith.negf %361 : vector<2x32xf32>
    %363 = math.exp %362 : vector<2x32xf32>
    %cst_70 = arith.constant 1.000000e+00 : f32
    %364 = vector.broadcast %cst_70 : f32 to vector<2x32xf32>
    %365 = arith.addf %364, %363 : vector<2x32xf32>
    %366 = arith.divf %364, %365 : vector<2x32xf32>
    %367 = vector.extract_strided_slice %354 {offsets = [0, 64], sizes = [2, 32], strides = [1, 1]} : vector<2x128xf32> to vector<2x32xf32>
    %368 = math.tanh %367 : vector<2x32xf32>
    %369 = vector.extract_strided_slice %354 {offsets = [0, 96], sizes = [2, 32], strides = [1, 1]} : vector<2x128xf32> to vector<2x32xf32>
    %370 = arith.negf %369 : vector<2x32xf32>
    %371 = math.exp %370 : vector<2x32xf32>
    %cst_71 = arith.constant 1.000000e+00 : f32
    %372 = vector.broadcast %cst_71 : f32 to vector<2x32xf32>
    %373 = arith.addf %372, %371 : vector<2x32xf32>
    %374 = arith.divf %372, %373 : vector<2x32xf32>
    %375 = arith.mulf %366, %290 : vector<2x32xf32>
    %376 = arith.mulf %360, %368 : vector<2x32xf32>
    %377 = arith.addf %375, %376 : vector<2x32xf32>
    %378 = math.tanh %377 : vector<2x32xf32>
    %379 = arith.mulf %374, %378 : vector<2x32xf32>
    %380 = vector.extract_strided_slice %11 {offsets = [8, 0], sizes = [2, 128], strides = [1, 1]} : vector<16x128xf32> to vector<2x128xf32>
    %381 = arith.truncf %321 : vector<2x32xf32> to vector<2x32xbf16>
    %cst_72 = arith.constant dense<0.000000e+00> : vector<2x128xf32>
    %382 = tpu.matmul %381, %13, %cst_72 {dimension_numbers = #tpu.dot_dimension_numbers<[1], [0], [0], [1], [0, 0, 1, 1], [], []>} : vector<2x32xbf16>, vector<32x128xbf16>, vector<2x128xf32> -> vector<2x128xf32>
    %383 = arith.addf %380, %382 : vector<2x128xf32>
    %384 = vector.extract_strided_slice %383 {offsets = [0, 0], sizes = [2, 32], strides = [1, 1]} : vector<2x128xf32> to vector<2x32xf32>
    %385 = arith.negf %384 : vector<2x32xf32>
    %386 = math.exp %385 : vector<2x32xf32>
    %cst_73 = arith.constant 1.000000e+00 : f32
    %387 = vector.broadcast %cst_73 : f32 to vector<2x32xf32>
    %388 = arith.addf %387, %386 : vector<2x32xf32>
    %389 = arith.divf %387, %388 : vector<2x32xf32>
    %390 = vector.extract_strided_slice %383 {offsets = [0, 32], sizes = [2, 32], strides = [1, 1]} : vector<2x128xf32> to vector<2x32xf32>
    %391 = arith.negf %390 : vector<2x32xf32>
    %392 = math.exp %391 : vector<2x32xf32>
    %cst_74 = arith.constant 1.000000e+00 : f32
    %393 = vector.broadcast %cst_74 : f32 to vector<2x32xf32>
    %394 = arith.addf %393, %392 : vector<2x32xf32>
    %395 = arith.divf %393, %394 : vector<2x32xf32>
    %396 = vector.extract_strided_slice %383 {offsets = [0, 64], sizes = [2, 32], strides = [1, 1]} : vector<2x128xf32> to vector<2x32xf32>
    %397 = math.tanh %396 : vector<2x32xf32>
    %398 = vector.extract_strided_slice %383 {offsets = [0, 96], sizes = [2, 32], strides = [1, 1]} : vector<2x128xf32> to vector<2x32xf32>
    %399 = arith.negf %398 : vector<2x32xf32>
    %400 = math.exp %399 : vector<2x32xf32>
    %cst_75 = arith.constant 1.000000e+00 : f32
    %401 = vector.broadcast %cst_75 : f32 to vector<2x32xf32>
    %402 = arith.addf %401, %400 : vector<2x32xf32>
    %403 = arith.divf %401, %402 : vector<2x32xf32>
    %404 = arith.mulf %395, %319 : vector<2x32xf32>
    %405 = arith.mulf %389, %397 : vector<2x32xf32>
    %406 = arith.addf %404, %405 : vector<2x32xf32>
    %407 = math.tanh %406 : vector<2x32xf32>
    %408 = arith.mulf %403, %407 : vector<2x32xf32>
    %409 = tpu.concatenate %408, %350 in 1 : vector<2x32xf32>, vector<2x32xf32> -> vector<2x64xf32>
    %410 = arith.truncf %409 : vector<2x64xf32> to vector<2x64xbf16>
    %cst_76 = arith.constant dense<0.000000e+00> : vector<2x128xf32>
    %411 = tpu.matmul %410, %15, %cst_76 {dimension_numbers = #tpu.dot_dimension_numbers<[1], [0], [0], [1], [0, 0, 1, 1], [], []>} : vector<2x64xbf16>, vector<64x128xbf16>, vector<2x128xf32> -> vector<2x128xf32>
    %412 = arith.addf %411, %21 : vector<2x128xf32>
    %413 = vector.extract_strided_slice %412 {offsets = [0, 0], sizes = [2, 32], strides = [1, 1]} : vector<2x128xf32> to vector<2x32xf32>
    %414 = arith.negf %413 : vector<2x32xf32>
    %415 = math.exp %414 : vector<2x32xf32>
    %cst_77 = arith.constant 1.000000e+00 : f32
    %416 = vector.broadcast %cst_77 : f32 to vector<2x32xf32>
    %417 = arith.addf %416, %415 : vector<2x32xf32>
    %418 = arith.divf %416, %417 : vector<2x32xf32>
    %419 = vector.extract_strided_slice %412 {offsets = [0, 32], sizes = [2, 32], strides = [1, 1]} : vector<2x128xf32> to vector<2x32xf32>
    %420 = arith.negf %419 : vector<2x32xf32>
    %421 = math.exp %420 : vector<2x32xf32>
    %cst_78 = arith.constant 1.000000e+00 : f32
    %422 = vector.broadcast %cst_78 : f32 to vector<2x32xf32>
    %423 = arith.addf %422, %421 : vector<2x32xf32>
    %424 = arith.divf %422, %423 : vector<2x32xf32>
    %425 = vector.extract_strided_slice %412 {offsets = [0, 64], sizes = [2, 32], strides = [1, 1]} : vector<2x128xf32> to vector<2x32xf32>
    %426 = math.tanh %425 : vector<2x32xf32>
    %427 = vector.extract_strided_slice %412 {offsets = [0, 96], sizes = [2, 32], strides = [1, 1]} : vector<2x128xf32> to vector<2x32xf32>
    %428 = arith.negf %427 : vector<2x32xf32>
    %429 = math.exp %428 : vector<2x32xf32>
    %cst_79 = arith.constant 1.000000e+00 : f32
    %430 = vector.broadcast %cst_79 : f32 to vector<2x32xf32>
    %431 = arith.addf %430, %429 : vector<2x32xf32>
    %432 = arith.divf %430, %431 : vector<2x32xf32>
    %433 = arith.mulf %424, %348 : vector<2x32xf32>
    %434 = arith.mulf %418, %426 : vector<2x32xf32>
    %435 = arith.addf %433, %434 : vector<2x32xf32>
    %436 = math.tanh %435 : vector<2x32xf32>
    %437 = arith.mulf %432, %436 : vector<2x32xf32>
    %438 = tpu.concatenate %437, %379 in 1 : vector<2x32xf32>, vector<2x32xf32> -> vector<2x64xf32>
    %439 = arith.truncf %438 : vector<2x64xf32> to vector<2x64xbf16>
    %cst_80 = arith.constant dense<0.000000e+00> : vector<2x128xf32>
    %440 = tpu.matmul %439, %17, %cst_80 {dimension_numbers = #tpu.dot_dimension_numbers<[1], [0], [0], [1], [0, 0, 1, 1], [], []>} : vector<2x64xbf16>, vector<64x128xbf16>, vector<2x128xf32> -> vector<2x128xf32>
    %441 = arith.addf %440, %25 : vector<2x128xf32>
    %442 = vector.extract_strided_slice %441 {offsets = [0, 0], sizes = [2, 32], strides = [1, 1]} : vector<2x128xf32> to vector<2x32xf32>
    %443 = arith.negf %442 : vector<2x32xf32>
    %444 = math.exp %443 : vector<2x32xf32>
    %cst_81 = arith.constant 1.000000e+00 : f32
    %445 = vector.broadcast %cst_81 : f32 to vector<2x32xf32>
    %446 = arith.addf %445, %444 : vector<2x32xf32>
    %447 = arith.divf %445, %446 : vector<2x32xf32>
    %448 = vector.extract_strided_slice %441 {offsets = [0, 32], sizes = [2, 32], strides = [1, 1]} : vector<2x128xf32> to vector<2x32xf32>
    %449 = arith.negf %448 : vector<2x32xf32>
    %450 = math.exp %449 : vector<2x32xf32>
    %cst_82 = arith.constant 1.000000e+00 : f32
    %451 = vector.broadcast %cst_82 : f32 to vector<2x32xf32>
    %452 = arith.addf %451, %450 : vector<2x32xf32>
    %453 = arith.divf %451, %452 : vector<2x32xf32>
    %454 = vector.extract_strided_slice %441 {offsets = [0, 64], sizes = [2, 32], strides = [1, 1]} : vector<2x128xf32> to vector<2x32xf32>
    %455 = math.tanh %454 : vector<2x32xf32>
    %456 = vector.extract_strided_slice %441 {offsets = [0, 96], sizes = [2, 32], strides = [1, 1]} : vector<2x128xf32> to vector<2x32xf32>
    %457 = arith.negf %456 : vector<2x32xf32>
    %458 = math.exp %457 : vector<2x32xf32>
    %cst_83 = arith.constant 1.000000e+00 : f32
    %459 = vector.broadcast %cst_83 : f32 to vector<2x32xf32>
    %460 = arith.addf %459, %458 : vector<2x32xf32>
    %461 = arith.divf %459, %460 : vector<2x32xf32>
    %462 = arith.mulf %453, %377 : vector<2x32xf32>
    %463 = arith.mulf %447, %455 : vector<2x32xf32>
    %464 = arith.addf %462, %463 : vector<2x32xf32>
    %465 = math.tanh %464 : vector<2x32xf32>
    %466 = arith.mulf %461, %465 : vector<2x32xf32>
    %467 = vector.extract_strided_slice %11 {offsets = [10, 0], sizes = [2, 128], strides = [1, 1]} : vector<16x128xf32> to vector<2x128xf32>
    %468 = arith.truncf %408 : vector<2x32xf32> to vector<2x32xbf16>
    %cst_84 = arith.constant dense<0.000000e+00> : vector<2x128xf32>
    %469 = tpu.matmul %468, %13, %cst_84 {dimension_numbers = #tpu.dot_dimension_numbers<[1], [0], [0], [1], [0, 0, 1, 1], [], []>} : vector<2x32xbf16>, vector<32x128xbf16>, vector<2x128xf32> -> vector<2x128xf32>
    %470 = arith.addf %467, %469 : vector<2x128xf32>
    %471 = vector.extract_strided_slice %470 {offsets = [0, 0], sizes = [2, 32], strides = [1, 1]} : vector<2x128xf32> to vector<2x32xf32>
    %472 = arith.negf %471 : vector<2x32xf32>
    %473 = math.exp %472 : vector<2x32xf32>
    %cst_85 = arith.constant 1.000000e+00 : f32
    %474 = vector.broadcast %cst_85 : f32 to vector<2x32xf32>
    %475 = arith.addf %474, %473 : vector<2x32xf32>
    %476 = arith.divf %474, %475 : vector<2x32xf32>
    %477 = vector.extract_strided_slice %470 {offsets = [0, 32], sizes = [2, 32], strides = [1, 1]} : vector<2x128xf32> to vector<2x32xf32>
    %478 = arith.negf %477 : vector<2x32xf32>
    %479 = math.exp %478 : vector<2x32xf32>
    %cst_86 = arith.constant 1.000000e+00 : f32
    %480 = vector.broadcast %cst_86 : f32 to vector<2x32xf32>
    %481 = arith.addf %480, %479 : vector<2x32xf32>
    %482 = arith.divf %480, %481 : vector<2x32xf32>
    %483 = vector.extract_strided_slice %470 {offsets = [0, 64], sizes = [2, 32], strides = [1, 1]} : vector<2x128xf32> to vector<2x32xf32>
    %484 = math.tanh %483 : vector<2x32xf32>
    %485 = vector.extract_strided_slice %470 {offsets = [0, 96], sizes = [2, 32], strides = [1, 1]} : vector<2x128xf32> to vector<2x32xf32>
    %486 = arith.negf %485 : vector<2x32xf32>
    %487 = math.exp %486 : vector<2x32xf32>
    %cst_87 = arith.constant 1.000000e+00 : f32
    %488 = vector.broadcast %cst_87 : f32 to vector<2x32xf32>
    %489 = arith.addf %488, %487 : vector<2x32xf32>
    %490 = arith.divf %488, %489 : vector<2x32xf32>
    %491 = arith.mulf %482, %406 : vector<2x32xf32>
    %492 = arith.mulf %476, %484 : vector<2x32xf32>
    %493 = arith.addf %491, %492 : vector<2x32xf32>
    %494 = math.tanh %493 : vector<2x32xf32>
    %495 = arith.mulf %490, %494 : vector<2x32xf32>
    %496 = tpu.concatenate %495, %437 in 1 : vector<2x32xf32>, vector<2x32xf32> -> vector<2x64xf32>
    %497 = arith.truncf %496 : vector<2x64xf32> to vector<2x64xbf16>
    %cst_88 = arith.constant dense<0.000000e+00> : vector<2x128xf32>
    %498 = tpu.matmul %497, %15, %cst_88 {dimension_numbers = #tpu.dot_dimension_numbers<[1], [0], [0], [1], [0, 0, 1, 1], [], []>} : vector<2x64xbf16>, vector<64x128xbf16>, vector<2x128xf32> -> vector<2x128xf32>
    %499 = arith.addf %498, %21 : vector<2x128xf32>
    %500 = vector.extract_strided_slice %499 {offsets = [0, 0], sizes = [2, 32], strides = [1, 1]} : vector<2x128xf32> to vector<2x32xf32>
    %501 = arith.negf %500 : vector<2x32xf32>
    %502 = math.exp %501 : vector<2x32xf32>
    %cst_89 = arith.constant 1.000000e+00 : f32
    %503 = vector.broadcast %cst_89 : f32 to vector<2x32xf32>
    %504 = arith.addf %503, %502 : vector<2x32xf32>
    %505 = arith.divf %503, %504 : vector<2x32xf32>
    %506 = vector.extract_strided_slice %499 {offsets = [0, 32], sizes = [2, 32], strides = [1, 1]} : vector<2x128xf32> to vector<2x32xf32>
    %507 = arith.negf %506 : vector<2x32xf32>
    %508 = math.exp %507 : vector<2x32xf32>
    %cst_90 = arith.constant 1.000000e+00 : f32
    %509 = vector.broadcast %cst_90 : f32 to vector<2x32xf32>
    %510 = arith.addf %509, %508 : vector<2x32xf32>
    %511 = arith.divf %509, %510 : vector<2x32xf32>
    %512 = vector.extract_strided_slice %499 {offsets = [0, 64], sizes = [2, 32], strides = [1, 1]} : vector<2x128xf32> to vector<2x32xf32>
    %513 = math.tanh %512 : vector<2x32xf32>
    %514 = vector.extract_strided_slice %499 {offsets = [0, 96], sizes = [2, 32], strides = [1, 1]} : vector<2x128xf32> to vector<2x32xf32>
    %515 = arith.negf %514 : vector<2x32xf32>
    %516 = math.exp %515 : vector<2x32xf32>
    %cst_91 = arith.constant 1.000000e+00 : f32
    %517 = vector.broadcast %cst_91 : f32 to vector<2x32xf32>
    %518 = arith.addf %517, %516 : vector<2x32xf32>
    %519 = arith.divf %517, %518 : vector<2x32xf32>
    %520 = arith.mulf %511, %435 : vector<2x32xf32>
    %521 = arith.mulf %505, %513 : vector<2x32xf32>
    %522 = arith.addf %520, %521 : vector<2x32xf32>
    %523 = math.tanh %522 : vector<2x32xf32>
    %524 = arith.mulf %519, %523 : vector<2x32xf32>
    %525 = tpu.concatenate %524, %466 in 1 : vector<2x32xf32>, vector<2x32xf32> -> vector<2x64xf32>
    %526 = arith.truncf %525 : vector<2x64xf32> to vector<2x64xbf16>
    %cst_92 = arith.constant dense<0.000000e+00> : vector<2x128xf32>
    %527 = tpu.matmul %526, %17, %cst_92 {dimension_numbers = #tpu.dot_dimension_numbers<[1], [0], [0], [1], [0, 0, 1, 1], [], []>} : vector<2x64xbf16>, vector<64x128xbf16>, vector<2x128xf32> -> vector<2x128xf32>
    %528 = arith.addf %527, %25 : vector<2x128xf32>
    %529 = vector.extract_strided_slice %528 {offsets = [0, 0], sizes = [2, 32], strides = [1, 1]} : vector<2x128xf32> to vector<2x32xf32>
    %530 = arith.negf %529 : vector<2x32xf32>
    %531 = math.exp %530 : vector<2x32xf32>
    %cst_93 = arith.constant 1.000000e+00 : f32
    %532 = vector.broadcast %cst_93 : f32 to vector<2x32xf32>
    %533 = arith.addf %532, %531 : vector<2x32xf32>
    %534 = arith.divf %532, %533 : vector<2x32xf32>
    %535 = vector.extract_strided_slice %528 {offsets = [0, 32], sizes = [2, 32], strides = [1, 1]} : vector<2x128xf32> to vector<2x32xf32>
    %536 = arith.negf %535 : vector<2x32xf32>
    %537 = math.exp %536 : vector<2x32xf32>
    %cst_94 = arith.constant 1.000000e+00 : f32
    %538 = vector.broadcast %cst_94 : f32 to vector<2x32xf32>
    %539 = arith.addf %538, %537 : vector<2x32xf32>
    %540 = arith.divf %538, %539 : vector<2x32xf32>
    %541 = vector.extract_strided_slice %528 {offsets = [0, 64], sizes = [2, 32], strides = [1, 1]} : vector<2x128xf32> to vector<2x32xf32>
    %542 = math.tanh %541 : vector<2x32xf32>
    %543 = vector.extract_strided_slice %528 {offsets = [0, 96], sizes = [2, 32], strides = [1, 1]} : vector<2x128xf32> to vector<2x32xf32>
    %544 = arith.negf %543 : vector<2x32xf32>
    %545 = math.exp %544 : vector<2x32xf32>
    %cst_95 = arith.constant 1.000000e+00 : f32
    %546 = vector.broadcast %cst_95 : f32 to vector<2x32xf32>
    %547 = arith.addf %546, %545 : vector<2x32xf32>
    %548 = arith.divf %546, %547 : vector<2x32xf32>
    %549 = arith.mulf %540, %464 : vector<2x32xf32>
    %550 = arith.mulf %534, %542 : vector<2x32xf32>
    %551 = arith.addf %549, %550 : vector<2x32xf32>
    %552 = math.tanh %551 : vector<2x32xf32>
    %553 = arith.mulf %548, %552 : vector<2x32xf32>
    %554 = vector.extract_strided_slice %11 {offsets = [12, 0], sizes = [2, 128], strides = [1, 1]} : vector<16x128xf32> to vector<2x128xf32>
    %555 = arith.truncf %495 : vector<2x32xf32> to vector<2x32xbf16>
    %cst_96 = arith.constant dense<0.000000e+00> : vector<2x128xf32>
    %556 = tpu.matmul %555, %13, %cst_96 {dimension_numbers = #tpu.dot_dimension_numbers<[1], [0], [0], [1], [0, 0, 1, 1], [], []>} : vector<2x32xbf16>, vector<32x128xbf16>, vector<2x128xf32> -> vector<2x128xf32>
    %557 = arith.addf %554, %556 : vector<2x128xf32>
    %558 = vector.extract_strided_slice %557 {offsets = [0, 0], sizes = [2, 32], strides = [1, 1]} : vector<2x128xf32> to vector<2x32xf32>
    %559 = arith.negf %558 : vector<2x32xf32>
    %560 = math.exp %559 : vector<2x32xf32>
    %cst_97 = arith.constant 1.000000e+00 : f32
    %561 = vector.broadcast %cst_97 : f32 to vector<2x32xf32>
    %562 = arith.addf %561, %560 : vector<2x32xf32>
    %563 = arith.divf %561, %562 : vector<2x32xf32>
    %564 = vector.extract_strided_slice %557 {offsets = [0, 32], sizes = [2, 32], strides = [1, 1]} : vector<2x128xf32> to vector<2x32xf32>
    %565 = arith.negf %564 : vector<2x32xf32>
    %566 = math.exp %565 : vector<2x32xf32>
    %cst_98 = arith.constant 1.000000e+00 : f32
    %567 = vector.broadcast %cst_98 : f32 to vector<2x32xf32>
    %568 = arith.addf %567, %566 : vector<2x32xf32>
    %569 = arith.divf %567, %568 : vector<2x32xf32>
    %570 = vector.extract_strided_slice %557 {offsets = [0, 64], sizes = [2, 32], strides = [1, 1]} : vector<2x128xf32> to vector<2x32xf32>
    %571 = math.tanh %570 : vector<2x32xf32>
    %572 = vector.extract_strided_slice %557 {offsets = [0, 96], sizes = [2, 32], strides = [1, 1]} : vector<2x128xf32> to vector<2x32xf32>
    %573 = arith.negf %572 : vector<2x32xf32>
    %574 = math.exp %573 : vector<2x32xf32>
    %cst_99 = arith.constant 1.000000e+00 : f32
    %575 = vector.broadcast %cst_99 : f32 to vector<2x32xf32>
    %576 = arith.addf %575, %574 : vector<2x32xf32>
    %577 = arith.divf %575, %576 : vector<2x32xf32>
    %578 = arith.mulf %569, %493 : vector<2x32xf32>
    %579 = arith.mulf %563, %571 : vector<2x32xf32>
    %580 = arith.addf %578, %579 : vector<2x32xf32>
    %581 = math.tanh %580 : vector<2x32xf32>
    %582 = arith.mulf %577, %581 : vector<2x32xf32>
    %583 = tpu.concatenate %582, %524 in 1 : vector<2x32xf32>, vector<2x32xf32> -> vector<2x64xf32>
    %584 = arith.truncf %583 : vector<2x64xf32> to vector<2x64xbf16>
    %cst_100 = arith.constant dense<0.000000e+00> : vector<2x128xf32>
    %585 = tpu.matmul %584, %15, %cst_100 {dimension_numbers = #tpu.dot_dimension_numbers<[1], [0], [0], [1], [0, 0, 1, 1], [], []>} : vector<2x64xbf16>, vector<64x128xbf16>, vector<2x128xf32> -> vector<2x128xf32>
    %586 = arith.addf %585, %21 : vector<2x128xf32>
    %587 = vector.extract_strided_slice %586 {offsets = [0, 0], sizes = [2, 32], strides = [1, 1]} : vector<2x128xf32> to vector<2x32xf32>
    %588 = arith.negf %587 : vector<2x32xf32>
    %589 = math.exp %588 : vector<2x32xf32>
    %cst_101 = arith.constant 1.000000e+00 : f32
    %590 = vector.broadcast %cst_101 : f32 to vector<2x32xf32>
    %591 = arith.addf %590, %589 : vector<2x32xf32>
    %592 = arith.divf %590, %591 : vector<2x32xf32>
    %593 = vector.extract_strided_slice %586 {offsets = [0, 32], sizes = [2, 32], strides = [1, 1]} : vector<2x128xf32> to vector<2x32xf32>
    %594 = arith.negf %593 : vector<2x32xf32>
    %595 = math.exp %594 : vector<2x32xf32>
    %cst_102 = arith.constant 1.000000e+00 : f32
    %596 = vector.broadcast %cst_102 : f32 to vector<2x32xf32>
    %597 = arith.addf %596, %595 : vector<2x32xf32>
    %598 = arith.divf %596, %597 : vector<2x32xf32>
    %599 = vector.extract_strided_slice %586 {offsets = [0, 64], sizes = [2, 32], strides = [1, 1]} : vector<2x128xf32> to vector<2x32xf32>
    %600 = math.tanh %599 : vector<2x32xf32>
    %601 = vector.extract_strided_slice %586 {offsets = [0, 96], sizes = [2, 32], strides = [1, 1]} : vector<2x128xf32> to vector<2x32xf32>
    %602 = arith.negf %601 : vector<2x32xf32>
    %603 = math.exp %602 : vector<2x32xf32>
    %cst_103 = arith.constant 1.000000e+00 : f32
    %604 = vector.broadcast %cst_103 : f32 to vector<2x32xf32>
    %605 = arith.addf %604, %603 : vector<2x32xf32>
    %606 = arith.divf %604, %605 : vector<2x32xf32>
    %607 = arith.mulf %598, %522 : vector<2x32xf32>
    %608 = arith.mulf %592, %600 : vector<2x32xf32>
    %609 = arith.addf %607, %608 : vector<2x32xf32>
    %610 = math.tanh %609 : vector<2x32xf32>
    %611 = arith.mulf %606, %610 : vector<2x32xf32>
    %612 = tpu.concatenate %611, %553 in 1 : vector<2x32xf32>, vector<2x32xf32> -> vector<2x64xf32>
    %613 = arith.truncf %612 : vector<2x64xf32> to vector<2x64xbf16>
    %cst_104 = arith.constant dense<0.000000e+00> : vector<2x128xf32>
    %614 = tpu.matmul %613, %17, %cst_104 {dimension_numbers = #tpu.dot_dimension_numbers<[1], [0], [0], [1], [0, 0, 1, 1], [], []>} : vector<2x64xbf16>, vector<64x128xbf16>, vector<2x128xf32> -> vector<2x128xf32>
    %615 = arith.addf %614, %25 : vector<2x128xf32>
    %616 = vector.extract_strided_slice %615 {offsets = [0, 0], sizes = [2, 32], strides = [1, 1]} : vector<2x128xf32> to vector<2x32xf32>
    %617 = arith.negf %616 : vector<2x32xf32>
    %618 = math.exp %617 : vector<2x32xf32>
    %cst_105 = arith.constant 1.000000e+00 : f32
    %619 = vector.broadcast %cst_105 : f32 to vector<2x32xf32>
    %620 = arith.addf %619, %618 : vector<2x32xf32>
    %621 = arith.divf %619, %620 : vector<2x32xf32>
    %622 = vector.extract_strided_slice %615 {offsets = [0, 32], sizes = [2, 32], strides = [1, 1]} : vector<2x128xf32> to vector<2x32xf32>
    %623 = arith.negf %622 : vector<2x32xf32>
    %624 = math.exp %623 : vector<2x32xf32>
    %cst_106 = arith.constant 1.000000e+00 : f32
    %625 = vector.broadcast %cst_106 : f32 to vector<2x32xf32>
    %626 = arith.addf %625, %624 : vector<2x32xf32>
    %627 = arith.divf %625, %626 : vector<2x32xf32>
    %628 = vector.extract_strided_slice %615 {offsets = [0, 64], sizes = [2, 32], strides = [1, 1]} : vector<2x128xf32> to vector<2x32xf32>
    %629 = math.tanh %628 : vector<2x32xf32>
    %630 = vector.extract_strided_slice %615 {offsets = [0, 96], sizes = [2, 32], strides = [1, 1]} : vector<2x128xf32> to vector<2x32xf32>
    %631 = arith.negf %630 : vector<2x32xf32>
    %632 = math.exp %631 : vector<2x32xf32>
    %cst_107 = arith.constant 1.000000e+00 : f32
    %633 = vector.broadcast %cst_107 : f32 to vector<2x32xf32>
    %634 = arith.addf %633, %632 : vector<2x32xf32>
    %635 = arith.divf %633, %634 : vector<2x32xf32>
    %636 = arith.mulf %627, %551 : vector<2x32xf32>
    %637 = arith.mulf %621, %629 : vector<2x32xf32>
    %638 = arith.addf %636, %637 : vector<2x32xf32>
    %639 = math.tanh %638 : vector<2x32xf32>
    %640 = arith.mulf %635, %639 : vector<2x32xf32>
    %641 = vector.extract_strided_slice %11 {offsets = [14, 0], sizes = [2, 128], strides = [1, 1]} : vector<16x128xf32> to vector<2x128xf32>
    %642 = arith.truncf %582 : vector<2x32xf32> to vector<2x32xbf16>
    %cst_108 = arith.constant dense<0.000000e+00> : vector<2x128xf32>
    %643 = tpu.matmul %642, %13, %cst_108 {dimension_numbers = #tpu.dot_dimension_numbers<[1], [0], [0], [1], [0, 0, 1, 1], [], []>} : vector<2x32xbf16>, vector<32x128xbf16>, vector<2x128xf32> -> vector<2x128xf32>
    %644 = arith.addf %641, %643 : vector<2x128xf32>
    %645 = vector.extract_strided_slice %644 {offsets = [0, 0], sizes = [2, 32], strides = [1, 1]} : vector<2x128xf32> to vector<2x32xf32>
    %646 = arith.negf %645 : vector<2x32xf32>
    %647 = math.exp %646 : vector<2x32xf32>
    %cst_109 = arith.constant 1.000000e+00 : f32
    %648 = vector.broadcast %cst_109 : f32 to vector<2x32xf32>
    %649 = arith.addf %648, %647 : vector<2x32xf32>
    %650 = arith.divf %648, %649 : vector<2x32xf32>
    %651 = vector.extract_strided_slice %644 {offsets = [0, 32], sizes = [2, 32], strides = [1, 1]} : vector<2x128xf32> to vector<2x32xf32>
    %652 = arith.negf %651 : vector<2x32xf32>
    %653 = math.exp %652 : vector<2x32xf32>
    %cst_110 = arith.constant 1.000000e+00 : f32
    %654 = vector.broadcast %cst_110 : f32 to vector<2x32xf32>
    %655 = arith.addf %654, %653 : vector<2x32xf32>
    %656 = arith.divf %654, %655 : vector<2x32xf32>
    %657 = vector.extract_strided_slice %644 {offsets = [0, 64], sizes = [2, 32], strides = [1, 1]} : vector<2x128xf32> to vector<2x32xf32>
    %658 = math.tanh %657 : vector<2x32xf32>
    %659 = vector.extract_strided_slice %644 {offsets = [0, 96], sizes = [2, 32], strides = [1, 1]} : vector<2x128xf32> to vector<2x32xf32>
    %660 = arith.negf %659 : vector<2x32xf32>
    %661 = math.exp %660 : vector<2x32xf32>
    %cst_111 = arith.constant 1.000000e+00 : f32
    %662 = vector.broadcast %cst_111 : f32 to vector<2x32xf32>
    %663 = arith.addf %662, %661 : vector<2x32xf32>
    %664 = arith.divf %662, %663 : vector<2x32xf32>
    %665 = arith.mulf %656, %580 : vector<2x32xf32>
    %666 = arith.mulf %650, %658 : vector<2x32xf32>
    %667 = arith.addf %665, %666 : vector<2x32xf32>
    %668 = math.tanh %667 : vector<2x32xf32>
    %669 = arith.mulf %664, %668 : vector<2x32xf32>
    %670 = tpu.concatenate %669, %611 in 1 : vector<2x32xf32>, vector<2x32xf32> -> vector<2x64xf32>
    %671 = arith.truncf %670 : vector<2x64xf32> to vector<2x64xbf16>
    %cst_112 = arith.constant dense<0.000000e+00> : vector<2x128xf32>
    %672 = tpu.matmul %671, %15, %cst_112 {dimension_numbers = #tpu.dot_dimension_numbers<[1], [0], [0], [1], [0, 0, 1, 1], [], []>} : vector<2x64xbf16>, vector<64x128xbf16>, vector<2x128xf32> -> vector<2x128xf32>
    %673 = arith.addf %672, %21 : vector<2x128xf32>
    %674 = vector.extract_strided_slice %673 {offsets = [0, 0], sizes = [2, 32], strides = [1, 1]} : vector<2x128xf32> to vector<2x32xf32>
    %675 = arith.negf %674 : vector<2x32xf32>
    %676 = math.exp %675 : vector<2x32xf32>
    %cst_113 = arith.constant 1.000000e+00 : f32
    %677 = vector.broadcast %cst_113 : f32 to vector<2x32xf32>
    %678 = arith.addf %677, %676 : vector<2x32xf32>
    %679 = arith.divf %677, %678 : vector<2x32xf32>
    %680 = vector.extract_strided_slice %673 {offsets = [0, 32], sizes = [2, 32], strides = [1, 1]} : vector<2x128xf32> to vector<2x32xf32>
    %681 = arith.negf %680 : vector<2x32xf32>
    %682 = math.exp %681 : vector<2x32xf32>
    %cst_114 = arith.constant 1.000000e+00 : f32
    %683 = vector.broadcast %cst_114 : f32 to vector<2x32xf32>
    %684 = arith.addf %683, %682 : vector<2x32xf32>
    %685 = arith.divf %683, %684 : vector<2x32xf32>
    %686 = vector.extract_strided_slice %673 {offsets = [0, 64], sizes = [2, 32], strides = [1, 1]} : vector<2x128xf32> to vector<2x32xf32>
    %687 = math.tanh %686 : vector<2x32xf32>
    %688 = vector.extract_strided_slice %673 {offsets = [0, 96], sizes = [2, 32], strides = [1, 1]} : vector<2x128xf32> to vector<2x32xf32>
    %689 = arith.negf %688 : vector<2x32xf32>
    %690 = math.exp %689 : vector<2x32xf32>
    %cst_115 = arith.constant 1.000000e+00 : f32
    %691 = vector.broadcast %cst_115 : f32 to vector<2x32xf32>
    %692 = arith.addf %691, %690 : vector<2x32xf32>
    %693 = arith.divf %691, %692 : vector<2x32xf32>
    %694 = arith.mulf %685, %609 : vector<2x32xf32>
    %695 = arith.mulf %679, %687 : vector<2x32xf32>
    %696 = arith.addf %694, %695 : vector<2x32xf32>
    %697 = math.tanh %696 : vector<2x32xf32>
    %698 = arith.mulf %693, %697 : vector<2x32xf32>
    %699 = tpu.concatenate %698, %640 in 1 : vector<2x32xf32>, vector<2x32xf32> -> vector<2x64xf32>
    %700 = arith.truncf %699 : vector<2x64xf32> to vector<2x64xbf16>
    %cst_116 = arith.constant dense<0.000000e+00> : vector<2x128xf32>
    %701 = tpu.matmul %700, %17, %cst_116 {dimension_numbers = #tpu.dot_dimension_numbers<[1], [0], [0], [1], [0, 0, 1, 1], [], []>} : vector<2x64xbf16>, vector<64x128xbf16>, vector<2x128xf32> -> vector<2x128xf32>
    %702 = arith.addf %701, %25 : vector<2x128xf32>
    %703 = vector.extract_strided_slice %702 {offsets = [0, 0], sizes = [2, 32], strides = [1, 1]} : vector<2x128xf32> to vector<2x32xf32>
    %704 = arith.negf %703 : vector<2x32xf32>
    %705 = math.exp %704 : vector<2x32xf32>
    %cst_117 = arith.constant 1.000000e+00 : f32
    %706 = vector.broadcast %cst_117 : f32 to vector<2x32xf32>
    %707 = arith.addf %706, %705 : vector<2x32xf32>
    %708 = arith.divf %706, %707 : vector<2x32xf32>
    %709 = vector.extract_strided_slice %702 {offsets = [0, 32], sizes = [2, 32], strides = [1, 1]} : vector<2x128xf32> to vector<2x32xf32>
    %710 = arith.negf %709 : vector<2x32xf32>
    %711 = math.exp %710 : vector<2x32xf32>
    %cst_118 = arith.constant 1.000000e+00 : f32
    %712 = vector.broadcast %cst_118 : f32 to vector<2x32xf32>
    %713 = arith.addf %712, %711 : vector<2x32xf32>
    %714 = arith.divf %712, %713 : vector<2x32xf32>
    %715 = vector.extract_strided_slice %702 {offsets = [0, 64], sizes = [2, 32], strides = [1, 1]} : vector<2x128xf32> to vector<2x32xf32>
    %716 = math.tanh %715 : vector<2x32xf32>
    %717 = vector.extract_strided_slice %702 {offsets = [0, 96], sizes = [2, 32], strides = [1, 1]} : vector<2x128xf32> to vector<2x32xf32>
    %718 = arith.negf %717 : vector<2x32xf32>
    %719 = math.exp %718 : vector<2x32xf32>
    %cst_119 = arith.constant 1.000000e+00 : f32
    %720 = vector.broadcast %cst_119 : f32 to vector<2x32xf32>
    %721 = arith.addf %720, %719 : vector<2x32xf32>
    %722 = arith.divf %720, %721 : vector<2x32xf32>
    %723 = arith.mulf %714, %638 : vector<2x32xf32>
    %724 = arith.mulf %708, %716 : vector<2x32xf32>
    %725 = arith.addf %723, %724 : vector<2x32xf32>
    %726 = math.tanh %725 : vector<2x32xf32>
    %727 = arith.mulf %722, %726 : vector<2x32xf32>
    %728 = tpu.concatenate %118, %205, %292, %379, %466, %553, %640, %727 in 0 : vector<2x32xf32>, vector<2x32xf32>, vector<2x32xf32>, vector<2x32xf32>, vector<2x32xf32>, vector<2x32xf32>, vector<2x32xf32>, vector<2x32xf32> -> vector<16x32xf32>
    %c0_120 = arith.constant 0 : index
    %c0_121 = arith.constant 0 : index
    %c0_122 = arith.constant 0 : index
    %729 = vector.load %arg7[%c0_120, %c0_121, %c0_122] : memref<1x32x128xf32, #tpu.memory_space<vmem>>, vector<1x32x128xf32>
    %730 = vector.shape_cast %729 : vector<1x32x128xf32> to vector<32x128xf32>
    %cst_123 = arith.constant dense<0.000000e+00> : vector<16x128xf32>
    %731 = tpu.matmul %728, %730, %cst_123 {dimension_numbers = #tpu.dot_dimension_numbers<[1], [0], [0], [1], [0, 0, 1, 1], [], []>} : vector<16x32xf32>, vector<32x128xf32>, vector<16x128xf32> -> vector<16x128xf32>
    %c0_124 = arith.constant 0 : index
    %c0_125 = arith.constant 0 : index
    %c0_126 = arith.constant 0 : index
    %732 = vector.load %arg8[%c0_124, %c0_125, %c0_126] : memref<1x1x128xf32, #tpu.memory_space<vmem>>, vector<1x1x128xf32>
    %733 = vector.shape_cast %732 : vector<1x1x128xf32> to vector<1x128xf32>
    %734 = vector.broadcast %733 : vector<1x128xf32> to vector<16x128xf32>
    %735 = arith.addf %731, %734 : vector<16x128xf32>
    %736 = arith.index_cast %arg0 : i32 to index
    %737 = memref.load %arg1[%736] : memref<4xi32, #tpu.memory_space<smem>>
    %c1_i32 = arith.constant 1 : i32
    %738 = arith.cmpi eq, %737, %c1_i32 : i32
    %739 = arith.negf %735 : vector<16x128xf32>
    %740 = math.exp %739 : vector<16x128xf32>
    %cst_127 = arith.constant 1.000000e+00 : f32
    %741 = vector.broadcast %cst_127 : f32 to vector<16x128xf32>
    %742 = arith.addf %741, %740 : vector<16x128xf32>
    %743 = arith.divf %741, %742 : vector<16x128xf32>
    %cst_128 = arith.constant 0.000000e+00 : f32
    %744 = vector.broadcast %cst_128 : f32 to vector<16x128xf32>
    %745 = arith.maximumf %735, %744 : vector<16x128xf32>
    %746 = arith.select %738, %743, %745 : vector<16x128xf32>
    %c0_129 = arith.constant 0 : index
    %c0_130 = arith.constant 0 : index
    %c0_131 = arith.constant 0 : index
    %747 = vector.load %arg9[%c0_129, %c0_130, %c0_131] : memref<1x16x128xf32, #tpu.memory_space<vmem>>, vector<1x16x128xf32>
    %748 = vector.shape_cast %747 : vector<1x16x128xf32> to vector<16x128xf32>
    %749 = vector.shape_cast %746 : vector<16x128xf32> to vector<1x16x128xf32>
    tpu.vector_store %arg9[%c0_129, %c0_130, %c0_131], %749 {strides = array<i32>} : memref<1x16x128xf32, #tpu.memory_space<vmem>>, vector<1x16x128xf32>,
    return
  }
  func.func @transform_0(%arg0: i32, %arg1: memref<4xi32, #tpu.memory_space<smem>>) -> (i32, i32, i32) {
    %c0_i32 = arith.constant 0 : i32
    %c0_i32_0 = arith.constant 0 : i32
    %c0_i32_1 = arith.constant 0 : i32
    return %arg0, %c0_i32, %c0_i32_0 : i32, i32, i32
  }
  func.func @transform_1(%arg0: i32, %arg1: memref<4xi32, #tpu.memory_space<smem>>) -> (i32, i32, i32) {
    %c0_i32 = arith.constant 0 : i32
    %c0_i32_0 = arith.constant 0 : i32
    %c0_i32_1 = arith.constant 0 : i32
    return %arg0, %c0_i32, %c0_i32_0 : i32, i32, i32
  }
  func.func @transform_2(%arg0: i32, %arg1: memref<4xi32, #tpu.memory_space<smem>>) -> (i32, i32, i32) {
    %c0_i32 = arith.constant 0 : i32
    %c0_i32_0 = arith.constant 0 : i32
    %c0_i32_1 = arith.constant 0 : i32
    return %arg0, %c0_i32, %c0_i32_0 : i32, i32, i32
  }
  func.func @transform_3(%arg0: i32, %arg1: memref<4xi32, #tpu.memory_space<smem>>) -> (i32, i32, i32, i32) {
    %c0_i32 = arith.constant 0 : i32
    %c0_i32_0 = arith.constant 0 : i32
    %c0_i32_1 = arith.constant 0 : i32
    %c0_i32_2 = arith.constant 0 : i32
    return %arg0, %c0_i32, %c0_i32_0, %c0_i32_1 : i32, i32, i32, i32
  }
  func.func @transform_4(%arg0: i32, %arg1: memref<4xi32, #tpu.memory_space<smem>>) -> (i32, i32, i32) {
    %c0_i32 = arith.constant 0 : i32
    %c0_i32_0 = arith.constant 0 : i32
    %c0_i32_1 = arith.constant 0 : i32
    return %arg0, %c0_i32, %c0_i32_0 : i32, i32, i32
  }
  func.func @transform_5(%arg0: i32, %arg1: memref<4xi32, #tpu.memory_space<smem>>) -> (i32, i32, i32) {
    %c0_i32 = arith.constant 0 : i32
    %c0_i32_0 = arith.constant 0 : i32
    %c0_i32_1 = arith.constant 0 : i32
    return %arg0, %c0_i32, %c0_i32_0 : i32, i32, i32
  }
  func.func @transform_6(%arg0: i32, %arg1: memref<4xi32, #tpu.memory_space<smem>>) -> (i32, i32, i32) {
    %c0_i32 = arith.constant 0 : i32
    %c0_i32_0 = arith.constant 0 : i32
    %c0_i32_1 = arith.constant 0 : i32
    return %arg0, %c0_i32, %c0_i32_0 : i32, i32, i32
  }
  func.func @transform_7(%arg0: i32, %arg1: memref<4xi32, #tpu.memory_space<smem>>) -> (i32, i32, i32) {
    %c0_i32 = arith.constant 0 : i32
    %c0_i32_0 = arith.constant 0 : i32
    %c0_i32_1 = arith.constant 0 : i32
    return %arg0, %c0_i32, %c0_i32_0 : i32, i32, i32
  }
}

</mosaic_0001>

<llo_original>
// kernel: pipeline.3
$region0: #{pipeline.3}
  #allocation0 [shape = 'u32[]', space=smem, size = 0x4, offset = 0x4, fixed_abs, tag = 'smem constant byte address 0x4 - core index']
  #allocation1 [shape = 'u32[144,128]{1,0:T(1,128)}', space=vmem, size = 0x12000, scoped, tag = 'internal scratch']
  #allocation2 [shape = 's32[1]{0}', space=sflag, size = 0x4, scoped, tag = 'scoped memory for pipeline.3']
  #allocation3 [shape = 'u8[512]{0}', space=smem, size = 0x200, scoped, tag = 'prefetched SMEM operand 0']
  %s0 = inlined_call_operand.vmem [shape: s32[4], index: 0, kind: input, shape index: {}]
  %s1 = inlined_call_operand.vmem [shape: f32[4,16,32], index: 1, kind: input, shape index: {}]
  %s2 = inlined_call_operand.vmem [shape: f32[4,32,128], index: 2, kind: input, shape index: {}]
  %s3 = inlined_call_operand.vmem [shape: bf16[4,32,128], index: 3, kind: input, shape index: {}]
  %s4 = inlined_call_operand.vmem [shape: bf16[4,2,64,128], index: 4, kind: input, shape index: {}]
  %s5 = inlined_call_operand.vmem [shape: f32[4,3,128], index: 5, kind: input, shape index: {}]
  %s6 = inlined_call_operand.vmem [shape: f32[4,32,128], index: 6, kind: input, shape index: {}]
  %s7 = inlined_call_operand.vmem [shape: f32[4,1,128], index: 7, kind: input, shape index: {}]
  %s8 = inlined_call_operand.vmem [shape: f32[4,16,128], index: 8, kind: output, shape index: {}]
  %s9 = sld [smem:[#allocation0]]
  $region61: #{pipeline.3} parent=0
    _
  %s11 = ssub.s32 1, %s9
  %s12 = scalar_select 0, %s11, %s9
  %s13 = sshll.u32 %s0, 4
  %s14 = int_to_ptr.vmem [resolvable:$true] %s13
  %16 = dma.vmem_to_smem %s14, 16, [#allocation3], [#allocation2]
  %17 = dma.done [#allocation2], 16
  %18 = sfence
  loop: start=0, step=1, limit=6
  $region2: #{pipeline.3} parent=0 // loop_pre_header
    _
  $region3: #{pipeline.3} parent=0 // loop_header
    %s20 = sphi 0, %s24
    %p21 = scmp.ge.s32.totalorder %s20, 6
    %s30 = sphi 0, %s32
    %s33 = sphi 0, %s30
    %s34 = sphi 0, %s33
    %s50 = sphi 0, %s34
    %s56 = sphi 0, %s58
    %s59 = sphi 0, %s56
    %s60 = sphi 0, %s59
    %s76 = sphi 0, %s60
    %s82 = sphi 0, %s84
    %s85 = sphi 0, %s82
    %s86 = sphi 0, %s85
    %s102 = sphi 0, %s86
    %s108 = sphi 0, %s110
    %s111 = sphi 0, %s108
    %s112 = sphi 0, %s111
    %s128 = sphi 0, %s112
    %s134 = sphi 0, %s136
    %s137 = sphi 0, %s134
    %s138 = sphi 0, %s137
    %s154 = sphi 0, %s138
    %s160 = sphi 0, %s162
    %s163 = sphi 0, %s160
    %s164 = sphi 0, %s163
    %s180 = sphi 0, %s164
    %s186 = sphi 0, %s188
    %s189 = sphi 0, %s186
    %s190 = sphi 0, %s189
    %s206 = sphi 0, %s190
    %s212 = sphi 0, %s214
    %s215 = sphi 0, %s212
    %s216 = sphi 0, %s215
    %s232 = sphi 0, %s216
  $region4: #{pipeline.3} parent=0 // loop_header_branch
    %23 = sbr.rel (%p21) target = $region8
  $region5: #{pipeline.3} parent=0 // loop_body
    %s25 = ssub.s32 %s20, 1
    %s26 = ssub.s32 %s20, 2
    %s27 = sadd.s32 %s20, 1
    %s28 = ssub.s32 %s20, %s27
    %p29 = scmp.eq.s32.totalorder %s28, 0
    %s31 = sadd.s32 %s30, 1
    %s32 = scalar_select %p29, %s30, %s31
    %p35 = pneg %p29
    %p36 = scmp.eq.s32.totalorder %s20, 3
    %p37 = por %p35, %p36
    %p38 = scmp.ne.s32.totalorder %s30, %s33
    %p39 = scmp.eq.s32.totalorder %s20, 0
    %p40 = por %p38, %p39
    %p41 = scmp.ne.s32.totalorder %s30, %s33
    %p42 = scmp.eq.s32.totalorder %s25, 3
    %p43 = por %p41, %p42
    %p44 = scmp.ne.s32.totalorder %s33, %s34
    %p45 = scmp.eq.s32.totalorder %s25, 0
    %p46 = por %p44, %p45
    %p47 = scmp.ne.s32.totalorder %s33, %s34
    %p48 = scmp.eq.s32.totalorder %s26, 3
    %p49 = por %p47, %p48
    %p51 = scmp.ne.s32.totalorder %s34, %s50
    %p52 = scmp.eq.s32.totalorder %s26, 0
    %p53 = por %p51, %p52
    %s54 = ssub.s32 %s20, %s27
    %p55 = scmp.eq.s32.totalorder %s54, 0
    %s57 = sadd.s32 %s56, 1
    %s58 = scalar_select %p55, %s56, %s57
    %p61 = pneg %p55
    %p62 = scmp.eq.s32.totalorder %s20, 3
    %p63 = por %p61, %p62
    %p64 = scmp.ne.s32.totalorder %s56, %s59
    %p65 = scmp.eq.s32.totalorder %s20, 0
    %p66 = por %p64, %p65
    %p67 = scmp.ne.s32.totalorder %s56, %s59
    %p68 = scmp.eq.s32.totalorder %s25, 3
    %p69 = por %p67, %p68
    %p70 = scmp.ne.s32.totalorder %s59, %s60
    %p71 = scmp.eq.s32.totalorder %s25, 0
    %p72 = por %p70, %p71
    %p73 = scmp.ne.s32.totalorder %s59, %s60
    %p74 = scmp.eq.s32.totalorder %s26, 3
    %p75 = por %p73, %p74
    %p77 = scmp.ne.s32.totalorder %s60, %s76
    %p78 = scmp.eq.s32.totalorder %s26, 0
    %p79 = por %p77, %p78
    %s80 = ssub.s32 %s20, %s27
    %p81 = scmp.eq.s32.totalorder %s80, 0
    %s83 = sadd.s32 %s82, 1
    %s84 = scalar_select %p81, %s82, %s83
    %p87 = pneg %p81
    %p88 = scmp.eq.s32.totalorder %s20, 3
    %p89 = por %p87, %p88
    %p90 = scmp.ne.s32.totalorder %s82, %s85
    %p91 = scmp.eq.s32.totalorder %s20, 0
    %p92 = por %p90, %p91
    %p93 = scmp.ne.s32.totalorder %s82, %s85
    %p94 = scmp.eq.s32.totalorder %s25, 3
    %p95 = por %p93, %p94
    %p96 = scmp.ne.s32.totalorder %s85, %s86
    %p97 = scmp.eq.s32.totalorder %s25, 0
    %p98 = por %p96, %p97
    %p99 = scmp.ne.s32.totalorder %s85, %s86
    %p100 = scmp.eq.s32.totalorder %s26, 3
    %p101 = por %p99, %p100
    %p103 = scmp.ne.s32.totalorder %s86, %s102
    %p104 = scmp.eq.s32.totalorder %s26, 0
    %p105 = por %p103, %p104
    %s106 = ssub.s32 %s20, %s27
    %p107 = scmp.eq.s32.totalorder %s106, 0
    %s109 = sadd.s32 %s108, 1
    %s110 = scalar_select %p107, %s108, %s109
    %p113 = pneg %p107
    %p114 = scmp.eq.s32.totalorder %s20, 3
    %p115 = por %p113, %p114
    %p116 = scmp.ne.s32.totalorder %s108, %s111
    %p117 = scmp.eq.s32.totalorder %s20, 0
    %p118 = por %p116, %p117
    %p119 = scmp.ne.s32.totalorder %s108, %s111
    %p120 = scmp.eq.s32.totalorder %s25, 3
    %p121 = por %p119, %p120
    %p122 = scmp.ne.s32.totalorder %s111, %s112
    %p123 = scmp.eq.s32.totalorder %s25, 0
    %p124 = por %p122, %p123
    %p125 = scmp.ne.s32.totalorder %s111, %s112
    %p126 = scmp.eq.s32.totalorder %s26, 3
    %p127 = por %p125, %p126
    %p129 = scmp.ne.s32.totalorder %s112, %s128
    %p130 = scmp.eq.s32.totalorder %s26, 0
    %p131 = por %p129, %p130
    %s132 = ssub.s32 %s20, %s27
    %p133 = scmp.eq.s32.totalorder %s132, 0
    %s135 = sadd.s32 %s134, 1
    %s136 = scalar_select %p133, %s134, %s135
    %p139 = pneg %p133
    %p140 = scmp.eq.s32.totalorder %s20, 3
    %p141 = por %p139, %p140
    %p142 = scmp.ne.s32.totalorder %s134, %s137
    %p143 = scmp.eq.s32.totalorder %s20, 0
    %p144 = por %p142, %p143
    %p145 = scmp.ne.s32.totalorder %s134, %s137
    %p146 = scmp.eq.s32.totalorder %s25, 3
    %p147 = por %p145, %p146
    %p148 = scmp.ne.s32.totalorder %s137, %s138
    %p149 = scmp.eq.s32.totalorder %s25, 0
    %p150 = por %p148, %p149
    %p151 = scmp.ne.s32.totalorder %s137, %s138
    %p152 = scmp.eq.s32.totalorder %s26, 3
    %p153 = por %p151, %p152
    %p155 = scmp.ne.s32.totalorder %s138, %s154
    %p156 = scmp.eq.s32.totalorder %s26, 0
    %p157 = por %p155, %p156
    %s158 = ssub.s32 %s20, %s27
    %p159 = scmp.eq.s32.totalorder %s158, 0
    %s161 = sadd.s32 %s160, 1
    %s162 = scalar_select %p159, %s160, %s161
    %p165 = pneg %p159
    %p166 = scmp.eq.s32.totalorder %s20, 3
    %p167 = por %p165, %p166
    %p168 = scmp.ne.s32.totalorder %s160, %s163
    %p169 = scmp.eq.s32.totalorder %s20, 0
    %p170 = por %p168, %p169
    %p171 = scmp.ne.s32.totalorder %s160, %s163
    %p172 = scmp.eq.s32.totalorder %s25, 3
    %p173 = por %p171, %p172
    %p174 = scmp.ne.s32.totalorder %s163, %s164
    %p175 = scmp.eq.s32.totalorder %s25, 0
    %p176 = por %p174, %p175
    %p177 = scmp.ne.s32.totalorder %s163, %s164
    %p178 = scmp.eq.s32.totalorder %s26, 3
    %p179 = por %p177, %p178
    %p181 = scmp.ne.s32.totalorder %s164, %s180
    %p182 = scmp.eq.s32.totalorder %s26, 0
    %p183 = por %p181, %p182
    %s184 = ssub.s32 %s20, %s27
    %p185 = scmp.eq.s32.totalorder %s184, 0
    %s187 = sadd.s32 %s186, 1
    %s188 = scalar_select %p185, %s186, %s187
    %p191 = pneg %p185
    %p192 = scmp.eq.s32.totalorder %s20, 3
    %p193 = por %p191, %p192
    %p194 = scmp.ne.s32.totalorder %s186, %s189
    %p195 = scmp.eq.s32.totalorder %s20, 0
    %p196 = por %p194, %p195
    %p197 = scmp.ne.s32.totalorder %s186, %s189
    %p198 = scmp.eq.s32.totalorder %s25, 3
    %p199 = por %p197, %p198
    %p200 = scmp.ne.s32.totalorder %s189, %s190
    %p201 = scmp.eq.s32.totalorder %s25, 0
    %p202 = por %p200, %p201
    %p203 = scmp.ne.s32.totalorder %s189, %s190
    %p204 = scmp.eq.s32.totalorder %s26, 3
    %p205 = por %p203, %p204
    %p207 = scmp.ne.s32.totalorder %s190, %s206
    %p208 = scmp.eq.s32.totalorder %s26, 0
    %p209 = por %p207, %p208
    %s210 = ssub.s32 %s20, %s27
    %p211 = scmp.eq.s32.totalorder %s210, 0
    %s213 = sadd.s32 %s212, 1
    %s214 = scalar_select %p211, %s212, %s213
    %p217 = pneg %p211
    %p218 = scmp.eq.s32.totalorder %s20, 3
    %p219 = por %p217, %p218
    %p220 = scmp.ne.s32.totalorder %s212, %s215
    %p221 = scmp.eq.s32.totalorder %s20, 0
    %p222 = por %p220, %p221
    %p223 = scmp.ne.s32.totalorder %s212, %s215
    %p224 = scmp.eq.s32.totalorder %s25, 3
    %p225 = por %p223, %p224
    %p226 = scmp.ne.s32.totalorder %s215, %s216
    %p227 = scmp.eq.s32.totalorder %s25, 0
    %p228 = por %p226, %p227
    %p229 = scmp.ne.s32.totalorder %s215, %s216
    %p230 = scmp.eq.s32.totalorder %s26, 3
    %p231 = por %p229, %p230
    %p233 = scmp.ne.s32.totalorder %s216, %s232
    %p234 = scmp.eq.s32.totalorder %s26, 0
    %p235 = por %p233, %p234
    %p236 = scmp.le.s32.totalorder 1, %s20
    %p237 = scmp.lt.s32.totalorder %s20, 5
    %p238 = pnand %p236, %p237
    %p239 = pneg %p238
    // Predicated region
    $region9: #{pipeline.3} parent=5 // pred_check
      _
    $region10: #{pipeline.3} parent=5 // pred_check_branch
      %241 = sbr.rel (%p238) target = $region12
    $region11: #{pipeline.3} parent=5 // pred_region
      %s242 = ssub.s32 %s20, 1
    $region12: #{pipeline.3} parent=5 // pred_fallthru
      _
    %p243 = scmp.lt.s32.totalorder %s20, 4
    // Predicated region
    $region13: #{pipeline.3} parent=5 // pred_check
      %p244 = pneg %p243
    $region14: #{pipeline.3} parent=5 // pred_check_branch
      %246 = sbr.rel (%p244) target = $region16
    $region15: #{pipeline.3} parent=5 // pred_region
      // Predicated region
      $region17: #{pipeline.3} parent=15 // pred_check
        %p247 = pneg %p40
      $region18: #{pipeline.3} parent=15 // pred_check_branch
        %249 = sbr.rel (%p247) target = $region20
      $region19: #{pipeline.3} parent=15 // pred_region
        %p250 = scmp.lt.s32.totalorder %s20, 3
        %s251 = scalar_select %p250, %s20, 3
        %s252 = smul.addr %s251, 2
        %s253 = smul.addr %s252, 8
        %s254 = scalar_lea.vmem %s1, %s253
      $region20: #{pipeline.3} parent=15 // pred_fallthru
        _
      // Predicated region
      $region21: #{pipeline.3} parent=15 // pred_check
        %p255 = pneg %p66
      $region22: #{pipeline.3} parent=15 // pred_check_branch
        %257 = sbr.rel (%p255) target = $region24
      $region23: #{pipeline.3} parent=15 // pred_region
        %p258 = scmp.lt.s32.totalorder %s20, 3
        %s259 = scalar_select %p258, %s20, 3
        %s260 = smul.addr %s259, 4
        %s261 = smul.addr %s260, 8
        %s262 = scalar_lea.vmem %s2, %s261
      $region24: #{pipeline.3} parent=15 // pred_fallthru
        _
      // Predicated region
      $region25: #{pipeline.3} parent=15 // pred_check
        %p263 = pneg %p92
      $region26: #{pipeline.3} parent=15 // pred_check_branch
        %265 = sbr.rel (%p263) target = $region28
      $region27: #{pipeline.3} parent=15 // pred_region
        %p266 = scmp.lt.s32.totalorder %s20, 3
        %s267 = scalar_select %p266, %s20, 3
        %s268 = smul.addr %s267, 4
        %s269 = smul.addr %s268, 4
        %s270 = scalar_lea.vmem %s3, %s269
      $region28: #{pipeline.3} parent=15 // pred_fallthru
        _
      // Predicated region
      $region29: #{pipeline.3} parent=15 // pred_check
        %p271 = pneg %p118
      $region30: #{pipeline.3} parent=15 // pred_check_branch
        %273 = sbr.rel (%p271) target = $region32
      $region31: #{pipeline.3} parent=15 // pred_region
        %p274 = scmp.lt.s32.totalorder %s20, 3
        %s275 = scalar_select %p274, %s20, 3
        %s276 = smul.addr %s275, 16
        %s277 = smul.addr %s276, 4
        %s278 = scalar_lea.vmem %s4, %s277
      $region32: #{pipeline.3} parent=15 // pred_fallthru
        _
      // Predicated region
      $region33: #{pipeline.3} parent=15 // pred_check
        %p279 = pneg %p144
      $region34: #{pipeline.3} parent=15 // pred_check_branch
        %281 = sbr.rel (%p279) target = $region36
      $region35: #{pipeline.3} parent=15 // pred_region
        %p282 = scmp.lt.s32.totalorder %s20, 3
        %s283 = scalar_select %p282, %s20, 3
        %s284 = smul.addr %s283, 4
        %s285 = scalar_lea.vmem %s5, %s284
      $region36: #{pipeline.3} parent=15 // pred_fallthru
        _
      // Predicated region
      $region37: #{pipeline.3} parent=15 // pred_check
        %p286 = pneg %p170
      $region38: #{pipeline.3} parent=15 // pred_check_branch
        %288 = sbr.rel (%p286) target = $region40
      $region39: #{pipeline.3} parent=15 // pred_region
        %p289 = scmp.lt.s32.totalorder %s20, 3
        %s290 = scalar_select %p289, %s20, 3
        %s291 = smul.addr %s290, 4
        %s292 = smul.addr %s291, 8
        %s293 = scalar_lea.vmem %s6, %s292
      $region40: #{pipeline.3} parent=15 // pred_fallthru
        _
      // Predicated region
      $region41: #{pipeline.3} parent=15 // pred_check
        %p294 = pneg %p196
      $region42: #{pipeline.3} parent=15 // pred_check_branch
        %296 = sbr.rel (%p294) target = $region44
      $region43: #{pipeline.3} parent=15 // pred_region
        %p297 = scmp.lt.s32.totalorder %s20, 3
        %s298 = scalar_select %p297, %s20, 3
        %s299 = scalar_lea.vmem %s7, %s298
      $region44: #{pipeline.3} parent=15 // pred_fallthru
        _
    $region16: #{pipeline.3} parent=5 // pred_fallthru
      _
    %p300 = scmp.le.s32.totalorder 1, %s20
    %p301 = scmp.lt.s32.totalorder %s20, 5
    %p302 = pnand %p300, %p301
    %p303 = pneg %p302
    // Predicated region
    $region45: #{pipeline.3} parent=5 // pred_check
      _
    $region46: #{pipeline.3} parent=5 // pred_check_branch
      %305 = sbr.rel (%p302) target = $region48
    $region47: #{pipeline.3} parent=5 // pred_region
      %s306 = ssub.s32 %s20, 1
      %p307 = scmp.lt.s32.totalorder %s25, 3
      %s308 = scalar_select %p307, %s25, 3
      %s309 = smul.addr %s308, 2
      %s310 = smul.addr %s309, 8
      %s311 = scalar_lea.vmem %s1, %s310
      %p312 = pneg %p46
      %p313 = pneg %p43
      %p314 = scmp.lt.s32.totalorder %s25, 3
      %s315 = scalar_select %p314, %s25, 3
      %s316 = smul.addr %s315, 4
      %s317 = smul.addr %s316, 8
      %s318 = scalar_lea.vmem %s2, %s317
      %p319 = pneg %p72
      %p320 = pneg %p69
      %p321 = scmp.lt.s32.totalorder %s25, 3
      %s322 = scalar_select %p321, %s25, 3
      %s323 = smul.addr %s322, 4
      %s324 = smul.addr %s323, 4
      %s325 = scalar_lea.vmem %s3, %s324
      %p326 = pneg %p98
      %p327 = pneg %p95
      %p328 = scmp.lt.s32.totalorder %s25, 3
      %s329 = scalar_select %p328, %s25, 3
      %s330 = smul.addr %s329, 16
      %s331 = smul.addr %s330, 4
      %s332 = scalar_lea.vmem %s4, %s331
      %p333 = pneg %p124
      %p334 = pneg %p121
      %p335 = scmp.lt.s32.totalorder %s25, 3
      %s336 = scalar_select %p335, %s25, 3
      %s337 = smul.addr %s336, 4
      %s338 = scalar_lea.vmem %s5, %s337
      %p339 = pneg %p150
      %p340 = pneg %p147
      %p341 = scmp.lt.s32.totalorder %s25, 3
      %s342 = scalar_select %p341, %s25, 3
      %s343 = smul.addr %s342, 4
      %s344 = smul.addr %s343, 8
      %s345 = scalar_lea.vmem %s6, %s344
      %p346 = pneg %p176
      %p347 = pneg %p173
      %p348 = scmp.lt.s32.totalorder %s25, 3
      %s349 = scalar_select %p348, %s25, 3
      %s350 = scalar_lea.vmem %s7, %s349
      %p351 = pneg %p202
      %p352 = pneg %p199
      %p353 = pneg %p228
      %p354 = pneg %p225
      %p355 = scmp.lt.s32.totalorder %s25, 3
      %s356 = scalar_select %p355, %s25, 3
      %s357 = smul.addr %s356, 2
      %s358 = smul.addr %s357, 8
      %s359 = scalar_lea.vmem %s8, %s358
      %p360 = scmp.lt.s32.totalorder %s25, 3
      %s361 = scalar_select %p360, %s25, 3
      %s362 = smul.addr %s361, 2
      %s363 = smul.addr %s362, 8
      %s364 = scalar_lea.vmem %s1, %s363
      %p365 = scmp.lt.s32.totalorder %s25, 3
      %s366 = scalar_select %p365, %s25, 3
      %s367 = smul.addr %s366, 4
      %s368 = smul.addr %s367, 8
      %s369 = scalar_lea.vmem %s2, %s368
      %p370 = scmp.lt.s32.totalorder %s25, 3
      %s371 = scalar_select %p370, %s25, 3
      %s372 = smul.addr %s371, 4
      %s373 = smul.addr %s372, 4
      %s374 = scalar_lea.vmem %s3, %s373
      %p375 = scmp.lt.s32.totalorder %s25, 3
      %s376 = scalar_select %p375, %s25, 3
      %s377 = smul.addr %s376, 16
      %s378 = smul.addr %s377, 4
      %s379 = scalar_lea.vmem %s4, %s378
      %p380 = scmp.lt.s32.totalorder %s25, 3
      %s381 = scalar_select %p380, %s25, 3
      %s382 = smul.addr %s381, 4
      %s383 = scalar_lea.vmem %s5, %s382
      %p384 = scmp.lt.s32.totalorder %s25, 3
      %s385 = scalar_select %p384, %s25, 3
      %s386 = smul.addr %s385, 4
      %s387 = smul.addr %s386, 8
      %s388 = scalar_lea.vmem %s6, %s387
      %p389 = scmp.lt.s32.totalorder %s25, 3
      %s390 = scalar_select %p389, %s25, 3
      %s391 = scalar_lea.vmem %s7, %s390
      %p392 = scmp.lt.s32.totalorder %s25, 3
      %s393 = scalar_select %p392, %s25, 3
      %s394 = smul.addr %s393, 2
      %s395 = smul.addr %s394, 8
      %s396 = scalar_lea.vmem %s8, %s395
      %v398 = vld [vmem:[%s383] sm:$0x7]
      %v399 = vld [vmem:[%s364] sm:$0xff]
      %v400 = vld [vmem:[%s364 + $0x8] sm:$0xff]
      %v401 = vld [vmem:[%s369] sm:$0xff]
      %v402 = vld [vmem:[%s369 + $0x8] sm:$0xff]
      %v403 = vld [vmem:[%s369 + $0x10] sm:$0xff]
      %v404 = vld [vmem:[%s369 + $0x18] sm:$0xff]
      %v405 = vlaneseq
      %v406 = vshrl.u32 %v405, 7
      %v407 = vsub.s32 0, %v406
      %v408 = vrot.slane %v398, %v407
      %vm409 = vcmask 261120
      %v411 = vsel %vm409, %v399, 0
      %v414 = vsel %vm409, %v400, 0
      %416 = vmatprep.subr.mxu0 0.0
      %417 = vmatpush1.msra.mxu0 %v401
      %418 = vmatprep.subr.mxu0 0.0
      %419 = vmatpush1.msra.mxu0 %v402
      %420 = vmatprep.subr.mxu0 0.0
      %421 = vmatpush1.msra.mxu0 %v403
      %422 = vmatprep.subr.mxu0 0.0
      %423 = vmatpush1.msra.mxu0 %v404
      %424 = vmatprep.subr.mxu0 0.0
      %425 = vmatpush1.msra.mxu0 0.0
      %426 = vmatprep.subr.mxu0 0.0
      %427 = vmatpush1.msra.mxu0 0.0
      %428 = vmatprep.subr.mxu0 0.0
      %429 = vmatpush1.msra.mxu0 0.0
      %430 = vmatprep.subr.mxu0 0.0
      %431 = vmatpush1.msra.mxu0 0.0
      %432 = vmatprep.subr.mxu0 0.0
      %433 = vmatpush1.msra.mxu0 0.0
      %434 = vmatprep.subr.mxu0 0.0
      %435 = vmatpush1.msra.mxu0 0.0
      %436 = vmatprep.subr.mxu0 0.0
      %437 = vmatpush1.msra.mxu0 0.0
      %438 = vmatprep.subr.mxu0 0.0
      %439 = vmatpush1.msra.mxu0 0.0
      %440 = vmatprep.subr.mxu0 0.0
      %441 = vmatpush1.msra.mxu0 0.0
      %442 = vmatprep.subr.mxu0 0.0
      %443 = vmatpush1.msra.mxu0 0.0
      %444 = vmatprep.subr.mxu0 0.0
      %445 = vmatpush1.msra.mxu0 0.0
      %446 = vmatprep.subr.mxu0 0.0
      %447 = vmatpush1.msra.mxu0 0.0
      %448 = vmatprep.subr.mxu0 0.0
      %449 = vmatpush1.msra.mxu0 0.0
      %450 = vmatprep.subr.mxu0 0.0
      %451 = vmatpush1.msra.mxu0 0.0
      %452 = vmatprep.subr.mxu0 0.0
      %453 = vmatpush1.msra.mxu0 0.0
      %454 = vmatprep.subr.mxu0 0.0
      %455 = vmatpush1.msra.mxu0 0.0
      %456 = vmatprep.subr.mxu0 0.0
      %457 = vmatpush1.msra.mxu0 0.0
      %458 = vmatprep.subr.mxu0 0.0
      %459 = vmatpush1.msra.mxu0 0.0
      %460 = vmatprep.subr.mxu0 0.0
      %461 = vmatpush1.msra.mxu0 0.0
      %462 = vmatprep.subr.mxu0 0.0
      %463 = vmatpush1.msra.mxu0 0.0
      %464 = vmatprep.subr.mxu0 0.0
      %465 = vmatpush1.msra.mxu0 0.0
      %466 = vmatprep.subr.mxu0 0.0
      %467 = vmatpush1.msra.mxu0 0.0
      %468 = vmatprep.subr.mxu0 0.0
      %469 = vmatpush1.msra.mxu0 0.0
      %470 = vmatprep.subr.mxu0 0.0
      %471 = vmatpush1.msra.mxu0 0.0
      %472 = vmatprep.subr.mxu0 0.0
      %473 = vmatpush1.msra.mxu0 0.0
      %474 = vmatprep.subr.mxu0 0.0
      %475 = vmatpush1.msra.mxu0 0.0
      %476 = vmatprep.subr.mxu0 0.0
      %477 = vmatpush1.msra.mxu0 0.0
      %478 = vmatprep.subr.mxu0 0.0
      %479 = vmatpush1.msra.mxu0 0.0
      %480 = vmatprep.mubr.f32.mxu0 0.0
      %481 = vmatmul.mubr.f32.gmra.mrb[0].mxu0 %v411
      %v482 = vpop.f32.mrb[0].mxu0
      %v483 = vadd.f32 %v408, %v482
      %v484 = vpop.f32.mrb[0].mxu0
      %485 = vmatprep.mubr.f32.mxu0 0.0
      %486 = vmatmul.mubr.f32.gmra.mrb[0].mxu0 %v414
      %v487 = vpop.f32.mrb[0].mxu0
      %v488 = vadd.f32 %v408, %v487
      %v489 = vpop.f32.mrb[0].mxu0
      %490 = vdwg.mxu0
      %v491 = vld [vmem:[%s374] sm:$0xf]
      %v492 = vld [vmem:[%s374 + $0x4] sm:$0xf]
      %v493 = vld [vmem:[%s374 + $0x8] sm:$0xf]
      %v494 = vld [vmem:[%s374 + $0xc] sm:$0xf]
      %v495 = vld [vmem:[%s379] sm:$0xf]
      %v496 = vld [vmem:[%s379 + $0x4] sm:$0xf]
      %v497 = vld [vmem:[%s379 + $0x8] sm:$0xf]
      %v498 = vld [vmem:[%s379 + $0xc] sm:$0xf]
      %v499 = vld [vmem:[%s379 + $0x10] sm:$0xf]
      %v500 = vld [vmem:[%s379 + $0x14] sm:$0xf]
      %v501 = vld [vmem:[%s379 + $0x18] sm:$0xf]
      %v502 = vld [vmem:[%s379 + $0x1c] sm:$0xf]
      %s503 = scalar_lea.vmem %s379, 32
      %v504 = vld [vmem:[%s503] sm:$0xf]
      %v505 = vld [vmem:[%s503 + $0x4] sm:$0xf]
      %v506 = vld [vmem:[%s503 + $0x8] sm:$0xf]
      %v507 = vld [vmem:[%s503 + $0xc] sm:$0xf]
      %v508 = vld [vmem:[%s503 + $0x10] sm:$0xf]
      %v509 = vld [vmem:[%s503 + $0x14] sm:$0xf]
      %v510 = vld [vmem:[%s503 + $0x18] sm:$0xf]
      %v511 = vld [vmem:[%s503 + $0x1c] sm:$0xf]
      %v512 = vlaneseq
      %v513 = vshrl.u32 %v512, 7
      %v514 = vsub.s32 1, %v513
      %v515 = vrot.slane %v398, %v514
      %v516 = vlaneseq
      %v517 = vshrl.u32 %v516, 7
      %v518 = vsub.s32 2, %v517
      %v519 = vrot.slane %v398, %v518
      %v524 = vunpack.c.l.b16 %v491
      %v525 = vunpack.c.l.b16 %v492
      %v526 = vunpack.c.l.b16 %v493
      %v527 = vunpack.c.l.b16 %v494
      %v528 = vpack.c.b16 %v525, %v524
      %v529 = vpack.c.b16 %v527, %v526
      %v533 = vsel %vm409, 0, 0
      %535 = vmatprep.subr.bf16.mxu0 0
      %536 = vmatpush1.bf16.msra.mxu0 %v528
      %537 = vmatprep.subr.bf16.mxu0 0
      %538 = vmatpush1.bf16.msra.mxu0 %v529
      %539 = vmatprep.subr.bf16.mxu0 0
      %540 = vmatpush1.bf16.msra.mxu0 0
      %541 = vmatprep.subr.bf16.mxu0 0
      %542 = vmatpush1.bf16.msra.mxu0 0
      %543 = vmatprep.subr.bf16.mxu0 0
      %544 = vmatpush1.bf16.msra.mxu0 0
      %545 = vmatprep.subr.bf16.mxu0 0
      %546 = vmatpush1.bf16.msra.mxu0 0
      %547 = vmatprep.subr.bf16.mxu0 0
      %548 = vmatpush1.bf16.msra.mxu0 0
      %549 = vmatprep.subr.bf16.mxu0 0
      %550 = vmatpush1.bf16.msra.mxu0 0
      %551 = vmatprep.subr.bf16.mxu0 0
      %552 = vmatpush1.bf16.msra.mxu0 0
      %553 = vmatprep.subr.bf16.mxu0 0
      %554 = vmatpush1.bf16.msra.mxu0 0
      %555 = vmatprep.subr.bf16.mxu0 0
      %556 = vmatpush1.bf16.msra.mxu0 0
      %557 = vmatprep.subr.bf16.mxu0 0
      %558 = vmatpush1.bf16.msra.mxu0 0
      %559 = vmatprep.subr.bf16.mxu0 0
      %560 = vmatpush1.bf16.msra.mxu0 0
      %561 = vmatprep.subr.bf16.mxu0 0
      %562 = vmatpush1.bf16.msra.mxu0 0
      %563 = vmatprep.subr.bf16.mxu0 0
      %564 = vmatpush1.bf16.msra.mxu0 0
      %565 = vmatprep.subr.bf16.mxu0 0
      %566 = vmatpush1.bf16.msra.mxu0 0
      %567 = vmatprep.mubr.bf16.mxu0 0
      %568 = vmatmul.mubr.bf16.gmra.mrb[0].mxu0 %v533
      %v569 = vpop.f32.mrb[0].mxu0
      %v570 = vadd.f32 0.0, %v569
      %v571 = vpop.f32.mrb[0].mxu0
      %v572 = vpop.f32.mrb[0].mxu0
      %v573 = vpop.f32.mrb[0].mxu0
      %574 = vdwg.mxu0
      %v575 = vadd.f32 %v483, %v570
      %v576 = vxor.u32 %v575, 2147483648
      %v577 = vmul.f32 %v576, 1.442695
      %v578 = vpow.pop %v577
      %v579 = vadd.f32 %v578, 1.0
      %v580 = vrcp.pop %v579
      %v581 = vmul.f32 1.0, %v580
      %v582 = vtanh.pop %v575
      %v583 = vmul.f32 %v581, 0.0
      %585 = vrot.lane.b32.xlu0 %v582, 64
      %v586 = vpop.permute.xlu0 %585
      %v588 = vmul.f32 %v581, %v586
      %590 = vrot.lane.b32.xlu0 %v588, 32
      %v591 = vpop.permute.xlu0 %590
      %v593 = vadd.f32 %v583, %v591
      %v594 = vtanh.pop %v593
      %596 = vrot.lane.b32.xlu0 %v594, 64
      %v597 = vpop.permute.xlu0 %596
      %v599 = vmul.f32 %v581, %v597
      %601 = vrot.lane.b32.xlu0 %v599, 32
      %v602 = vpop.permute.xlu0 %601
      %v604 = vsel %vm409, %v602, 0.0
      %v605 = vpack.c.bf16 %v604, %v604
      %v614 = vunpack.c.l.b16 %v495
      %v615 = vunpack.c.l.b16 %v496
      %v616 = vunpack.c.l.b16 %v497
      %v617 = vunpack.c.l.b16 %v498
      %v618 = vunpack.c.l.b16 %v499
      %v619 = vunpack.c.l.b16 %v500
      %v620 = vunpack.c.l.b16 %v501
      %v621 = vunpack.c.l.b16 %v502
      %v622 = vpack.c.b16 %v615, %v614
      %v623 = vpack.c.b16 %v617, %v616
      %v624 = vpack.c.b16 %v619, %v618
      %v625 = vpack.c.b16 %v621, %v620
      %vm630 = vcmask 523264
      %v632 = vsel %vm630, %v605, 0
      %634 = vmatprep.subr.bf16.mxu0 0
      %635 = vmatpush1.bf16.msra.mxu0 %v622
      %636 = vmatprep.subr.bf16.mxu0 0
      %637 = vmatpush1.bf16.msra.mxu0 %v623
      %638 = vmatprep.subr.bf16.mxu0 0
      %639 = vmatpush1.bf16.msra.mxu0 %v624
      %640 = vmatprep.subr.bf16.mxu0 0
      %641 = vmatpush1.bf16.msra.mxu0 %v625
      %642 = vmatprep.subr.bf16.mxu0 0
      %643 = vmatpush1.bf16.msra.mxu0 0
      %644 = vmatprep.subr.bf16.mxu0 0
      %645 = vmatpush1.bf16.msra.mxu0 0
      %646 = vmatprep.subr.bf16.mxu0 0
      %647 = vmatpush1.bf16.msra.mxu0 0
      %648 = vmatprep.subr.bf16.mxu0 0
      %649 = vmatpush1.bf16.msra.mxu0 0
      %650 = vmatprep.subr.bf16.mxu0 0
      %651 = vmatpush1.bf16.msra.mxu0 0
      %652 = vmatprep.subr.bf16.mxu0 0
      %653 = vmatpush1.bf16.msra.mxu0 0
      %654 = vmatprep.subr.bf16.mxu0 0
      %655 = vmatpush1.bf16.msra.mxu0 0
      %656 = vmatprep.subr.bf16.mxu0 0
      %657 = vmatpush1.bf16.msra.mxu0 0
      %658 = vmatprep.subr.bf16.mxu0 0
      %659 = vmatpush1.bf16.msra.mxu0 0
      %660 = vmatprep.subr.bf16.mxu0 0
      %661 = vmatpush1.bf16.msra.mxu0 0
      %662 = vmatprep.subr.bf16.mxu0 0
      %663 = vmatpush1.bf16.msra.mxu0 0
      %664 = vmatprep.subr.bf16.mxu0 0
      %665 = vmatpush1.bf16.msra.mxu0 0
      %666 = vmatprep.mubr.bf16.mxu0 0
      %667 = vmatmul.mubr.bf16.gmra.mrb[0].mxu0 %v632
      %v668 = vpop.f32.mrb[0].mxu0
      %v669 = vadd.f32 %v515, %v668
      %v670 = vpop.f32.mrb[0].mxu0
      %v671 = vpop.f32.mrb[0].mxu0
      %v672 = vpop.f32.mrb[0].mxu0
      %673 = vdwg.mxu0
      %v674 = vxor.u32 %v669, 2147483648
      %v675 = vmul.f32 %v674, 1.442695
      %v676 = vpow.pop %v675
      %v677 = vadd.f32 %v676, 1.0
      %v678 = vrcp.pop %v677
      %v679 = vmul.f32 1.0, %v678
      %v680 = vtanh.pop %v669
      %v681 = vmul.f32 %v679, 0.0
      %683 = vrot.lane.b32.xlu0 %v680, 64
      %v684 = vpop.permute.xlu0 %683
      %v686 = vmul.f32 %v679, %v684
      %688 = vrot.lane.b32.xlu0 %v686, 32
      %v689 = vpop.permute.xlu0 %688
      %v691 = vadd.f32 %v681, %v689
      %v692 = vtanh.pop %v691
      %694 = vrot.lane.b32.xlu0 %v692, 64
      %v695 = vpop.permute.xlu0 %694
      %v697 = vmul.f32 %v679, %v695
      %699 = vrot.lane.b32.xlu0 %v697, 32
      %v700 = vpop.permute.xlu0 %699
      %v702 = vsel %vm409, %v700, 0.0
      %v703 = vpack.c.bf16 %v702, %v702
      %v712 = vunpack.c.l.b16 %v504
      %v713 = vunpack.c.l.b16 %v505
      %v714 = vunpack.c.l.b16 %v506
      %v715 = vunpack.c.l.b16 %v507
      %v716 = vunpack.c.l.b16 %v508
      %v717 = vunpack.c.l.b16 %v509
      %v718 = vunpack.c.l.b16 %v510
      %v719 = vunpack.c.l.b16 %v511
      %v720 = vpack.c.b16 %v713, %v712
      %v721 = vpack.c.b16 %v715, %v714
      %v722 = vpack.c.b16 %v717, %v716
      %v723 = vpack.c.b16 %v719, %v718
      %v729 = vsel %vm630, %v703, 0
      %731 = vmatprep.subr.bf16.mxu0 0
      %732 = vmatpush1.bf16.msra.mxu0 %v720
      %733 = vmatprep.subr.bf16.mxu0 0
      %734 = vmatpush1.bf16.msra.mxu0 %v721
      %735 = vmatprep.subr.bf16.mxu0 0
      %736 = vmatpush1.bf16.msra.mxu0 %v722
      %737 = vmatprep.subr.bf16.mxu0 0
      %738 = vmatpush1.bf16.msra.mxu0 %v723
      %739 = vmatprep.subr.bf16.mxu0 0
      %740 = vmatpush1.bf16.msra.mxu0 0
      %741 = vmatprep.subr.bf16.mxu0 0
      %742 = vmatpush1.bf16.msra.mxu0 0
      %743 = vmatprep.subr.bf16.mxu0 0
      %744 = vmatpush1.bf16.msra.mxu0 0
      %745 = vmatprep.subr.bf16.mxu0 0
      %746 = vmatpush1.bf16.msra.mxu0 0
      %747 = vmatprep.subr.bf16.mxu0 0
      %748 = vmatpush1.bf16.msra.mxu0 0
      %749 = vmatprep.subr.bf16.mxu0 0
      %750 = vmatpush1.bf16.msra.mxu0 0
      %751 = vmatprep.subr.bf16.mxu0 0
      %752 = vmatpush1.bf16.msra.mxu0 0
      %753 = vmatprep.subr.bf16.mxu0 0
      %754 = vmatpush1.bf16.msra.mxu0 0
      %755 = vmatprep.subr.bf16.mxu0 0
      %756 = vmatpush1.bf16.msra.mxu0 0
      %757 = vmatprep.subr.bf16.mxu0 0
      %758 = vmatpush1.bf16.msra.mxu0 0
      %759 = vmatprep.subr.bf16.mxu0 0
      %760 = vmatpush1.bf16.msra.mxu0 0
      %761 = vmatprep.subr.bf16.mxu0 0
      %762 = vmatpush1.bf16.msra.mxu0 0
      %763 = vmatprep.mubr.bf16.mxu0 0
      %764 = vmatmul.mubr.bf16.gmra.mrb[0].mxu0 %v729
      %v765 = vpop.f32.mrb[0].mxu0
      %v766 = vadd.f32 %v519, %v765
      %v767 = vpop.f32.mrb[0].mxu0
      %v768 = vpop.f32.mrb[0].mxu0
      %v769 = vpop.f32.mrb[0].mxu0
      %770 = vdwg.mxu0
      %v771 = vxor.u32 %v766, 2147483648
      %v772 = vmul.f32 %v771, 1.442695
      %v773 = vpow.pop %v772
      %v774 = vadd.f32 %v773, 1.0
      %v775 = vrcp.pop %v774
      %v776 = vmul.f32 1.0, %v775
      %v777 = vtanh.pop %v766
      %v778 = vmul.f32 %v776, 0.0
      %780 = vrot.lane.b32.xlu0 %v777, 64
      %v781 = vpop.permute.xlu0 %780
      %v783 = vmul.f32 %v776, %v781
      %785 = vrot.lane.b32.xlu0 %v783, 32
      %v786 = vpop.permute.xlu0 %785
      %v788 = vadd.f32 %v778, %v786
      %v789 = vtanh.pop %v788
      %791 = vrot.lane.b32.xlu0 %v789, 64
      %v792 = vpop.permute.xlu0 %791
      %v794 = vmul.f32 %v776, %v792
      %v795 = vpack.c.bf16 %v599, %v599
      %797 = vrot.lane.b32.xlu0 %v795, 32
      %v798 = vpop.permute.xlu0 %797
      %v800 = vsel %vm409, %v798, 0
      %802 = vmatprep.subr.bf16.mxu0 0
      %803 = vmatpush1.bf16.msra.mxu0 %v528
      %804 = vmatprep.subr.bf16.mxu0 0
      %805 = vmatpush1.bf16.msra.mxu0 %v529
      %806 = vmatprep.subr.bf16.mxu0 0
      %807 = vmatpush1.bf16.msra.mxu0 0
      %808 = vmatprep.subr.bf16.mxu0 0
      %809 = vmatpush1.bf16.msra.mxu0 0
      %810 = vmatprep.subr.bf16.mxu0 0
      %811 = vmatpush1.bf16.msra.mxu0 0
      %812 = vmatprep.subr.bf16.mxu0 0
      %813 = vmatpush1.bf16.msra.mxu0 0
      %814 = vmatprep.subr.bf16.mxu0 0
      %815 = vmatpush1.bf16.msra.mxu0 0
      %816 = vmatprep.subr.bf16.mxu0 0
      %817 = vmatpush1.bf16.msra.mxu0 0
      %818 = vmatprep.subr.bf16.mxu0 0
      %819 = vmatpush1.bf16.msra.mxu0 0
      %820 = vmatprep.subr.bf16.mxu0 0
      %821 = vmatpush1.bf16.msra.mxu0 0
      %822 = vmatprep.subr.bf16.mxu0 0
      %823 = vmatpush1.bf16.msra.mxu0 0
      %824 = vmatprep.subr.bf16.mxu0 0
      %825 = vmatpush1.bf16.msra.mxu0 0
      %826 = vmatprep.subr.bf16.mxu0 0
      %827 = vmatpush1.bf16.msra.mxu0 0
      %828 = vmatprep.subr.bf16.mxu0 0
      %829 = vmatpush1.bf16.msra.mxu0 0
      %830 = vmatprep.subr.bf16.mxu0 0
      %831 = vmatpush1.bf16.msra.mxu0 0
      %832 = vmatprep.subr.bf16.mxu0 0
      %833 = vmatpush1.bf16.msra.mxu0 0
      %834 = vmatprep.mubr.bf16.mxu0 0
      %835 = vmatmul.mubr.bf16.gmra.mrb[0].mxu0 %v800
      %v836 = vpop.f32.mrb[0].mxu0
      %v837 = vadd.f32 0.0, %v836
      %v838 = vpop.f32.mrb[0].mxu0
      %v839 = vpop.f32.mrb[0].mxu0
      %v840 = vpop.f32.mrb[0].mxu0
      %841 = vdwg.mxu0
      %v843 = vrot.slane %v837, 6
      %v845 = vadd.f32 %v483, %v843
      %v846 = vxor.u32 %v845, 2147483648
      %v847 = vmul.f32 %v846, 1.442695
      %v848 = vpow.pop %v847
      %v849 = vadd.f32 %v848, 1.0
      %v850 = vrcp.pop %v849
      %v851 = vmul.f32 1.0, %v850
      %v852 = vtanh.pop %v845
      %v854 = vrot.slane %v593, 6
      %v856 = vmul.f32 %v851, %v854
      %858 = vrot.lane.b32.xlu0 %v852, 64
      %v859 = vpop.permute.xlu0 %858
      %v861 = vmul.f32 %v851, %v859
      %863 = vrot.lane.b32.xlu0 %v861, 32
      %v864 = vpop.permute.xlu0 %863
      %v866 = vadd.f32 %v856, %v864
      %v867 = vtanh.pop %v866
      %869 = vrot.lane.b32.xlu0 %v867, 64
      %v870 = vpop.permute.xlu0 %869
      %v872 = vmul.f32 %v851, %v870
      %874 = vrot.lane.b32.xlu0 %v872, 32
      %v875 = vpop.permute.xlu0 %874
      %v877 = vrot.slane %v697, 6
      %878 = vrot.lane.b32.xlu0 %v877, 64
      %v879 = vpop.permute.xlu0 %878
      %v881 = vsel %vm409, %v875, %v879
      %v882 = vpack.c.bf16 %v881, %v881
      %v884 = vrot.slane %v882, 1
      %v886 = vsel %vm630, %v884, 0
      %888 = vmatprep.subr.bf16.mxu0 0
      %889 = vmatpush1.bf16.msra.mxu0 %v622
      %890 = vmatprep.subr.bf16.mxu0 0
      %891 = vmatpush1.bf16.msra.mxu0 %v623
      %892 = vmatprep.subr.bf16.mxu0 0
      %893 = vmatpush1.bf16.msra.mxu0 %v624
      %894 = vmatprep.subr.bf16.mxu0 0
      %895 = vmatpush1.bf16.msra.mxu0 %v625
      %896 = vmatprep.subr.bf16.mxu0 0
      %897 = vmatpush1.bf16.msra.mxu0 0
      %898 = vmatprep.subr.bf16.mxu0 0
      %899 = vmatpush1.bf16.msra.mxu0 0
      %900 = vmatprep.subr.bf16.mxu0 0
      %901 = vmatpush1.bf16.msra.mxu0 0
      %902 = vmatprep.subr.bf16.mxu0 0
      %903 = vmatpush1.bf16.msra.mxu0 0
      %904 = vmatprep.subr.bf16.mxu0 0
      %905 = vmatpush1.bf16.msra.mxu0 0
      %906 = vmatprep.subr.bf16.mxu0 0
      %907 = vmatpush1.bf16.msra.mxu0 0
      %908 = vmatprep.subr.bf16.mxu0 0
      %909 = vmatpush1.bf16.msra.mxu0 0
      %910 = vmatprep.subr.bf16.mxu0 0
      %911 = vmatpush1.bf16.msra.mxu0 0
      %912 = vmatprep.subr.bf16.mxu0 0
      %913 = vmatpush1.bf16.msra.mxu0 0
      %914 = vmatprep.subr.bf16.mxu0 0
      %915 = vmatpush1.bf16.msra.mxu0 0
      %916 = vmatprep.subr.bf16.mxu0 0
      %917 = vmatpush1.bf16.msra.mxu0 0
      %918 = vmatprep.subr.bf16.mxu0 0
      %919 = vmatpush1.bf16.msra.mxu0 0
      %920 = vmatprep.mubr.bf16.mxu0 0
      %921 = vmatmul.mubr.bf16.gmra.mrb[0].mxu0 %v886
      %v922 = vpop.f32.mrb[0].mxu0
      %v923 = vadd.f32 %v515, %v922
      %v924 = vpop.f32.mrb[0].mxu0
      %v925 = vpop.f32.mrb[0].mxu0
      %v926 = vpop.f32.mrb[0].mxu0
      %927 = vdwg.mxu0
      %v928 = vxor.u32 %v923, 2147483648
      %v929 = vmul.f32 %v928, 1.442695
      %v930 = vpow.pop %v929
      %v931 = vadd.f32 %v930, 1.0
      %v932 = vrcp.pop %v931
      %v933 = vmul.f32 1.0, %v932
      %v934 = vtanh.pop %v923
      %v935 = vmul.f32 %v933, %v691
      %937 = vrot.lane.b32.xlu0 %v934, 64
      %v938 = vpop.permute.xlu0 %937
      %v940 = vmul.f32 %v933, %v938
      %942 = vrot.lane.b32.xlu0 %v940, 32
      %v943 = vpop.permute.xlu0 %942
      %v945 = vadd.f32 %v935, %v943
      %v946 = vtanh.pop %v945
      %948 = vrot.lane.b32.xlu0 %v946, 64
      %v949 = vpop.permute.xlu0 %948
      %v951 = vmul.f32 %v933, %v949
      %953 = vrot.lane.b32.xlu0 %v951, 32
      %v954 = vpop.permute.xlu0 %953
      %957 = vrot.lane.b32.xlu0 %v794, 64
      %v958 = vpop.permute.xlu0 %957
      %v960 = vsel %vm409, %v954, %v958
      %v961 = vpack.c.bf16 %v960, %v960
      %v963 = vsel %vm630, %v961, 0
      %965 = vmatprep.subr.bf16.mxu0 0
      %966 = vmatpush1.bf16.msra.mxu0 %v720
      %967 = vmatprep.subr.bf16.mxu0 0
      %968 = vmatpush1.bf16.msra.mxu0 %v721
      %969 = vmatprep.subr.bf16.mxu0 0
      %970 = vmatpush1.bf16.msra.mxu0 %v722
      %971 = vmatprep.subr.bf16.mxu0 0
      %972 = vmatpush1.bf16.msra.mxu0 %v723
      %973 = vmatprep.subr.bf16.mxu0 0
      %974 = vmatpush1.bf16.msra.mxu0 0
      %975 = vmatprep.subr.bf16.mxu0 0
      %976 = vmatpush1.bf16.msra.mxu0 0
      %977 = vmatprep.subr.bf16.mxu0 0
      %978 = vmatpush1.bf16.msra.mxu0 0
      %979 = vmatprep.subr.bf16.mxu0 0
      %980 = vmatpush1.bf16.msra.mxu0 0
      %981 = vmatprep.subr.bf16.mxu0 0
      %982 = vmatpush1.bf16.msra.mxu0 0
      %983 = vmatprep.subr.bf16.mxu0 0
      %984 = vmatpush1.bf16.msra.mxu0 0
      %985 = vmatprep.subr.bf16.mxu0 0
      %986 = vmatpush1.bf16.msra.mxu0 0
      %987 = vmatprep.subr.bf16.mxu0 0
      %988 = vmatpush1.bf16.msra.mxu0 0
      %989 = vmatprep.subr.bf16.mxu0 0
      %990 = vmatpush1.bf16.msra.mxu0 0
      %991 = vmatprep.subr.bf16.mxu0 0
      %992 = vmatpush1.bf16.msra.mxu0 0
      %993 = vmatprep.subr.bf16.mxu0 0
      %994 = vmatpush1.bf16.msra.mxu0 0
      %995 = vmatprep.subr.bf16.mxu0 0
      %996 = vmatpush1.bf16.msra.mxu0 0
      %997 = vmatprep.mubr.bf16.mxu0 0
      %998 = vmatmul.mubr.bf16.gmra.mrb[0].mxu0 %v963
      %v999 = vpop.f32.mrb[0].mxu0
      %v1000 = vadd.f32 %v519, %v999
      %v1001 = vpop.f32.mrb[0].mxu0
      %v1002 = vpop.f32.mrb[0].mxu0
      %v1003 = vpop.f32.mrb[0].mxu0
      %1004 = vdwg.mxu0
      %v1005 = vxor.u32 %v1000, 2147483648
      %v1006 = vmul.f32 %v1005, 1.442695
      %v1007 = vpow.pop %v1006
      %v1008 = vadd.f32 %v1007, 1.0
      %v1009 = vrcp.pop %v1008
      %v1010 = vmul.f32 1.0, %v1009
      %v1011 = vtanh.pop %v1000
      %v1012 = vmul.f32 %v1010, %v788
      %1014 = vrot.lane.b32.xlu0 %v1011, 64
      %v1015 = vpop.permute.xlu0 %1014
      %v1017 = vmul.f32 %v1010, %v1015
      %1019 = vrot.lane.b32.xlu0 %v1017, 32
      %v1020 = vpop.permute.xlu0 %1019
      %v1022 = vadd.f32 %v1012, %v1020
      %v1023 = vtanh.pop %v1022
      %1025 = vrot.lane.b32.xlu0 %v1023, 64
      %v1026 = vpop.permute.xlu0 %1025
      %v1028 = vmul.f32 %v1010, %v1026
      %v1029 = vpack.c.bf16 %v872, %v872
      %v1031 = vrot.slane %v1029, 1
      %1032 = vrot.lane.b32.xlu0 %v1031, 32
      %v1033 = vpop.permute.xlu0 %1032
      %v1035 = vsel %vm409, %v1033, 0
      %1037 = vmatprep.subr.bf16.mxu0 0
      %1038 = vmatpush1.bf16.msra.mxu0 %v528
      %1039 = vmatprep.subr.bf16.mxu0 0
      %1040 = vmatpush1.bf16.msra.mxu0 %v529
      %1041 = vmatprep.subr.bf16.mxu0 0
      %1042 = vmatpush1.bf16.msra.mxu0 0
      %1043 = vmatprep.subr.bf16.mxu0 0
      %1044 = vmatpush1.bf16.msra.mxu0 0
      %1045 = vmatprep.subr.bf16.mxu0 0
      %1046 = vmatpush1.bf16.msra.mxu0 0
      %1047 = vmatprep.subr.bf16.mxu0 0
      %1048 = vmatpush1.bf16.msra.mxu0 0
      %1049 = vmatprep.subr.bf16.mxu0 0
      %1050 = vmatpush1.bf16.msra.mxu0 0
      %1051 = vmatprep.subr.bf16.mxu0 0
      %1052 = vmatpush1.bf16.msra.mxu0 0
      %1053 = vmatprep.subr.bf16.mxu0 0
      %1054 = vmatpush1.bf16.msra.mxu0 0
      %1055 = vmatprep.subr.bf16.mxu0 0
      %1056 = vmatpush1.bf16.msra.mxu0 0
      %1057 = vmatprep.subr.bf16.mxu0 0
      %1058 = vmatpush1.bf16.msra.mxu0 0
      %1059 = vmatprep.subr.bf16.mxu0 0
      %1060 = vmatpush1.bf16.msra.mxu0 0
      %1061 = vmatprep.subr.bf16.mxu0 0
      %1062 = vmatpush1.bf16.msra.mxu0 0
      %1063 = vmatprep.subr.bf16.mxu0 0
      %1064 = vmatpush1.bf16.msra.mxu0 0
      %1065 = vmatprep.subr.bf16.mxu0 0
      %1066 = vmatpush1.bf16.msra.mxu0 0
      %1067 = vmatprep.subr.bf16.mxu0 0
      %1068 = vmatpush1.bf16.msra.mxu0 0
      %1069 = vmatprep.mubr.bf16.mxu0 0
      %1070 = vmatmul.mubr.bf16.gmra.mrb[0].mxu0 %v1035
      %v1071 = vpop.f32.mrb[0].mxu0
      %v1072 = vadd.f32 0.0, %v1071
      %v1073 = vpop.f32.mrb[0].mxu0
      %v1074 = vpop.f32.mrb[0].mxu0
      %v1075 = vpop.f32.mrb[0].mxu0
      %1076 = vdwg.mxu0
      %v1078 = vrot.slane %v1072, 4
      %v1080 = vadd.f32 %v483, %v1078
      %v1081 = vxor.u32 %v1080, 2147483648
      %v1082 = vmul.f32 %v1081, 1.442695
      %v1083 = vpow.pop %v1082
      %v1084 = vadd.f32 %v1083, 1.0
      %v1085 = vrcp.pop %v1084
      %v1086 = vmul.f32 1.0, %v1085
      %v1087 = vtanh.pop %v1080
      %v1089 = vrot.slane %v866, 6
      %v1091 = vmul.f32 %v1086, %v1089
      %1093 = vrot.lane.b32.xlu0 %v1087, 64
      %v1094 = vpop.permute.xlu0 %1093
      %v1096 = vmul.f32 %v1086, %v1094
      %1098 = vrot.lane.b32.xlu0 %v1096, 32
      %v1099 = vpop.permute.xlu0 %1098
      %v1101 = vadd.f32 %v1091, %v1099
      %v1102 = vtanh.pop %v1101
      %1104 = vrot.lane.b32.xlu0 %v1102, 64
      %v1105 = vpop.permute.xlu0 %1104
      %v1107 = vmul.f32 %v1086, %v1105
      %1109 = vrot.lane.b32.xlu0 %v1107, 32
      %v1110 = vpop.permute.xlu0 %1109
      %v1112 = vrot.slane %v951, 4
      %1113 = vrot.lane.b32.xlu0 %v1112, 64
      %v1114 = vpop.permute.xlu0 %1113
      %v1116 = vsel %vm409, %v1110, %v1114
      %v1117 = vpack.c.bf16 %v1116, %v1116
      %v1119 = vrot.slane %v1117, 2
      %v1121 = vsel %vm630, %v1119, 0
      %1123 = vmatprep.subr.bf16.mxu0 0
      %1124 = vmatpush1.bf16.msra.mxu0 %v622
      %1125 = vmatprep.subr.bf16.mxu0 0
      %1126 = vmatpush1.bf16.msra.mxu0 %v623
      %1127 = vmatprep.subr.bf16.mxu0 0
      %1128 = vmatpush1.bf16.msra.mxu0 %v624
      %1129 = vmatprep.subr.bf16.mxu0 0
      %1130 = vmatpush1.bf16.msra.mxu0 %v625
      %1131 = vmatprep.subr.bf16.mxu0 0
      %1132 = vmatpush1.bf16.msra.mxu0 0
      %1133 = vmatprep.subr.bf16.mxu0 0
      %1134 = vmatpush1.bf16.msra.mxu0 0
      %1135 = vmatprep.subr.bf16.mxu0 0
      %1136 = vmatpush1.bf16.msra.mxu0 0
      %1137 = vmatprep.subr.bf16.mxu0 0
      %1138 = vmatpush1.bf16.msra.mxu0 0
      %1139 = vmatprep.subr.bf16.mxu0 0
      %1140 = vmatpush1.bf16.msra.mxu0 0
      %1141 = vmatprep.subr.bf16.mxu0 0
      %1142 = vmatpush1.bf16.msra.mxu0 0
      %1143 = vmatprep.subr.bf16.mxu0 0
      %1144 = vmatpush1.bf16.msra.mxu0 0
      %1145 = vmatprep.subr.bf16.mxu0 0
      %1146 = vmatpush1.bf16.msra.mxu0 0
      %1147 = vmatprep.subr.bf16.mxu0 0
      %1148 = vmatpush1.bf16.msra.mxu0 0
      %1149 = vmatprep.subr.bf16.mxu0 0
      %1150 = vmatpush1.bf16.msra.mxu0 0
      %1151 = vmatprep.subr.bf16.mxu0 0
      %1152 = vmatpush1.bf16.msra.mxu0 0
      %1153 = vmatprep.subr.bf16.mxu0 0
      %1154 = vmatpush1.bf16.msra.mxu0 0
      %1155 = vmatprep.mubr.bf16.mxu0 0
      %1156 = vmatmul.mubr.bf16.gmra.mrb[0].mxu0 %v1121
      %v1157 = vpop.f32.mrb[0].mxu0
      %v1158 = vadd.f32 %v515, %v1157
      %v1159 = vpop.f32.mrb[0].mxu0
      %v1160 = vpop.f32.mrb[0].mxu0
      %v1161 = vpop.f32.mrb[0].mxu0
      %1162 = vdwg.mxu0
      %v1163 = vxor.u32 %v1158, 2147483648
      %v1164 = vmul.f32 %v1163, 1.442695
      %v1165 = vpow.pop %v1164
      %v1166 = vadd.f32 %v1165, 1.0
      %v1167 = vrcp.pop %v1166
      %v1168 = vmul.f32 1.0, %v1167
      %v1169 = vtanh.pop %v1158
      %v1170 = vmul.f32 %v1168, %v945
      %1172 = vrot.lane.b32.xlu0 %v1169, 64
      %v1173 = vpop.permute.xlu0 %1172
      %v1175 = vmul.f32 %v1168, %v1173
      %1177 = vrot.lane.b32.xlu0 %v1175, 32
      %v1178 = vpop.permute.xlu0 %1177
      %v1180 = vadd.f32 %v1170, %v1178
      %v1181 = vtanh.pop %v1180
      %1183 = vrot.lane.b32.xlu0 %v1181, 64
      %v1184 = vpop.permute.xlu0 %1183
      %v1186 = vmul.f32 %v1168, %v1184
      %1188 = vrot.lane.b32.xlu0 %v1186, 32
      %v1189 = vpop.permute.xlu0 %1188
      %1192 = vrot.lane.b32.xlu0 %v1028, 64
      %v1193 = vpop.permute.xlu0 %1192
      %v1195 = vsel %vm409, %v1189, %v1193
      %v1196 = vpack.c.bf16 %v1195, %v1195
      %v1198 = vsel %vm630, %v1196, 0
      %1200 = vmatprep.subr.bf16.mxu0 0
      %1201 = vmatpush1.bf16.msra.mxu0 %v720
      %1202 = vmatprep.subr.bf16.mxu0 0
      %1203 = vmatpush1.bf16.msra.mxu0 %v721
      %1204 = vmatprep.subr.bf16.mxu0 0
      %1205 = vmatpush1.bf16.msra.mxu0 %v722
      %1206 = vmatprep.subr.bf16.mxu0 0
      %1207 = vmatpush1.bf16.msra.mxu0 %v723
      %1208 = vmatprep.subr.bf16.mxu0 0
      %1209 = vmatpush1.bf16.msra.mxu0 0
      %1210 = vmatprep.subr.bf16.mxu0 0
      %1211 = vmatpush1.bf16.msra.mxu0 0
      %1212 = vmatprep.subr.bf16.mxu0 0
      %1213 = vmatpush1.bf16.msra.mxu0 0
      %1214 = vmatprep.subr.bf16.mxu0 0
      %1215 = vmatpush1.bf16.msra.mxu0 0
      %1216 = vmatprep.subr.bf16.mxu0 0
      %1217 = vmatpush1.bf16.msra.mxu0 0
      %1218 = vmatprep.subr.bf16.mxu0 0
      %1219 = vmatpush1.bf16.msra.mxu0 0
      %1220 = vmatprep.subr.bf16.mxu0 0
      %1221 = vmatpush1.bf16.msra.mxu0 0
      %1222 = vmatprep.subr.bf16.mxu0 0
      %1223 = vmatpush1.bf16.msra.mxu0 0
      %1224 = vmatprep.subr.bf16.mxu0 0
      %1225 = vmatpush1.bf16.msra.mxu0 0
      %1226 = vmatprep.subr.bf16.mxu0 0
      %1227 = vmatpush1.bf16.msra.mxu0 0
      %1228 = vmatprep.subr.bf16.mxu0 0
      %1229 = vmatpush1.bf16.msra.mxu0 0
      %1230 = vmatprep.subr.bf16.mxu0 0
      %1231 = vmatpush1.bf16.msra.mxu0 0
      %1232 = vmatprep.mubr.bf16.mxu0 0
      %1233 = vmatmul.mubr.bf16.gmra.mrb[0].mxu0 %v1198
      %v1234 = vpop.f32.mrb[0].mxu0
      %v1235 = vadd.f32 %v519, %v1234
      %v1236 = vpop.f32.mrb[0].mxu0
      %v1237 = vpop.f32.mrb[0].mxu0
      %v1238 = vpop.f32.mrb[0].mxu0
      %1239 = vdwg.mxu0
      %v1240 = vxor.u32 %v1235, 2147483648
      %v1241 = vmul.f32 %v1240, 1.442695
      %v1242 = vpow.pop %v1241
      %v1243 = vadd.f32 %v1242, 1.0
      %v1244 = vrcp.pop %v1243
      %v1245 = vmul.f32 1.0, %v1244
      %v1246 = vtanh.pop %v1235
      %v1247 = vmul.f32 %v1245, %v1022
      %1249 = vrot.lane.b32.xlu0 %v1246, 64
      %v1250 = vpop.permute.xlu0 %1249
      %v1252 = vmul.f32 %v1245, %v1250
      %1254 = vrot.lane.b32.xlu0 %v1252, 32
      %v1255 = vpop.permute.xlu0 %1254
      %v1257 = vadd.f32 %v1247, %v1255
      %v1258 = vtanh.pop %v1257
      %1260 = vrot.lane.b32.xlu0 %v1258, 64
      %v1261 = vpop.permute.xlu0 %1260
      %v1263 = vmul.f32 %v1245, %v1261
      %v1264 = vpack.c.bf16 %v1107, %v1107
      %v1266 = vrot.slane %v1264, 2
      %1267 = vrot.lane.b32.xlu0 %v1266, 32
      %v1268 = vpop.permute.xlu0 %1267
      %v1270 = vsel %vm409, %v1268, 0
      %1272 = vmatprep.subr.bf16.mxu0 0
      %1273 = vmatpush1.bf16.msra.mxu0 %v528
      %1274 = vmatprep.subr.bf16.mxu0 0
      %1275 = vmatpush1.bf16.msra.mxu0 %v529
      %1276 = vmatprep.subr.bf16.mxu0 0
      %1277 = vmatpush1.bf16.msra.mxu0 0
      %1278 = vmatprep.subr.bf16.mxu0 0
      %1279 = vmatpush1.bf16.msra.mxu0 0
      %1280 = vmatprep.subr.bf16.mxu0 0
      %1281 = vmatpush1.bf16.msra.mxu0 0
      %1282 = vmatprep.subr.bf16.mxu0 0
      %1283 = vmatpush1.bf16.msra.mxu0 0
      %1284 = vmatprep.subr.bf16.mxu0 0
      %1285 = vmatpush1.bf16.msra.mxu0 0
      %1286 = vmatprep.subr.bf16.mxu0 0
      %1287 = vmatpush1.bf16.msra.mxu0 0
      %1288 = vmatprep.subr.bf16.mxu0 0
      %1289 = vmatpush1.bf16.msra.mxu0 0
      %1290 = vmatprep.subr.bf16.mxu0 0
      %1291 = vmatpush1.bf16.msra.mxu0 0
      %1292 = vmatprep.subr.bf16.mxu0 0
      %1293 = vmatpush1.bf16.msra.mxu0 0
      %1294 = vmatprep.subr.bf16.mxu0 0
      %1295 = vmatpush1.bf16.msra.mxu0 0
      %1296 = vmatprep.subr.bf16.mxu0 0
      %1297 = vmatpush1.bf16.msra.mxu0 0
      %1298 = vmatprep.subr.bf16.mxu0 0
      %1299 = vmatpush1.bf16.msra.mxu0 0
      %1300 = vmatprep.subr.bf16.mxu0 0
      %1301 = vmatpush1.bf16.msra.mxu0 0
      %1302 = vmatprep.subr.bf16.mxu0 0
      %1303 = vmatpush1.bf16.msra.mxu0 0
      %1304 = vmatprep.mubr.bf16.mxu0 0
      %1305 = vmatmul.mubr.bf16.gmra.mrb[0].mxu0 %v1270
      %v1306 = vpop.f32.mrb[0].mxu0
      %v1307 = vadd.f32 0.0, %v1306
      %v1308 = vpop.f32.mrb[0].mxu0
      %v1309 = vpop.f32.mrb[0].mxu0
      %v1310 = vpop.f32.mrb[0].mxu0
      %1311 = vdwg.mxu0
      %v1313 = vrot.slane %v1307, 2
      %v1315 = vadd.f32 %v483, %v1313
      %v1316 = vxor.u32 %v1315, 2147483648
      %v1317 = vmul.f32 %v1316, 1.442695
      %v1318 = vpow.pop %v1317
      %v1319 = vadd.f32 %v1318, 1.0
      %v1320 = vrcp.pop %v1319
      %v1321 = vmul.f32 1.0, %v1320
      %v1322 = vtanh.pop %v1315
      %v1324 = vrot.slane %v1101, 6
      %v1326 = vmul.f32 %v1321, %v1324
      %1328 = vrot.lane.b32.xlu0 %v1322, 64
      %v1329 = vpop.permute.xlu0 %1328
      %v1331 = vmul.f32 %v1321, %v1329
      %1333 = vrot.lane.b32.xlu0 %v1331, 32
      %v1334 = vpop.permute.xlu0 %1333
      %v1336 = vadd.f32 %v1326, %v1334
      %v1337 = vtanh.pop %v1336
      %1339 = vrot.lane.b32.xlu0 %v1337, 64
      %v1340 = vpop.permute.xlu0 %1339
      %v1342 = vmul.f32 %v1321, %v1340
      %1344 = vrot.lane.b32.xlu0 %v1342, 32
      %v1345 = vpop.permute.xlu0 %1344
      %v1347 = vrot.slane %v1186, 2
      %1348 = vrot.lane.b32.xlu0 %v1347, 64
      %v1349 = vpop.permute.xlu0 %1348
      %v1351 = vsel %vm409, %v1345, %v1349
      %v1352 = vpack.c.bf16 %v1351, %v1351
      %v1354 = vrot.slane %v1352, 3
      %v1356 = vsel %vm630, %v1354, 0
      %1358 = vmatprep.subr.bf16.mxu0 0
      %1359 = vmatpush1.bf16.msra.mxu0 %v622
      %1360 = vmatprep.subr.bf16.mxu0 0
      %1361 = vmatpush1.bf16.msra.mxu0 %v623
      %1362 = vmatprep.subr.bf16.mxu0 0
      %1363 = vmatpush1.bf16.msra.mxu0 %v624
      %1364 = vmatprep.subr.bf16.mxu0 0
      %1365 = vmatpush1.bf16.msra.mxu0 %v625
      %1366 = vmatprep.subr.bf16.mxu0 0
      %1367 = vmatpush1.bf16.msra.mxu0 0
      %1368 = vmatprep.subr.bf16.mxu0 0
      %1369 = vmatpush1.bf16.msra.mxu0 0
      %1370 = vmatprep.subr.bf16.mxu0 0
      %1371 = vmatpush1.bf16.msra.mxu0 0
      %1372 = vmatprep.subr.bf16.mxu0 0
      %1373 = vmatpush1.bf16.msra.mxu0 0
      %1374 = vmatprep.subr.bf16.mxu0 0
      %1375 = vmatpush1.bf16.msra.mxu0 0
      %1376 = vmatprep.subr.bf16.mxu0 0
      %1377 = vmatpush1.bf16.msra.mxu0 0
      %1378 = vmatprep.subr.bf16.mxu0 0
      %1379 = vmatpush1.bf16.msra.mxu0 0
      %1380 = vmatprep.subr.bf16.mxu0 0
      %1381 = vmatpush1.bf16.msra.mxu0 0
      %1382 = vmatprep.subr.bf16.mxu0 0
      %1383 = vmatpush1.bf16.msra.mxu0 0
      %1384 = vmatprep.subr.bf16.mxu0 0
      %1385 = vmatpush1.bf16.msra.mxu0 0
      %1386 = vmatprep.subr.bf16.mxu0 0
      %1387 = vmatpush1.bf16.msra.mxu0 0
      %1388 = vmatprep.subr.bf16.mxu0 0
      %1389 = vmatpush1.bf16.msra.mxu0 0
      %1390 = vmatprep.mubr.bf16.mxu0 0
      %1391 = vmatmul.mubr.bf16.gmra.mrb[0].mxu0 %v1356
      %v1392 = vpop.f32.mrb[0].mxu0
      %v1393 = vadd.f32 %v515, %v1392
      %v1394 = vpop.f32.mrb[0].mxu0
      %v1395 = vpop.f32.mrb[0].mxu0
      %v1396 = vpop.f32.mrb[0].mxu0
      %1397 = vdwg.mxu0
      %v1398 = vxor.u32 %v1393, 2147483648
      %v1399 = vmul.f32 %v1398, 1.442695
      %v1400 = vpow.pop %v1399
      %v1401 = vadd.f32 %v1400, 1.0
      %v1402 = vrcp.pop %v1401
      %v1403 = vmul.f32 1.0, %v1402
      %v1404 = vtanh.pop %v1393
      %v1405 = vmul.f32 %v1403, %v1180
      %1407 = vrot.lane.b32.xlu0 %v1404, 64
      %v1408 = vpop.permute.xlu0 %1407
      %v1410 = vmul.f32 %v1403, %v1408
      %1412 = vrot.lane.b32.xlu0 %v1410, 32
      %v1413 = vpop.permute.xlu0 %1412
      %v1415 = vadd.f32 %v1405, %v1413
      %v1416 = vtanh.pop %v1415
      %1418 = vrot.lane.b32.xlu0 %v1416, 64
      %v1419 = vpop.permute.xlu0 %1418
      %v1421 = vmul.f32 %v1403, %v1419
      %1423 = vrot.lane.b32.xlu0 %v1421, 32
      %v1424 = vpop.permute.xlu0 %1423
      %1427 = vrot.lane.b32.xlu0 %v1263, 64
      %v1428 = vpop.permute.xlu0 %1427
      %v1430 = vsel %vm409, %v1424, %v1428
      %v1431 = vpack.c.bf16 %v1430, %v1430
      %v1433 = vsel %vm630, %v1431, 0
      %1435 = vmatprep.subr.bf16.mxu0 0
      %1436 = vmatpush1.bf16.msra.mxu0 %v720
      %1437 = vmatprep.subr.bf16.mxu0 0
      %1438 = vmatpush1.bf16.msra.mxu0 %v721
      %1439 = vmatprep.subr.bf16.mxu0 0
      %1440 = vmatpush1.bf16.msra.mxu0 %v722
      %1441 = vmatprep.subr.bf16.mxu0 0
      %1442 = vmatpush1.bf16.msra.mxu0 %v723
      %1443 = vmatprep.subr.bf16.mxu0 0
      %1444 = vmatpush1.bf16.msra.mxu0 0
      %1445 = vmatprep.subr.bf16.mxu0 0
      %1446 = vmatpush1.bf16.msra.mxu0 0
      %1447 = vmatprep.subr.bf16.mxu0 0
      %1448 = vmatpush1.bf16.msra.mxu0 0
      %1449 = vmatprep.subr.bf16.mxu0 0
      %1450 = vmatpush1.bf16.msra.mxu0 0
      %1451 = vmatprep.subr.bf16.mxu0 0
      %1452 = vmatpush1.bf16.msra.mxu0 0
      %1453 = vmatprep.subr.bf16.mxu0 0
      %1454 = vmatpush1.bf16.msra.mxu0 0
      %1455 = vmatprep.subr.bf16.mxu0 0
      %1456 = vmatpush1.bf16.msra.mxu0 0
      %1457 = vmatprep.subr.bf16.mxu0 0
      %1458 = vmatpush1.bf16.msra.mxu0 0
      %1459 = vmatprep.subr.bf16.mxu0 0
      %1460 = vmatpush1.bf16.msra.mxu0 0
      %1461 = vmatprep.subr.bf16.mxu0 0
      %1462 = vmatpush1.bf16.msra.mxu0 0
      %1463 = vmatprep.subr.bf16.mxu0 0
      %1464 = vmatpush1.bf16.msra.mxu0 0
      %1465 = vmatprep.subr.bf16.mxu0 0
      %1466 = vmatpush1.bf16.msra.mxu0 0
      %1467 = vmatprep.mubr.bf16.mxu0 0
      %1468 = vmatmul.mubr.bf16.gmra.mrb[0].mxu0 %v1433
      %v1469 = vpop.f32.mrb[0].mxu0
      %v1470 = vadd.f32 %v519, %v1469
      %v1471 = vpop.f32.mrb[0].mxu0
      %v1472 = vpop.f32.mrb[0].mxu0
      %v1473 = vpop.f32.mrb[0].mxu0
      %1474 = vdwg.mxu0
      %v1475 = vxor.u32 %v1470, 2147483648
      %v1476 = vmul.f32 %v1475, 1.442695
      %v1477 = vpow.pop %v1476
      %v1478 = vadd.f32 %v1477, 1.0
      %v1479 = vrcp.pop %v1478
      %v1480 = vmul.f32 1.0, %v1479
      %v1481 = vtanh.pop %v1470
      %v1482 = vmul.f32 %v1480, %v1257
      %1484 = vrot.lane.b32.xlu0 %v1481, 64
      %v1485 = vpop.permute.xlu0 %1484
      %v1487 = vmul.f32 %v1480, %v1485
      %1489 = vrot.lane.b32.xlu0 %v1487, 32
      %v1490 = vpop.permute.xlu0 %1489
      %v1492 = vadd.f32 %v1482, %v1490
      %v1493 = vtanh.pop %v1492
      %1495 = vrot.lane.b32.xlu0 %v1493, 64
      %v1496 = vpop.permute.xlu0 %1495
      %v1498 = vmul.f32 %v1480, %v1496
      %v1499 = vpack.c.bf16 %v1342, %v1342
      %v1501 = vrot.slane %v1499, 3
      %1502 = vrot.lane.b32.xlu0 %v1501, 32
      %v1503 = vpop.permute.xlu0 %1502
      %v1505 = vsel %vm409, %v1503, 0
      %1507 = vmatprep.subr.bf16.mxu0 0
      %1508 = vmatpush1.bf16.msra.mxu0 %v528
      %1509 = vmatprep.subr.bf16.mxu0 0
      %1510 = vmatpush1.bf16.msra.mxu0 %v529
      %1511 = vmatprep.subr.bf16.mxu0 0
      %1512 = vmatpush1.bf16.msra.mxu0 0
      %1513 = vmatprep.subr.bf16.mxu0 0
      %1514 = vmatpush1.bf16.msra.mxu0 0
      %1515 = vmatprep.subr.bf16.mxu0 0
      %1516 = vmatpush1.bf16.msra.mxu0 0
      %1517 = vmatprep.subr.bf16.mxu0 0
      %1518 = vmatpush1.bf16.msra.mxu0 0
      %1519 = vmatprep.subr.bf16.mxu0 0
      %1520 = vmatpush1.bf16.msra.mxu0 0
      %1521 = vmatprep.subr.bf16.mxu0 0
      %1522 = vmatpush1.bf16.msra.mxu0 0
      %1523 = vmatprep.subr.bf16.mxu0 0
      %1524 = vmatpush1.bf16.msra.mxu0 0
      %1525 = vmatprep.subr.bf16.mxu0 0
      %1526 = vmatpush1.bf16.msra.mxu0 0
      %1527 = vmatprep.subr.bf16.mxu0 0
      %1528 = vmatpush1.bf16.msra.mxu0 0
      %1529 = vmatprep.subr.bf16.mxu0 0
      %1530 = vmatpush1.bf16.msra.mxu0 0
      %1531 = vmatprep.subr.bf16.mxu0 0
      %1532 = vmatpush1.bf16.msra.mxu0 0
      %1533 = vmatprep.subr.bf16.mxu0 0
      %1534 = vmatpush1.bf16.msra.mxu0 0
      %1535 = vmatprep.subr.bf16.mxu0 0
      %1536 = vmatpush1.bf16.msra.mxu0 0
      %1537 = vmatprep.subr.bf16.mxu0 0
      %1538 = vmatpush1.bf16.msra.mxu0 0
      %1539 = vmatprep.mubr.bf16.mxu0 0
      %1540 = vmatmul.mubr.bf16.gmra.mrb[0].mxu0 %v1505
      %v1541 = vpop.f32.mrb[0].mxu0
      %v1542 = vadd.f32 0.0, %v1541
      %v1543 = vpop.f32.mrb[0].mxu0
      %v1544 = vpop.f32.mrb[0].mxu0
      %v1545 = vpop.f32.mrb[0].mxu0
      %1546 = vdwg.mxu0
      %v1547 = vadd.f32 %v488, %v1542
      %v1548 = vxor.u32 %v1547, 2147483648
      %v1549 = vmul.f32 %v1548, 1.442695
      %v1550 = vpow.pop %v1549
      %v1551 = vadd.f32 %v1550, 1.0
      %v1552 = vrcp.pop %v1551
      %v1553 = vmul.f32 1.0, %v1552
      %v1554 = vtanh.pop %v1547
      %v1556 = vrot.slane %v1336, 6
      %v1558 = vmul.f32 %v1553, %v1556
      %1560 = vrot.lane.b32.xlu0 %v1554, 64
      %v1561 = vpop.permute.xlu0 %1560
      %v1563 = vmul.f32 %v1553, %v1561
      %1565 = vrot.lane.b32.xlu0 %v1563, 32
      %v1566 = vpop.permute.xlu0 %1565
      %v1568 = vadd.f32 %v1558, %v1566
      %v1569 = vtanh.pop %v1568
      %1571 = vrot.lane.b32.xlu0 %v1569, 64
      %v1572 = vpop.permute.xlu0 %1571
      %v1574 = vmul.f32 %v1553, %v1572
      %1576 = vrot.lane.b32.xlu0 %v1574, 32
      %v1577 = vpop.permute.xlu0 %1576
      %1579 = vrot.lane.b32.xlu0 %v1421, 64
      %v1580 = vpop.permute.xlu0 %1579
      %v1582 = vsel %vm409, %v1577, %v1580
      %v1583 = vpack.c.bf16 %v1582, %v1582
      %v1585 = vsel %vm630, %v1583, 0
      %1587 = vmatprep.subr.bf16.mxu0 0
      %1588 = vmatpush1.bf16.msra.mxu0 %v622
      %1589 = vmatprep.subr.bf16.mxu0 0
      %1590 = vmatpush1.bf16.msra.mxu0 %v623
      %1591 = vmatprep.subr.bf16.mxu0 0
      %1592 = vmatpush1.bf16.msra.mxu0 %v624
      %1593 = vmatprep.subr.bf16.mxu0 0
      %1594 = vmatpush1.bf16.msra.mxu0 %v625
      %1595 = vmatprep.subr.bf16.mxu0 0
      %1596 = vmatpush1.bf16.msra.mxu0 0
      %1597 = vmatprep.subr.bf16.mxu0 0
      %1598 = vmatpush1.bf16.msra.mxu0 0
      %1599 = vmatprep.subr.bf16.mxu0 0
      %1600 = vmatpush1.bf16.msra.mxu0 0
      %1601 = vmatprep.subr.bf16.mxu0 0
      %1602 = vmatpush1.bf16.msra.mxu0 0
      %1603 = vmatprep.subr.bf16.mxu0 0
      %1604 = vmatpush1.bf16.msra.mxu0 0
      %1605 = vmatprep.subr.bf16.mxu0 0
      %1606 = vmatpush1.bf16.msra.mxu0 0
      %1607 = vmatprep.subr.bf16.mxu0 0
      %1608 = vmatpush1.bf16.msra.mxu0 0
      %1609 = vmatprep.subr.bf16.mxu0 0
      %1610 = vmatpush1.bf16.msra.mxu0 0
      %1611 = vmatprep.subr.bf16.mxu0 0
      %1612 = vmatpush1.bf16.msra.mxu0 0
      %1613 = vmatprep.subr.bf16.mxu0 0
      %1614 = vmatpush1.bf16.msra.mxu0 0
      %1615 = vmatprep.subr.bf16.mxu0 0
      %1616 = vmatpush1.bf16.msra.mxu0 0
      %1617 = vmatprep.subr.bf16.mxu0 0
      %1618 = vmatpush1.bf16.msra.mxu0 0
      %1619 = vmatprep.mubr.bf16.mxu0 0
      %1620 = vmatmul.mubr.bf16.gmra.mrb[0].mxu0 %v1585
      %v1621 = vpop.f32.mrb[0].mxu0
      %v1622 = vadd.f32 %v515, %v1621
      %v1623 = vpop.f32.mrb[0].mxu0
      %v1624 = vpop.f32.mrb[0].mxu0
      %v1625 = vpop.f32.mrb[0].mxu0
      %1626 = vdwg.mxu0
      %v1627 = vxor.u32 %v1622, 2147483648
      %v1628 = vmul.f32 %v1627, 1.442695
      %v1629 = vpow.pop %v1628
      %v1630 = vadd.f32 %v1629, 1.0
      %v1631 = vrcp.pop %v1630
      %v1632 = vmul.f32 1.0, %v1631
      %v1633 = vtanh.pop %v1622
      %v1634 = vmul.f32 %v1632, %v1415
      %1636 = vrot.lane.b32.xlu0 %v1633, 64
      %v1637 = vpop.permute.xlu0 %1636
      %v1639 = vmul.f32 %v1632, %v1637
      %1641 = vrot.lane.b32.xlu0 %v1639, 32
      %v1642 = vpop.permute.xlu0 %1641
      %v1644 = vadd.f32 %v1634, %v1642
      %v1645 = vtanh.pop %v1644
      %1647 = vrot.lane.b32.xlu0 %v1645, 64
      %v1648 = vpop.permute.xlu0 %1647
      %v1650 = vmul.f32 %v1632, %v1648
      %1652 = vrot.lane.b32.xlu0 %v1650, 32
      %v1653 = vpop.permute.xlu0 %1652
      %1656 = vrot.lane.b32.xlu0 %v1498, 64
      %v1657 = vpop.permute.xlu0 %1656
      %v1659 = vsel %vm409, %v1653, %v1657
      %v1660 = vpack.c.bf16 %v1659, %v1659
      %v1662 = vsel %vm630, %v1660, 0
      %1664 = vmatprep.subr.bf16.mxu0 0
      %1665 = vmatpush1.bf16.msra.mxu0 %v720
      %1666 = vmatprep.subr.bf16.mxu0 0
      %1667 = vmatpush1.bf16.msra.mxu0 %v721
      %1668 = vmatprep.subr.bf16.mxu0 0
      %1669 = vmatpush1.bf16.msra.mxu0 %v722
      %1670 = vmatprep.subr.bf16.mxu0 0
      %1671 = vmatpush1.bf16.msra.mxu0 %v723
      %1672 = vmatprep.subr.bf16.mxu0 0
      %1673 = vmatpush1.bf16.msra.mxu0 0
      %1674 = vmatprep.subr.bf16.mxu0 0
      %1675 = vmatpush1.bf16.msra.mxu0 0
      %1676 = vmatprep.subr.bf16.mxu0 0
      %1677 = vmatpush1.bf16.msra.mxu0 0
      %1678 = vmatprep.subr.bf16.mxu0 0
      %1679 = vmatpush1.bf16.msra.mxu0 0
      %1680 = vmatprep.subr.bf16.mxu0 0
      %1681 = vmatpush1.bf16.msra.mxu0 0
      %1682 = vmatprep.subr.bf16.mxu0 0
      %1683 = vmatpush1.bf16.msra.mxu0 0
      %1684 = vmatprep.subr.bf16.mxu0 0
      %1685 = vmatpush1.bf16.msra.mxu0 0
      %1686 = vmatprep.subr.bf16.mxu0 0
      %1687 = vmatpush1.bf16.msra.mxu0 0
      %1688 = vmatprep.subr.bf16.mxu0 0
      %1689 = vmatpush1.bf16.msra.mxu0 0
      %1690 = vmatprep.subr.bf16.mxu0 0
      %1691 = vmatpush1.bf16.msra.mxu0 0
      %1692 = vmatprep.subr.bf16.mxu0 0
      %1693 = vmatpush1.bf16.msra.mxu0 0
      %1694 = vmatprep.subr.bf16.mxu0 0
      %1695 = vmatpush1.bf16.msra.mxu0 0
      %1696 = vmatprep.mubr.bf16.mxu0 0
      %1697 = vmatmul.mubr.bf16.gmra.mrb[0].mxu0 %v1662
      %v1698 = vpop.f32.mrb[0].mxu0
      %v1699 = vadd.f32 %v519, %v1698
      %v1700 = vpop.f32.mrb[0].mxu0
      %v1701 = vpop.f32.mrb[0].mxu0
      %v1702 = vpop.f32.mrb[0].mxu0
      %1703 = vdwg.mxu0
      %v1704 = vxor.u32 %v1699, 2147483648
      %v1705 = vmul.f32 %v1704, 1.442695
      %v1706 = vpow.pop %v1705
      %v1707 = vadd.f32 %v1706, 1.0
      %v1708 = vrcp.pop %v1707
      %v1709 = vmul.f32 1.0, %v1708
      %v1710 = vtanh.pop %v1699
      %v1711 = vmul.f32 %v1709, %v1492
      %1713 = vrot.lane.b32.xlu0 %v1710, 64
      %v1714 = vpop.permute.xlu0 %1713
      %v1716 = vmul.f32 %v1709, %v1714
      %1718 = vrot.lane.b32.xlu0 %v1716, 32
      %v1719 = vpop.permute.xlu0 %1718
      %v1721 = vadd.f32 %v1711, %v1719
      %v1722 = vtanh.pop %v1721
      %1724 = vrot.lane.b32.xlu0 %v1722, 64
      %v1725 = vpop.permute.xlu0 %1724
      %v1727 = vmul.f32 %v1709, %v1725
      %v1728 = vpack.c.bf16 %v1574, %v1574
      %1730 = vrot.lane.b32.xlu0 %v1728, 32
      %v1731 = vpop.permute.xlu0 %1730
      %v1733 = vsel %vm409, %v1731, 0
      %1735 = vmatprep.subr.bf16.mxu0 0
      %1736 = vmatpush1.bf16.msra.mxu0 %v528
      %1737 = vmatprep.subr.bf16.mxu0 0
      %1738 = vmatpush1.bf16.msra.mxu0 %v529
      %1739 = vmatprep.subr.bf16.mxu0 0
      %1740 = vmatpush1.bf16.msra.mxu0 0
      %1741 = vmatprep.subr.bf16.mxu0 0
      %1742 = vmatpush1.bf16.msra.mxu0 0
      %1743 = vmatprep.subr.bf16.mxu0 0
      %1744 = vmatpush1.bf16.msra.mxu0 0
      %1745 = vmatprep.subr.bf16.mxu0 0
      %1746 = vmatpush1.bf16.msra.mxu0 0
      %1747 = vmatprep.subr.bf16.mxu0 0
      %1748 = vmatpush1.bf16.msra.mxu0 0
      %1749 = vmatprep.subr.bf16.mxu0 0
      %1750 = vmatpush1.bf16.msra.mxu0 0
      %1751 = vmatprep.subr.bf16.mxu0 0
      %1752 = vmatpush1.bf16.msra.mxu0 0
      %1753 = vmatprep.subr.bf16.mxu0 0
      %1754 = vmatpush1.bf16.msra.mxu0 0
      %1755 = vmatprep.subr.bf16.mxu0 0
      %1756 = vmatpush1.bf16.msra.mxu0 0
      %1757 = vmatprep.subr.bf16.mxu0 0
      %1758 = vmatpush1.bf16.msra.mxu0 0
      %1759 = vmatprep.subr.bf16.mxu0 0
      %1760 = vmatpush1.bf16.msra.mxu0 0
      %1761 = vmatprep.subr.bf16.mxu0 0
      %1762 = vmatpush1.bf16.msra.mxu0 0
      %1763 = vmatprep.subr.bf16.mxu0 0
      %1764 = vmatpush1.bf16.msra.mxu0 0
      %1765 = vmatprep.subr.bf16.mxu0 0
      %1766 = vmatpush1.bf16.msra.mxu0 0
      %1767 = vmatprep.mubr.bf16.mxu0 0
      %1768 = vmatmul.mubr.bf16.gmra.mrb[0].mxu0 %v1733
      %v1769 = vpop.f32.mrb[0].mxu0
      %v1770 = vadd.f32 0.0, %v1769
      %v1771 = vpop.f32.mrb[0].mxu0
      %v1772 = vpop.f32.mrb[0].mxu0
      %v1773 = vpop.f32.mrb[0].mxu0
      %1774 = vdwg.mxu0
      %v1776 = vrot.slane %v1770, 6
      %v1778 = vadd.f32 %v488, %v1776
      %v1779 = vxor.u32 %v1778, 2147483648
      %v1780 = vmul.f32 %v1779, 1.442695
      %v1781 = vpow.pop %v1780
      %v1782 = vadd.f32 %v1781, 1.0
      %v1783 = vrcp.pop %v1782
      %v1784 = vmul.f32 1.0, %v1783
      %v1785 = vtanh.pop %v1778
      %v1787 = vrot.slane %v1568, 6
      %v1789 = vmul.f32 %v1784, %v1787
      %1791 = vrot.lane.b32.xlu0 %v1785, 64
      %v1792 = vpop.permute.xlu0 %1791
      %v1794 = vmul.f32 %v1784, %v1792
      %1796 = vrot.lane.b32.xlu0 %v1794, 32
      %v1797 = vpop.permute.xlu0 %1796
      %v1799 = vadd.f32 %v1789, %v1797
      %v1800 = vtanh.pop %v1799
      %1802 = vrot.lane.b32.xlu0 %v1800, 64
      %v1803 = vpop.permute.xlu0 %1802
      %v1805 = vmul.f32 %v1784, %v1803
      %1807 = vrot.lane.b32.xlu0 %v1805, 32
      %v1808 = vpop.permute.xlu0 %1807
      %v1810 = vrot.slane %v1650, 6
      %1811 = vrot.lane.b32.xlu0 %v1810, 64
      %v1812 = vpop.permute.xlu0 %1811
      %v1814 = vsel %vm409, %v1808, %v1812
      %v1815 = vpack.c.bf16 %v1814, %v1814
      %v1817 = vrot.slane %v1815, 1
      %v1819 = vsel %vm630, %v1817, 0
      %1821 = vmatprep.subr.bf16.mxu0 0
      %1822 = vmatpush1.bf16.msra.mxu0 %v622
      %1823 = vmatprep.subr.bf16.mxu0 0
      %1824 = vmatpush1.bf16.msra.mxu0 %v623
      %1825 = vmatprep.subr.bf16.mxu0 0
      %1826 = vmatpush1.bf16.msra.mxu0 %v624
      %1827 = vmatprep.subr.bf16.mxu0 0
      %1828 = vmatpush1.bf16.msra.mxu0 %v625
      %1829 = vmatprep.subr.bf16.mxu0 0
      %1830 = vmatpush1.bf16.msra.mxu0 0
      %1831 = vmatprep.subr.bf16.mxu0 0
      %1832 = vmatpush1.bf16.msra.mxu0 0
      %1833 = vmatprep.subr.bf16.mxu0 0
      %1834 = vmatpush1.bf16.msra.mxu0 0
      %1835 = vmatprep.subr.bf16.mxu0 0
      %1836 = vmatpush1.bf16.msra.mxu0 0
      %1837 = vmatprep.subr.bf16.mxu0 0
      %1838 = vmatpush1.bf16.msra.mxu0 0
      %1839 = vmatprep.subr.bf16.mxu0 0
      %1840 = vmatpush1.bf16.msra.mxu0 0
      %1841 = vmatprep.subr.bf16.mxu0 0
      %1842 = vmatpush1.bf16.msra.mxu0 0
      %1843 = vmatprep.subr.bf16.mxu0 0
      %1844 = vmatpush1.bf16.msra.mxu0 0
      %1845 = vmatprep.subr.bf16.mxu0 0
      %1846 = vmatpush1.bf16.msra.mxu0 0
      %1847 = vmatprep.subr.bf16.mxu0 0
      %1848 = vmatpush1.bf16.msra.mxu0 0
      %1849 = vmatprep.subr.bf16.mxu0 0
      %1850 = vmatpush1.bf16.msra.mxu0 0
      %1851 = vmatprep.subr.bf16.mxu0 0
      %1852 = vmatpush1.bf16.msra.mxu0 0
      %1853 = vmatprep.mubr.bf16.mxu0 0
      %1854 = vmatmul.mubr.bf16.gmra.mrb[0].mxu0 %v1819
      %v1855 = vpop.f32.mrb[0].mxu0
      %v1856 = vadd.f32 %v515, %v1855
      %v1857 = vpop.f32.mrb[0].mxu0
      %v1858 = vpop.f32.mrb[0].mxu0
      %v1859 = vpop.f32.mrb[0].mxu0
      %1860 = vdwg.mxu0
      %v1861 = vxor.u32 %v1856, 2147483648
      %v1862 = vmul.f32 %v1861, 1.442695
      %v1863 = vpow.pop %v1862
      %v1864 = vadd.f32 %v1863, 1.0
      %v1865 = vrcp.pop %v1864
      %v1866 = vmul.f32 1.0, %v1865
      %v1867 = vtanh.pop %v1856
      %v1868 = vmul.f32 %v1866, %v1644
      %1870 = vrot.lane.b32.xlu0 %v1867, 64
      %v1871 = vpop.permute.xlu0 %1870
      %v1873 = vmul.f32 %v1866, %v1871
      %1875 = vrot.lane.b32.xlu0 %v1873, 32
      %v1876 = vpop.permute.xlu0 %1875
      %v1878 = vadd.f32 %v1868, %v1876
      %v1879 = vtanh.pop %v1878
      %1881 = vrot.lane.b32.xlu0 %v1879, 64
      %v1882 = vpop.permute.xlu0 %1881
      %v1884 = vmul.f32 %v1866, %v1882
      %1886 = vrot.lane.b32.xlu0 %v1884, 32
      %v1887 = vpop.permute.xlu0 %1886
      %1890 = vrot.lane.b32.xlu0 %v1727, 64
      %v1891 = vpop.permute.xlu0 %1890
      %v1893 = vsel %vm409, %v1887, %v1891
      %v1894 = vpack.c.bf16 %v1893, %v1893
      %v1896 = vsel %vm630, %v1894, 0
      %1898 = vmatprep.subr.bf16.mxu0 0
      %1899 = vmatpush1.bf16.msra.mxu0 %v720
      %1900 = vmatprep.subr.bf16.mxu0 0
      %1901 = vmatpush1.bf16.msra.mxu0 %v721
      %1902 = vmatprep.subr.bf16.mxu0 0
      %1903 = vmatpush1.bf16.msra.mxu0 %v722
      %1904 = vmatprep.subr.bf16.mxu0 0
      %1905 = vmatpush1.bf16.msra.mxu0 %v723
      %1906 = vmatprep.subr.bf16.mxu0 0
      %1907 = vmatpush1.bf16.msra.mxu0 0
      %1908 = vmatprep.subr.bf16.mxu0 0
      %1909 = vmatpush1.bf16.msra.mxu0 0
      %1910 = vmatprep.subr.bf16.mxu0 0
      %1911 = vmatpush1.bf16.msra.mxu0 0
      %1912 = vmatprep.subr.bf16.mxu0 0
      %1913 = vmatpush1.bf16.msra.mxu0 0
      %1914 = vmatprep.subr.bf16.mxu0 0
      %1915 = vmatpush1.bf16.msra.mxu0 0
      %1916 = vmatprep.subr.bf16.mxu0 0
      %1917 = vmatpush1.bf16.msra.mxu0 0
      %1918 = vmatprep.subr.bf16.mxu0 0
      %1919 = vmatpush1.bf16.msra.mxu0 0
      %1920 = vmatprep.subr.bf16.mxu0 0
      %1921 = vmatpush1.bf16.msra.mxu0 0
      %1922 = vmatprep.subr.bf16.mxu0 0
      %1923 = vmatpush1.bf16.msra.mxu0 0
      %1924 = vmatprep.subr.bf16.mxu0 0
      %1925 = vmatpush1.bf16.msra.mxu0 0
      %1926 = vmatprep.subr.bf16.mxu0 0
      %1927 = vmatpush1.bf16.msra.mxu0 0
      %1928 = vmatprep.subr.bf16.mxu0 0
      %1929 = vmatpush1.bf16.msra.mxu0 0
      %1930 = vmatprep.mubr.bf16.mxu0 0
      %1931 = vmatmul.mubr.bf16.gmra.mrb[0].mxu0 %v1896
      %v1932 = vpop.f32.mrb[0].mxu0
      %v1933 = vadd.f32 %v519, %v1932
      %v1934 = vpop.f32.mrb[0].mxu0
      %v1935 = vpop.f32.mrb[0].mxu0
      %v1936 = vpop.f32.mrb[0].mxu0
      %1937 = vdwg.mxu0
      %v1938 = vxor.u32 %v1933, 2147483648
      %v1939 = vmul.f32 %v1938, 1.442695
      %v1940 = vpow.pop %v1939
      %v1941 = vadd.f32 %v1940, 1.0
      %v1942 = vrcp.pop %v1941
      %v1943 = vmul.f32 1.0, %v1942
      %v1944 = vtanh.pop %v1933
      %v1945 = vmul.f32 %v1943, %v1721
      %1947 = vrot.lane.b32.xlu0 %v1944, 64
      %v1948 = vpop.permute.xlu0 %1947
      %v1950 = vmul.f32 %v1943, %v1948
      %1952 = vrot.lane.b32.xlu0 %v1950, 32
      %v1953 = vpop.permute.xlu0 %1952
      %v1955 = vadd.f32 %v1945, %v1953
      %v1956 = vtanh.pop %v1955
      %1958 = vrot.lane.b32.xlu0 %v1956, 64
      %v1959 = vpop.permute.xlu0 %1958
      %v1961 = vmul.f32 %v1943, %v1959
      %v1962 = vpack.c.bf16 %v1805, %v1805
      %v1964 = vrot.slane %v1962, 1
      %1965 = vrot.lane.b32.xlu0 %v1964, 32
      %v1966 = vpop.permute.xlu0 %1965
      %v1968 = vsel %vm409, %v1966, 0
      %1970 = vmatprep.subr.bf16.mxu0 0
      %1971 = vmatpush1.bf16.msra.mxu0 %v528
      %1972 = vmatprep.subr.bf16.mxu0 0
      %1973 = vmatpush1.bf16.msra.mxu0 %v529
      %1974 = vmatprep.subr.bf16.mxu0 0
      %1975 = vmatpush1.bf16.msra.mxu0 0
      %1976 = vmatprep.subr.bf16.mxu0 0
      %1977 = vmatpush1.bf16.msra.mxu0 0
      %1978 = vmatprep.subr.bf16.mxu0 0
      %1979 = vmatpush1.bf16.msra.mxu0 0
      %1980 = vmatprep.subr.bf16.mxu0 0
      %1981 = vmatpush1.bf16.msra.mxu0 0
      %1982 = vmatprep.subr.bf16.mxu0 0
      %1983 = vmatpush1.bf16.msra.mxu0 0
      %1984 = vmatprep.subr.bf16.mxu0 0
      %1985 = vmatpush1.bf16.msra.mxu0 0
      %1986 = vmatprep.subr.bf16.mxu0 0
      %1987 = vmatpush1.bf16.msra.mxu0 0
      %1988 = vmatprep.subr.bf16.mxu0 0
      %1989 = vmatpush1.bf16.msra.mxu0 0
      %1990 = vmatprep.subr.bf16.mxu0 0
      %1991 = vmatpush1.bf16.msra.mxu0 0
      %1992 = vmatprep.subr.bf16.mxu0 0
      %1993 = vmatpush1.bf16.msra.mxu0 0
      %1994 = vmatprep.subr.bf16.mxu0 0
      %1995 = vmatpush1.bf16.msra.mxu0 0
      %1996 = vmatprep.subr.bf16.mxu0 0
      %1997 = vmatpush1.bf16.msra.mxu0 0
      %1998 = vmatprep.subr.bf16.mxu0 0
      %1999 = vmatpush1.bf16.msra.mxu0 0
      %2000 = vmatprep.subr.bf16.mxu0 0
      %2001 = vmatpush1.bf16.msra.mxu0 0
      %2002 = vmatprep.mubr.bf16.mxu0 0
      %2003 = vmatmul.mubr.bf16.gmra.mrb[0].mxu0 %v1968
      %v2004 = vpop.f32.mrb[0].mxu0
      %v2005 = vadd.f32 0.0, %v2004
      %v2006 = vpop.f32.mrb[0].mxu0
      %v2007 = vpop.f32.mrb[0].mxu0
      %v2008 = vpop.f32.mrb[0].mxu0
      %2009 = vdwg.mxu0
      %v2011 = vrot.slane %v2005, 4
      %v2013 = vadd.f32 %v488, %v2011
      %v2014 = vxor.u32 %v2013, 2147483648
      %v2015 = vmul.f32 %v2014, 1.442695
      %v2016 = vpow.pop %v2015
      %v2017 = vadd.f32 %v2016, 1.0
      %v2018 = vrcp.pop %v2017
      %v2019 = vmul.f32 1.0, %v2018
      %v2020 = vtanh.pop %v2013
      %v2022 = vrot.slane %v1799, 6
      %v2024 = vmul.f32 %v2019, %v2022
      %2026 = vrot.lane.b32.xlu0 %v2020, 64
      %v2027 = vpop.permute.xlu0 %2026
      %v2029 = vmul.f32 %v2019, %v2027
      %2031 = vrot.lane.b32.xlu0 %v2029, 32
      %v2032 = vpop.permute.xlu0 %2031
      %v2034 = vadd.f32 %v2024, %v2032
      %v2035 = vtanh.pop %v2034
      %2037 = vrot.lane.b32.xlu0 %v2035, 64
      %v2038 = vpop.permute.xlu0 %2037
      %v2040 = vmul.f32 %v2019, %v2038
      %2042 = vrot.lane.b32.xlu0 %v2040, 32
      %v2043 = vpop.permute.xlu0 %2042
      %v2045 = vrot.slane %v1884, 4
      %2046 = vrot.lane.b32.xlu0 %v2045, 64
      %v2047 = vpop.permute.xlu0 %2046
      %v2049 = vsel %vm409, %v2043, %v2047
      %v2050 = vpack.c.bf16 %v2049, %v2049
      %v2052 = vrot.slane %v2050, 2
      %v2054 = vsel %vm630, %v2052, 0
      %2056 = vmatprep.subr.bf16.mxu0 0
      %2057 = vmatpush1.bf16.msra.mxu0 %v622
      %2058 = vmatprep.subr.bf16.mxu0 0
      %2059 = vmatpush1.bf16.msra.mxu0 %v623
      %2060 = vmatprep.subr.bf16.mxu0 0
      %2061 = vmatpush1.bf16.msra.mxu0 %v624
      %2062 = vmatprep.subr.bf16.mxu0 0
      %2063 = vmatpush1.bf16.msra.mxu0 %v625
      %2064 = vmatprep.subr.bf16.mxu0 0
      %2065 = vmatpush1.bf16.msra.mxu0 0
      %2066 = vmatprep.subr.bf16.mxu0 0
      %2067 = vmatpush1.bf16.msra.mxu0 0
      %2068 = vmatprep.subr.bf16.mxu0 0
      %2069 = vmatpush1.bf16.msra.mxu0 0
      %2070 = vmatprep.subr.bf16.mxu0 0
      %2071 = vmatpush1.bf16.msra.mxu0 0
      %2072 = vmatprep.subr.bf16.mxu0 0
      %2073 = vmatpush1.bf16.msra.mxu0 0
      %2074 = vmatprep.subr.bf16.mxu0 0
      %2075 = vmatpush1.bf16.msra.mxu0 0
      %2076 = vmatprep.subr.bf16.mxu0 0
      %2077 = vmatpush1.bf16.msra.mxu0 0
      %2078 = vmatprep.subr.bf16.mxu0 0
      %2079 = vmatpush1.bf16.msra.mxu0 0
      %2080 = vmatprep.subr.bf16.mxu0 0
      %2081 = vmatpush1.bf16.msra.mxu0 0
      %2082 = vmatprep.subr.bf16.mxu0 0
      %2083 = vmatpush1.bf16.msra.mxu0 0
      %2084 = vmatprep.subr.bf16.mxu0 0
      %2085 = vmatpush1.bf16.msra.mxu0 0
      %2086 = vmatprep.subr.bf16.mxu0 0
      %2087 = vmatpush1.bf16.msra.mxu0 0
      %2088 = vmatprep.mubr.bf16.mxu0 0
      %2089 = vmatmul.mubr.bf16.gmra.mrb[0].mxu0 %v2054
      %v2090 = vpop.f32.mrb[0].mxu0
      %v2091 = vadd.f32 %v515, %v2090
      %v2092 = vpop.f32.mrb[0].mxu0
      %v2093 = vpop.f32.mrb[0].mxu0
      %v2094 = vpop.f32.mrb[0].mxu0
      %2095 = vdwg.mxu0
      %v2096 = vxor.u32 %v2091, 2147483648
      %v2097 = vmul.f32 %v2096, 1.442695
      %v2098 = vpow.pop %v2097
      %v2099 = vadd.f32 %v2098, 1.0
      %v2100 = vrcp.pop %v2099
      %v2101 = vmul.f32 1.0, %v2100
      %v2102 = vtanh.pop %v2091
      %v2103 = vmul.f32 %v2101, %v1878
      %2105 = vrot.lane.b32.xlu0 %v2102, 64
      %v2106 = vpop.permute.xlu0 %2105
      %v2108 = vmul.f32 %v2101, %v2106
      %2110 = vrot.lane.b32.xlu0 %v2108, 32
      %v2111 = vpop.permute.xlu0 %2110
      %v2113 = vadd.f32 %v2103, %v2111
      %v2114 = vtanh.pop %v2113
      %2116 = vrot.lane.b32.xlu0 %v2114, 64
      %v2117 = vpop.permute.xlu0 %2116
      %v2119 = vmul.f32 %v2101, %v2117
      %2121 = vrot.lane.b32.xlu0 %v2119, 32
      %v2122 = vpop.permute.xlu0 %2121
      %2125 = vrot.lane.b32.xlu0 %v1961, 64
      %v2126 = vpop.permute.xlu0 %2125
      %v2128 = vsel %vm409, %v2122, %v2126
      %v2129 = vpack.c.bf16 %v2128, %v2128
      %v2131 = vsel %vm630, %v2129, 0
      %2133 = vmatprep.subr.bf16.mxu0 0
      %2134 = vmatpush1.bf16.msra.mxu0 %v720
      %2135 = vmatprep.subr.bf16.mxu0 0
      %2136 = vmatpush1.bf16.msra.mxu0 %v721
      %2137 = vmatprep.subr.bf16.mxu0 0
      %2138 = vmatpush1.bf16.msra.mxu0 %v722
      %2139 = vmatprep.subr.bf16.mxu0 0
      %2140 = vmatpush1.bf16.msra.mxu0 %v723
      %2141 = vmatprep.subr.bf16.mxu0 0
      %2142 = vmatpush1.bf16.msra.mxu0 0
      %2143 = vmatprep.subr.bf16.mxu0 0
      %2144 = vmatpush1.bf16.msra.mxu0 0
      %2145 = vmatprep.subr.bf16.mxu0 0
      %2146 = vmatpush1.bf16.msra.mxu0 0
      %2147 = vmatprep.subr.bf16.mxu0 0
      %2148 = vmatpush1.bf16.msra.mxu0 0
      %2149 = vmatprep.subr.bf16.mxu0 0
      %2150 = vmatpush1.bf16.msra.mxu0 0
      %2151 = vmatprep.subr.bf16.mxu0 0
      %2152 = vmatpush1.bf16.msra.mxu0 0
      %2153 = vmatprep.subr.bf16.mxu0 0
      %2154 = vmatpush1.bf16.msra.mxu0 0
      %2155 = vmatprep.subr.bf16.mxu0 0
      %2156 = vmatpush1.bf16.msra.mxu0 0
      %2157 = vmatprep.subr.bf16.mxu0 0
      %2158 = vmatpush1.bf16.msra.mxu0 0
      %2159 = vmatprep.subr.bf16.mxu0 0
      %2160 = vmatpush1.bf16.msra.mxu0 0
      %2161 = vmatprep.subr.bf16.mxu0 0
      %2162 = vmatpush1.bf16.msra.mxu0 0
      %2163 = vmatprep.subr.bf16.mxu0 0
      %2164 = vmatpush1.bf16.msra.mxu0 0
      %2165 = vmatprep.mubr.bf16.mxu0 0
      %2166 = vmatmul.mubr.bf16.gmra.mrb[0].mxu0 %v2131
      %v2167 = vpop.f32.mrb[0].mxu0
      %v2168 = vadd.f32 %v519, %v2167
      %v2169 = vpop.f32.mrb[0].mxu0
      %v2170 = vpop.f32.mrb[0].mxu0
      %v2171 = vpop.f32.mrb[0].mxu0
      %2172 = vdwg.mxu0
      %v2173 = vxor.u32 %v2168, 2147483648
      %v2174 = vmul.f32 %v2173, 1.442695
      %v2175 = vpow.pop %v2174
      %v2176 = vadd.f32 %v2175, 1.0
      %v2177 = vrcp.pop %v2176
      %v2178 = vmul.f32 1.0, %v2177
      %v2179 = vtanh.pop %v2168
      %v2180 = vmul.f32 %v2178, %v1955
      %2182 = vrot.lane.b32.xlu0 %v2179, 64
      %v2183 = vpop.permute.xlu0 %2182
      %v2185 = vmul.f32 %v2178, %v2183
      %2187 = vrot.lane.b32.xlu0 %v2185, 32
      %v2188 = vpop.permute.xlu0 %2187
      %v2190 = vadd.f32 %v2180, %v2188
      %v2191 = vtanh.pop %v2190
      %2193 = vrot.lane.b32.xlu0 %v2191, 64
      %v2194 = vpop.permute.xlu0 %2193
      %v2196 = vmul.f32 %v2178, %v2194
      %v2197 = vpack.c.bf16 %v2040, %v2040
      %v2199 = vrot.slane %v2197, 2
      %2200 = vrot.lane.b32.xlu0 %v2199, 32
      %v2201 = vpop.permute.xlu0 %2200
      %v2203 = vsel %vm409, %v2201, 0
      %2205 = vmatprep.subr.bf16.mxu0 0
      %2206 = vmatpush1.bf16.msra.mxu0 %v528
      %2207 = vmatprep.subr.bf16.mxu0 0
      %2208 = vmatpush1.bf16.msra.mxu0 %v529
      %2209 = vmatprep.subr.bf16.mxu0 0
      %2210 = vmatpush1.bf16.msra.mxu0 0
      %2211 = vmatprep.subr.bf16.mxu0 0
      %2212 = vmatpush1.bf16.msra.mxu0 0
      %2213 = vmatprep.subr.bf16.mxu0 0
      %2214 = vmatpush1.bf16.msra.mxu0 0
      %2215 = vmatprep.subr.bf16.mxu0 0
      %2216 = vmatpush1.bf16.msra.mxu0 0
      %2217 = vmatprep.subr.bf16.mxu0 0
      %2218 = vmatpush1.bf16.msra.mxu0 0
      %2219 = vmatprep.subr.bf16.mxu0 0
      %2220 = vmatpush1.bf16.msra.mxu0 0
      %2221 = vmatprep.subr.bf16.mxu0 0
      %2222 = vmatpush1.bf16.msra.mxu0 0
      %2223 = vmatprep.subr.bf16.mxu0 0
      %2224 = vmatpush1.bf16.msra.mxu0 0
      %2225 = vmatprep.subr.bf16.mxu0 0
      %2226 = vmatpush1.bf16.msra.mxu0 0
      %2227 = vmatprep.subr.bf16.mxu0 0
      %2228 = vmatpush1.bf16.msra.mxu0 0
      %2229 = vmatprep.subr.bf16.mxu0 0
      %2230 = vmatpush1.bf16.msra.mxu0 0
      %2231 = vmatprep.subr.bf16.mxu0 0
      %2232 = vmatpush1.bf16.msra.mxu0 0
      %2233 = vmatprep.subr.bf16.mxu0 0
      %2234 = vmatpush1.bf16.msra.mxu0 0
      %2235 = vmatprep.subr.bf16.mxu0 0
      %2236 = vmatpush1.bf16.msra.mxu0 0
      %2237 = vmatprep.mubr.bf16.mxu0 0
      %2238 = vmatmul.mubr.bf16.gmra.mrb[0].mxu0 %v2203
      %v2239 = vpop.f32.mrb[0].mxu0
      %v2240 = vadd.f32 0.0, %v2239
      %v2241 = vpop.f32.mrb[0].mxu0
      %v2242 = vpop.f32.mrb[0].mxu0
      %v2243 = vpop.f32.mrb[0].mxu0
      %2244 = vdwg.mxu0
      %v2246 = vrot.slane %v2240, 2
      %v2248 = vadd.f32 %v488, %v2246
      %v2249 = vxor.u32 %v2248, 2147483648
      %v2250 = vmul.f32 %v2249, 1.442695
      %v2251 = vpow.pop %v2250
      %v2252 = vadd.f32 %v2251, 1.0
      %v2253 = vrcp.pop %v2252
      %v2254 = vmul.f32 1.0, %v2253
      %v2255 = vtanh.pop %v2248
      %v2257 = vrot.slane %v2034, 6
      %v2259 = vmul.f32 %v2254, %v2257
      %2261 = vrot.lane.b32.xlu0 %v2255, 64
      %v2262 = vpop.permute.xlu0 %2261
      %v2264 = vmul.f32 %v2254, %v2262
      %2266 = vrot.lane.b32.xlu0 %v2264, 32
      %v2267 = vpop.permute.xlu0 %2266
      %v2269 = vadd.f32 %v2259, %v2267
      %v2270 = vtanh.pop %v2269
      %2272 = vrot.lane.b32.xlu0 %v2270, 64
      %v2273 = vpop.permute.xlu0 %2272
      %v2275 = vmul.f32 %v2254, %v2273
      %2277 = vrot.lane.b32.xlu0 %v2275, 32
      %v2278 = vpop.permute.xlu0 %2277
      %v2280 = vrot.slane %v2119, 2
      %2281 = vrot.lane.b32.xlu0 %v2280, 64
      %v2282 = vpop.permute.xlu0 %2281
      %v2284 = vsel %vm409, %v2278, %v2282
      %v2285 = vpack.c.bf16 %v2284, %v2284
      %v2287 = vrot.slane %v2285, 3
      %v2289 = vsel %vm630, %v2287, 0
      %2291 = vmatprep.subr.bf16.mxu0 0
      %2292 = vmatpush1.bf16.msra.mxu0 %v622
      %2293 = vmatprep.subr.bf16.mxu0 0
      %2294 = vmatpush1.bf16.msra.mxu0 %v623
      %2295 = vmatprep.subr.bf16.mxu0 0
      %2296 = vmatpush1.bf16.msra.mxu0 %v624
      %2297 = vmatprep.subr.bf16.mxu0 0
      %2298 = vmatpush1.bf16.msra.mxu0 %v625
      %2299 = vmatprep.subr.bf16.mxu0 0
      %2300 = vmatpush1.bf16.msra.mxu0 0
      %2301 = vmatprep.subr.bf16.mxu0 0
      %2302 = vmatpush1.bf16.msra.mxu0 0
      %2303 = vmatprep.subr.bf16.mxu0 0
      %2304 = vmatpush1.bf16.msra.mxu0 0
      %2305 = vmatprep.subr.bf16.mxu0 0
      %2306 = vmatpush1.bf16.msra.mxu0 0
      %2307 = vmatprep.subr.bf16.mxu0 0
      %2308 = vmatpush1.bf16.msra.mxu0 0
      %2309 = vmatprep.subr.bf16.mxu0 0
      %2310 = vmatpush1.bf16.msra.mxu0 0
      %2311 = vmatprep.subr.bf16.mxu0 0
      %2312 = vmatpush1.bf16.msra.mxu0 0
      %2313 = vmatprep.subr.bf16.mxu0 0
      %2314 = vmatpush1.bf16.msra.mxu0 0
      %2315 = vmatprep.subr.bf16.mxu0 0
      %2316 = vmatpush1.bf16.msra.mxu0 0
      %2317 = vmatprep.subr.bf16.mxu0 0
      %2318 = vmatpush1.bf16.msra.mxu0 0
      %2319 = vmatprep.subr.bf16.mxu0 0
      %2320 = vmatpush1.bf16.msra.mxu0 0
      %2321 = vmatprep.subr.bf16.mxu0 0
      %2322 = vmatpush1.bf16.msra.mxu0 0
      %2323 = vmatprep.mubr.bf16.mxu0 0
      %2324 = vmatmul.mubr.bf16.gmra.mrb[0].mxu0 %v2289
      %v2325 = vpop.f32.mrb[0].mxu0
      %v2326 = vadd.f32 %v515, %v2325
      %v2327 = vpop.f32.mrb[0].mxu0
      %v2328 = vpop.f32.mrb[0].mxu0
      %v2329 = vpop.f32.mrb[0].mxu0
      %2330 = vdwg.mxu0
      %v2331 = vxor.u32 %v2326, 2147483648
      %v2332 = vmul.f32 %v2331, 1.442695
      %v2333 = vpow.pop %v2332
      %v2334 = vadd.f32 %v2333, 1.0
      %v2335 = vrcp.pop %v2334
      %v2336 = vmul.f32 1.0, %v2335
      %v2337 = vtanh.pop %v2326
      %v2338 = vmul.f32 %v2336, %v2113
      %2340 = vrot.lane.b32.xlu0 %v2337, 64
      %v2341 = vpop.permute.xlu0 %2340
      %v2343 = vmul.f32 %v2336, %v2341
      %2345 = vrot.lane.b32.xlu0 %v2343, 32
      %v2346 = vpop.permute.xlu0 %2345
      %v2348 = vadd.f32 %v2338, %v2346
      %v2349 = vtanh.pop %v2348
      %2351 = vrot.lane.b32.xlu0 %v2349, 64
      %v2352 = vpop.permute.xlu0 %2351
      %v2354 = vmul.f32 %v2336, %v2352
      %2356 = vrot.lane.b32.xlu0 %v2354, 32
      %v2357 = vpop.permute.xlu0 %2356
      %2360 = vrot.lane.b32.xlu0 %v2196, 64
      %v2361 = vpop.permute.xlu0 %2360
      %v2363 = vsel %vm409, %v2357, %v2361
      %v2364 = vpack.c.bf16 %v2363, %v2363
      %v2366 = vsel %vm630, %v2364, 0
      %2368 = vmatprep.subr.bf16.mxu0 0
      %2369 = vmatpush1.bf16.msra.mxu0 %v720
      %2370 = vmatprep.subr.bf16.mxu0 0
      %2371 = vmatpush1.bf16.msra.mxu0 %v721
      %2372 = vmatprep.subr.bf16.mxu0 0
      %2373 = vmatpush1.bf16.msra.mxu0 %v722
      %2374 = vmatprep.subr.bf16.mxu0 0
      %2375 = vmatpush1.bf16.msra.mxu0 %v723
      %2376 = vmatprep.subr.bf16.mxu0 0
      %2377 = vmatpush1.bf16.msra.mxu0 0
      %2378 = vmatprep.subr.bf16.mxu0 0
      %2379 = vmatpush1.bf16.msra.mxu0 0
      %2380 = vmatprep.subr.bf16.mxu0 0
      %2381 = vmatpush1.bf16.msra.mxu0 0
      %2382 = vmatprep.subr.bf16.mxu0 0
      %2383 = vmatpush1.bf16.msra.mxu0 0
      %2384 = vmatprep.subr.bf16.mxu0 0
      %2385 = vmatpush1.bf16.msra.mxu0 0
      %2386 = vmatprep.subr.bf16.mxu0 0
      %2387 = vmatpush1.bf16.msra.mxu0 0
      %2388 = vmatprep.subr.bf16.mxu0 0
      %2389 = vmatpush1.bf16.msra.mxu0 0
      %2390 = vmatprep.subr.bf16.mxu0 0
      %2391 = vmatpush1.bf16.msra.mxu0 0
      %2392 = vmatprep.subr.bf16.mxu0 0
      %2393 = vmatpush1.bf16.msra.mxu0 0
      %2394 = vmatprep.subr.bf16.mxu0 0
      %2395 = vmatpush1.bf16.msra.mxu0 0
      %2396 = vmatprep.subr.bf16.mxu0 0
      %2397 = vmatpush1.bf16.msra.mxu0 0
      %2398 = vmatprep.subr.bf16.mxu0 0
      %2399 = vmatpush1.bf16.msra.mxu0 0
      %2400 = vmatprep.mubr.bf16.mxu0 0
      %2401 = vmatmul.mubr.bf16.gmra.mrb[0].mxu0 %v2366
      %v2402 = vpop.f32.mrb[0].mxu0
      %v2403 = vadd.f32 %v519, %v2402
      %v2404 = vpop.f32.mrb[0].mxu0
      %v2405 = vpop.f32.mrb[0].mxu0
      %v2406 = vpop.f32.mrb[0].mxu0
      %2407 = vdwg.mxu0
      %v2408 = vxor.u32 %v2403, 2147483648
      %v2409 = vmul.f32 %v2408, 1.442695
      %v2410 = vpow.pop %v2409
      %v2411 = vadd.f32 %v2410, 1.0
      %v2412 = vrcp.pop %v2411
      %v2413 = vmul.f32 1.0, %v2412
      %v2414 = vtanh.pop %v2403
      %v2415 = vmul.f32 %v2413, %v2190
      %2417 = vrot.lane.b32.xlu0 %v2414, 64
      %v2418 = vpop.permute.xlu0 %2417
      %v2420 = vmul.f32 %v2413, %v2418
      %2422 = vrot.lane.b32.xlu0 %v2420, 32
      %v2423 = vpop.permute.xlu0 %2422
      %v2425 = vadd.f32 %v2415, %v2423
      %v2426 = vtanh.pop %v2425
      %2428 = vrot.lane.b32.xlu0 %v2426, 64
      %v2429 = vpop.permute.xlu0 %2428
      %v2431 = vmul.f32 %v2413, %v2429
      %v2432 = vrot.slane %v1028, 6
      %v2434 = vrot.slane %v1263, 4
      %v2436 = vrot.slane %v1498, 2
      %v2438 = vrot.slane %v1961, 6
      %v2440 = vrot.slane %v2196, 4
      %v2443 = vrot.slane %v2431, 2
      %vm2445 = vcmask 1041408
      %v2446 = vsel %vm2445, %v794, %v2432
      %vm2447 = vcmask 1043456
      %v2448 = vsel %vm2447, %v2446, %v2434
      %vm2449 = vcmask 1045504
      %v2450 = vsel %vm2449, %v2448, %v2436
      %v2451 = vsel %vm2445, %v1727, %v2438
      %v2452 = vsel %vm2447, %v2451, %v2440
      %v2453 = vsel %vm2449, %v2452, %v2443
      %v2454 = vld [vmem:[%s388] sm:$0xff]
      %v2455 = vld [vmem:[%s388 + $0x8] sm:$0xff]
      %v2456 = vld [vmem:[%s388 + $0x10] sm:$0xff]
      %v2457 = vld [vmem:[%s388 + $0x18] sm:$0xff]
      %v2458 = vld [vmem:[%s391] sm:$0x1]
      %v2460 = vlaneseq
      %v2461 = vshrl.u32 %v2460, 7
      %v2462 = vsub.s32 0, %v2461
      %v2463 = vrot.slane %v2458, %v2462
      %2467 = vrot.lane.b32.xlu0 %v2450, 32
      %v2468 = vpop.permute.xlu0 %2467
      %2469 = vrot.lane.b32.xlu0 %v2453, 32
      %v2470 = vpop.permute.xlu0 %2469
      %v2471 = vsel %vm409, %v2468, 0
      %v2473 = vsel %vm409, %v2470, 0
      %2475 = vmatprep.subr.mxu0 0.0
      %2476 = vmatpush1.msra.mxu0 %v2454
      %2477 = vmatprep.subr.mxu0 0.0
      %2478 = vmatpush1.msra.mxu0 %v2455
      %2479 = vmatprep.subr.mxu0 0.0
      %2480 = vmatpush1.msra.mxu0 %v2456
      %2481 = vmatprep.subr.mxu0 0.0
      %2482 = vmatpush1.msra.mxu0 %v2457
      %2483 = vmatprep.subr.mxu0 0.0
      %2484 = vmatpush1.msra.mxu0 0.0
      %2485 = vmatprep.subr.mxu0 0.0
      %2486 = vmatpush1.msra.mxu0 0.0
      %2487 = vmatprep.subr.mxu0 0.0
      %2488 = vmatpush1.msra.mxu0 0.0
      %2489 = vmatprep.subr.mxu0 0.0
      %2490 = vmatpush1.msra.mxu0 0.0
      %2491 = vmatprep.subr.mxu0 0.0
      %2492 = vmatpush1.msra.mxu0 0.0
      %2493 = vmatprep.subr.mxu0 0.0
      %2494 = vmatpush1.msra.mxu0 0.0
      %2495 = vmatprep.subr.mxu0 0.0
      %2496 = vmatpush1.msra.mxu0 0.0
      %2497 = vmatprep.subr.mxu0 0.0
      %2498 = vmatpush1.msra.mxu0 0.0
      %2499 = vmatprep.subr.mxu0 0.0
      %2500 = vmatpush1.msra.mxu0 0.0
      %2501 = vmatprep.subr.mxu0 0.0
      %2502 = vmatpush1.msra.mxu0 0.0
      %2503 = vmatprep.subr.mxu0 0.0
      %2504 = vmatpush1.msra.mxu0 0.0
      %2505 = vmatprep.subr.mxu0 0.0
      %2506 = vmatpush1.msra.mxu0 0.0
      %2507 = vmatprep.subr.mxu0 0.0
      %2508 = vmatpush1.msra.mxu0 0.0
      %2509 = vmatprep.subr.mxu0 0.0
      %2510 = vmatpush1.msra.mxu0 0.0
      %2511 = vmatprep.subr.mxu0 0.0
      %2512 = vmatpush1.msra.mxu0 0.0
      %2513 = vmatprep.subr.mxu0 0.0
      %2514 = vmatpush1.msra.mxu0 0.0
      %2515 = vmatprep.subr.mxu0 0.0
      %2516 = vmatpush1.msra.mxu0 0.0
      %2517 = vmatprep.subr.mxu0 0.0
      %2518 = vmatpush1.msra.mxu0 0.0
      %2519 = vmatprep.subr.mxu0 0.0
      %2520 = vmatpush1.msra.mxu0 0.0
      %2521 = vmatprep.subr.mxu0 0.0
      %2522 = vmatpush1.msra.mxu0 0.0
      %2523 = vmatprep.subr.mxu0 0.0
      %2524 = vmatpush1.msra.mxu0 0.0
      %2525 = vmatprep.subr.mxu0 0.0
      %2526 = vmatpush1.msra.mxu0 0.0
      %2527 = vmatprep.subr.mxu0 0.0
      %2528 = vmatpush1.msra.mxu0 0.0
      %2529 = vmatprep.subr.mxu0 0.0
      %2530 = vmatpush1.msra.mxu0 0.0
      %2531 = vmatprep.subr.mxu0 0.0
      %2532 = vmatpush1.msra.mxu0 0.0
      %2533 = vmatprep.subr.mxu0 0.0
      %2534 = vmatpush1.msra.mxu0 0.0
      %2535 = vmatprep.subr.mxu0 0.0
      %2536 = vmatpush1.msra.mxu0 0.0
      %2537 = vmatprep.subr.mxu0 0.0
      %2538 = vmatpush1.msra.mxu0 0.0
      %2539 = vmatprep.mubr.f32.mxu0 0.0
      %2540 = vmatmul.mubr.f32.gmra.mrb[0].mxu0 %v2471
      %v2541 = vpop.f32.mrb[0].mxu0
      %v2542 = vadd.f32 %v2463, %v2541
      %v2543 = vpop.f32.mrb[0].mxu0
      %2544 = vmatprep.mubr.f32.mxu0 0.0
      %2545 = vmatmul.mubr.f32.gmra.mrb[0].mxu0 %v2473
      %v2546 = vpop.f32.mrb[0].mxu0
      %v2547 = vadd.f32 %v2463, %v2546
      %v2548 = vpop.f32.mrb[0].mxu0
      %2549 = vdwg.mxu0
      %s2550 = sld [smem:[#allocation3 + %s25]]
      %p2551 = scmp.eq.s32.totalorder %s2550, 1
      %v2552 = vxor.u32 %v2542, 2147483648
      %v2553 = vxor.u32 %v2547, 2147483648
      %v2554 = vmul.f32 %v2552, 1.442695
      %v2555 = vpow.pop %v2554
      %v2556 = vmul.f32 %v2553, 1.442695
      %v2557 = vpow.pop %v2556
      %v2558 = vadd.f32 %v2555, 1.0
      %v2559 = vadd.f32 %v2557, 1.0
      %v2560 = vrcp.pop %v2558
      %v2561 = vmul.f32 1.0, %v2560
      %v2562 = vrcp.pop %v2559
      %v2563 = vmul.f32 1.0, %v2562
      %v2564 = vmax.f32 %v2542, 0.0
      %v2565 = vmax.f32 %v2547, 0.0
      %s2566 = scalar_select %p2551, 1, 0
      %v2567 = vstv %s2566
      %vm2568 = vcmp.eq.s32.totalorder %v2567, 1
      %v2569 = vsel %vm2568, %v2561, %v2564
      %v2570 = vsel %vm2568, %v2563, %v2565
      %2571 = vst [vmem:[%s396] sm:$0xff] %v2569
      %2572 = vst [vmem:[%s396 + $0x8] sm:$0xff] %v2570
      %p2573 = scmp.lt.s32.totalorder %s25, 3
      %s2574 = scalar_select %p2573, %s25, 3
      %s2575 = smul.addr %s2574, 2
      %s2576 = smul.addr %s2575, 8
      %s2577 = scalar_lea.vmem %s8, %s2576
      // Predicated region
      $region49: #{pipeline.3} parent=47 // pred_check
        %p2578 = pneg %p225
      $region50: #{pipeline.3} parent=47 // pred_check_branch
        %2580 = sbr.rel (%p2578) target = $region52
      $region51: #{pipeline.3} parent=47 // pred_region
        _
      $region52: #{pipeline.3} parent=47 // pred_fallthru
        _
    $region48: #{pipeline.3} parent=5 // pred_fallthru
      _
    %p2581 = scmp.le.s32.totalorder 2, %s20
    // Predicated region
    $region53: #{pipeline.3} parent=5 // pred_check
      %p2582 = pneg %p2581
    $region54: #{pipeline.3} parent=5 // pred_check_branch
      %2584 = sbr.rel (%p2582) target = $region56
    $region55: #{pipeline.3} parent=5 // pred_region
      %s2585 = ssub.s32 %s20, 2
      // Predicated region
      $region57: #{pipeline.3} parent=55 // pred_check
        %p2586 = pneg %p231
      $region58: #{pipeline.3} parent=55 // pred_check_branch
        %2588 = sbr.rel (%p2586) target = $region60
      $region59: #{pipeline.3} parent=55 // pred_region
        %p2589 = scmp.lt.s32.totalorder %s26, 3
        %s2590 = scalar_select %p2589, %s26, 3
        %s2591 = smul.addr %s2590, 2
        %s2592 = smul.addr %s2591, 8
        %s2593 = scalar_lea.vmem %s8, %s2592
      $region60: #{pipeline.3} parent=55 // pred_fallthru
        _
    $region56: #{pipeline.3} parent=5 // pred_fallthru
      _
  $region6: #{pipeline.3} parent=0 // loop_footer
    %s24 = sadd.s32 1, %s20
  $region7: #{pipeline.3} parent=0 // loop_footer_branch
    %19 = sbr.rel target = $region3
  $region8: #{pipeline.3} parent=0 // loop_exit
    _

// kernel: pipeline.2
$region0: #{pipeline.2}
  #allocation0 [shape = 'u32[]', space=smem, size = 0x4, offset = 0x4, fixed_abs, tag = 'smem constant byte address 0x4 - core index']
  #allocation1 [shape = 'u32[144,128]{1,0:T(1,128)}', space=vmem, size = 0x12000, scoped, tag = 'internal scratch']
  #allocation2 [shape = 's32[1]{0}', space=sflag, size = 0x4, scoped, tag = 'scoped memory for pipeline.2']
  #allocation3 [shape = 'u8[512]{0}', space=smem, size = 0x200, scoped, tag = 'prefetched SMEM operand 0']
  %s0 = inlined_call_operand.vmem [shape: s32[2], index: 0, kind: input, shape index: {}]
  %s1 = inlined_call_operand.vmem [shape: f32[2,16,32], index: 1, kind: input, shape index: {}]
  %s2 = inlined_call_operand.hbm [shape: f32[2,32,128], index: 2, kind: input, shape index: {}]
  %s3 = inlined_call_operand.vmem [shape: bf16[2,32,128], index: 3, kind: input, shape index: {}]
  %s4 = inlined_call_operand.vmem [shape: bf16[2,2,64,128], index: 4, kind: input, shape index: {}]
  %s5 = inlined_call_operand.vmem [shape: f32[2,3,128], index: 5, kind: input, shape index: {}]
  %s6 = inlined_call_operand.vmem [shape: f32[2,32,128], index: 6, kind: input, shape index: {}]
  %s7 = inlined_call_operand.vmem [shape: f32[2,1,128], index: 7, kind: input, shape index: {}]
  %s8 = inlined_call_operand.vmem [shape: f32[2,16,128], index: 8, kind: output, shape index: {}]
  %s9 = sld [smem:[#allocation0]]
  $region65: #{pipeline.2} parent=0
    _
  %s11 = ssub.s32 1, %s9
  %s12 = scalar_select 0, %s11, %s9
  %s13 = sshll.u32 %s0, 4
  %s14 = int_to_ptr.vmem [resolvable:$true] %s13
  %16 = dma.vmem_to_smem %s14, 16, [#allocation3], [#allocation2]
  %17 = dma.done [#allocation2], 16
  %18 = sfence
  $region1: #{pipeline.2} parent=0
    #allocation4 [shape = 'u8[32768]{0}', space=vmem, size = 0x8000, scoped, tag = 'input window, operand 2']
    #allocation5 [shape = 's32[2]{0}', space=sflag, size = 0x8, scoped, tag = 'scoped memory for pipeline.2']
    %19 = vsyncpa [#allocation5], 0
    %s20 = scalar_lea.sflag [#allocation5], 1
    %21 = vsyncpa %s20, 0
    loop: start=0, step=1, limit=4
    $region2: #{pipeline.2} parent=1 // loop_pre_header
      _
    $region3: #{pipeline.2} parent=1 // loop_header
      %s23 = sphi 0, %s27
      %p24 = scmp.ge.s32.totalorder %s23, 4
      %s33 = sphi 0, %s35
      %s36 = sphi 0, %s33
      %s37 = sphi 0, %s36
      %s53 = sphi 0, %s37
      %s59 = sphi 0, %s61
      %s62 = sphi 0, %s59
      %s63 = sphi 0, %s62
      %s79 = sphi 0, %s63
      %s85 = sphi 0, %s87
      %s88 = sphi 0, %s85
      %s89 = sphi 0, %s88
      %s105 = sphi 0, %s89
      %s111 = sphi 0, %s113
      %s114 = sphi 0, %s111
      %s115 = sphi 0, %s114
      %s131 = sphi 0, %s115
      %s137 = sphi 0, %s139
      %s140 = sphi 0, %s137
      %s141 = sphi 0, %s140
      %s157 = sphi 0, %s141
      %s163 = sphi 0, %s165
      %s166 = sphi 0, %s163
      %s167 = sphi 0, %s166
      %s183 = sphi 0, %s167
      %s189 = sphi 0, %s191
      %s192 = sphi 0, %s189
      %s193 = sphi 0, %s192
      %s209 = sphi 0, %s193
      %s215 = sphi 0, %s217
      %s218 = sphi 0, %s215
      %s219 = sphi 0, %s218
      %s235 = sphi 0, %s219
    $region4: #{pipeline.2} parent=1 // loop_header_branch
      %26 = sbr.rel (%p24) target = $region8
    $region5: #{pipeline.2} parent=1 // loop_body
      %s28 = ssub.s32 %s23, 1
      %s29 = ssub.s32 %s23, 2
      %s30 = sadd.s32 %s23, 1
      %s31 = ssub.s32 %s23, %s30
      %p32 = scmp.eq.s32.totalorder %s31, 0
      %s34 = sadd.s32 %s33, 1
      %s35 = scalar_select %p32, %s33, %s34
      %p38 = pneg %p32
      %p39 = scmp.eq.s32.totalorder %s23, 1
      %p40 = por %p38, %p39
      %p41 = scmp.ne.s32.totalorder %s33, %s36
      %p42 = scmp.eq.s32.totalorder %s23, 0
      %p43 = por %p41, %p42
      %p44 = scmp.ne.s32.totalorder %s33, %s36
      %p45 = scmp.eq.s32.totalorder %s28, 1
      %p46 = por %p44, %p45
      %p47 = scmp.ne.s32.totalorder %s36, %s37
      %p48 = scmp.eq.s32.totalorder %s28, 0
      %p49 = por %p47, %p48
      %p50 = scmp.ne.s32.totalorder %s36, %s37
      %p51 = scmp.eq.s32.totalorder %s29, 1
      %p52 = por %p50, %p51
      %p54 = scmp.ne.s32.totalorder %s37, %s53
      %p55 = scmp.eq.s32.totalorder %s29, 0
      %p56 = por %p54, %p55
      %s57 = ssub.s32 %s23, %s30
      %p58 = scmp.eq.s32.totalorder %s57, 0
      %s60 = sadd.s32 %s59, 1
      %s61 = scalar_select %p58, %s59, %s60
      %p64 = pneg %p58
      %p65 = scmp.eq.s32.totalorder %s23, 1
      %p66 = por %p64, %p65
      %p67 = scmp.ne.s32.totalorder %s59, %s62
      %p68 = scmp.eq.s32.totalorder %s23, 0
      %p69 = por %p67, %p68
      %p70 = scmp.ne.s32.totalorder %s59, %s62
      %p71 = scmp.eq.s32.totalorder %s28, 1
      %p72 = por %p70, %p71
      %p73 = scmp.ne.s32.totalorder %s62, %s63
      %p74 = scmp.eq.s32.totalorder %s28, 0
      %p75 = por %p73, %p74
      %p76 = scmp.ne.s32.totalorder %s62, %s63
      %p77 = scmp.eq.s32.totalorder %s29, 1
      %p78 = por %p76, %p77
      %p80 = scmp.ne.s32.totalorder %s63, %s79
      %p81 = scmp.eq.s32.totalorder %s29, 0
      %p82 = por %p80, %p81
      %s83 = ssub.s32 %s23, %s30
      %p84 = scmp.eq.s32.totalorder %s83, 0
      %s86 = sadd.s32 %s85, 1
      %s87 = scalar_select %p84, %s85, %s86
      %p90 = pneg %p84
      %p91 = scmp.eq.s32.totalorder %s23, 1
      %p92 = por %p90, %p91
      %p93 = scmp.ne.s32.totalorder %s85, %s88
      %p94 = scmp.eq.s32.totalorder %s23, 0
      %p95 = por %p93, %p94
      %p96 = scmp.ne.s32.totalorder %s85, %s88
      %p97 = scmp.eq.s32.totalorder %s28, 1
      %p98 = por %p96, %p97
      %p99 = scmp.ne.s32.totalorder %s88, %s89
      %p100 = scmp.eq.s32.totalorder %s28, 0
      %p101 = por %p99, %p100
      %p102 = scmp.ne.s32.totalorder %s88, %s89
      %p103 = scmp.eq.s32.totalorder %s29, 1
      %p104 = por %p102, %p103
      %p106 = scmp.ne.s32.totalorder %s89, %s105
      %p107 = scmp.eq.s32.totalorder %s29, 0
      %p108 = por %p106, %p107
      %s109 = ssub.s32 %s23, %s30
      %p110 = scmp.eq.s32.totalorder %s109, 0
      %s112 = sadd.s32 %s111, 1
      %s113 = scalar_select %p110, %s111, %s112
      %p116 = pneg %p110
      %p117 = scmp.eq.s32.totalorder %s23, 1
      %p118 = por %p116, %p117
      %p119 = scmp.ne.s32.totalorder %s111, %s114
      %p120 = scmp.eq.s32.totalorder %s23, 0
      %p121 = por %p119, %p120
      %p122 = scmp.ne.s32.totalorder %s111, %s114
      %p123 = scmp.eq.s32.totalorder %s28, 1
      %p124 = por %p122, %p123
      %p125 = scmp.ne.s32.totalorder %s114, %s115
      %p126 = scmp.eq.s32.totalorder %s28, 0
      %p127 = por %p125, %p126
      %p128 = scmp.ne.s32.totalorder %s114, %s115
      %p129 = scmp.eq.s32.totalorder %s29, 1
      %p130 = por %p128, %p129
      %p132 = scmp.ne.s32.totalorder %s115, %s131
      %p133 = scmp.eq.s32.totalorder %s29, 0
      %p134 = por %p132, %p133
      %s135 = ssub.s32 %s23, %s30
      %p136 = scmp.eq.s32.totalorder %s135, 0
      %s138 = sadd.s32 %s137, 1
      %s139 = scalar_select %p136, %s137, %s138
      %p142 = pneg %p136
      %p143 = scmp.eq.s32.totalorder %s23, 1
      %p144 = por %p142, %p143
      %p145 = scmp.ne.s32.totalorder %s137, %s140
      %p146 = scmp.eq.s32.totalorder %s23, 0
      %p147 = por %p145, %p146
      %p148 = scmp.ne.s32.totalorder %s137, %s140
      %p149 = scmp.eq.s32.totalorder %s28, 1
      %p150 = por %p148, %p149
      %p151 = scmp.ne.s32.totalorder %s140, %s141
      %p152 = scmp.eq.s32.totalorder %s28, 0
      %p153 = por %p151, %p152
      %p154 = scmp.ne.s32.totalorder %s140, %s141
      %p155 = scmp.eq.s32.totalorder %s29, 1
      %p156 = por %p154, %p155
      %p158 = scmp.ne.s32.totalorder %s141, %s157
      %p159 = scmp.eq.s32.totalorder %s29, 0
      %p160 = por %p158, %p159
      %s161 = ssub.s32 %s23, %s30
      %p162 = scmp.eq.s32.totalorder %s161, 0
      %s164 = sadd.s32 %s163, 1
      %s165 = scalar_select %p162, %s163, %s164
      %p168 = pneg %p162
      %p169 = scmp.eq.s32.totalorder %s23, 1
      %p170 = por %p168, %p169
      %p171 = scmp.ne.s32.totalorder %s163, %s166
      %p172 = scmp.eq.s32.totalorder %s23, 0
      %p173 = por %p171, %p172
      %p174 = scmp.ne.s32.totalorder %s163, %s166
      %p175 = scmp.eq.s32.totalorder %s28, 1
      %p176 = por %p174, %p175
      %p177 = scmp.ne.s32.totalorder %s166, %s167
      %p178 = scmp.eq.s32.totalorder %s28, 0
      %p179 = por %p177, %p178
      %p180 = scmp.ne.s32.totalorder %s166, %s167
      %p181 = scmp.eq.s32.totalorder %s29, 1
      %p182 = por %p180, %p181
      %p184 = scmp.ne.s32.totalorder %s167, %s183
      %p185 = scmp.eq.s32.totalorder %s29, 0
      %p186 = por %p184, %p185
      %s187 = ssub.s32 %s23, %s30
      %p188 = scmp.eq.s32.totalorder %s187, 0
      %s190 = sadd.s32 %s189, 1
      %s191 = scalar_select %p188, %s189, %s190
      %p194 = pneg %p188
      %p195 = scmp.eq.s32.totalorder %s23, 1
      %p196 = por %p194, %p195
      %p197 = scmp.ne.s32.totalorder %s189, %s192
      %p198 = scmp.eq.s32.totalorder %s23, 0
      %p199 = por %p197, %p198
      %p200 = scmp.ne.s32.totalorder %s189, %s192
      %p201 = scmp.eq.s32.totalorder %s28, 1
      %p202 = por %p200, %p201
      %p203 = scmp.ne.s32.totalorder %s192, %s193
      %p204 = scmp.eq.s32.totalorder %s28, 0
      %p205 = por %p203, %p204
      %p206 = scmp.ne.s32.totalorder %s192, %s193
      %p207 = scmp.eq.s32.totalorder %s29, 1
      %p208 = por %p206, %p207
      %p210 = scmp.ne.s32.totalorder %s193, %s209
      %p211 = scmp.eq.s32.totalorder %s29, 0
      %p212 = por %p210, %p211
      %s213 = ssub.s32 %s23, %s30
      %p214 = scmp.eq.s32.totalorder %s213, 0
      %s216 = sadd.s32 %s215, 1
      %s217 = scalar_select %p214, %s215, %s216
      %p220 = pneg %p214
      %p221 = scmp.eq.s32.totalorder %s23, 1
      %p222 = por %p220, %p221
      %p223 = scmp.ne.s32.totalorder %s215, %s218
      %p224 = scmp.eq.s32.totalorder %s23, 0
      %p225 = por %p223, %p224
      %p226 = scmp.ne.s32.totalorder %s215, %s218
      %p227 = scmp.eq.s32.totalorder %s28, 1
      %p228 = por %p226, %p227
      %p229 = scmp.ne.s32.totalorder %s218, %s219
      %p230 = scmp.eq.s32.totalorder %s28, 0
      %p231 = por %p229, %p230
      %p232 = scmp.ne.s32.totalorder %s218, %s219
      %p233 = scmp.eq.s32.totalorder %s29, 1
      %p234 = por %p232, %p233
      %p236 = scmp.ne.s32.totalorder %s219, %s235
      %p237 = scmp.eq.s32.totalorder %s29, 0
      %p238 = por %p236, %p237
      %p239 = scmp.le.s32.totalorder 1, %s23
      %p240 = scmp.lt.s32.totalorder %s23, 3
      %p241 = pnand %p239, %p240
      %p242 = pneg %p241
      // Predicated region
      $region9: #{pipeline.2} parent=5 // pred_check
        _
      $region10: #{pipeline.2} parent=5 // pred_check_branch
        %244 = sbr.rel (%p241) target = $region12
      $region11: #{pipeline.2} parent=5 // pred_region
        %s245 = ssub.s32 %s23, 1
      $region12: #{pipeline.2} parent=5 // pred_fallthru
        _
      %p246 = scmp.lt.s32.totalorder %s23, 2
      // Predicated region
      $region13: #{pipeline.2} parent=5 // pred_check
        %p247 = pneg %p246
      $region14: #{pipeline.2} parent=5 // pred_check_branch
        %249 = sbr.rel (%p247) target = $region16
      $region15: #{pipeline.2} parent=5 // pred_region
        // Predicated region
        $region17: #{pipeline.2} parent=15 // pred_check
          %p250 = pneg %p43
        $region18: #{pipeline.2} parent=15 // pred_check_branch
          %252 = sbr.rel (%p250) target = $region20
        $region19: #{pipeline.2} parent=15 // pred_region
          %p253 = scmp.lt.s32.totalorder %s23, 1
          %s254 = scalar_select %p253, %s23, 1
          %s255 = smul.addr %s254, 2
          %s256 = smul.addr %s255, 8
          %s257 = scalar_lea.vmem %s1, %s256
        $region20: #{pipeline.2} parent=15 // pred_fallthru
          _
        // Predicated region
        $region21: #{pipeline.2} parent=15 // pred_check
          %p258 = pneg %p69
        $region22: #{pipeline.2} parent=15 // pred_check_branch
          %260 = sbr.rel (%p258) target = $region24
        $region23: #{pipeline.2} parent=15 // pred_region
          %s261 = sand.u32 %s59, 1
          %s262 = scalar_lea.sflag [#allocation5], %s261
          %s263 = sand.u32 %s59, 1
          %s264 = smul.addr %s263, 32
          %s265 = scalar_lea.vmem [#allocation4], %s264
          %s267 = ssub.s32 512, 512
          %268 = vsyncadd %s262, %s267
          %s269 = smul.addr %s23, 4
          %s270 = smul.addr %s269, 128
          %s271 = scalar_lea.hbm %s2, %s270
          %s272 = sshll.u32 %s265, 4
          %s273 = int_to_ptr.vmem [resolvable:$true] %s272
          %278 = dma.hbm_to_vmem [thread:$0]  %s271, 512, %s273, %s262, 128, 128, 8
        $region24: #{pipeline.2} parent=15 // pred_fallthru
          _
        // Predicated region
        $region25: #{pipeline.2} parent=15 // pred_check
          %p279 = pneg %p95
        $region26: #{pipeline.2} parent=15 // pred_check_branch
          %281 = sbr.rel (%p279) target = $region28
        $region27: #{pipeline.2} parent=15 // pred_region
          %p282 = scmp.lt.s32.totalorder %s23, 1
          %s283 = scalar_select %p282, %s23, 1
          %s284 = smul.addr %s283, 4
          %s285 = smul.addr %s284, 4
          %s286 = scalar_lea.vmem %s3, %s285
        $region28: #{pipeline.2} parent=15 // pred_fallthru
          _
        // Predicated region
        $region29: #{pipeline.2} parent=15 // pred_check
          %p287 = pneg %p121
        $region30: #{pipeline.2} parent=15 // pred_check_branch
          %289 = sbr.rel (%p287) target = $region32
        $region31: #{pipeline.2} parent=15 // pred_region
          %p290 = scmp.lt.s32.totalorder %s23, 1
          %s291 = scalar_select %p290, %s23, 1
          %s292 = smul.addr %s291, 16
          %s293 = smul.addr %s292, 4
          %s294 = scalar_lea.vmem %s4, %s293
        $region32: #{pipeline.2} parent=15 // pred_fallthru
          _
        // Predicated region
        $region33: #{pipeline.2} parent=15 // pred_check
          %p295 = pneg %p147
        $region34: #{pipeline.2} parent=15 // pred_check_branch
          %297 = sbr.rel (%p295) target = $region36
        $region35: #{pipeline.2} parent=15 // pred_region
          %p298 = scmp.lt.s32.totalorder %s23, 1
          %s299 = scalar_select %p298, %s23, 1
          %s300 = smul.addr %s299, 4
          %s301 = scalar_lea.vmem %s5, %s300
        $region36: #{pipeline.2} parent=15 // pred_fallthru
          _
        // Predicated region
        $region37: #{pipeline.2} parent=15 // pred_check
          %p302 = pneg %p173
        $region38: #{pipeline.2} parent=15 // pred_check_branch
          %304 = sbr.rel (%p302) target = $region40
        $region39: #{pipeline.2} parent=15 // pred_region
          %p305 = scmp.lt.s32.totalorder %s23, 1
          %s306 = scalar_select %p305, %s23, 1
          %s307 = smul.addr %s306, 4
          %s308 = smul.addr %s307, 8
          %s309 = scalar_lea.vmem %s6, %s308
        $region40: #{pipeline.2} parent=15 // pred_fallthru
          _
        // Predicated region
        $region41: #{pipeline.2} parent=15 // pred_check
          %p310 = pneg %p199
        $region42: #{pipeline.2} parent=15 // pred_check_branch
          %312 = sbr.rel (%p310) target = $region44
        $region43: #{pipeline.2} parent=15 // pred_region
          %p313 = scmp.lt.s32.totalorder %s23, 1
          %s314 = scalar_select %p313, %s23, 1
          %s315 = scalar_lea.vmem %s7, %s314
        $region44: #{pipeline.2} parent=15 // pred_fallthru
          _
      $region16: #{pipeline.2} parent=5 // pred_fallthru
        _
      %p316 = scmp.le.s32.totalorder 1, %s23
      %p317 = scmp.lt.s32.totalorder %s23, 3
      %p318 = pnand %p316, %p317
      %p319 = pneg %p318
      // Predicated region
      $region45: #{pipeline.2} parent=5 // pred_check
        _
      $region46: #{pipeline.2} parent=5 // pred_check_branch
        %321 = sbr.rel (%p318) target = $region48
      $region47: #{pipeline.2} parent=5 // pred_region
        %s322 = ssub.s32 %s23, 1
        %s323 = sand.u32 %s62, 1
        %s324 = scalar_lea.sflag [#allocation5], %s323
        %s325 = sand.u32 %s62, 1
        %s326 = smul.addr %s325, 32
        %s327 = scalar_lea.vmem [#allocation4], %s326
        // Predicated region
        $region49: #{pipeline.2} parent=47 // pred_check
          %p328 = pneg %p75
        $region50: #{pipeline.2} parent=47 // pred_check_branch
          %330 = sbr.rel (%p328) target = $region52
        $region51: #{pipeline.2} parent=47 // pred_region
          %331 = dma.done %s324, 512
        $region52: #{pipeline.2} parent=47 // pred_fallthru
          _
        %p332 = scmp.lt.s32.totalorder %s28, 1
        %s333 = scalar_select %p332, %s28, 1
        %s334 = smul.addr %s333, 2
        %s335 = smul.addr %s334, 8
        %s336 = scalar_lea.vmem %s1, %s335
        %p337 = pneg %p49
        %p338 = pneg %p46
        %s339 = sand.u32 %s62, 1
        %s340 = scalar_lea.sflag [#allocation5], %s339
        %s341 = sand.u32 %s62, 1
        %s342 = smul.addr %s341, 32
        %s343 = scalar_lea.vmem [#allocation4], %s342
        %p344 = pneg %p75
        %p345 = pneg %p72
        %p346 = scmp.lt.s32.totalorder %s28, 1
        %s347 = scalar_select %p346, %s28, 1
        %s348 = smul.addr %s347, 4
        %s349 = smul.addr %s348, 4
        %s350 = scalar_lea.vmem %s3, %s349
        %p351 = pneg %p101
        %p352 = pneg %p98
        %p353 = scmp.lt.s32.totalorder %s28, 1
        %s354 = scalar_select %p353, %s28, 1
        %s355 = smul.addr %s354, 16
        %s356 = smul.addr %s355, 4
        %s357 = scalar_lea.vmem %s4, %s356
        %p358 = pneg %p127
        %p359 = pneg %p124
        %p360 = scmp.lt.s32.totalorder %s28, 1
        %s361 = scalar_select %p360, %s28, 1
        %s362 = smul.addr %s361, 4
        %s363 = scalar_lea.vmem %s5, %s362
        %p364 = pneg %p153
        %p365 = pneg %p150
        %p366 = scmp.lt.s32.totalorder %s28, 1
        %s367 = scalar_select %p366, %s28, 1
        %s368 = smul.addr %s367, 4
        %s369 = smul.addr %s368, 8
        %s370 = scalar_lea.vmem %s6, %s369
        %p371 = pneg %p179
        %p372 = pneg %p176
        %p373 = scmp.lt.s32.totalorder %s28, 1
        %s374 = scalar_select %p373, %s28, 1
        %s375 = scalar_lea.vmem %s7, %s374
        %p376 = pneg %p205
        %p377 = pneg %p202
        %p378 = pneg %p231
        %p379 = pneg %p228
        %p380 = scmp.lt.s32.totalorder %s28, 1
        %s381 = scalar_select %p380, %s28, 1
        %s382 = smul.addr %s381, 2
        %s383 = smul.addr %s382, 8
        %s384 = scalar_lea.vmem %s8, %s383
        %p385 = scmp.lt.s32.totalorder %s28, 1
        %s386 = scalar_select %p385, %s28, 1
        %s387 = smul.addr %s386, 2
        %s388 = smul.addr %s387, 8
        %s389 = scalar_lea.vmem %s1, %s388
        %p390 = scmp.lt.s32.totalorder %s28, 1
        %s391 = scalar_select %p390, %s28, 1
        %s392 = smul.addr %s391, 4
        %s393 = smul.addr %s392, 4
        %s394 = scalar_lea.vmem %s3, %s393
        %p395 = scmp.lt.s32.totalorder %s28, 1
        %s396 = scalar_select %p395, %s28, 1
        %s397 = smul.addr %s396, 16
        %s398 = smul.addr %s397, 4
        %s399 = scalar_lea.vmem %s4, %s398
        %p400 = scmp.lt.s32.totalorder %s28, 1
        %s401 = scalar_select %p400, %s28, 1
        %s402 = smul.addr %s401, 4
        %s403 = scalar_lea.vmem %s5, %s402
        %p404 = scmp.lt.s32.totalorder %s28, 1
        %s405 = scalar_select %p404, %s28, 1
        %s406 = smul.addr %s405, 4
        %s407 = smul.addr %s406, 8
        %s408 = scalar_lea.vmem %s6, %s407
        %p409 = scmp.lt.s32.totalorder %s28, 1
        %s410 = scalar_select %p409, %s28, 1
        %s411 = scalar_lea.vmem %s7, %s410
        %p412 = scmp.lt.s32.totalorder %s28, 1
        %s413 = scalar_select %p412, %s28, 1
        %s414 = smul.addr %s413, 2
        %s415 = smul.addr %s414, 8
        %s416 = scalar_lea.vmem %s8, %s415
        %v418 = vld [vmem:[%s403] sm:$0x7]
        %v419 = vld [vmem:[%s389] sm:$0xff]
        %v420 = vld [vmem:[%s389 + $0x8] sm:$0xff]
        %v421 = vld [vmem:[%s327] sm:$0xff]
        %v422 = vld [vmem:[%s327 + $0x8] sm:$0xff]
        %v423 = vld [vmem:[%s327 + $0x10] sm:$0xff]
        %v424 = vld [vmem:[%s327 + $0x18] sm:$0xff]
        %v425 = vlaneseq
        %v426 = vshrl.u32 %v425, 7
        %v427 = vsub.s32 0, %v426
        %v428 = vrot.slane %v418, %v427
        %vm429 = vcmask 261120
        %v431 = vsel %vm429, %v419, 0
        %v434 = vsel %vm429, %v420, 0
        %436 = vmatprep.subr.mxu0 0.0
        %437 = vmatpush1.msra.mxu0 %v421
        %438 = vmatprep.subr.mxu0 0.0
        %439 = vmatpush1.msra.mxu0 %v422
        %440 = vmatprep.subr.mxu0 0.0
        %441 = vmatpush1.msra.mxu0 %v423
        %442 = vmatprep.subr.mxu0 0.0
        %443 = vmatpush1.msra.mxu0 %v424
        %444 = vmatprep.subr.mxu0 0.0
        %445 = vmatpush1.msra.mxu0 0.0
        %446 = vmatprep.subr.mxu0 0.0
        %447 = vmatpush1.msra.mxu0 0.0
        %448 = vmatprep.subr.mxu0 0.0
        %449 = vmatpush1.msra.mxu0 0.0
        %450 = vmatprep.subr.mxu0 0.0
        %451 = vmatpush1.msra.mxu0 0.0
        %452 = vmatprep.subr.mxu0 0.0
        %453 = vmatpush1.msra.mxu0 0.0
        %454 = vmatprep.subr.mxu0 0.0
        %455 = vmatpush1.msra.mxu0 0.0
        %456 = vmatprep.subr.mxu0 0.0
        %457 = vmatpush1.msra.mxu0 0.0
        %458 = vmatprep.subr.mxu0 0.0
        %459 = vmatpush1.msra.mxu0 0.0
        %460 = vmatprep.subr.mxu0 0.0
        %461 = vmatpush1.msra.mxu0 0.0
        %462 = vmatprep.subr.mxu0 0.0
        %463 = vmatpush1.msra.mxu0 0.0
        %464 = vmatprep.subr.mxu0 0.0
        %465 = vmatpush1.msra.mxu0 0.0
        %466 = vmatprep.subr.mxu0 0.0
        %467 = vmatpush1.msra.mxu0 0.0
        %468 = vmatprep.subr.mxu0 0.0
        %469 = vmatpush1.msra.mxu0 0.0
        %470 = vmatprep.subr.mxu0 0.0
        %471 = vmatpush1.msra.mxu0 0.0
        %472 = vmatprep.subr.mxu0 0.0
        %473 = vmatpush1.msra.mxu0 0.0
        %474 = vmatprep.subr.mxu0 0.0
        %475 = vmatpush1.msra.mxu0 0.0
        %476 = vmatprep.subr.mxu0 0.0
        %477 = vmatpush1.msra.mxu0 0.0
        %478 = vmatprep.subr.mxu0 0.0
        %479 = vmatpush1.msra.mxu0 0.0
        %480 = vmatprep.subr.mxu0 0.0
        %481 = vmatpush1.msra.mxu0 0.0
        %482 = vmatprep.subr.mxu0 0.0
        %483 = vmatpush1.msra.mxu0 0.0
        %484 = vmatprep.subr.mxu0 0.0
        %485 = vmatpush1.msra.mxu0 0.0
        %486 = vmatprep.subr.mxu0 0.0
        %487 = vmatpush1.msra.mxu0 0.0
        %488 = vmatprep.subr.mxu0 0.0
        %489 = vmatpush1.msra.mxu0 0.0
        %490 = vmatprep.subr.mxu0 0.0
        %491 = vmatpush1.msra.mxu0 0.0
        %492 = vmatprep.subr.mxu0 0.0
        %493 = vmatpush1.msra.mxu0 0.0
        %494 = vmatprep.subr.mxu0 0.0
        %495 = vmatpush1.msra.mxu0 0.0
        %496 = vmatprep.subr.mxu0 0.0
        %497 = vmatpush1.msra.mxu0 0.0
        %498 = vmatprep.subr.mxu0 0.0
        %499 = vmatpush1.msra.mxu0 0.0
        %500 = vmatprep.mubr.f32.mxu0 0.0
        %501 = vmatmul.mubr.f32.gmra.mrb[0].mxu0 %v431
        %v502 = vpop.f32.mrb[0].mxu0
        %v503 = vadd.f32 %v428, %v502
        %v504 = vpop.f32.mrb[0].mxu0
        %505 = vmatprep.mubr.f32.mxu0 0.0
        %506 = vmatmul.mubr.f32.gmra.mrb[0].mxu0 %v434
        %v507 = vpop.f32.mrb[0].mxu0
        %v508 = vadd.f32 %v428, %v507
        %v509 = vpop.f32.mrb[0].mxu0
        %510 = vdwg.mxu0
        %v511 = vld [vmem:[%s394] sm:$0xf]
        %v512 = vld [vmem:[%s394 + $0x4] sm:$0xf]
        %v513 = vld [vmem:[%s394 + $0x8] sm:$0xf]
        %v514 = vld [vmem:[%s394 + $0xc] sm:$0xf]
        %v515 = vld [vmem:[%s399] sm:$0xf]
        %v516 = vld [vmem:[%s399 + $0x4] sm:$0xf]
        %v517 = vld [vmem:[%s399 + $0x8] sm:$0xf]
        %v518 = vld [vmem:[%s399 + $0xc] sm:$0xf]
        %v519 = vld [vmem:[%s399 + $0x10] sm:$0xf]
        %v520 = vld [vmem:[%s399 + $0x14] sm:$0xf]
        %v521 = vld [vmem:[%s399 + $0x18] sm:$0xf]
        %v522 = vld [vmem:[%s399 + $0x1c] sm:$0xf]
        %s523 = scalar_lea.vmem %s399, 32
        %v524 = vld [vmem:[%s523] sm:$0xf]
        %v525 = vld [vmem:[%s523 + $0x4] sm:$0xf]
        %v526 = vld [vmem:[%s523 + $0x8] sm:$0xf]
        %v527 = vld [vmem:[%s523 + $0xc] sm:$0xf]
        %v528 = vld [vmem:[%s523 + $0x10] sm:$0xf]
        %v529 = vld [vmem:[%s523 + $0x14] sm:$0xf]
        %v530 = vld [vmem:[%s523 + $0x18] sm:$0xf]
        %v531 = vld [vmem:[%s523 + $0x1c] sm:$0xf]
        %v532 = vlaneseq
        %v533 = vshrl.u32 %v532, 7
        %v534 = vsub.s32 1, %v533
        %v535 = vrot.slane %v418, %v534
        %v536 = vlaneseq
        %v537 = vshrl.u32 %v536, 7
        %v538 = vsub.s32 2, %v537
        %v539 = vrot.slane %v418, %v538
        %v544 = vunpack.c.l.b16 %v511
        %v545 = vunpack.c.l.b16 %v512
        %v546 = vunpack.c.l.b16 %v513
        %v547 = vunpack.c.l.b16 %v514
        %v548 = vpack.c.b16 %v545, %v544
        %v549 = vpack.c.b16 %v547, %v546
        %v553 = vsel %vm429, 0, 0
        %555 = vmatprep.subr.bf16.mxu0 0
        %556 = vmatpush1.bf16.msra.mxu0 %v548
        %557 = vmatprep.subr.bf16.mxu0 0
        %558 = vmatpush1.bf16.msra.mxu0 %v549
        %559 = vmatprep.subr.bf16.mxu0 0
        %560 = vmatpush1.bf16.msra.mxu0 0
        %561 = vmatprep.subr.bf16.mxu0 0
        %562 = vmatpush1.bf16.msra.mxu0 0
        %563 = vmatprep.subr.bf16.mxu0 0
        %564 = vmatpush1.bf16.msra.mxu0 0
        %565 = vmatprep.subr.bf16.mxu0 0
        %566 = vmatpush1.bf16.msra.mxu0 0
        %567 = vmatprep.subr.bf16.mxu0 0
        %568 = vmatpush1.bf16.msra.mxu0 0
        %569 = vmatprep.subr.bf16.mxu0 0
        %570 = vmatpush1.bf16.msra.mxu0 0
        %571 = vmatprep.subr.bf16.mxu0 0
        %572 = vmatpush1.bf16.msra.mxu0 0
        %573 = vmatprep.subr.bf16.mxu0 0
        %574 = vmatpush1.bf16.msra.mxu0 0
        %575 = vmatprep.subr.bf16.mxu0 0
        %576 = vmatpush1.bf16.msra.mxu0 0
        %577 = vmatprep.subr.bf16.mxu0 0
        %578 = vmatpush1.bf16.msra.mxu0 0
        %579 = vmatprep.subr.bf16.mxu0 0
        %580 = vmatpush1.bf16.msra.mxu0 0
        %581 = vmatprep.subr.bf16.mxu0 0
        %582 = vmatpush1.bf16.msra.mxu0 0
        %583 = vmatprep.subr.bf16.mxu0 0
        %584 = vmatpush1.bf16.msra.mxu0 0
        %585 = vmatprep.subr.bf16.mxu0 0
        %586 = vmatpush1.bf16.msra.mxu0 0
        %587 = vmatprep.mubr.bf16.mxu0 0
        %588 = vmatmul.mubr.bf16.gmra.mrb[0].mxu0 %v553
        %v589 = vpop.f32.mrb[0].mxu0
        %v590 = vadd.f32 0.0, %v589
        %v591 = vpop.f32.mrb[0].mxu0
        %v592 = vpop.f32.mrb[0].mxu0
        %v593 = vpop.f32.mrb[0].mxu0
        %594 = vdwg.mxu0
        %v595 = vadd.f32 %v503, %v590
        %v596 = vxor.u32 %v595, 2147483648
        %v597 = vmul.f32 %v596, 1.442695
        %v598 = vpow.pop %v597
        %v599 = vadd.f32 %v598, 1.0
        %v600 = vrcp.pop %v599
        %v601 = vmul.f32 1.0, %v600
        %v602 = vtanh.pop %v595
        %v603 = vmul.f32 %v601, 0.0
        %605 = vrot.lane.b32.xlu0 %v602, 64
        %v606 = vpop.permute.xlu0 %605
        %v608 = vmul.f32 %v601, %v606
        %610 = vrot.lane.b32.xlu0 %v608, 32
        %v611 = vpop.permute.xlu0 %610
        %v613 = vadd.f32 %v603, %v611
        %v614 = vtanh.pop %v613
        %616 = vrot.lane.b32.xlu0 %v614, 64
        %v617 = vpop.permute.xlu0 %616
        %v619 = vmul.f32 %v601, %v617
        %621 = vrot.lane.b32.xlu0 %v619, 32
        %v622 = vpop.permute.xlu0 %621
        %v624 = vsel %vm429, %v622, 0.0
        %v625 = vpack.c.bf16 %v624, %v624
        %v634 = vunpack.c.l.b16 %v515
        %v635 = vunpack.c.l.b16 %v516
        %v636 = vunpack.c.l.b16 %v517
        %v637 = vunpack.c.l.b16 %v518
        %v638 = vunpack.c.l.b16 %v519
        %v639 = vunpack.c.l.b16 %v520
        %v640 = vunpack.c.l.b16 %v521
        %v641 = vunpack.c.l.b16 %v522
        %v642 = vpack.c.b16 %v635, %v634
        %v643 = vpack.c.b16 %v637, %v636
        %v644 = vpack.c.b16 %v639, %v638
        %v645 = vpack.c.b16 %v641, %v640
        %vm650 = vcmask 523264
        %v652 = vsel %vm650, %v625, 0
        %654 = vmatprep.subr.bf16.mxu0 0
        %655 = vmatpush1.bf16.msra.mxu0 %v642
        %656 = vmatprep.subr.bf16.mxu0 0
        %657 = vmatpush1.bf16.msra.mxu0 %v643
        %658 = vmatprep.subr.bf16.mxu0 0
        %659 = vmatpush1.bf16.msra.mxu0 %v644
        %660 = vmatprep.subr.bf16.mxu0 0
        %661 = vmatpush1.bf16.msra.mxu0 %v645
        %662 = vmatprep.subr.bf16.mxu0 0
        %663 = vmatpush1.bf16.msra.mxu0 0
        %664 = vmatprep.subr.bf16.mxu0 0
        %665 = vmatpush1.bf16.msra.mxu0 0
        %666 = vmatprep.subr.bf16.mxu0 0
        %667 = vmatpush1.bf16.msra.mxu0 0
        %668 = vmatprep.subr.bf16.mxu0 0
        %669 = vmatpush1.bf16.msra.mxu0 0
        %670 = vmatprep.subr.bf16.mxu0 0
        %671 = vmatpush1.bf16.msra.mxu0 0
        %672 = vmatprep.subr.bf16.mxu0 0
        %673 = vmatpush1.bf16.msra.mxu0 0
        %674 = vmatprep.subr.bf16.mxu0 0
        %675 = vmatpush1.bf16.msra.mxu0 0
        %676 = vmatprep.subr.bf16.mxu0 0
        %677 = vmatpush1.bf16.msra.mxu0 0
        %678 = vmatprep.subr.bf16.mxu0 0
        %679 = vmatpush1.bf16.msra.mxu0 0
        %680 = vmatprep.subr.bf16.mxu0 0
        %681 = vmatpush1.bf16.msra.mxu0 0
        %682 = vmatprep.subr.bf16.mxu0 0
        %683 = vmatpush1.bf16.msra.mxu0 0
        %684 = vmatprep.subr.bf16.mxu0 0
        %685 = vmatpush1.bf16.msra.mxu0 0
        %686 = vmatprep.mubr.bf16.mxu0 0
        %687 = vmatmul.mubr.bf16.gmra.mrb[0].mxu0 %v652
        %v688 = vpop.f32.mrb[0].mxu0
        %v689 = vadd.f32 %v535, %v688
        %v690 = vpop.f32.mrb[0].mxu0
        %v691 = vpop.f32.mrb[0].mxu0
        %v692 = vpop.f32.mrb[0].mxu0
        %693 = vdwg.mxu0
        %v694 = vxor.u32 %v689, 2147483648
        %v695 = vmul.f32 %v694, 1.442695
        %v696 = vpow.pop %v695
        %v697 = vadd.f32 %v696, 1.0
        %v698 = vrcp.pop %v697
        %v699 = vmul.f32 1.0, %v698
        %v700 = vtanh.pop %v689
        %v701 = vmul.f32 %v699, 0.0
        %703 = vrot.lane.b32.xlu0 %v700, 64
        %v704 = vpop.permute.xlu0 %703
        %v706 = vmul.f32 %v699, %v704
        %708 = vrot.lane.b32.xlu0 %v706, 32
        %v709 = vpop.permute.xlu0 %708
        %v711 = vadd.f32 %v701, %v709
        %v712 = vtanh.pop %v711
        %714 = vrot.lane.b32.xlu0 %v712, 64
        %v715 = vpop.permute.xlu0 %714
        %v717 = vmul.f32 %v699, %v715
        %719 = vrot.lane.b32.xlu0 %v717, 32
        %v720 = vpop.permute.xlu0 %719
        %v722 = vsel %vm429, %v720, 0.0
        %v723 = vpack.c.bf16 %v722, %v722
        %v732 = vunpack.c.l.b16 %v524
        %v733 = vunpack.c.l.b16 %v525
        %v734 = vunpack.c.l.b16 %v526
        %v735 = vunpack.c.l.b16 %v527
        %v736 = vunpack.c.l.b16 %v528
        %v737 = vunpack.c.l.b16 %v529
        %v738 = vunpack.c.l.b16 %v530
        %v739 = vunpack.c.l.b16 %v531
        %v740 = vpack.c.b16 %v733, %v732
        %v741 = vpack.c.b16 %v735, %v734
        %v742 = vpack.c.b16 %v737, %v736
        %v743 = vpack.c.b16 %v739, %v738
        %v749 = vsel %vm650, %v723, 0
        %751 = vmatprep.subr.bf16.mxu0 0
        %752 = vmatpush1.bf16.msra.mxu0 %v740
        %753 = vmatprep.subr.bf16.mxu0 0
        %754 = vmatpush1.bf16.msra.mxu0 %v741
        %755 = vmatprep.subr.bf16.mxu0 0
        %756 = vmatpush1.bf16.msra.mxu0 %v742
        %757 = vmatprep.subr.bf16.mxu0 0
        %758 = vmatpush1.bf16.msra.mxu0 %v743
        %759 = vmatprep.subr.bf16.mxu0 0
        %760 = vmatpush1.bf16.msra.mxu0 0
        %761 = vmatprep.subr.bf16.mxu0 0
        %762 = vmatpush1.bf16.msra.mxu0 0
        %763 = vmatprep.subr.bf16.mxu0 0
        %764 = vmatpush1.bf16.msra.mxu0 0
        %765 = vmatprep.subr.bf16.mxu0 0
        %766 = vmatpush1.bf16.msra.mxu0 0
        %767 = vmatprep.subr.bf16.mxu0 0
        %768 = vmatpush1.bf16.msra.mxu0 0
        %769 = vmatprep.subr.bf16.mxu0 0
        %770 = vmatpush1.bf16.msra.mxu0 0
        %771 = vmatprep.subr.bf16.mxu0 0
        %772 = vmatpush1.bf16.msra.mxu0 0
        %773 = vmatprep.subr.bf16.mxu0 0
        %774 = vmatpush1.bf16.msra.mxu0 0
        %775 = vmatprep.subr.bf16.mxu0 0
        %776 = vmatpush1.bf16.msra.mxu0 0
        %777 = vmatprep.subr.bf16.mxu0 0
        %778 = vmatpush1.bf16.msra.mxu0 0
        %779 = vmatprep.subr.bf16.mxu0 0
        %780 = vmatpush1.bf16.msra.mxu0 0
        %781 = vmatprep.subr.bf16.mxu0 0
        %782 = vmatpush1.bf16.msra.mxu0 0
        %783 = vmatprep.mubr.bf16.mxu0 0
        %784 = vmatmul.mubr.bf16.gmra.mrb[0].mxu0 %v749
        %v785 = vpop.f32.mrb[0].mxu0
        %v786 = vadd.f32 %v539, %v785
        %v787 = vpop.f32.mrb[0].mxu0
        %v788 = vpop.f32.mrb[0].mxu0
        %v789 = vpop.f32.mrb[0].mxu0
        %790 = vdwg.mxu0
        %v791 = vxor.u32 %v786, 2147483648
        %v792 = vmul.f32 %v791, 1.442695
        %v793 = vpow.pop %v792
        %v794 = vadd.f32 %v793, 1.0
        %v795 = vrcp.pop %v794
        %v796 = vmul.f32 1.0, %v795
        %v797 = vtanh.pop %v786
        %v798 = vmul.f32 %v796, 0.0
        %800 = vrot.lane.b32.xlu0 %v797, 64
        %v801 = vpop.permute.xlu0 %800
        %v803 = vmul.f32 %v796, %v801
        %805 = vrot.lane.b32.xlu0 %v803, 32
        %v806 = vpop.permute.xlu0 %805
        %v808 = vadd.f32 %v798, %v806
        %v809 = vtanh.pop %v808
        %811 = vrot.lane.b32.xlu0 %v809, 64
        %v812 = vpop.permute.xlu0 %811
        %v814 = vmul.f32 %v796, %v812
        %v815 = vpack.c.bf16 %v619, %v619
        %817 = vrot.lane.b32.xlu0 %v815, 32
        %v818 = vpop.permute.xlu0 %817
        %v820 = vsel %vm429, %v818, 0
        %822 = vmatprep.subr.bf16.mxu0 0
        %823 = vmatpush1.bf16.msra.mxu0 %v548
        %824 = vmatprep.subr.bf16.mxu0 0
        %825 = vmatpush1.bf16.msra.mxu0 %v549
        %826 = vmatprep.subr.bf16.mxu0 0
        %827 = vmatpush1.bf16.msra.mxu0 0
        %828 = vmatprep.subr.bf16.mxu0 0
        %829 = vmatpush1.bf16.msra.mxu0 0
        %830 = vmatprep.subr.bf16.mxu0 0
        %831 = vmatpush1.bf16.msra.mxu0 0
        %832 = vmatprep.subr.bf16.mxu0 0
        %833 = vmatpush1.bf16.msra.mxu0 0
        %834 = vmatprep.subr.bf16.mxu0 0
        %835 = vmatpush1.bf16.msra.mxu0 0
        %836 = vmatprep.subr.bf16.mxu0 0
        %837 = vmatpush1.bf16.msra.mxu0 0
        %838 = vmatprep.subr.bf16.mxu0 0
        %839 = vmatpush1.bf16.msra.mxu0 0
        %840 = vmatprep.subr.bf16.mxu0 0
        %841 = vmatpush1.bf16.msra.mxu0 0
        %842 = vmatprep.subr.bf16.mxu0 0
        %843 = vmatpush1.bf16.msra.mxu0 0
        %844 = vmatprep.subr.bf16.mxu0 0
        %845 = vmatpush1.bf16.msra.mxu0 0
        %846 = vmatprep.subr.bf16.mxu0 0
        %847 = vmatpush1.bf16.msra.mxu0 0
        %848 = vmatprep.subr.bf16.mxu0 0
        %849 = vmatpush1.bf16.msra.mxu0 0
        %850 = vmatprep.subr.bf16.mxu0 0
        %851 = vmatpush1.bf16.msra.mxu0 0
        %852 = vmatprep.subr.bf16.mxu0 0
        %853 = vmatpush1.bf16.msra.mxu0 0
        %854 = vmatprep.mubr.bf16.mxu0 0
        %855 = vmatmul.mubr.bf16.gmra.mrb[0].mxu0 %v820
        %v856 = vpop.f32.mrb[0].mxu0
        %v857 = vadd.f32 0.0, %v856
        %v858 = vpop.f32.mrb[0].mxu0
        %v859 = vpop.f32.mrb[0].mxu0
        %v860 = vpop.f32.mrb[0].mxu0
        %861 = vdwg.mxu0
        %v863 = vrot.slane %v857, 6
        %v865 = vadd.f32 %v503, %v863
        %v866 = vxor.u32 %v865, 2147483648
        %v867 = vmul.f32 %v866, 1.442695
        %v868 = vpow.pop %v867
        %v869 = vadd.f32 %v868, 1.0
        %v870 = vrcp.pop %v869
        %v871 = vmul.f32 1.0, %v870
        %v872 = vtanh.pop %v865
        %v874 = vrot.slane %v613, 6
        %v876 = vmul.f32 %v871, %v874
        %878 = vrot.lane.b32.xlu0 %v872, 64
        %v879 = vpop.permute.xlu0 %878
        %v881 = vmul.f32 %v871, %v879
        %883 = vrot.lane.b32.xlu0 %v881, 32
        %v884 = vpop.permute.xlu0 %883
        %v886 = vadd.f32 %v876, %v884
        %v887 = vtanh.pop %v886
        %889 = vrot.lane.b32.xlu0 %v887, 64
        %v890 = vpop.permute.xlu0 %889
        %v892 = vmul.f32 %v871, %v890
        %894 = vrot.lane.b32.xlu0 %v892, 32
        %v895 = vpop.permute.xlu0 %894
        %v897 = vrot.slane %v717, 6
        %898 = vrot.lane.b32.xlu0 %v897, 64
        %v899 = vpop.permute.xlu0 %898
        %v901 = vsel %vm429, %v895, %v899
        %v902 = vpack.c.bf16 %v901, %v901
        %v904 = vrot.slane %v902, 1
        %v906 = vsel %vm650, %v904, 0
        %908 = vmatprep.subr.bf16.mxu0 0
        %909 = vmatpush1.bf16.msra.mxu0 %v642
        %910 = vmatprep.subr.bf16.mxu0 0
        %911 = vmatpush1.bf16.msra.mxu0 %v643
        %912 = vmatprep.subr.bf16.mxu0 0
        %913 = vmatpush1.bf16.msra.mxu0 %v644
        %914 = vmatprep.subr.bf16.mxu0 0
        %915 = vmatpush1.bf16.msra.mxu0 %v645
        %916 = vmatprep.subr.bf16.mxu0 0
        %917 = vmatpush1.bf16.msra.mxu0 0
        %918 = vmatprep.subr.bf16.mxu0 0
        %919 = vmatpush1.bf16.msra.mxu0 0
        %920 = vmatprep.subr.bf16.mxu0 0
        %921 = vmatpush1.bf16.msra.mxu0 0
        %922 = vmatprep.subr.bf16.mxu0 0
        %923 = vmatpush1.bf16.msra.mxu0 0
        %924 = vmatprep.subr.bf16.mxu0 0
        %925 = vmatpush1.bf16.msra.mxu0 0
        %926 = vmatprep.subr.bf16.mxu0 0
        %927 = vmatpush1.bf16.msra.mxu0 0
        %928 = vmatprep.subr.bf16.mxu0 0
        %929 = vmatpush1.bf16.msra.mxu0 0
        %930 = vmatprep.subr.bf16.mxu0 0
        %931 = vmatpush1.bf16.msra.mxu0 0
        %932 = vmatprep.subr.bf16.mxu0 0
        %933 = vmatpush1.bf16.msra.mxu0 0
        %934 = vmatprep.subr.bf16.mxu0 0
        %935 = vmatpush1.bf16.msra.mxu0 0
        %936 = vmatprep.subr.bf16.mxu0 0
        %937 = vmatpush1.bf16.msra.mxu0 0
        %938 = vmatprep.subr.bf16.mxu0 0
        %939 = vmatpush1.bf16.msra.mxu0 0
        %940 = vmatprep.mubr.bf16.mxu0 0
        %941 = vmatmul.mubr.bf16.gmra.mrb[0].mxu0 %v906
        %v942 = vpop.f32.mrb[0].mxu0
        %v943 = vadd.f32 %v535, %v942
        %v944 = vpop.f32.mrb[0].mxu0
        %v945 = vpop.f32.mrb[0].mxu0
        %v946 = vpop.f32.mrb[0].mxu0
        %947 = vdwg.mxu0
        %v948 = vxor.u32 %v943, 2147483648
        %v949 = vmul.f32 %v948, 1.442695
        %v950 = vpow.pop %v949
        %v951 = vadd.f32 %v950, 1.0
        %v952 = vrcp.pop %v951
        %v953 = vmul.f32 1.0, %v952
        %v954 = vtanh.pop %v943
        %v955 = vmul.f32 %v953, %v711
        %957 = vrot.lane.b32.xlu0 %v954, 64
        %v958 = vpop.permute.xlu0 %957
        %v960 = vmul.f32 %v953, %v958
        %962 = vrot.lane.b32.xlu0 %v960, 32
        %v963 = vpop.permute.xlu0 %962
        %v965 = vadd.f32 %v955, %v963
        %v966 = vtanh.pop %v965
        %968 = vrot.lane.b32.xlu0 %v966, 64
        %v969 = vpop.permute.xlu0 %968
        %v971 = vmul.f32 %v953, %v969
        %973 = vrot.lane.b32.xlu0 %v971, 32
        %v974 = vpop.permute.xlu0 %973
        %977 = vrot.lane.b32.xlu0 %v814, 64
        %v978 = vpop.permute.xlu0 %977
        %v980 = vsel %vm429, %v974, %v978
        %v981 = vpack.c.bf16 %v980, %v980
        %v983 = vsel %vm650, %v981, 0
        %985 = vmatprep.subr.bf16.mxu0 0
        %986 = vmatpush1.bf16.msra.mxu0 %v740
        %987 = vmatprep.subr.bf16.mxu0 0
        %988 = vmatpush1.bf16.msra.mxu0 %v741
        %989 = vmatprep.subr.bf16.mxu0 0
        %990 = vmatpush1.bf16.msra.mxu0 %v742
        %991 = vmatprep.subr.bf16.mxu0 0
        %992 = vmatpush1.bf16.msra.mxu0 %v743
        %993 = vmatprep.subr.bf16.mxu0 0
        %994 = vmatpush1.bf16.msra.mxu0 0
        %995 = vmatprep.subr.bf16.mxu0 0
        %996 = vmatpush1.bf16.msra.mxu0 0
        %997 = vmatprep.subr.bf16.mxu0 0
        %998 = vmatpush1.bf16.msra.mxu0 0
        %999 = vmatprep.subr.bf16.mxu0 0
        %1000 = vmatpush1.bf16.msra.mxu0 0
        %1001 = vmatprep.subr.bf16.mxu0 0
        %1002 = vmatpush1.bf16.msra.mxu0 0
        %1003 = vmatprep.subr.bf16.mxu0 0
        %1004 = vmatpush1.bf16.msra.mxu0 0
        %1005 = vmatprep.subr.bf16.mxu0 0
        %1006 = vmatpush1.bf16.msra.mxu0 0
        %1007 = vmatprep.subr.bf16.mxu0 0
        %1008 = vmatpush1.bf16.msra.mxu0 0
        %1009 = vmatprep.subr.bf16.mxu0 0
        %1010 = vmatpush1.bf16.msra.mxu0 0
        %1011 = vmatprep.subr.bf16.mxu0 0
        %1012 = vmatpush1.bf16.msra.mxu0 0
        %1013 = vmatprep.subr.bf16.mxu0 0
        %1014 = vmatpush1.bf16.msra.mxu0 0
        %1015 = vmatprep.subr.bf16.mxu0 0
        %1016 = vmatpush1.bf16.msra.mxu0 0
        %1017 = vmatprep.mubr.bf16.mxu0 0
        %1018 = vmatmul.mubr.bf16.gmra.mrb[0].mxu0 %v983
        %v1019 = vpop.f32.mrb[0].mxu0
        %v1020 = vadd.f32 %v539, %v1019
        %v1021 = vpop.f32.mrb[0].mxu0
        %v1022 = vpop.f32.mrb[0].mxu0
        %v1023 = vpop.f32.mrb[0].mxu0
        %1024 = vdwg.mxu0
        %v1025 = vxor.u32 %v1020, 2147483648
        %v1026 = vmul.f32 %v1025, 1.442695
        %v1027 = vpow.pop %v1026
        %v1028 = vadd.f32 %v1027, 1.0
        %v1029 = vrcp.pop %v1028
        %v1030 = vmul.f32 1.0, %v1029
        %v1031 = vtanh.pop %v1020
        %v1032 = vmul.f32 %v1030, %v808
        %1034 = vrot.lane.b32.xlu0 %v1031, 64
        %v1035 = vpop.permute.xlu0 %1034
        %v1037 = vmul.f32 %v1030, %v1035
        %1039 = vrot.lane.b32.xlu0 %v1037, 32
        %v1040 = vpop.permute.xlu0 %1039
        %v1042 = vadd.f32 %v1032, %v1040
        %v1043 = vtanh.pop %v1042
        %1045 = vrot.lane.b32.xlu0 %v1043, 64
        %v1046 = vpop.permute.xlu0 %1045
        %v1048 = vmul.f32 %v1030, %v1046
        %v1049 = vpack.c.bf16 %v892, %v892
        %v1051 = vrot.slane %v1049, 1
        %1052 = vrot.lane.b32.xlu0 %v1051, 32
        %v1053 = vpop.permute.xlu0 %1052
        %v1055 = vsel %vm429, %v1053, 0
        %1057 = vmatprep.subr.bf16.mxu0 0
        %1058 = vmatpush1.bf16.msra.mxu0 %v548
        %1059 = vmatprep.subr.bf16.mxu0 0
        %1060 = vmatpush1.bf16.msra.mxu0 %v549
        %1061 = vmatprep.subr.bf16.mxu0 0
        %1062 = vmatpush1.bf16.msra.mxu0 0
        %1063 = vmatprep.subr.bf16.mxu0 0
        %1064 = vmatpush1.bf16.msra.mxu0 0
        %1065 = vmatprep.subr.bf16.mxu0 0
        %1066 = vmatpush1.bf16.msra.mxu0 0
        %1067 = vmatprep.subr.bf16.mxu0 0
        %1068 = vmatpush1.bf16.msra.mxu0 0
        %1069 = vmatprep.subr.bf16.mxu0 0
        %1070 = vmatpush1.bf16.msra.mxu0 0
        %1071 = vmatprep.subr.bf16.mxu0 0
        %1072 = vmatpush1.bf16.msra.mxu0 0
        %1073 = vmatprep.subr.bf16.mxu0 0
        %1074 = vmatpush1.bf16.msra.mxu0 0
        %1075 = vmatprep.subr.bf16.mxu0 0
        %1076 = vmatpush1.bf16.msra.mxu0 0
        %1077 = vmatprep.subr.bf16.mxu0 0
        %1078 = vmatpush1.bf16.msra.mxu0 0
        %1079 = vmatprep.subr.bf16.mxu0 0
        %1080 = vmatpush1.bf16.msra.mxu0 0
        %1081 = vmatprep.subr.bf16.mxu0 0
        %1082 = vmatpush1.bf16.msra.mxu0 0
        %1083 = vmatprep.subr.bf16.mxu0 0
        %1084 = vmatpush1.bf16.msra.mxu0 0
        %1085 = vmatprep.subr.bf16.mxu0 0
        %1086 = vmatpush1.bf16.msra.mxu0 0
        %1087 = vmatprep.subr.bf16.mxu0 0
        %1088 = vmatpush1.bf16.msra.mxu0 0
        %1089 = vmatprep.mubr.bf16.mxu0 0
        %1090 = vmatmul.mubr.bf16.gmra.mrb[0].mxu0 %v1055
        %v1091 = vpop.f32.mrb[0].mxu0
        %v1092 = vadd.f32 0.0, %v1091
        %v1093 = vpop.f32.mrb[0].mxu0
        %v1094 = vpop.f32.mrb[0].mxu0
        %v1095 = vpop.f32.mrb[0].mxu0
        %1096 = vdwg.mxu0
        %v1098 = vrot.slane %v1092, 4
        %v1100 = vadd.f32 %v503, %v1098
        %v1101 = vxor.u32 %v1100, 2147483648
        %v1102 = vmul.f32 %v1101, 1.442695
        %v1103 = vpow.pop %v1102
        %v1104 = vadd.f32 %v1103, 1.0
        %v1105 = vrcp.pop %v1104
        %v1106 = vmul.f32 1.0, %v1105
        %v1107 = vtanh.pop %v1100
        %v1109 = vrot.slane %v886, 6
        %v1111 = vmul.f32 %v1106, %v1109
        %1113 = vrot.lane.b32.xlu0 %v1107, 64
        %v1114 = vpop.permute.xlu0 %1113
        %v1116 = vmul.f32 %v1106, %v1114
        %1118 = vrot.lane.b32.xlu0 %v1116, 32
        %v1119 = vpop.permute.xlu0 %1118
        %v1121 = vadd.f32 %v1111, %v1119
        %v1122 = vtanh.pop %v1121
        %1124 = vrot.lane.b32.xlu0 %v1122, 64
        %v1125 = vpop.permute.xlu0 %1124
        %v1127 = vmul.f32 %v1106, %v1125
        %1129 = vrot.lane.b32.xlu0 %v1127, 32
        %v1130 = vpop.permute.xlu0 %1129
        %v1132 = vrot.slane %v971, 4
        %1133 = vrot.lane.b32.xlu0 %v1132, 64
        %v1134 = vpop.permute.xlu0 %1133
        %v1136 = vsel %vm429, %v1130, %v1134
        %v1137 = vpack.c.bf16 %v1136, %v1136
        %v1139 = vrot.slane %v1137, 2
        %v1141 = vsel %vm650, %v1139, 0
        %1143 = vmatprep.subr.bf16.mxu0 0
        %1144 = vmatpush1.bf16.msra.mxu0 %v642
        %1145 = vmatprep.subr.bf16.mxu0 0
        %1146 = vmatpush1.bf16.msra.mxu0 %v643
        %1147 = vmatprep.subr.bf16.mxu0 0
        %1148 = vmatpush1.bf16.msra.mxu0 %v644
        %1149 = vmatprep.subr.bf16.mxu0 0
        %1150 = vmatpush1.bf16.msra.mxu0 %v645
        %1151 = vmatprep.subr.bf16.mxu0 0
        %1152 = vmatpush1.bf16.msra.mxu0 0
        %1153 = vmatprep.subr.bf16.mxu0 0
        %1154 = vmatpush1.bf16.msra.mxu0 0
        %1155 = vmatprep.subr.bf16.mxu0 0
        %1156 = vmatpush1.bf16.msra.mxu0 0
        %1157 = vmatprep.subr.bf16.mxu0 0
        %1158 = vmatpush1.bf16.msra.mxu0 0
        %1159 = vmatprep.subr.bf16.mxu0 0
        %1160 = vmatpush1.bf16.msra.mxu0 0
        %1161 = vmatprep.subr.bf16.mxu0 0
        %1162 = vmatpush1.bf16.msra.mxu0 0
        %1163 = vmatprep.subr.bf16.mxu0 0
        %1164 = vmatpush1.bf16.msra.mxu0 0
        %1165 = vmatprep.subr.bf16.mxu0 0
        %1166 = vmatpush1.bf16.msra.mxu0 0
        %1167 = vmatprep.subr.bf16.mxu0 0
        %1168 = vmatpush1.bf16.msra.mxu0 0
        %1169 = vmatprep.subr.bf16.mxu0 0
        %1170 = vmatpush1.bf16.msra.mxu0 0
        %1171 = vmatprep.subr.bf16.mxu0 0
        %1172 = vmatpush1.bf16.msra.mxu0 0
        %1173 = vmatprep.subr.bf16.mxu0 0
        %1174 = vmatpush1.bf16.msra.mxu0 0
        %1175 = vmatprep.mubr.bf16.mxu0 0
        %1176 = vmatmul.mubr.bf16.gmra.mrb[0].mxu0 %v1141
        %v1177 = vpop.f32.mrb[0].mxu0
        %v1178 = vadd.f32 %v535, %v1177
        %v1179 = vpop.f32.mrb[0].mxu0
        %v1180 = vpop.f32.mrb[0].mxu0
        %v1181 = vpop.f32.mrb[0].mxu0
        %1182 = vdwg.mxu0
        %v1183 = vxor.u32 %v1178, 2147483648
        %v1184 = vmul.f32 %v1183, 1.442695
        %v1185 = vpow.pop %v1184
        %v1186 = vadd.f32 %v1185, 1.0
        %v1187 = vrcp.pop %v1186
        %v1188 = vmul.f32 1.0, %v1187
        %v1189 = vtanh.pop %v1178
        %v1190 = vmul.f32 %v1188, %v965
        %1192 = vrot.lane.b32.xlu0 %v1189, 64
        %v1193 = vpop.permute.xlu0 %1192
        %v1195 = vmul.f32 %v1188, %v1193
        %1197 = vrot.lane.b32.xlu0 %v1195, 32
        %v1198 = vpop.permute.xlu0 %1197
        %v1200 = vadd.f32 %v1190, %v1198
        %v1201 = vtanh.pop %v1200
        %1203 = vrot.lane.b32.xlu0 %v1201, 64
        %v1204 = vpop.permute.xlu0 %1203
        %v1206 = vmul.f32 %v1188, %v1204
        %1208 = vrot.lane.b32.xlu0 %v1206, 32
        %v1209 = vpop.permute.xlu0 %1208
        %1212 = vrot.lane.b32.xlu0 %v1048, 64
        %v1213 = vpop.permute.xlu0 %1212
        %v1215 = vsel %vm429, %v1209, %v1213
        %v1216 = vpack.c.bf16 %v1215, %v1215
        %v1218 = vsel %vm650, %v1216, 0
        %1220 = vmatprep.subr.bf16.mxu0 0
        %1221 = vmatpush1.bf16.msra.mxu0 %v740
        %1222 = vmatprep.subr.bf16.mxu0 0
        %1223 = vmatpush1.bf16.msra.mxu0 %v741
        %1224 = vmatprep.subr.bf16.mxu0 0
        %1225 = vmatpush1.bf16.msra.mxu0 %v742
        %1226 = vmatprep.subr.bf16.mxu0 0
        %1227 = vmatpush1.bf16.msra.mxu0 %v743
        %1228 = vmatprep.subr.bf16.mxu0 0
        %1229 = vmatpush1.bf16.msra.mxu0 0
        %1230 = vmatprep.subr.bf16.mxu0 0
        %1231 = vmatpush1.bf16.msra.mxu0 0
        %1232 = vmatprep.subr.bf16.mxu0 0
        %1233 = vmatpush1.bf16.msra.mxu0 0
        %1234 = vmatprep.subr.bf16.mxu0 0
        %1235 = vmatpush1.bf16.msra.mxu0 0
        %1236 = vmatprep.subr.bf16.mxu0 0
        %1237 = vmatpush1.bf16.msra.mxu0 0
        %1238 = vmatprep.subr.bf16.mxu0 0
        %1239 = vmatpush1.bf16.msra.mxu0 0
        %1240 = vmatprep.subr.bf16.mxu0 0
        %1241 = vmatpush1.bf16.msra.mxu0 0
        %1242 = vmatprep.subr.bf16.mxu0 0
        %1243 = vmatpush1.bf16.msra.mxu0 0
        %1244 = vmatprep.subr.bf16.mxu0 0
        %1245 = vmatpush1.bf16.msra.mxu0 0
        %1246 = vmatprep.subr.bf16.mxu0 0
        %1247 = vmatpush1.bf16.msra.mxu0 0
        %1248 = vmatprep.subr.bf16.mxu0 0
        %1249 = vmatpush1.bf16.msra.mxu0 0
        %1250 = vmatprep.subr.bf16.mxu0 0
        %1251 = vmatpush1.bf16.msra.mxu0 0
        %1252 = vmatprep.mubr.bf16.mxu0 0
        %1253 = vmatmul.mubr.bf16.gmra.mrb[0].mxu0 %v1218
        %v1254 = vpop.f32.mrb[0].mxu0
        %v1255 = vadd.f32 %v539, %v1254
        %v1256 = vpop.f32.mrb[0].mxu0
        %v1257 = vpop.f32.mrb[0].mxu0
        %v1258 = vpop.f32.mrb[0].mxu0
        %1259 = vdwg.mxu0
        %v1260 = vxor.u32 %v1255, 2147483648
        %v1261 = vmul.f32 %v1260, 1.442695
        %v1262 = vpow.pop %v1261
        %v1263 = vadd.f32 %v1262, 1.0
        %v1264 = vrcp.pop %v1263
        %v1265 = vmul.f32 1.0, %v1264
        %v1266 = vtanh.pop %v1255
        %v1267 = vmul.f32 %v1265, %v1042
        %1269 = vrot.lane.b32.xlu0 %v1266, 64
        %v1270 = vpop.permute.xlu0 %1269
        %v1272 = vmul.f32 %v1265, %v1270
        %1274 = vrot.lane.b32.xlu0 %v1272, 32
        %v1275 = vpop.permute.xlu0 %1274
        %v1277 = vadd.f32 %v1267, %v1275
        %v1278 = vtanh.pop %v1277
        %1280 = vrot.lane.b32.xlu0 %v1278, 64
        %v1281 = vpop.permute.xlu0 %1280
        %v1283 = vmul.f32 %v1265, %v1281
        %v1284 = vpack.c.bf16 %v1127, %v1127
        %v1286 = vrot.slane %v1284, 2
        %1287 = vrot.lane.b32.xlu0 %v1286, 32
        %v1288 = vpop.permute.xlu0 %1287
        %v1290 = vsel %vm429, %v1288, 0
        %1292 = vmatprep.subr.bf16.mxu0 0
        %1293 = vmatpush1.bf16.msra.mxu0 %v548
        %1294 = vmatprep.subr.bf16.mxu0 0
        %1295 = vmatpush1.bf16.msra.mxu0 %v549
        %1296 = vmatprep.subr.bf16.mxu0 0
        %1297 = vmatpush1.bf16.msra.mxu0 0
        %1298 = vmatprep.subr.bf16.mxu0 0
        %1299 = vmatpush1.bf16.msra.mxu0 0
        %1300 = vmatprep.subr.bf16.mxu0 0
        %1301 = vmatpush1.bf16.msra.mxu0 0
        %1302 = vmatprep.subr.bf16.mxu0 0
        %1303 = vmatpush1.bf16.msra.mxu0 0
        %1304 = vmatprep.subr.bf16.mxu0 0
        %1305 = vmatpush1.bf16.msra.mxu0 0
        %1306 = vmatprep.subr.bf16.mxu0 0
        %1307 = vmatpush1.bf16.msra.mxu0 0
        %1308 = vmatprep.subr.bf16.mxu0 0
        %1309 = vmatpush1.bf16.msra.mxu0 0
        %1310 = vmatprep.subr.bf16.mxu0 0
        %1311 = vmatpush1.bf16.msra.mxu0 0
        %1312 = vmatprep.subr.bf16.mxu0 0
        %1313 = vmatpush1.bf16.msra.mxu0 0
        %1314 = vmatprep.subr.bf16.mxu0 0
        %1315 = vmatpush1.bf16.msra.mxu0 0
        %1316 = vmatprep.subr.bf16.mxu0 0
        %1317 = vmatpush1.bf16.msra.mxu0 0
        %1318 = vmatprep.subr.bf16.mxu0 0
        %1319 = vmatpush1.bf16.msra.mxu0 0
        %1320 = vmatprep.subr.bf16.mxu0 0
        %1321 = vmatpush1.bf16.msra.mxu0 0
        %1322 = vmatprep.subr.bf16.mxu0 0
        %1323 = vmatpush1.bf16.msra.mxu0 0
        %1324 = vmatprep.mubr.bf16.mxu0 0
        %1325 = vmatmul.mubr.bf16.gmra.mrb[0].mxu0 %v1290
        %v1326 = vpop.f32.mrb[0].mxu0
        %v1327 = vadd.f32 0.0, %v1326
        %v1328 = vpop.f32.mrb[0].mxu0
        %v1329 = vpop.f32.mrb[0].mxu0
        %v1330 = vpop.f32.mrb[0].mxu0
        %1331 = vdwg.mxu0
        %v1333 = vrot.slane %v1327, 2
        %v1335 = vadd.f32 %v503, %v1333
        %v1336 = vxor.u32 %v1335, 2147483648
        %v1337 = vmul.f32 %v1336, 1.442695
        %v1338 = vpow.pop %v1337
        %v1339 = vadd.f32 %v1338, 1.0
        %v1340 = vrcp.pop %v1339
        %v1341 = vmul.f32 1.0, %v1340
        %v1342 = vtanh.pop %v1335
        %v1344 = vrot.slane %v1121, 6
        %v1346 = vmul.f32 %v1341, %v1344
        %1348 = vrot.lane.b32.xlu0 %v1342, 64
        %v1349 = vpop.permute.xlu0 %1348
        %v1351 = vmul.f32 %v1341, %v1349
        %1353 = vrot.lane.b32.xlu0 %v1351, 32
        %v1354 = vpop.permute.xlu0 %1353
        %v1356 = vadd.f32 %v1346, %v1354
        %v1357 = vtanh.pop %v1356
        %1359 = vrot.lane.b32.xlu0 %v1357, 64
        %v1360 = vpop.permute.xlu0 %1359
        %v1362 = vmul.f32 %v1341, %v1360
        %1364 = vrot.lane.b32.xlu0 %v1362, 32
        %v1365 = vpop.permute.xlu0 %1364
        %v1367 = vrot.slane %v1206, 2
        %1368 = vrot.lane.b32.xlu0 %v1367, 64
        %v1369 = vpop.permute.xlu0 %1368
        %v1371 = vsel %vm429, %v1365, %v1369
        %v1372 = vpack.c.bf16 %v1371, %v1371
        %v1374 = vrot.slane %v1372, 3
        %v1376 = vsel %vm650, %v1374, 0
        %1378 = vmatprep.subr.bf16.mxu0 0
        %1379 = vmatpush1.bf16.msra.mxu0 %v642
        %1380 = vmatprep.subr.bf16.mxu0 0
        %1381 = vmatpush1.bf16.msra.mxu0 %v643
        %1382 = vmatprep.subr.bf16.mxu0 0
        %1383 = vmatpush1.bf16.msra.mxu0 %v644
        %1384 = vmatprep.subr.bf16.mxu0 0
        %1385 = vmatpush1.bf16.msra.mxu0 %v645
        %1386 = vmatprep.subr.bf16.mxu0 0
        %1387 = vmatpush1.bf16.msra.mxu0 0
        %1388 = vmatprep.subr.bf16.mxu0 0
        %1389 = vmatpush1.bf16.msra.mxu0 0
        %1390 = vmatprep.subr.bf16.mxu0 0
        %1391 = vmatpush1.bf16.msra.mxu0 0
        %1392 = vmatprep.subr.bf16.mxu0 0
        %1393 = vmatpush1.bf16.msra.mxu0 0
        %1394 = vmatprep.subr.bf16.mxu0 0
        %1395 = vmatpush1.bf16.msra.mxu0 0
        %1396 = vmatprep.subr.bf16.mxu0 0
        %1397 = vmatpush1.bf16.msra.mxu0 0
        %1398 = vmatprep.subr.bf16.mxu0 0
        %1399 = vmatpush1.bf16.msra.mxu0 0
        %1400 = vmatprep.subr.bf16.mxu0 0
        %1401 = vmatpush1.bf16.msra.mxu0 0
        %1402 = vmatprep.subr.bf16.mxu0 0
        %1403 = vmatpush1.bf16.msra.mxu0 0
        %1404 = vmatprep.subr.bf16.mxu0 0
        %1405 = vmatpush1.bf16.msra.mxu0 0
        %1406 = vmatprep.subr.bf16.mxu0 0
        %1407 = vmatpush1.bf16.msra.mxu0 0
        %1408 = vmatprep.subr.bf16.mxu0 0
        %1409 = vmatpush1.bf16.msra.mxu0 0
        %1410 = vmatprep.mubr.bf16.mxu0 0
        %1411 = vmatmul.mubr.bf16.gmra.mrb[0].mxu0 %v1376
        %v1412 = vpop.f32.mrb[0].mxu0
        %v1413 = vadd.f32 %v535, %v1412
        %v1414 = vpop.f32.mrb[0].mxu0
        %v1415 = vpop.f32.mrb[0].mxu0
        %v1416 = vpop.f32.mrb[0].mxu0
        %1417 = vdwg.mxu0
        %v1418 = vxor.u32 %v1413, 2147483648
        %v1419 = vmul.f32 %v1418, 1.442695
        %v1420 = vpow.pop %v1419
        %v1421 = vadd.f32 %v1420, 1.0
        %v1422 = vrcp.pop %v1421
        %v1423 = vmul.f32 1.0, %v1422
        %v1424 = vtanh.pop %v1413
        %v1425 = vmul.f32 %v1423, %v1200
        %1427 = vrot.lane.b32.xlu0 %v1424, 64
        %v1428 = vpop.permute.xlu0 %1427
        %v1430 = vmul.f32 %v1423, %v1428
        %1432 = vrot.lane.b32.xlu0 %v1430, 32
        %v1433 = vpop.permute.xlu0 %1432
        %v1435 = vadd.f32 %v1425, %v1433
        %v1436 = vtanh.pop %v1435
        %1438 = vrot.lane.b32.xlu0 %v1436, 64
        %v1439 = vpop.permute.xlu0 %1438
        %v1441 = vmul.f32 %v1423, %v1439
        %1443 = vrot.lane.b32.xlu0 %v1441, 32
        %v1444 = vpop.permute.xlu0 %1443
        %1447 = vrot.lane.b32.xlu0 %v1283, 64
        %v1448 = vpop.permute.xlu0 %1447
        %v1450 = vsel %vm429, %v1444, %v1448
        %v1451 = vpack.c.bf16 %v1450, %v1450
        %v1453 = vsel %vm650, %v1451, 0
        %1455 = vmatprep.subr.bf16.mxu0 0
        %1456 = vmatpush1.bf16.msra.mxu0 %v740
        %1457 = vmatprep.subr.bf16.mxu0 0
        %1458 = vmatpush1.bf16.msra.mxu0 %v741
        %1459 = vmatprep.subr.bf16.mxu0 0
        %1460 = vmatpush1.bf16.msra.mxu0 %v742
        %1461 = vmatprep.subr.bf16.mxu0 0
        %1462 = vmatpush1.bf16.msra.mxu0 %v743
        %1463 = vmatprep.subr.bf16.mxu0 0
        %1464 = vmatpush1.bf16.msra.mxu0 0
        %1465 = vmatprep.subr.bf16.mxu0 0
        %1466 = vmatpush1.bf16.msra.mxu0 0
        %1467 = vmatprep.subr.bf16.mxu0 0
        %1468 = vmatpush1.bf16.msra.mxu0 0
        %1469 = vmatprep.subr.bf16.mxu0 0
        %1470 = vmatpush1.bf16.msra.mxu0 0
        %1471 = vmatprep.subr.bf16.mxu0 0
        %1472 = vmatpush1.bf16.msra.mxu0 0
        %1473 = vmatprep.subr.bf16.mxu0 0
        %1474 = vmatpush1.bf16.msra.mxu0 0
        %1475 = vmatprep.subr.bf16.mxu0 0
        %1476 = vmatpush1.bf16.msra.mxu0 0
        %1477 = vmatprep.subr.bf16.mxu0 0
        %1478 = vmatpush1.bf16.msra.mxu0 0
        %1479 = vmatprep.subr.bf16.mxu0 0
        %1480 = vmatpush1.bf16.msra.mxu0 0
        %1481 = vmatprep.subr.bf16.mxu0 0
        %1482 = vmatpush1.bf16.msra.mxu0 0
        %1483 = vmatprep.subr.bf16.mxu0 0
        %1484 = vmatpush1.bf16.msra.mxu0 0
        %1485 = vmatprep.subr.bf16.mxu0 0
        %1486 = vmatpush1.bf16.msra.mxu0 0
        %1487 = vmatprep.mubr.bf16.mxu0 0
        %1488 = vmatmul.mubr.bf16.gmra.mrb[0].mxu0 %v1453
        %v1489 = vpop.f32.mrb[0].mxu0
        %v1490 = vadd.f32 %v539, %v1489
        %v1491 = vpop.f32.mrb[0].mxu0
        %v1492 = vpop.f32.mrb[0].mxu0
        %v1493 = vpop.f32.mrb[0].mxu0
        %1494 = vdwg.mxu0
        %v1495 = vxor.u32 %v1490, 2147483648
        %v1496 = vmul.f32 %v1495, 1.442695
        %v1497 = vpow.pop %v1496
        %v1498 = vadd.f32 %v1497, 1.0
        %v1499 = vrcp.pop %v1498
        %v1500 = vmul.f32 1.0, %v1499
        %v1501 = vtanh.pop %v1490
        %v1502 = vmul.f32 %v1500, %v1277
        %1504 = vrot.lane.b32.xlu0 %v1501, 64
        %v1505 = vpop.permute.xlu0 %1504
        %v1507 = vmul.f32 %v1500, %v1505
        %1509 = vrot.lane.b32.xlu0 %v1507, 32
        %v1510 = vpop.permute.xlu0 %1509
        %v1512 = vadd.f32 %v1502, %v1510
        %v1513 = vtanh.pop %v1512
        %1515 = vrot.lane.b32.xlu0 %v1513, 64
        %v1516 = vpop.permute.xlu0 %1515
        %v1518 = vmul.f32 %v1500, %v1516
        %v1519 = vpack.c.bf16 %v1362, %v1362
        %v1521 = vrot.slane %v1519, 3
        %1522 = vrot.lane.b32.xlu0 %v1521, 32
        %v1523 = vpop.permute.xlu0 %1522
        %v1525 = vsel %vm429, %v1523, 0
        %1527 = vmatprep.subr.bf16.mxu0 0
        %1528 = vmatpush1.bf16.msra.mxu0 %v548
        %1529 = vmatprep.subr.bf16.mxu0 0
        %1530 = vmatpush1.bf16.msra.mxu0 %v549
        %1531 = vmatprep.subr.bf16.mxu0 0
        %1532 = vmatpush1.bf16.msra.mxu0 0
        %1533 = vmatprep.subr.bf16.mxu0 0
        %1534 = vmatpush1.bf16.msra.mxu0 0
        %1535 = vmatprep.subr.bf16.mxu0 0
        %1536 = vmatpush1.bf16.msra.mxu0 0
        %1537 = vmatprep.subr.bf16.mxu0 0
        %1538 = vmatpush1.bf16.msra.mxu0 0
        %1539 = vmatprep.subr.bf16.mxu0 0
        %1540 = vmatpush1.bf16.msra.mxu0 0
        %1541 = vmatprep.subr.bf16.mxu0 0
        %1542 = vmatpush1.bf16.msra.mxu0 0
        %1543 = vmatprep.subr.bf16.mxu0 0
        %1544 = vmatpush1.bf16.msra.mxu0 0
        %1545 = vmatprep.subr.bf16.mxu0 0
        %1546 = vmatpush1.bf16.msra.mxu0 0
        %1547 = vmatprep.subr.bf16.mxu0 0
        %1548 = vmatpush1.bf16.msra.mxu0 0
        %1549 = vmatprep.subr.bf16.mxu0 0
        %1550 = vmatpush1.bf16.msra.mxu0 0
        %1551 = vmatprep.subr.bf16.mxu0 0
        %1552 = vmatpush1.bf16.msra.mxu0 0
        %1553 = vmatprep.subr.bf16.mxu0 0
        %1554 = vmatpush1.bf16.msra.mxu0 0
        %1555 = vmatprep.subr.bf16.mxu0 0
        %1556 = vmatpush1.bf16.msra.mxu0 0
        %1557 = vmatprep.subr.bf16.mxu0 0
        %1558 = vmatpush1.bf16.msra.mxu0 0
        %1559 = vmatprep.mubr.bf16.mxu0 0
        %1560 = vmatmul.mubr.bf16.gmra.mrb[0].mxu0 %v1525
        %v1561 = vpop.f32.mrb[0].mxu0
        %v1562 = vadd.f32 0.0, %v1561
        %v1563 = vpop.f32.mrb[0].mxu0
        %v1564 = vpop.f32.mrb[0].mxu0
        %v1565 = vpop.f32.mrb[0].mxu0
        %1566 = vdwg.mxu0
        %v1567 = vadd.f32 %v508, %v1562
        %v1568 = vxor.u32 %v1567, 2147483648
        %v1569 = vmul.f32 %v1568, 1.442695
        %v1570 = vpow.pop %v1569
        %v1571 = vadd.f32 %v1570, 1.0
        %v1572 = vrcp.pop %v1571
        %v1573 = vmul.f32 1.0, %v1572
        %v1574 = vtanh.pop %v1567
        %v1576 = vrot.slane %v1356, 6
        %v1578 = vmul.f32 %v1573, %v1576
        %1580 = vrot.lane.b32.xlu0 %v1574, 64
        %v1581 = vpop.permute.xlu0 %1580
        %v1583 = vmul.f32 %v1573, %v1581
        %1585 = vrot.lane.b32.xlu0 %v1583, 32
        %v1586 = vpop.permute.xlu0 %1585
        %v1588 = vadd.f32 %v1578, %v1586
        %v1589 = vtanh.pop %v1588
        %1591 = vrot.lane.b32.xlu0 %v1589, 64
        %v1592 = vpop.permute.xlu0 %1591
        %v1594 = vmul.f32 %v1573, %v1592
        %1596 = vrot.lane.b32.xlu0 %v1594, 32
        %v1597 = vpop.permute.xlu0 %1596
        %1599 = vrot.lane.b32.xlu0 %v1441, 64
        %v1600 = vpop.permute.xlu0 %1599
        %v1602 = vsel %vm429, %v1597, %v1600
        %v1603 = vpack.c.bf16 %v1602, %v1602
        %v1605 = vsel %vm650, %v1603, 0
        %1607 = vmatprep.subr.bf16.mxu0 0
        %1608 = vmatpush1.bf16.msra.mxu0 %v642
        %1609 = vmatprep.subr.bf16.mxu0 0
        %1610 = vmatpush1.bf16.msra.mxu0 %v643
        %1611 = vmatprep.subr.bf16.mxu0 0
        %1612 = vmatpush1.bf16.msra.mxu0 %v644
        %1613 = vmatprep.subr.bf16.mxu0 0
        %1614 = vmatpush1.bf16.msra.mxu0 %v645
        %1615 = vmatprep.subr.bf16.mxu0 0
        %1616 = vmatpush1.bf16.msra.mxu0 0
        %1617 = vmatprep.subr.bf16.mxu0 0
        %1618 = vmatpush1.bf16.msra.mxu0 0
        %1619 = vmatprep.subr.bf16.mxu0 0
        %1620 = vmatpush1.bf16.msra.mxu0 0
        %1621 = vmatprep.subr.bf16.mxu0 0
        %1622 = vmatpush1.bf16.msra.mxu0 0
        %1623 = vmatprep.subr.bf16.mxu0 0
        %1624 = vmatpush1.bf16.msra.mxu0 0
        %1625 = vmatprep.subr.bf16.mxu0 0
        %1626 = vmatpush1.bf16.msra.mxu0 0
        %1627 = vmatprep.subr.bf16.mxu0 0
        %1628 = vmatpush1.bf16.msra.mxu0 0
        %1629 = vmatprep.subr.bf16.mxu0 0
        %1630 = vmatpush1.bf16.msra.mxu0 0
        %1631 = vmatprep.subr.bf16.mxu0 0
        %1632 = vmatpush1.bf16.msra.mxu0 0
        %1633 = vmatprep.subr.bf16.mxu0 0
        %1634 = vmatpush1.bf16.msra.mxu0 0
        %1635 = vmatprep.subr.bf16.mxu0 0
        %1636 = vmatpush1.bf16.msra.mxu0 0
        %1637 = vmatprep.subr.bf16.mxu0 0
        %1638 = vmatpush1.bf16.msra.mxu0 0
        %1639 = vmatprep.mubr.bf16.mxu0 0
        %1640 = vmatmul.mubr.bf16.gmra.mrb[0].mxu0 %v1605
        %v1641 = vpop.f32.mrb[0].mxu0
        %v1642 = vadd.f32 %v535, %v1641
        %v1643 = vpop.f32.mrb[0].mxu0
        %v1644 = vpop.f32.mrb[0].mxu0
        %v1645 = vpop.f32.mrb[0].mxu0
        %1646 = vdwg.mxu0
        %v1647 = vxor.u32 %v1642, 2147483648
        %v1648 = vmul.f32 %v1647, 1.442695
        %v1649 = vpow.pop %v1648
        %v1650 = vadd.f32 %v1649, 1.0
        %v1651 = vrcp.pop %v1650
        %v1652 = vmul.f32 1.0, %v1651
        %v1653 = vtanh.pop %v1642
        %v1654 = vmul.f32 %v1652, %v1435
        %1656 = vrot.lane.b32.xlu0 %v1653, 64
        %v1657 = vpop.permute.xlu0 %1656
        %v1659 = vmul.f32 %v1652, %v1657
        %1661 = vrot.lane.b32.xlu0 %v1659, 32
        %v1662 = vpop.permute.xlu0 %1661
        %v1664 = vadd.f32 %v1654, %v1662
        %v1665 = vtanh.pop %v1664
        %1667 = vrot.lane.b32.xlu0 %v1665, 64
        %v1668 = vpop.permute.xlu0 %1667
        %v1670 = vmul.f32 %v1652, %v1668
        %1672 = vrot.lane.b32.xlu0 %v1670, 32
        %v1673 = vpop.permute.xlu0 %1672
        %1676 = vrot.lane.b32.xlu0 %v1518, 64
        %v1677 = vpop.permute.xlu0 %1676
        %v1679 = vsel %vm429, %v1673, %v1677
        %v1680 = vpack.c.bf16 %v1679, %v1679
        %v1682 = vsel %vm650, %v1680, 0
        %1684 = vmatprep.subr.bf16.mxu0 0
        %1685 = vmatpush1.bf16.msra.mxu0 %v740
        %1686 = vmatprep.subr.bf16.mxu0 0
        %1687 = vmatpush1.bf16.msra.mxu0 %v741
        %1688 = vmatprep.subr.bf16.mxu0 0
        %1689 = vmatpush1.bf16.msra.mxu0 %v742
        %1690 = vmatprep.subr.bf16.mxu0 0
        %1691 = vmatpush1.bf16.msra.mxu0 %v743
        %1692 = vmatprep.subr.bf16.mxu0 0
        %1693 = vmatpush1.bf16.msra.mxu0 0
        %1694 = vmatprep.subr.bf16.mxu0 0
        %1695 = vmatpush1.bf16.msra.mxu0 0
        %1696 = vmatprep.subr.bf16.mxu0 0
        %1697 = vmatpush1.bf16.msra.mxu0 0
        %1698 = vmatprep.subr.bf16.mxu0 0
        %1699 = vmatpush1.bf16.msra.mxu0 0
        %1700 = vmatprep.subr.bf16.mxu0 0
        %1701 = vmatpush1.bf16.msra.mxu0 0
        %1702 = vmatprep.subr.bf16.mxu0 0
        %1703 = vmatpush1.bf16.msra.mxu0 0
        %1704 = vmatprep.subr.bf16.mxu0 0
        %1705 = vmatpush1.bf16.msra.mxu0 0
        %1706 = vmatprep.subr.bf16.mxu0 0
        %1707 = vmatpush1.bf16.msra.mxu0 0
        %1708 = vmatprep.subr.bf16.mxu0 0
        %1709 = vmatpush1.bf16.msra.mxu0 0
        %1710 = vmatprep.subr.bf16.mxu0 0
        %1711 = vmatpush1.bf16.msra.mxu0 0
        %1712 = vmatprep.subr.bf16.mxu0 0
        %1713 = vmatpush1.bf16.msra.mxu0 0
        %1714 = vmatprep.subr.bf16.mxu0 0
        %1715 = vmatpush1.bf16.msra.mxu0 0
        %1716 = vmatprep.mubr.bf16.mxu0 0
        %1717 = vmatmul.mubr.bf16.gmra.mrb[0].mxu0 %v1682
        %v1718 = vpop.f32.mrb[0].mxu0
        %v1719 = vadd.f32 %v539, %v1718
        %v1720 = vpop.f32.mrb[0].mxu0
        %v1721 = vpop.f32.mrb[0].mxu0
        %v1722 = vpop.f32.mrb[0].mxu0
        %1723 = vdwg.mxu0
        %v1724 = vxor.u32 %v1719, 2147483648
        %v1725 = vmul.f32 %v1724, 1.442695
        %v1726 = vpow.pop %v1725
        %v1727 = vadd.f32 %v1726, 1.0
        %v1728 = vrcp.pop %v1727
        %v1729 = vmul.f32 1.0, %v1728
        %v1730 = vtanh.pop %v1719
        %v1731 = vmul.f32 %v1729, %v1512
        %1733 = vrot.lane.b32.xlu0 %v1730, 64
        %v1734 = vpop.permute.xlu0 %1733
        %v1736 = vmul.f32 %v1729, %v1734
        %1738 = vrot.lane.b32.xlu0 %v1736, 32
        %v1739 = vpop.permute.xlu0 %1738
        %v1741 = vadd.f32 %v1731, %v1739
        %v1742 = vtanh.pop %v1741
        %1744 = vrot.lane.b32.xlu0 %v1742, 64
        %v1745 = vpop.permute.xlu0 %1744
        %v1747 = vmul.f32 %v1729, %v1745
        %v1748 = vpack.c.bf16 %v1594, %v1594
        %1750 = vrot.lane.b32.xlu0 %v1748, 32
        %v1751 = vpop.permute.xlu0 %1750
        %v1753 = vsel %vm429, %v1751, 0
        %1755 = vmatprep.subr.bf16.mxu0 0
        %1756 = vmatpush1.bf16.msra.mxu0 %v548
        %1757 = vmatprep.subr.bf16.mxu0 0
        %1758 = vmatpush1.bf16.msra.mxu0 %v549
        %1759 = vmatprep.subr.bf16.mxu0 0
        %1760 = vmatpush1.bf16.msra.mxu0 0
        %1761 = vmatprep.subr.bf16.mxu0 0
        %1762 = vmatpush1.bf16.msra.mxu0 0
        %1763 = vmatprep.subr.bf16.mxu0 0
        %1764 = vmatpush1.bf16.msra.mxu0 0
        %1765 = vmatprep.subr.bf16.mxu0 0
        %1766 = vmatpush1.bf16.msra.mxu0 0
        %1767 = vmatprep.subr.bf16.mxu0 0
        %1768 = vmatpush1.bf16.msra.mxu0 0
        %1769 = vmatprep.subr.bf16.mxu0 0
        %1770 = vmatpush1.bf16.msra.mxu0 0
        %1771 = vmatprep.subr.bf16.mxu0 0
        %1772 = vmatpush1.bf16.msra.mxu0 0
        %1773 = vmatprep.subr.bf16.mxu0 0
        %1774 = vmatpush1.bf16.msra.mxu0 0
        %1775 = vmatprep.subr.bf16.mxu0 0
        %1776 = vmatpush1.bf16.msra.mxu0 0
        %1777 = vmatprep.subr.bf16.mxu0 0
        %1778 = vmatpush1.bf16.msra.mxu0 0
        %1779 = vmatprep.subr.bf16.mxu0 0
        %1780 = vmatpush1.bf16.msra.mxu0 0
        %1781 = vmatprep.subr.bf16.mxu0 0
        %1782 = vmatpush1.bf16.msra.mxu0 0
        %1783 = vmatprep.subr.bf16.mxu0 0
        %1784 = vmatpush1.bf16.msra.mxu0 0
        %1785 = vmatprep.subr.bf16.mxu0 0
        %1786 = vmatpush1.bf16.msra.mxu0 0
        %1787 = vmatprep.mubr.bf16.mxu0 0
        %1788 = vmatmul.mubr.bf16.gmra.mrb[0].mxu0 %v1753
        %v1789 = vpop.f32.mrb[0].mxu0
        %v1790 = vadd.f32 0.0, %v1789
        %v1791 = vpop.f32.mrb[0].mxu0
        %v1792 = vpop.f32.mrb[0].mxu0
        %v1793 = vpop.f32.mrb[0].mxu0
        %1794 = vdwg.mxu0
        %v1796 = vrot.slane %v1790, 6
        %v1798 = vadd.f32 %v508, %v1796
        %v1799 = vxor.u32 %v1798, 2147483648
        %v1800 = vmul.f32 %v1799, 1.442695
        %v1801 = vpow.pop %v1800
        %v1802 = vadd.f32 %v1801, 1.0
        %v1803 = vrcp.pop %v1802
        %v1804 = vmul.f32 1.0, %v1803
        %v1805 = vtanh.pop %v1798
        %v1807 = vrot.slane %v1588, 6
        %v1809 = vmul.f32 %v1804, %v1807
        %1811 = vrot.lane.b32.xlu0 %v1805, 64
        %v1812 = vpop.permute.xlu0 %1811
        %v1814 = vmul.f32 %v1804, %v1812
        %1816 = vrot.lane.b32.xlu0 %v1814, 32
        %v1817 = vpop.permute.xlu0 %1816
        %v1819 = vadd.f32 %v1809, %v1817
        %v1820 = vtanh.pop %v1819
        %1822 = vrot.lane.b32.xlu0 %v1820, 64
        %v1823 = vpop.permute.xlu0 %1822
        %v1825 = vmul.f32 %v1804, %v1823
        %1827 = vrot.lane.b32.xlu0 %v1825, 32
        %v1828 = vpop.permute.xlu0 %1827
        %v1830 = vrot.slane %v1670, 6
        %1831 = vrot.lane.b32.xlu0 %v1830, 64
        %v1832 = vpop.permute.xlu0 %1831
        %v1834 = vsel %vm429, %v1828, %v1832
        %v1835 = vpack.c.bf16 %v1834, %v1834
        %v1837 = vrot.slane %v1835, 1
        %v1839 = vsel %vm650, %v1837, 0
        %1841 = vmatprep.subr.bf16.mxu0 0
        %1842 = vmatpush1.bf16.msra.mxu0 %v642
        %1843 = vmatprep.subr.bf16.mxu0 0
        %1844 = vmatpush1.bf16.msra.mxu0 %v643
        %1845 = vmatprep.subr.bf16.mxu0 0
        %1846 = vmatpush1.bf16.msra.mxu0 %v644
        %1847 = vmatprep.subr.bf16.mxu0 0
        %1848 = vmatpush1.bf16.msra.mxu0 %v645
        %1849 = vmatprep.subr.bf16.mxu0 0
        %1850 = vmatpush1.bf16.msra.mxu0 0
        %1851 = vmatprep.subr.bf16.mxu0 0
        %1852 = vmatpush1.bf16.msra.mxu0 0
        %1853 = vmatprep.subr.bf16.mxu0 0
        %1854 = vmatpush1.bf16.msra.mxu0 0
        %1855 = vmatprep.subr.bf16.mxu0 0
        %1856 = vmatpush1.bf16.msra.mxu0 0
        %1857 = vmatprep.subr.bf16.mxu0 0
        %1858 = vmatpush1.bf16.msra.mxu0 0
        %1859 = vmatprep.subr.bf16.mxu0 0
        %1860 = vmatpush1.bf16.msra.mxu0 0
        %1861 = vmatprep.subr.bf16.mxu0 0
        %1862 = vmatpush1.bf16.msra.mxu0 0
        %1863 = vmatprep.subr.bf16.mxu0 0
        %1864 = vmatpush1.bf16.msra.mxu0 0
        %1865 = vmatprep.subr.bf16.mxu0 0
        %1866 = vmatpush1.bf16.msra.mxu0 0
        %1867 = vmatprep.subr.bf16.mxu0 0
        %1868 = vmatpush1.bf16.msra.mxu0 0
        %1869 = vmatprep.subr.bf16.mxu0 0
        %1870 = vmatpush1.bf16.msra.mxu0 0
        %1871 = vmatprep.subr.bf16.mxu0 0
        %1872 = vmatpush1.bf16.msra.mxu0 0
        %1873 = vmatprep.mubr.bf16.mxu0 0
        %1874 = vmatmul.mubr.bf16.gmra.mrb[0].mxu0 %v1839
        %v1875 = vpop.f32.mrb[0].mxu0
        %v1876 = vadd.f32 %v535, %v1875
        %v1877 = vpop.f32.mrb[0].mxu0
        %v1878 = vpop.f32.mrb[0].mxu0
        %v1879 = vpop.f32.mrb[0].mxu0
        %1880 = vdwg.mxu0
        %v1881 = vxor.u32 %v1876, 2147483648
        %v1882 = vmul.f32 %v1881, 1.442695
        %v1883 = vpow.pop %v1882
        %v1884 = vadd.f32 %v1883, 1.0
        %v1885 = vrcp.pop %v1884
        %v1886 = vmul.f32 1.0, %v1885
        %v1887 = vtanh.pop %v1876
        %v1888 = vmul.f32 %v1886, %v1664
        %1890 = vrot.lane.b32.xlu0 %v1887, 64
        %v1891 = vpop.permute.xlu0 %1890
        %v1893 = vmul.f32 %v1886, %v1891
        %1895 = vrot.lane.b32.xlu0 %v1893, 32
        %v1896 = vpop.permute.xlu0 %1895
        %v1898 = vadd.f32 %v1888, %v1896
        %v1899 = vtanh.pop %v1898
        %1901 = vrot.lane.b32.xlu0 %v1899, 64
        %v1902 = vpop.permute.xlu0 %1901
        %v1904 = vmul.f32 %v1886, %v1902
        %1906 = vrot.lane.b32.xlu0 %v1904, 32
        %v1907 = vpop.permute.xlu0 %1906
        %1910 = vrot.lane.b32.xlu0 %v1747, 64
        %v1911 = vpop.permute.xlu0 %1910
        %v1913 = vsel %vm429, %v1907, %v1911
        %v1914 = vpack.c.bf16 %v1913, %v1913
        %v1916 = vsel %vm650, %v1914, 0
        %1918 = vmatprep.subr.bf16.mxu0 0
        %1919 = vmatpush1.bf16.msra.mxu0 %v740
        %1920 = vmatprep.subr.bf16.mxu0 0
        %1921 = vmatpush1.bf16.msra.mxu0 %v741
        %1922 = vmatprep.subr.bf16.mxu0 0
        %1923 = vmatpush1.bf16.msra.mxu0 %v742
        %1924 = vmatprep.subr.bf16.mxu0 0
        %1925 = vmatpush1.bf16.msra.mxu0 %v743
        %1926 = vmatprep.subr.bf16.mxu0 0
        %1927 = vmatpush1.bf16.msra.mxu0 0
        %1928 = vmatprep.subr.bf16.mxu0 0
        %1929 = vmatpush1.bf16.msra.mxu0 0
        %1930 = vmatprep.subr.bf16.mxu0 0
        %1931 = vmatpush1.bf16.msra.mxu0 0
        %1932 = vmatprep.subr.bf16.mxu0 0
        %1933 = vmatpush1.bf16.msra.mxu0 0
        %1934 = vmatprep.subr.bf16.mxu0 0
        %1935 = vmatpush1.bf16.msra.mxu0 0
        %1936 = vmatprep.subr.bf16.mxu0 0
        %1937 = vmatpush1.bf16.msra.mxu0 0
        %1938 = vmatprep.subr.bf16.mxu0 0
        %1939 = vmatpush1.bf16.msra.mxu0 0
        %1940 = vmatprep.subr.bf16.mxu0 0
        %1941 = vmatpush1.bf16.msra.mxu0 0
        %1942 = vmatprep.subr.bf16.mxu0 0
        %1943 = vmatpush1.bf16.msra.mxu0 0
        %1944 = vmatprep.subr.bf16.mxu0 0
        %1945 = vmatpush1.bf16.msra.mxu0 0
        %1946 = vmatprep.subr.bf16.mxu0 0
        %1947 = vmatpush1.bf16.msra.mxu0 0
        %1948 = vmatprep.subr.bf16.mxu0 0
        %1949 = vmatpush1.bf16.msra.mxu0 0
        %1950 = vmatprep.mubr.bf16.mxu0 0
        %1951 = vmatmul.mubr.bf16.gmra.mrb[0].mxu0 %v1916
        %v1952 = vpop.f32.mrb[0].mxu0
        %v1953 = vadd.f32 %v539, %v1952
        %v1954 = vpop.f32.mrb[0].mxu0
        %v1955 = vpop.f32.mrb[0].mxu0
        %v1956 = vpop.f32.mrb[0].mxu0
        %1957 = vdwg.mxu0
        %v1958 = vxor.u32 %v1953, 2147483648
        %v1959 = vmul.f32 %v1958, 1.442695
        %v1960 = vpow.pop %v1959
        %v1961 = vadd.f32 %v1960, 1.0
        %v1962 = vrcp.pop %v1961
        %v1963 = vmul.f32 1.0, %v1962
        %v1964 = vtanh.pop %v1953
        %v1965 = vmul.f32 %v1963, %v1741
        %1967 = vrot.lane.b32.xlu0 %v1964, 64
        %v1968 = vpop.permute.xlu0 %1967
        %v1970 = vmul.f32 %v1963, %v1968
        %1972 = vrot.lane.b32.xlu0 %v1970, 32
        %v1973 = vpop.permute.xlu0 %1972
        %v1975 = vadd.f32 %v1965, %v1973
        %v1976 = vtanh.pop %v1975
        %1978 = vrot.lane.b32.xlu0 %v1976, 64
        %v1979 = vpop.permute.xlu0 %1978
        %v1981 = vmul.f32 %v1963, %v1979
        %v1982 = vpack.c.bf16 %v1825, %v1825
        %v1984 = vrot.slane %v1982, 1
        %1985 = vrot.lane.b32.xlu0 %v1984, 32
        %v1986 = vpop.permute.xlu0 %1985
        %v1988 = vsel %vm429, %v1986, 0
        %1990 = vmatprep.subr.bf16.mxu0 0
        %1991 = vmatpush1.bf16.msra.mxu0 %v548
        %1992 = vmatprep.subr.bf16.mxu0 0
        %1993 = vmatpush1.bf16.msra.mxu0 %v549
        %1994 = vmatprep.subr.bf16.mxu0 0
        %1995 = vmatpush1.bf16.msra.mxu0 0
        %1996 = vmatprep.subr.bf16.mxu0 0
        %1997 = vmatpush1.bf16.msra.mxu0 0
        %1998 = vmatprep.subr.bf16.mxu0 0
        %1999 = vmatpush1.bf16.msra.mxu0 0
        %2000 = vmatprep.subr.bf16.mxu0 0
        %2001 = vmatpush1.bf16.msra.mxu0 0
        %2002 = vmatprep.subr.bf16.mxu0 0
        %2003 = vmatpush1.bf16.msra.mxu0 0
        %2004 = vmatprep.subr.bf16.mxu0 0
        %2005 = vmatpush1.bf16.msra.mxu0 0
        %2006 = vmatprep.subr.bf16.mxu0 0
        %2007 = vmatpush1.bf16.msra.mxu0 0
        %2008 = vmatprep.subr.bf16.mxu0 0
        %2009 = vmatpush1.bf16.msra.mxu0 0
        %2010 = vmatprep.subr.bf16.mxu0 0
        %2011 = vmatpush1.bf16.msra.mxu0 0
        %2012 = vmatprep.subr.bf16.mxu0 0
        %2013 = vmatpush1.bf16.msra.mxu0 0
        %2014 = vmatprep.subr.bf16.mxu0 0
        %2015 = vmatpush1.bf16.msra.mxu0 0
        %2016 = vmatprep.subr.bf16.mxu0 0
        %2017 = vmatpush1.bf16.msra.mxu0 0
        %2018 = vmatprep.subr.bf16.mxu0 0
        %2019 = vmatpush1.bf16.msra.mxu0 0
        %2020 = vmatprep.subr.bf16.mxu0 0
        %2021 = vmatpush1.bf16.msra.mxu0 0
        %2022 = vmatprep.mubr.bf16.mxu0 0
        %2023 = vmatmul.mubr.bf16.gmra.mrb[0].mxu0 %v1988
        %v2024 = vpop.f32.mrb[0].mxu0
        %v2025 = vadd.f32 0.0, %v2024
        %v2026 = vpop.f32.mrb[0].mxu0
        %v2027 = vpop.f32.mrb[0].mxu0
        %v2028 = vpop.f32.mrb[0].mxu0
        %2029 = vdwg.mxu0
        %v2031 = vrot.slane %v2025, 4
        %v2033 = vadd.f32 %v508, %v2031
        %v2034 = vxor.u32 %v2033, 2147483648
        %v2035 = vmul.f32 %v2034, 1.442695
        %v2036 = vpow.pop %v2035
        %v2037 = vadd.f32 %v2036, 1.0
        %v2038 = vrcp.pop %v2037
        %v2039 = vmul.f32 1.0, %v2038
        %v2040 = vtanh.pop %v2033
        %v2042 = vrot.slane %v1819, 6
        %v2044 = vmul.f32 %v2039, %v2042
        %2046 = vrot.lane.b32.xlu0 %v2040, 64
        %v2047 = vpop.permute.xlu0 %2046
        %v2049 = vmul.f32 %v2039, %v2047
        %2051 = vrot.lane.b32.xlu0 %v2049, 32
        %v2052 = vpop.permute.xlu0 %2051
        %v2054 = vadd.f32 %v2044, %v2052
        %v2055 = vtanh.pop %v2054
        %2057 = vrot.lane.b32.xlu0 %v2055, 64
        %v2058 = vpop.permute.xlu0 %2057
        %v2060 = vmul.f32 %v2039, %v2058
        %2062 = vrot.lane.b32.xlu0 %v2060, 32
        %v2063 = vpop.permute.xlu0 %2062
        %v2065 = vrot.slane %v1904, 4
        %2066 = vrot.lane.b32.xlu0 %v2065, 64
        %v2067 = vpop.permute.xlu0 %2066
        %v2069 = vsel %vm429, %v2063, %v2067
        %v2070 = vpack.c.bf16 %v2069, %v2069
        %v2072 = vrot.slane %v2070, 2
        %v2074 = vsel %vm650, %v2072, 0
        %2076 = vmatprep.subr.bf16.mxu0 0
        %2077 = vmatpush1.bf16.msra.mxu0 %v642
        %2078 = vmatprep.subr.bf16.mxu0 0
        %2079 = vmatpush1.bf16.msra.mxu0 %v643
        %2080 = vmatprep.subr.bf16.mxu0 0
        %2081 = vmatpush1.bf16.msra.mxu0 %v644
        %2082 = vmatprep.subr.bf16.mxu0 0
        %2083 = vmatpush1.bf16.msra.mxu0 %v645
        %2084 = vmatprep.subr.bf16.mxu0 0
        %2085 = vmatpush1.bf16.msra.mxu0 0
        %2086 = vmatprep.subr.bf16.mxu0 0
        %2087 = vmatpush1.bf16.msra.mxu0 0
        %2088 = vmatprep.subr.bf16.mxu0 0
        %2089 = vmatpush1.bf16.msra.mxu0 0
        %2090 = vmatprep.subr.bf16.mxu0 0
        %2091 = vmatpush1.bf16.msra.mxu0 0
        %2092 = vmatprep.subr.bf16.mxu0 0
        %2093 = vmatpush1.bf16.msra.mxu0 0
        %2094 = vmatprep.subr.bf16.mxu0 0
        %2095 = vmatpush1.bf16.msra.mxu0 0
        %2096 = vmatprep.subr.bf16.mxu0 0
        %2097 = vmatpush1.bf16.msra.mxu0 0
        %2098 = vmatprep.subr.bf16.mxu0 0
        %2099 = vmatpush1.bf16.msra.mxu0 0
        %2100 = vmatprep.subr.bf16.mxu0 0
        %2101 = vmatpush1.bf16.msra.mxu0 0
        %2102 = vmatprep.subr.bf16.mxu0 0
        %2103 = vmatpush1.bf16.msra.mxu0 0
        %2104 = vmatprep.subr.bf16.mxu0 0
        %2105 = vmatpush1.bf16.msra.mxu0 0
        %2106 = vmatprep.subr.bf16.mxu0 0
        %2107 = vmatpush1.bf16.msra.mxu0 0
        %2108 = vmatprep.mubr.bf16.mxu0 0
        %2109 = vmatmul.mubr.bf16.gmra.mrb[0].mxu0 %v2074
        %v2110 = vpop.f32.mrb[0].mxu0
        %v2111 = vadd.f32 %v535, %v2110
        %v2112 = vpop.f32.mrb[0].mxu0
        %v2113 = vpop.f32.mrb[0].mxu0
        %v2114 = vpop.f32.mrb[0].mxu0
        %2115 = vdwg.mxu0
        %v2116 = vxor.u32 %v2111, 2147483648
        %v2117 = vmul.f32 %v2116, 1.442695
        %v2118 = vpow.pop %v2117
        %v2119 = vadd.f32 %v2118, 1.0
        %v2120 = vrcp.pop %v2119
        %v2121 = vmul.f32 1.0, %v2120
        %v2122 = vtanh.pop %v2111
        %v2123 = vmul.f32 %v2121, %v1898
        %2125 = vrot.lane.b32.xlu0 %v2122, 64
        %v2126 = vpop.permute.xlu0 %2125
        %v2128 = vmul.f32 %v2121, %v2126
        %2130 = vrot.lane.b32.xlu0 %v2128, 32
        %v2131 = vpop.permute.xlu0 %2130
        %v2133 = vadd.f32 %v2123, %v2131
        %v2134 = vtanh.pop %v2133
        %2136 = vrot.lane.b32.xlu0 %v2134, 64
        %v2137 = vpop.permute.xlu0 %2136
        %v2139 = vmul.f32 %v2121, %v2137
        %2141 = vrot.lane.b32.xlu0 %v2139, 32
        %v2142 = vpop.permute.xlu0 %2141
        %2145 = vrot.lane.b32.xlu0 %v1981, 64
        %v2146 = vpop.permute.xlu0 %2145
        %v2148 = vsel %vm429, %v2142, %v2146
        %v2149 = vpack.c.bf16 %v2148, %v2148
        %v2151 = vsel %vm650, %v2149, 0
        %2153 = vmatprep.subr.bf16.mxu0 0
        %2154 = vmatpush1.bf16.msra.mxu0 %v740
        %2155 = vmatprep.subr.bf16.mxu0 0
        %2156 = vmatpush1.bf16.msra.mxu0 %v741
        %2157 = vmatprep.subr.bf16.mxu0 0
        %2158 = vmatpush1.bf16.msra.mxu0 %v742
        %2159 = vmatprep.subr.bf16.mxu0 0
        %2160 = vmatpush1.bf16.msra.mxu0 %v743
        %2161 = vmatprep.subr.bf16.mxu0 0
        %2162 = vmatpush1.bf16.msra.mxu0 0
        %2163 = vmatprep.subr.bf16.mxu0 0
        %2164 = vmatpush1.bf16.msra.mxu0 0
        %2165 = vmatprep.subr.bf16.mxu0 0
        %2166 = vmatpush1.bf16.msra.mxu0 0
        %2167 = vmatprep.subr.bf16.mxu0 0
        %2168 = vmatpush1.bf16.msra.mxu0 0
        %2169 = vmatprep.subr.bf16.mxu0 0
        %2170 = vmatpush1.bf16.msra.mxu0 0
        %2171 = vmatprep.subr.bf16.mxu0 0
        %2172 = vmatpush1.bf16.msra.mxu0 0
        %2173 = vmatprep.subr.bf16.mxu0 0
        %2174 = vmatpush1.bf16.msra.mxu0 0
        %2175 = vmatprep.subr.bf16.mxu0 0
        %2176 = vmatpush1.bf16.msra.mxu0 0
        %2177 = vmatprep.subr.bf16.mxu0 0
        %2178 = vmatpush1.bf16.msra.mxu0 0
        %2179 = vmatprep.subr.bf16.mxu0 0
        %2180 = vmatpush1.bf16.msra.mxu0 0
        %2181 = vmatprep.subr.bf16.mxu0 0
        %2182 = vmatpush1.bf16.msra.mxu0 0
        %2183 = vmatprep.subr.bf16.mxu0 0
        %2184 = vmatpush1.bf16.msra.mxu0 0
        %2185 = vmatprep.mubr.bf16.mxu0 0
        %2186 = vmatmul.mubr.bf16.gmra.mrb[0].mxu0 %v2151
        %v2187 = vpop.f32.mrb[0].mxu0
        %v2188 = vadd.f32 %v539, %v2187
        %v2189 = vpop.f32.mrb[0].mxu0
        %v2190 = vpop.f32.mrb[0].mxu0
        %v2191 = vpop.f32.mrb[0].mxu0
        %2192 = vdwg.mxu0
        %v2193 = vxor.u32 %v2188, 2147483648
        %v2194 = vmul.f32 %v2193, 1.442695
        %v2195 = vpow.pop %v2194
        %v2196 = vadd.f32 %v2195, 1.0
        %v2197 = vrcp.pop %v2196
        %v2198 = vmul.f32 1.0, %v2197
        %v2199 = vtanh.pop %v2188
        %v2200 = vmul.f32 %v2198, %v1975
        %2202 = vrot.lane.b32.xlu0 %v2199, 64
        %v2203 = vpop.permute.xlu0 %2202
        %v2205 = vmul.f32 %v2198, %v2203
        %2207 = vrot.lane.b32.xlu0 %v2205, 32
        %v2208 = vpop.permute.xlu0 %2207
        %v2210 = vadd.f32 %v2200, %v2208
        %v2211 = vtanh.pop %v2210
        %2213 = vrot.lane.b32.xlu0 %v2211, 64
        %v2214 = vpop.permute.xlu0 %2213
        %v2216 = vmul.f32 %v2198, %v2214
        %v2217 = vpack.c.bf16 %v2060, %v2060
        %v2219 = vrot.slane %v2217, 2
        %2220 = vrot.lane.b32.xlu0 %v2219, 32
        %v2221 = vpop.permute.xlu0 %2220
        %v2223 = vsel %vm429, %v2221, 0
        %2225 = vmatprep.subr.bf16.mxu0 0
        %2226 = vmatpush1.bf16.msra.mxu0 %v548
        %2227 = vmatprep.subr.bf16.mxu0 0
        %2228 = vmatpush1.bf16.msra.mxu0 %v549
        %2229 = vmatprep.subr.bf16.mxu0 0
        %2230 = vmatpush1.bf16.msra.mxu0 0
        %2231 = vmatprep.subr.bf16.mxu0 0
        %2232 = vmatpush1.bf16.msra.mxu0 0
        %2233 = vmatprep.subr.bf16.mxu0 0
        %2234 = vmatpush1.bf16.msra.mxu0 0
        %2235 = vmatprep.subr.bf16.mxu0 0
        %2236 = vmatpush1.bf16.msra.mxu0 0
        %2237 = vmatprep.subr.bf16.mxu0 0
        %2238 = vmatpush1.bf16.msra.mxu0 0
        %2239 = vmatprep.subr.bf16.mxu0 0
        %2240 = vmatpush1.bf16.msra.mxu0 0
        %2241 = vmatprep.subr.bf16.mxu0 0
        %2242 = vmatpush1.bf16.msra.mxu0 0
        %2243 = vmatprep.subr.bf16.mxu0 0
        %2244 = vmatpush1.bf16.msra.mxu0 0
        %2245 = vmatprep.subr.bf16.mxu0 0
        %2246 = vmatpush1.bf16.msra.mxu0 0
        %2247 = vmatprep.subr.bf16.mxu0 0
        %2248 = vmatpush1.bf16.msra.mxu0 0
        %2249 = vmatprep.subr.bf16.mxu0 0
        %2250 = vmatpush1.bf16.msra.mxu0 0
        %2251 = vmatprep.subr.bf16.mxu0 0
        %2252 = vmatpush1.bf16.msra.mxu0 0
        %2253 = vmatprep.subr.bf16.mxu0 0
        %2254 = vmatpush1.bf16.msra.mxu0 0
        %2255 = vmatprep.subr.bf16.mxu0 0
        %2256 = vmatpush1.bf16.msra.mxu0 0
        %2257 = vmatprep.mubr.bf16.mxu0 0
        %2258 = vmatmul.mubr.bf16.gmra.mrb[0].mxu0 %v2223
        %v2259 = vpop.f32.mrb[0].mxu0
        %v2260 = vadd.f32 0.0, %v2259
        %v2261 = vpop.f32.mrb[0].mxu0
        %v2262 = vpop.f32.mrb[0].mxu0
        %v2263 = vpop.f32.mrb[0].mxu0
        %2264 = vdwg.mxu0
        %v2266 = vrot.slane %v2260, 2
        %v2268 = vadd.f32 %v508, %v2266
        %v2269 = vxor.u32 %v2268, 2147483648
        %v2270 = vmul.f32 %v2269, 1.442695
        %v2271 = vpow.pop %v2270
        %v2272 = vadd.f32 %v2271, 1.0
        %v2273 = vrcp.pop %v2272
        %v2274 = vmul.f32 1.0, %v2273
        %v2275 = vtanh.pop %v2268
        %v2277 = vrot.slane %v2054, 6
        %v2279 = vmul.f32 %v2274, %v2277
        %2281 = vrot.lane.b32.xlu0 %v2275, 64
        %v2282 = vpop.permute.xlu0 %2281
        %v2284 = vmul.f32 %v2274, %v2282
        %2286 = vrot.lane.b32.xlu0 %v2284, 32
        %v2287 = vpop.permute.xlu0 %2286
        %v2289 = vadd.f32 %v2279, %v2287
        %v2290 = vtanh.pop %v2289
        %2292 = vrot.lane.b32.xlu0 %v2290, 64
        %v2293 = vpop.permute.xlu0 %2292
        %v2295 = vmul.f32 %v2274, %v2293
        %2297 = vrot.lane.b32.xlu0 %v2295, 32
        %v2298 = vpop.permute.xlu0 %2297
        %v2300 = vrot.slane %v2139, 2
        %2301 = vrot.lane.b32.xlu0 %v2300, 64
        %v2302 = vpop.permute.xlu0 %2301
        %v2304 = vsel %vm429, %v2298, %v2302
        %v2305 = vpack.c.bf16 %v2304, %v2304
        %v2307 = vrot.slane %v2305, 3
        %v2309 = vsel %vm650, %v2307, 0
        %2311 = vmatprep.subr.bf16.mxu0 0
        %2312 = vmatpush1.bf16.msra.mxu0 %v642
        %2313 = vmatprep.subr.bf16.mxu0 0
        %2314 = vmatpush1.bf16.msra.mxu0 %v643
        %2315 = vmatprep.subr.bf16.mxu0 0
        %2316 = vmatpush1.bf16.msra.mxu0 %v644
        %2317 = vmatprep.subr.bf16.mxu0 0
        %2318 = vmatpush1.bf16.msra.mxu0 %v645
        %2319 = vmatprep.subr.bf16.mxu0 0
        %2320 = vmatpush1.bf16.msra.mxu0 0
        %2321 = vmatprep.subr.bf16.mxu0 0
        %2322 = vmatpush1.bf16.msra.mxu0 0
        %2323 = vmatprep.subr.bf16.mxu0 0
        %2324 = vmatpush1.bf16.msra.mxu0 0
        %2325 = vmatprep.subr.bf16.mxu0 0
        %2326 = vmatpush1.bf16.msra.mxu0 0
        %2327 = vmatprep.subr.bf16.mxu0 0
        %2328 = vmatpush1.bf16.msra.mxu0 0
        %2329 = vmatprep.subr.bf16.mxu0 0
        %2330 = vmatpush1.bf16.msra.mxu0 0
        %2331 = vmatprep.subr.bf16.mxu0 0
        %2332 = vmatpush1.bf16.msra.mxu0 0
        %2333 = vmatprep.subr.bf16.mxu0 0
        %2334 = vmatpush1.bf16.msra.mxu0 0
        %2335 = vmatprep.subr.bf16.mxu0 0
        %2336 = vmatpush1.bf16.msra.mxu0 0
        %2337 = vmatprep.subr.bf16.mxu0 0
        %2338 = vmatpush1.bf16.msra.mxu0 0
        %2339 = vmatprep.subr.bf16.mxu0 0
        %2340 = vmatpush1.bf16.msra.mxu0 0
        %2341 = vmatprep.subr.bf16.mxu0 0
        %2342 = vmatpush1.bf16.msra.mxu0 0
        %2343 = vmatprep.mubr.bf16.mxu0 0
        %2344 = vmatmul.mubr.bf16.gmra.mrb[0].mxu0 %v2309
        %v2345 = vpop.f32.mrb[0].mxu0
        %v2346 = vadd.f32 %v535, %v2345
        %v2347 = vpop.f32.mrb[0].mxu0
        %v2348 = vpop.f32.mrb[0].mxu0
        %v2349 = vpop.f32.mrb[0].mxu0
        %2350 = vdwg.mxu0
        %v2351 = vxor.u32 %v2346, 2147483648
        %v2352 = vmul.f32 %v2351, 1.442695
        %v2353 = vpow.pop %v2352
        %v2354 = vadd.f32 %v2353, 1.0
        %v2355 = vrcp.pop %v2354
        %v2356 = vmul.f32 1.0, %v2355
        %v2357 = vtanh.pop %v2346
        %v2358 = vmul.f32 %v2356, %v2133
        %2360 = vrot.lane.b32.xlu0 %v2357, 64
        %v2361 = vpop.permute.xlu0 %2360
        %v2363 = vmul.f32 %v2356, %v2361
        %2365 = vrot.lane.b32.xlu0 %v2363, 32
        %v2366 = vpop.permute.xlu0 %2365
        %v2368 = vadd.f32 %v2358, %v2366
        %v2369 = vtanh.pop %v2368
        %2371 = vrot.lane.b32.xlu0 %v2369, 64
        %v2372 = vpop.permute.xlu0 %2371
        %v2374 = vmul.f32 %v2356, %v2372
        %2376 = vrot.lane.b32.xlu0 %v2374, 32
        %v2377 = vpop.permute.xlu0 %2376
        %2380 = vrot.lane.b32.xlu0 %v2216, 64
        %v2381 = vpop.permute.xlu0 %2380
        %v2383 = vsel %vm429, %v2377, %v2381
        %v2384 = vpack.c.bf16 %v2383, %v2383
        %v2386 = vsel %vm650, %v2384, 0
        %2388 = vmatprep.subr.bf16.mxu0 0
        %2389 = vmatpush1.bf16.msra.mxu0 %v740
        %2390 = vmatprep.subr.bf16.mxu0 0
        %2391 = vmatpush1.bf16.msra.mxu0 %v741
        %2392 = vmatprep.subr.bf16.mxu0 0
        %2393 = vmatpush1.bf16.msra.mxu0 %v742
        %2394 = vmatprep.subr.bf16.mxu0 0
        %2395 = vmatpush1.bf16.msra.mxu0 %v743
        %2396 = vmatprep.subr.bf16.mxu0 0
        %2397 = vmatpush1.bf16.msra.mxu0 0
        %2398 = vmatprep.subr.bf16.mxu0 0
        %2399 = vmatpush1.bf16.msra.mxu0 0
        %2400 = vmatprep.subr.bf16.mxu0 0
        %2401 = vmatpush1.bf16.msra.mxu0 0
        %2402 = vmatprep.subr.bf16.mxu0 0
        %2403 = vmatpush1.bf16.msra.mxu0 0
        %2404 = vmatprep.subr.bf16.mxu0 0
        %2405 = vmatpush1.bf16.msra.mxu0 0
        %2406 = vmatprep.subr.bf16.mxu0 0
        %2407 = vmatpush1.bf16.msra.mxu0 0
        %2408 = vmatprep.subr.bf16.mxu0 0
        %2409 = vmatpush1.bf16.msra.mxu0 0
        %2410 = vmatprep.subr.bf16.mxu0 0
        %2411 = vmatpush1.bf16.msra.mxu0 0
        %2412 = vmatprep.subr.bf16.mxu0 0
        %2413 = vmatpush1.bf16.msra.mxu0 0
        %2414 = vmatprep.subr.bf16.mxu0 0
        %2415 = vmatpush1.bf16.msra.mxu0 0
        %2416 = vmatprep.subr.bf16.mxu0 0
        %2417 = vmatpush1.bf16.msra.mxu0 0
        %2418 = vmatprep.subr.bf16.mxu0 0
        %2419 = vmatpush1.bf16.msra.mxu0 0
        %2420 = vmatprep.mubr.bf16.mxu0 0
        %2421 = vmatmul.mubr.bf16.gmra.mrb[0].mxu0 %v2386
        %v2422 = vpop.f32.mrb[0].mxu0
        %v2423 = vadd.f32 %v539, %v2422
        %v2424 = vpop.f32.mrb[0].mxu0
        %v2425 = vpop.f32.mrb[0].mxu0
        %v2426 = vpop.f32.mrb[0].mxu0
        %2427 = vdwg.mxu0
        %v2428 = vxor.u32 %v2423, 2147483648
        %v2429 = vmul.f32 %v2428, 1.442695
        %v2430 = vpow.pop %v2429
        %v2431 = vadd.f32 %v2430, 1.0
        %v2432 = vrcp.pop %v2431
        %v2433 = vmul.f32 1.0, %v2432
        %v2434 = vtanh.pop %v2423
        %v2435 = vmul.f32 %v2433, %v2210
        %2437 = vrot.lane.b32.xlu0 %v2434, 64
        %v2438 = vpop.permute.xlu0 %2437
        %v2440 = vmul.f32 %v2433, %v2438
        %2442 = vrot.lane.b32.xlu0 %v2440, 32
        %v2443 = vpop.permute.xlu0 %2442
        %v2445 = vadd.f32 %v2435, %v2443
        %v2446 = vtanh.pop %v2445
        %2448 = vrot.lane.b32.xlu0 %v2446, 64
        %v2449 = vpop.permute.xlu0 %2448
        %v2451 = vmul.f32 %v2433, %v2449
        %v2452 = vrot.slane %v1048, 6
        %v2454 = vrot.slane %v1283, 4
        %v2456 = vrot.slane %v1518, 2
        %v2458 = vrot.slane %v1981, 6
        %v2460 = vrot.slane %v2216, 4
        %v2463 = vrot.slane %v2451, 2
        %vm2465 = vcmask 1041408
        %v2466 = vsel %vm2465, %v814, %v2452
        %vm2467 = vcmask 1043456
        %v2468 = vsel %vm2467, %v2466, %v2454
        %vm2469 = vcmask 1045504
        %v2470 = vsel %vm2469, %v2468, %v2456
        %v2471 = vsel %vm2465, %v1747, %v2458
        %v2472 = vsel %vm2467, %v2471, %v2460
        %v2473 = vsel %vm2469, %v2472, %v2463
        %v2474 = vld [vmem:[%s408] sm:$0xff]
        %v2475 = vld [vmem:[%s408 + $0x8] sm:$0xff]
        %v2476 = vld [vmem:[%s408 + $0x10] sm:$0xff]
        %v2477 = vld [vmem:[%s408 + $0x18] sm:$0xff]
        %v2478 = vld [vmem:[%s411] sm:$0x1]
        %v2480 = vlaneseq
        %v2481 = vshrl.u32 %v2480, 7
        %v2482 = vsub.s32 0, %v2481
        %v2483 = vrot.slane %v2478, %v2482
        %2487 = vrot.lane.b32.xlu0 %v2470, 32
        %v2488 = vpop.permute.xlu0 %2487
        %2489 = vrot.lane.b32.xlu0 %v2473, 32
        %v2490 = vpop.permute.xlu0 %2489
        %v2491 = vsel %vm429, %v2488, 0
        %v2493 = vsel %vm429, %v2490, 0
        %2495 = vmatprep.subr.mxu0 0.0
        %2496 = vmatpush1.msra.mxu0 %v2474
        %2497 = vmatprep.subr.mxu0 0.0
        %2498 = vmatpush1.msra.mxu0 %v2475
        %2499 = vmatprep.subr.mxu0 0.0
        %2500 = vmatpush1.msra.mxu0 %v2476
        %2501 = vmatprep.subr.mxu0 0.0
        %2502 = vmatpush1.msra.mxu0 %v2477
        %2503 = vmatprep.subr.mxu0 0.0
        %2504 = vmatpush1.msra.mxu0 0.0
        %2505 = vmatprep.subr.mxu0 0.0
        %2506 = vmatpush1.msra.mxu0 0.0
        %2507 = vmatprep.subr.mxu0 0.0
        %2508 = vmatpush1.msra.mxu0 0.0
        %2509 = vmatprep.subr.mxu0 0.0
        %2510 = vmatpush1.msra.mxu0 0.0
        %2511 = vmatprep.subr.mxu0 0.0
        %2512 = vmatpush1.msra.mxu0 0.0
        %2513 = vmatprep.subr.mxu0 0.0
        %2514 = vmatpush1.msra.mxu0 0.0
        %2515 = vmatprep.subr.mxu0 0.0
        %2516 = vmatpush1.msra.mxu0 0.0
        %2517 = vmatprep.subr.mxu0 0.0
        %2518 = vmatpush1.msra.mxu0 0.0
        %2519 = vmatprep.subr.mxu0 0.0
        %2520 = vmatpush1.msra.mxu0 0.0
        %2521 = vmatprep.subr.mxu0 0.0
        %2522 = vmatpush1.msra.mxu0 0.0
        %2523 = vmatprep.subr.mxu0 0.0
        %2524 = vmatpush1.msra.mxu0 0.0
        %2525 = vmatprep.subr.mxu0 0.0
        %2526 = vmatpush1.msra.mxu0 0.0
        %2527 = vmatprep.subr.mxu0 0.0
        %2528 = vmatpush1.msra.mxu0 0.0
        %2529 = vmatprep.subr.mxu0 0.0
        %2530 = vmatpush1.msra.mxu0 0.0
        %2531 = vmatprep.subr.mxu0 0.0
        %2532 = vmatpush1.msra.mxu0 0.0
        %2533 = vmatprep.subr.mxu0 0.0
        %2534 = vmatpush1.msra.mxu0 0.0
        %2535 = vmatprep.subr.mxu0 0.0
        %2536 = vmatpush1.msra.mxu0 0.0
        %2537 = vmatprep.subr.mxu0 0.0
        %2538 = vmatpush1.msra.mxu0 0.0
        %2539 = vmatprep.subr.mxu0 0.0
        %2540 = vmatpush1.msra.mxu0 0.0
        %2541 = vmatprep.subr.mxu0 0.0
        %2542 = vmatpush1.msra.mxu0 0.0
        %2543 = vmatprep.subr.mxu0 0.0
        %2544 = vmatpush1.msra.mxu0 0.0
        %2545 = vmatprep.subr.mxu0 0.0
        %2546 = vmatpush1.msra.mxu0 0.0
        %2547 = vmatprep.subr.mxu0 0.0
        %2548 = vmatpush1.msra.mxu0 0.0
        %2549 = vmatprep.subr.mxu0 0.0
        %2550 = vmatpush1.msra.mxu0 0.0
        %2551 = vmatprep.subr.mxu0 0.0
        %2552 = vmatpush1.msra.mxu0 0.0
        %2553 = vmatprep.subr.mxu0 0.0
        %2554 = vmatpush1.msra.mxu0 0.0
        %2555 = vmatprep.subr.mxu0 0.0
        %2556 = vmatpush1.msra.mxu0 0.0
        %2557 = vmatprep.subr.mxu0 0.0
        %2558 = vmatpush1.msra.mxu0 0.0
        %2559 = vmatprep.mubr.f32.mxu0 0.0
        %2560 = vmatmul.mubr.f32.gmra.mrb[0].mxu0 %v2491
        %v2561 = vpop.f32.mrb[0].mxu0
        %v2562 = vadd.f32 %v2483, %v2561
        %v2563 = vpop.f32.mrb[0].mxu0
        %2564 = vmatprep.mubr.f32.mxu0 0.0
        %2565 = vmatmul.mubr.f32.gmra.mrb[0].mxu0 %v2493
        %v2566 = vpop.f32.mrb[0].mxu0
        %v2567 = vadd.f32 %v2483, %v2566
        %v2568 = vpop.f32.mrb[0].mxu0
        %2569 = vdwg.mxu0
        %s2570 = sld [smem:[#allocation3 + %s28]]
        %p2571 = scmp.eq.s32.totalorder %s2570, 1
        %v2572 = vxor.u32 %v2562, 2147483648
        %v2573 = vxor.u32 %v2567, 2147483648
        %v2574 = vmul.f32 %v2572, 1.442695
        %v2575 = vpow.pop %v2574
        %v2576 = vmul.f32 %v2573, 1.442695
        %v2577 = vpow.pop %v2576
        %v2578 = vadd.f32 %v2575, 1.0
        %v2579 = vadd.f32 %v2577, 1.0
        %v2580 = vrcp.pop %v2578
        %v2581 = vmul.f32 1.0, %v2580
        %v2582 = vrcp.pop %v2579
        %v2583 = vmul.f32 1.0, %v2582
        %v2584 = vmax.f32 %v2562, 0.0
        %v2585 = vmax.f32 %v2567, 0.0
        %s2586 = scalar_select %p2571, 1, 0
        %v2587 = vstv %s2586
        %vm2588 = vcmp.eq.s32.totalorder %v2587, 1
        %v2589 = vsel %vm2588, %v2581, %v2584
        %v2590 = vsel %vm2588, %v2583, %v2585
        %2591 = vst [vmem:[%s416] sm:$0xff] %v2589
        %2592 = vst [vmem:[%s416 + $0x8] sm:$0xff] %v2590
        %p2593 = scmp.lt.s32.totalorder %s28, 1
        %s2594 = scalar_select %p2593, %s28, 1
        %s2595 = smul.addr %s2594, 2
        %s2596 = smul.addr %s2595, 8
        %s2597 = scalar_lea.vmem %s8, %s2596
        // Predicated region
        $region53: #{pipeline.2} parent=47 // pred_check
          %p2598 = pneg %p228
        $region54: #{pipeline.2} parent=47 // pred_check_branch
          %2600 = sbr.rel (%p2598) target = $region56
        $region55: #{pipeline.2} parent=47 // pred_region
          _
        $region56: #{pipeline.2} parent=47 // pred_fallthru
          _
      $region48: #{pipeline.2} parent=5 // pred_fallthru
        _
      %p2601 = scmp.le.s32.totalorder 2, %s23
      // Predicated region
      $region57: #{pipeline.2} parent=5 // pred_check
        %p2602 = pneg %p2601
      $region58: #{pipeline.2} parent=5 // pred_check_branch
        %2604 = sbr.rel (%p2602) target = $region60
      $region59: #{pipeline.2} parent=5 // pred_region
        %s2605 = ssub.s32 %s23, 2
        // Predicated region
        $region61: #{pipeline.2} parent=59 // pred_check
          %p2606 = pneg %p234
        $region62: #{pipeline.2} parent=59 // pred_check_branch
          %2608 = sbr.rel (%p2606) target = $region64
        $region63: #{pipeline.2} parent=59 // pred_region
          %p2609 = scmp.lt.s32.totalorder %s29, 1
          %s2610 = scalar_select %p2609, %s29, 1
          %s2611 = smul.addr %s2610, 2
          %s2612 = smul.addr %s2611, 8
          %s2613 = scalar_lea.vmem %s8, %s2612
        $region64: #{pipeline.2} parent=59 // pred_fallthru
          _
      $region60: #{pipeline.2} parent=5 // pred_fallthru
        _
    $region6: #{pipeline.2} parent=1 // loop_footer
      %s27 = sadd.s32 1, %s23
    $region7: #{pipeline.2} parent=1 // loop_footer_branch
      %22 = sbr.rel target = $region3
    $region8: #{pipeline.2} parent=1 // loop_exit
      _
    %2614 = vsyncpa [#allocation5], 1
    %s2615 = scalar_lea.sflag [#allocation5], 1
    %2616 = vsyncpa %s2615, 1

</llo_original>
